<compile_context>
chip_gen: v6e
topology: v6e:2x2x1
jax: 0.10.0
libtpu: 0.0.40
codegen_flags: <defaults>
</compile_context>

<pallas_src>
import functools

import jax
import jax.numpy as jnp
from jax import lax
from jax.experimental import pallas as pl
from jax.experimental.pallas import tpu as pltpu


def _round_up(a, b):
    return (a + b - 1) // b * b


# ---------------------------------------------------------------------------
# Fused kernel: in-kernel im2col (8 tap matmuls) + instance-norm stats +
# in-place normalization + LeakyReLU on a VMEM-resident per-batch slab.
# ---------------------------------------------------------------------------
def _unet_down_kernel(xrow_ref, xhalo_ref, mask_ref, w_ref, o_ref,
                      slab_ref, sum_ref, ssq_ref, *,
                      tap_offsets, c8, inv_count, eps, neg_slope, normalize):
    si = pl.program_id(1)
    n_s = pl.num_programs(1)
    t_rows = xrow_ref.shape[1]
    halo_rows = xhalo_ref.shape[1]
    c_out = o_ref.shape[2]

    if normalize:
        @pl.when(si == 0)
        def _():
            sum_ref[...] = jnp.zeros_like(sum_ref)
            ssq_ref[...] = jnp.zeros_like(ssq_ref)

    # In-kernel im2col: build the contiguous (t_rows + halo_rows, C8) slab.
    slab_ref[0:t_rows, :] = xrow_ref[0]
    slab_ref[t_rows:t_rows + halo_rows, :] = xhalo_ref[0]

    # 8 tap matmuls:  y[f, :] = sum_s  xb[f + off_s, :] @ W_s   (f32 accumulate)
    acc = jnp.zeros((t_rows, c_out), jnp.float32)
    for s, off in enumerate(tap_offsets):
        acc += jnp.dot(slab_ref[off:off + t_rows, :],
                       w_ref[s * c8:(s + 1) * c8, :],
                       preferred_element_type=jnp.float32)

    row0 = pl.multiple_of(si * t_rows, 8)

    if normalize:
        m = mask_ref[...]                                  # (t_rows, 1) validity
        am = acc * m
        sum_ref[...] += jnp.sum(am, axis=0, keepdims=True)          # (1, C_out)
        ssq_ref[...] += jnp.sum(acc * am, axis=0, keepdims=True)
        o_ref[0, pl.ds(row0, t_rows), :] = acc

        @pl.when(si == n_s - 1)
        def _():
            mean = sum_ref[...] * inv_count
            var = jnp.maximum(ssq_ref[...] * inv_count - mean * mean, 0.0)
            inv_std = lax.rsqrt(var + eps)
            y = (o_ref[0] - mean) * inv_std
            o_ref[0] = jnp.where(y > 0, y, neg_slope * y)
    else:
        y = acc
        o_ref[0, pl.ds(row0, t_rows), :] = jnp.where(y > 0, y, neg_slope * y)


# ---------------------------------------------------------------------------
# Wrapper.
# ---------------------------------------------------------------------------
@functools.partial(jax.jit,
                   static_argnames=("normalize", "eps", "negative_slope",
                                    "row_tile"))
def unet_down(x, weight, *, normalize=True, eps=1e-5, negative_slope=0.2,
              row_tile=2048):
    """x: (N, C_in, D, H, W) f32, weight: (C_out, C_in, 4, 4, 4).
    Returns (N, C_out, D//2, H//2, W//2) f32.  Spatial dims must be even."""
    N, C_in, D, H, W = x.shape
    C_out = weight.shape[0]
    assert weight.shape == (C_out, C_in, 4, 4, 4)
    assert D % 2 == 0 and H % 2 == 0 and W % 2 == 0, "even spatial dims required"

    Do, Ho, Wo = D // 2, H // 2, W // 2
    Db, Hb, Wb = Do + 1, Ho + 1, Wo + 1          # block grid of the padded input
    C8 = 8 * C_in                                # channels x 2x2x2 parities
    K = 8 * C8                                   # = C_in * 4**3
    S = Do * Ho * Wo                             # valid output positions
    Sb = Db * Hb * Wb                            # over-computed block grid

    # --- space-to-depth of the padded input, channels-last, bf16 -------------
    xp = jnp.pad(x, ((0, 0), (0, 0), (1, 1), (1, 1), (1, 1)))
    xb = xp.reshape(N, C_in, Db, 2, Hb, 2, Wb, 2)
    xb = xb.transpose(0, 2, 4, 6, 1, 3, 5, 7)            # (N,Db,Hb,Wb,C,2,2,2)
    xb = xb.reshape(N, Sb, C8).astype(jnp.bfloat16)

    # --- row tiling: tR is a multiple of halo_pad so the halo stream has a
    #     legal block index ----------------------------------------------------
    halo = Hb * Wb + Wb + 1                      # largest tap offset
    halo_pad = _round_up(halo, 8)
    q = max(1, min(row_tile // halo_pad, -(-Sb // halo_pad)))
    tR = q * halo_pad
    n_s = -(-Sb // tR)
    Sb_pad = n_s * tR
    R_total = Sb_pad + tR                        # room for the last halo fetch
    xb = jnp.pad(xb, ((0, 0), (0, R_total - Sb), (0, 0)))

    # --- weights: (C_out, C_in, 4,4,4) -> (8 taps * C8, C_out), bf16 ----------
    w8 = weight.reshape(C_out, C_in, 2, 2, 2, 2, 2, 2)   # co,c,dd,pd,dh,ph,dw,pw
    w8 = w8.transpose(2, 4, 6, 1, 3, 5, 7, 0)            # dd,dh,dw,c,pd,ph,pw,co
    w8 = w8.reshape(K, C_out).astype(jnp.bfloat16)

    # --- validity mask over the block grid (feeds the statistics only) --------
    mask = jnp.zeros((Db, Hb, Wb), jnp.float32).at[:Do, :Ho, :Wo].set(1.0)
    mask = jnp.pad(mask.reshape(Sb, 1), ((0, Sb_pad - Sb), (0, 0)))

    tap_offsets = tuple(dd * Hb * Wb + dh * Wb + dw
                        for dd in (0, 1) for dh in (0, 1) for dw in (0, 1))

    # --- VMEM budgeting --------------------------------------------------------
    slab_bytes = Sb_pad * C_out * 4
    # TODO(synk): two-pass (non-resident-output) fallback for volumes whose
    # per-batch output slab does not fit in VMEM; not needed at these sizes.
    assert slab_bytes <= 24 * 1024 * 1024, "per-batch output slab too large"
    vmem_need = (2 * tR * C8 * 2 + 2 * halo_pad * C8 * 2 + 2 * tR * 4
                 + 2 * K * C_out * 2 + 2 * slab_bytes
                 + (tR + halo_pad) * C8 * 2 + 4 * C_out * 4)
    try:
        vmem_cap = pltpu.get_tpu_info().vmem_capacity_bytes
    except Exception:
        vmem_cap = 64 * 1024 * 1024
    vmem_limit = int(min(vmem_cap * 9 // 10,
                         max(32 * 1024 * 1024, vmem_need * 3 // 2)))

    kernel = functools.partial(
        _unet_down_kernel, tap_offsets=tap_offsets, c8=C8, inv_count=1.0 / S,
        eps=eps, neg_slope=negative_slope, normalize=normalize)

    cost = pl.CostEstimate(
        flops=2 * N * Sb_pad * K * C_out,
        transcendentals=N * C_out,
        bytes_accessed=int(N * (Sb_pad + n_s * halo_pad) * C8 * 2
                           + N * Sb_pad * C_out * 4 + K * C_out * 2))

    out = pl.pallas_call(
        kernel,
        out_shape=jax.ShapeDtypeStruct((N, Sb_pad, C_out), jnp.float32),
        grid_spec=pltpu.PrefetchScalarGridSpec(
            num_scalar_prefetch=0,
            grid=(N, n_s),
            in_specs=[
                pl.BlockSpec((1, tR, C8), lambda n, si: (n, si, 0)),
                pl.BlockSpec((1, halo_pad, C8),
                             lambda n, si: (n, (si + 1) * q, 0)),
                pl.BlockSpec((tR, 1), lambda n, si: (si, 0)),
                pl.BlockSpec((K, C_out), lambda n, si: (0, 0)),
            ],
            out_specs=pl.BlockSpec((1, Sb_pad, C_out), lambda n, si: (n, 0, 0)),
            scratch_shapes=[
                pltpu.VMEM((tR + halo_pad, C8), jnp.bfloat16),   # slab (im2col)
                pltpu.VMEM((1, C_out), jnp.float32),             # sum
                pltpu.VMEM((1, C_out), jnp.float32),             # sum of squares
            ]),
        compiler_params=pltpu.CompilerParams(
            dimension_semantics=("parallel", "arbitrary"),
            vmem_limit_bytes=vmem_limit),
        cost_estimate=cost,
    )(xb, xb, mask, w8)

    # Drop over-computed rows and return to NCDHW (one slice + transpose pass).
    out = out[:, :Sb, :].reshape(N, Db, Hb, Wb, C_out)[:, :Do, :Ho, :Wo, :]
    # TODO(synk): dropout > 0.0 (training-mode masking) is not implemented; the
    # module's default dropout=0.0 is the identity.
    return jnp.transpose(out, (0, 4, 1, 2, 3))


# ---------------------------------------------------------------------------
# Pure-JAX reference (bf16-rounded inputs, matching the kernel's MXU inputs).
# ---------------------------------------------------------------------------
def _reference(x, weight, *, eps=1e-5, negative_slope=0.2, normalize=True):
    xb = x.astype(jnp.bfloat16).astype(jnp.float32)
    wb = weight.astype(jnp.bfloat16).astype(jnp.float32)
    y = lax.conv_general_dilated(
        xb, wb, window_strides=(2, 2, 2), padding=((1, 1), (1, 1), (1, 1)),
        dimension_numbers=("NCDHW", "OIDHW", "NCDHW"),
        preferred_element_type=jnp.float32)
    if normalize:
        mean = jnp.mean(y, axis=(2, 3, 4), keepdims=True)
        var = jnp.mean((y - mean) ** 2, axis=(2, 3, 4), keepdims=True)
        y = (y - mean) * lax.rsqrt(var + eps)
    return jnp.where(y > 0, y, negative_slope * y)


if __name__ == "__main__":
    key = jax.random.PRNGKey(0)
    k_x, k_w = jax.random.split(key)

    N, C_in, C_out = 2, 4, 16
    D = H = W = 16                               # output 8x8x8 per sample
    x = jax.random.normal(k_x, (N, C_in, D, H, W), dtype=jnp.float32)
    weight = jax.random.normal(k_w, (C_out, C_in, 4, 4, 4),
                               dtype=jnp.float32) * 0.1

    ref = _reference(x, weight)

    # Single-tile and multi-tile spatial streaming (exercises resident-slab
    # accumulation of stats across several grid steps).
    for rt in (2048, 96):
        out = jax.block_until_ready(unet_down(x, weight, row_tile=rt))
        assert out.shape == (N, C_out, D // 2, H // 2, W // 2), out.shape
        err = float(jnp.max(jnp.abs(out - ref)))
        assert jnp.allclose(out, ref, atol=2e-3, rtol=2e-3), err

    # normalize=False path (conv -> LeakyReLU only, no statistics).
    out_nf = jax.block_until_ready(unet_down(x, weight, normalize=False))
    ref_nf = _reference(x, weight, normalize=False)
    err_nf = float(jnp.max(jnp.abs(out_nf - ref_nf)))
    assert jnp.allclose(out_nf, ref_nf, atol=2e-3, rtol=2e-3), err_nf

    print("KERNEL_OK")
</pallas_src>

<mosaic_0001>
module attributes {stable_mosaic.version = 11 : i64} {
  func.func @_unet_down_kernel(%arg0: i32, %arg1: i32, %arg2: memref<1x768x32xbf16, #tpu.memory_space<vmem>>, %arg3: memref<1x96x32xbf16, #tpu.memory_space<vmem>>, %arg4: memref<768x1xf32, #tpu.memory_space<vmem>>, %arg5: memref<256x16xbf16, #tpu.memory_space<vmem>>, %arg6: memref<1x768x16xf32, #tpu.memory_space<vmem>>, %arg7: memref<864x32xbf16, #tpu.memory_space<vmem>>, %arg8: memref<1x16xf32, #tpu.memory_space<vmem>>, %arg9: memref<1x16xf32, #tpu.memory_space<vmem>>) attributes {dimension_semantics = [#tpu.dimension_semantics<parallel>, #tpu.dimension_semantics<arbitrary>], iteration_bounds = array<i64: 2, 1>, scalar_prefetch = 0 : i64, scratch_operands = 3 : i64, tpu.core_type = #tpu.core_type<tc>, window_params = [{transform_indices = @transform_0, window_bounds = array<i64: 1, 768, 32>}, {transform_indices = @transform_1, window_bounds = array<i64: 1, 96, 32>}, {transform_indices = @transform_2, window_bounds = array<i64: 768, 1>}, {pipeline_mode = #tpu.pipeline_mode<synchronous>, transform_indices = @transform_3, window_bounds = array<i64: 256, 16>}, {transform_indices = @transform_4, window_bounds = array<i64: 1, 768, 16>}]} {
    %c0_i32 = arith.constant 0 : i32
    %0 = arith.cmpi eq, %arg1, %c0_i32 : i32
    %1 = arith.extui %0 : i1 to i32
    %c0_i32_0 = arith.constant 0 : i32
    %2 = arith.cmpi ne, %1, %c0_i32_0 : i32
    scf.if %2 {
      %cst_51 = arith.constant 0.000000e+00 : f32
      %65 = vector.broadcast %cst_51 : f32 to vector<1x16xf32>
      %c0_52 = arith.constant 0 : index
      %c0_53 = arith.constant 0 : index
      %66 = vector.load %arg8[%c0_52, %c0_53] : memref<1x16xf32, #tpu.memory_space<vmem>>, vector<1x16xf32>
      tpu.vector_store %arg8[%c0_52, %c0_53], %65 {strides = array<i32>} : memref<1x16xf32, #tpu.memory_space<vmem>>, vector<1x16xf32>,
      %cst_54 = arith.constant 0.000000e+00 : f32
      %67 = vector.broadcast %cst_54 : f32 to vector<1x16xf32>
      %c0_55 = arith.constant 0 : index
      %c0_56 = arith.constant 0 : index
      %68 = vector.load %arg9[%c0_55, %c0_56] : memref<1x16xf32, #tpu.memory_space<vmem>>, vector<1x16xf32>
      tpu.vector_store %arg9[%c0_55, %c0_56], %67 {strides = array<i32>} : memref<1x16xf32, #tpu.memory_space<vmem>>, vector<1x16xf32>,
    } else {
    }
    %c0 = arith.constant 0 : index
    %c0_1 = arith.constant 0 : index
    %c0_2 = arith.constant 0 : index
    %3 = vector.load %arg2[%c0, %c0_1, %c0_2] : memref<1x768x32xbf16, #tpu.memory_space<vmem>>, vector<1x768x32xbf16>
    %4 = vector.shape_cast %3 : vector<1x768x32xbf16> to vector<768x32xbf16>
    %c0_3 = arith.constant 0 : index
    %c0_4 = arith.constant 0 : index
    %5 = vector.load %arg7[%c0_3, %c0_4] : memref<864x32xbf16, #tpu.memory_space<vmem>>, vector<768x32xbf16>
    tpu.vector_store %arg7[%c0_3, %c0_4], %4 {strides = array<i32>} : memref<864x32xbf16, #tpu.memory_space<vmem>>, vector<768x32xbf16>,
    %c0_5 = arith.constant 0 : index
    %c0_6 = arith.constant 0 : index
    %c0_7 = arith.constant 0 : index
    %6 = vector.load %arg3[%c0_5, %c0_6, %c0_7] : memref<1x96x32xbf16, #tpu.memory_space<vmem>>, vector<1x96x32xbf16>
    %7 = vector.shape_cast %6 : vector<1x96x32xbf16> to vector<96x32xbf16>
    %c768 = arith.constant 768 : index
    %c0_8 = arith.constant 0 : index
    %8 = vector.load %arg7[%c768, %c0_8] : memref<864x32xbf16, #tpu.memory_space<vmem>>, vector<96x32xbf16>
    tpu.vector_store %arg7[%c768, %c0_8], %7 {strides = array<i32>} : memref<864x32xbf16, #tpu.memory_space<vmem>>, vector<96x32xbf16>,
    %cst = arith.constant 0.000000e+00 : f32
    %9 = vector.broadcast %cst : f32 to vector<768x16xf32>
    %c0_9 = arith.constant 0 : index
    %c0_10 = arith.constant 0 : index
    %10 = vector.load %arg7[%c0_9, %c0_10] : memref<864x32xbf16, #tpu.memory_space<vmem>>, vector<768x32xbf16>
    %c0_11 = arith.constant 0 : index
    %c0_12 = arith.constant 0 : index
    %11 = vector.load %arg5[%c0_11, %c0_12] : memref<256x16xbf16, #tpu.memory_space<vmem>>, vector<32x16xbf16>
    %cst_13 = arith.constant dense<0.000000e+00> : vector<768x16xf32>
    %12 = tpu.matmul %10, %11, %cst_13 {dimension_numbers = #tpu.dot_dimension_numbers<[1], [0], [0], [1], [0, 0, 1, 1], [], []>} : vector<768x32xbf16>, vector<32x16xbf16>, vector<768x16xf32> -> vector<768x16xf32>
    %13 = arith.addf %9, %12 : vector<768x16xf32>
    %c1 = arith.constant 1 : index
    %c0_14 = arith.constant 0 : index
    %14 = vector.load %arg7[%c1, %c0_14] : memref<864x32xbf16, #tpu.memory_space<vmem>>, vector<768x32xbf16>
    %c32 = arith.constant 32 : index
    %c0_15 = arith.constant 0 : index
    %15 = vector.load %arg5[%c32, %c0_15] : memref<256x16xbf16, #tpu.memory_space<vmem>>, vector<32x16xbf16>
    %cst_16 = arith.constant dense<0.000000e+00> : vector<768x16xf32>
    %16 = tpu.matmul %14, %15, %cst_16 {dimension_numbers = #tpu.dot_dimension_numbers<[1], [0], [0], [1], [0, 0, 1, 1], [], []>} : vector<768x32xbf16>, vector<32x16xbf16>, vector<768x16xf32> -> vector<768x16xf32>
    %17 = arith.addf %13, %16 : vector<768x16xf32>
    %c9 = arith.constant 9 : index
    %c0_17 = arith.constant 0 : index
    %18 = vector.load %arg7[%c9, %c0_17] : memref<864x32xbf16, #tpu.memory_space<vmem>>, vector<768x32xbf16>
    %c64 = arith.constant 64 : index
    %c0_18 = arith.constant 0 : index
    %19 = vector.load %arg5[%c64, %c0_18] : memref<256x16xbf16, #tpu.memory_space<vmem>>, vector<32x16xbf16>
    %cst_19 = arith.constant dense<0.000000e+00> : vector<768x16xf32>
    %20 = tpu.matmul %18, %19, %cst_19 {dimension_numbers = #tpu.dot_dimension_numbers<[1], [0], [0], [1], [0, 0, 1, 1], [], []>} : vector<768x32xbf16>, vector<32x16xbf16>, vector<768x16xf32> -> vector<768x16xf32>
    %21 = arith.addf %17, %20 : vector<768x16xf32>
    %c10 = arith.constant 10 : index
    %c0_20 = arith.constant 0 : index
    %22 = vector.load %arg7[%c10, %c0_20] : memref<864x32xbf16, #tpu.memory_space<vmem>>, vector<768x32xbf16>
    %c96 = arith.constant 96 : index
    %c0_21 = arith.constant 0 : index
    %23 = vector.load %arg5[%c96, %c0_21] : memref<256x16xbf16, #tpu.memory_space<vmem>>, vector<32x16xbf16>
    %cst_22 = arith.constant dense<0.000000e+00> : vector<768x16xf32>
    %24 = tpu.matmul %22, %23, %cst_22 {dimension_numbers = #tpu.dot_dimension_numbers<[1], [0], [0], [1], [0, 0, 1, 1], [], []>} : vector<768x32xbf16>, vector<32x16xbf16>, vector<768x16xf32> -> vector<768x16xf32>
    %25 = arith.addf %21, %24 : vector<768x16xf32>
    %c81 = arith.constant 81 : index
    %c0_23 = arith.constant 0 : index
    %26 = vector.load %arg7[%c81, %c0_23] : memref<864x32xbf16, #tpu.memory_space<vmem>>, vector<768x32xbf16>
    %c128 = arith.constant 128 : index
    %c0_24 = arith.constant 0 : index
    %27 = vector.load %arg5[%c128, %c0_24] : memref<256x16xbf16, #tpu.memory_space<vmem>>, vector<32x16xbf16>
    %cst_25 = arith.constant dense<0.000000e+00> : vector<768x16xf32>
    %28 = tpu.matmul %26, %27, %cst_25 {dimension_numbers = #tpu.dot_dimension_numbers<[1], [0], [0], [1], [0, 0, 1, 1], [], []>} : vector<768x32xbf16>, vector<32x16xbf16>, vector<768x16xf32> -> vector<768x16xf32>
    %29 = arith.addf %25, %28 : vector<768x16xf32>
    %c82 = arith.constant 82 : index
    %c0_26 = arith.constant 0 : index
    %30 = vector.load %arg7[%c82, %c0_26] : memref<864x32xbf16, #tpu.memory_space<vmem>>, vector<768x32xbf16>
    %c160 = arith.constant 160 : index
    %c0_27 = arith.constant 0 : index
    %31 = vector.load %arg5[%c160, %c0_27] : memref<256x16xbf16, #tpu.memory_space<vmem>>, vector<32x16xbf16>
    %cst_28 = arith.constant dense<0.000000e+00> : vector<768x16xf32>
    %32 = tpu.matmul %30, %31, %cst_28 {dimension_numbers = #tpu.dot_dimension_numbers<[1], [0], [0], [1], [0, 0, 1, 1], [], []>} : vector<768x32xbf16>, vector<32x16xbf16>, vector<768x16xf32> -> vector<768x16xf32>
    %33 = arith.addf %29, %32 : vector<768x16xf32>
    %c90 = arith.constant 90 : index
    %c0_29 = arith.constant 0 : index
    %34 = vector.load %arg7[%c90, %c0_29] : memref<864x32xbf16, #tpu.memory_space<vmem>>, vector<768x32xbf16>
    %c192 = arith.constant 192 : index
    %c0_30 = arith.constant 0 : index
    %35 = vector.load %arg5[%c192, %c0_30] : memref<256x16xbf16, #tpu.memory_space<vmem>>, vector<32x16xbf16>
    %cst_31 = arith.constant dense<0.000000e+00> : vector<768x16xf32>
    %36 = tpu.matmul %34, %35, %cst_31 {dimension_numbers = #tpu.dot_dimension_numbers<[1], [0], [0], [1], [0, 0, 1, 1], [], []>} : vector<768x32xbf16>, vector<32x16xbf16>, vector<768x16xf32> -> vector<768x16xf32>
    %37 = arith.addf %33, %36 : vector<768x16xf32>
    %c91 = arith.constant 91 : index
    %c0_32 = arith.constant 0 : index
    %38 = vector.load %arg7[%c91, %c0_32] : memref<864x32xbf16, #tpu.memory_space<vmem>>, vector<768x32xbf16>
    %c224 = arith.constant 224 : index
    %c0_33 = arith.constant 0 : index
    %39 = vector.load %arg5[%c224, %c0_33] : memref<256x16xbf16, #tpu.memory_space<vmem>>, vector<32x16xbf16>
    %cst_34 = arith.constant dense<0.000000e+00> : vector<768x16xf32>
    %40 = tpu.matmul %38, %39, %cst_34 {dimension_numbers = #tpu.dot_dimension_numbers<[1], [0], [0], [1], [0, 0, 1, 1], [], []>} : vector<768x32xbf16>, vector<32x16xbf16>, vector<768x16xf32> -> vector<768x16xf32>
    %41 = arith.addf %37, %40 : vector<768x16xf32>
    %c768_i32 = arith.constant 768 : i32
    %42 = arith.muli %arg1, %c768_i32 : i32
    %43 = tpu.assume_multiple %42, 8 : i32
    %c0_35 = arith.constant 0 : index
    %c0_36 = arith.constant 0 : index
    %44 = vector.load %arg4[%c0_35, %c0_36] : memref<768x1xf32, #tpu.memory_space<vmem>>, vector<768x1xf32>
    %45 = vector.broadcast %44 : vector<768x1xf32> to vector<768x16xf32>
    %46 = arith.mulf %41, %45 : vector<768x16xf32>
    %c0_37 = arith.constant 0 : index
    %c0_38 = arith.constant 0 : index
    %47 = vector.load %arg8[%c0_37, %c0_38] : memref<1x16xf32, #tpu.memory_space<vmem>>, vector<1x16xf32>
    %cst_39 = arith.constant dense<0.000000e+00> : vector<16xf32>
    %48 = vector.multi_reduction <add>, %46, %cst_39 [0] : vector<768x16xf32> to vector<16xf32>
    %49 = vector.shape_cast %48 : vector<16xf32> to vector<1x16xf32>
    %50 = arith.addf %47, %49 : vector<1x16xf32>
    %c0_40 = arith.constant 0 : index
    %c0_41 = arith.constant 0 : index
    %51 = vector.load %arg8[%c0_40, %c0_41] : memref<1x16xf32, #tpu.memory_space<vmem>>, vector<1x16xf32>
    tpu.vector_store %arg8[%c0_40, %c0_41], %50 {strides = array<i32>} : memref<1x16xf32, #tpu.memory_space<vmem>>, vector<1x16xf32>,
    %c0_42 = arith.constant 0 : index
    %c0_43 = arith.constant 0 : index
    %52 = vector.load %arg9[%c0_42, %c0_43] : memref<1x16xf32, #tpu.memory_space<vmem>>, vector<1x16xf32>
    %53 = arith.mulf %41, %46 : vector<768x16xf32>
    %cst_44 = arith.constant dense<0.000000e+00> : vector<16xf32>
    %54 = vector.multi_reduction <add>, %53, %cst_44 [0] : vector<768x16xf32> to vector<16xf32>
    %55 = vector.shape_cast %54 : vector<16xf32> to vector<1x16xf32>
    %56 = arith.addf %52, %55 : vector<1x16xf32>
    %c0_45 = arith.constant 0 : index
    %c0_46 = arith.constant 0 : index
    %57 = vector.load %arg9[%c0_45, %c0_46] : memref<1x16xf32, #tpu.memory_space<vmem>>, vector<1x16xf32>
    tpu.vector_store %arg9[%c0_45, %c0_46], %56 {strides = array<i32>} : memref<1x16xf32, #tpu.memory_space<vmem>>, vector<1x16xf32>,
    %c0_47 = arith.constant 0 : index
    %58 = arith.index_cast %43 : i32 to index
    %c0_48 = arith.constant 0 : index
    %59 = vector.load %arg6[%c0_47, %58, %c0_48] : memref<1x768x16xf32, #tpu.memory_space<vmem>>, vector<1x768x16xf32>
    %60 = vector.shape_cast %59 : vector<1x768x16xf32> to vector<768x16xf32>
    %61 = vector.shape_cast %41 : vector<768x16xf32> to vector<1x768x16xf32>
    tpu.vector_store %arg6[%c0_47, %58, %c0_48], %61 {strides = array<i32>} : memref<1x768x16xf32, #tpu.memory_space<vmem>>, vector<1x768x16xf32>,
    %c0_i32_49 = arith.constant 0 : i32
    %62 = arith.cmpi eq, %arg1, %c0_i32_49 : i32
    %63 = arith.extui %62 : i1 to i32
    %c0_i32_50 = arith.constant 0 : i32
    %64 = arith.cmpi ne, %63, %c0_i32_50 : i32
    scf.if %64 {
      %c0_51 = arith.constant 0 : index
      %c0_52 = arith.constant 0 : index
      %65 = vector.load %arg8[%c0_51, %c0_52] : memref<1x16xf32, #tpu.memory_space<vmem>>, vector<1x16xf32>
      %cst_53 = arith.constant 0.001953125 : f32
      %66 = vector.broadcast %cst_53 : f32 to vector<1x16xf32>
      %67 = arith.mulf %65, %66 : vector<1x16xf32>
      %c0_54 = arith.constant 0 : index
      %c0_55 = arith.constant 0 : index
      %68 = vector.load %arg9[%c0_54, %c0_55] : memref<1x16xf32, #tpu.memory_space<vmem>>, vector<1x16xf32>
      %cst_56 = arith.constant 0.001953125 : f32
      %69 = vector.broadcast %cst_56 : f32 to vector<1x16xf32>
      %70 = arith.mulf %68, %69 : vector<1x16xf32>
      %71 = arith.mulf %67, %67 : vector<1x16xf32>
      %72 = arith.subf %70, %71 : vector<1x16xf32>
      %cst_57 = arith.constant 0.000000e+00 : f32
      %73 = vector.broadcast %cst_57 : f32 to vector<1x16xf32>
      %74 = arith.maximumf %72, %73 : vector<1x16xf32>
      %cst_58 = arith.constant 9.99999974E-6 : f32
      %75 = vector.broadcast %cst_58 : f32 to vector<1x16xf32>
      %76 = arith.addf %74, %75 : vector<1x16xf32>
      %77 = math.rsqrt %76 : vector<1x16xf32>
      %c0_59 = arith.constant 0 : index
      %c0_60 = arith.constant 0 : index
      %c0_61 = arith.constant 0 : index
      %78 = vector.load %arg6[%c0_59, %c0_60, %c0_61] : memref<1x768x16xf32, #tpu.memory_space<vmem>>, vector<1x768x16xf32>
      %79 = vector.shape_cast %78 : vector<1x768x16xf32> to vector<768x16xf32>
      %80 = vector.broadcast %67 : vector<1x16xf32> to vector<768x16xf32>
      %81 = arith.subf %79, %80 : vector<768x16xf32>
      %82 = vector.broadcast %77 : vector<1x16xf32> to vector<768x16xf32>
      %83 = arith.mulf %81, %82 : vector<768x16xf32>
      %cst_62 = arith.constant 0.000000e+00 : f32
      %84 = vector.broadcast %cst_62 : f32 to vector<768x16xf32>
      %85 = arith.cmpf ogt, %83, %84 : vector<768x16xf32>
      %cst_63 = arith.constant 2.000000e-01 : f32
      %86 = vector.broadcast %cst_63 : f32 to vector<768x16xf32>
      %87 = arith.mulf %86, %83 : vector<768x16xf32>
      %88 = arith.select %85, %83, %87 : vector<768x16xi1>, vector<768x16xf32>
      %c0_64 = arith.constant 0 : index
      %c0_65 = arith.constant 0 : index
      %c0_66 = arith.constant 0 : index
      %89 = vector.load %arg6[%c0_64, %c0_65, %c0_66] : memref<1x768x16xf32, #tpu.memory_space<vmem>>, vector<1x768x16xf32>
      %90 = vector.shape_cast %89 : vector<1x768x16xf32> to vector<768x16xf32>
      %91 = vector.shape_cast %88 : vector<768x16xf32> to vector<1x768x16xf32>
      tpu.vector_store %arg6[%c0_64, %c0_65, %c0_66], %91 {strides = array<i32>} : memref<1x768x16xf32, #tpu.memory_space<vmem>>, vector<1x768x16xf32>,
    } else {
    }
    return
  }
  func.func @transform_0(%arg0: i32, %arg1: i32) -> (i32, i32, i32) {
    %c0_i32 = arith.constant 0 : i32
    %c0_i32_0 = arith.constant 0 : i32
    return %arg0, %arg1, %c0_i32 : i32, i32, i32
  }
  func.func @transform_1(%arg0: i32, %arg1: i32) -> (i32, i32, i32) {
    %c1_i32 = arith.constant 1 : i32
    %0 = arith.addi %arg1, %c1_i32 : i32
    %c8_i32 = arith.constant 8 : i32
    %1 = arith.muli %0, %c8_i32 : i32
    %c0_i32 = arith.constant 0 : i32
    %c0_i32_0 = arith.constant 0 : i32
    return %arg0, %1, %c0_i32 : i32, i32, i32
  }
  func.func @transform_2(%arg0: i32, %arg1: i32) -> (i32, i32) {
    %c0_i32 = arith.constant 0 : i32
    %c0_i32_0 = arith.constant 0 : i32
    return %arg1, %c0_i32 : i32, i32
  }
  func.func @transform_3(%arg0: i32, %arg1: i32) -> (i32, i32) {
    %c0_i32 = arith.constant 0 : i32
    %c0_i32_0 = arith.constant 0 : i32
    %c0_i32_1 = arith.constant 0 : i32
    return %c0_i32, %c0_i32_0 : i32, i32
  }
  func.func @transform_4(%arg0: i32, %arg1: i32) -> (i32, i32, i32) {
    %c0_i32 = arith.constant 0 : i32
    %c0_i32_0 = arith.constant 0 : i32
    %c0_i32_1 = arith.constant 0 : i32
    return %arg0, %c0_i32, %c0_i32_0 : i32, i32, i32
  }
}

</mosaic_0001>

<llo_original>
// kernel: unet_down.1
$region0: #{unet_down.1}
  #allocation0 [shape = 'u32[]', space=smem, size = 0x4, offset = 0x4, fixed_abs, tag = 'smem constant byte address 0x4 - core index']
  #allocation1 [shape = 'u32[144,128]{1,0:T(1,128)}', space=vmem, size = 0x12000, scoped, tag = 'internal scratch']
  #allocation2 [shape = 'bf16[864,32]{1,0:T(8,128)(2,1)}', space=vmem, size = 0x36000, scoped, tag = 'scratch operand']
  #allocation3 [shape = 'f32[1,16]{1,0:T(1,128)}', space=vmem, size = 0x200, scoped, tag = 'scratch operand']
  #allocation4 [shape = 'f32[1,16]{1,0:T(1,128)}', space=vmem, size = 0x200, scoped, tag = 'scratch operand']
  %s0 = inlined_call_operand.vmem [shape: bf16[2,1536,32], index: 0, kind: input, shape index: {}, may-alias: {0,1}]
  %s1 = inlined_call_operand.vmem [shape: bf16[2,1536,32], index: 1, kind: input, shape index: {}, may-alias: {0,1}]
  %s2 = inlined_call_operand.vmem [shape: f32[768,1], index: 2, kind: input, shape index: {}]
  %s3 = inlined_call_operand.vmem [shape: bf16[256,16], index: 3, kind: input, shape index: {}]
  %s4 = inlined_call_operand.vmem [shape: f32[2,768,16], index: 4, kind: output, shape index: {}]
  %s5 = sld [smem:[#allocation0]]
  $region57: #{unet_down.1} parent=0
    _
  %s7 = ssub.s32 1, %s5
  %s8 = scalar_select 0, %s7, %s5
  loop: start=0, step=1, limit=4
  $region2: #{unet_down.1} parent=0 // loop_pre_header
    _
  $region3: #{unet_down.1} parent=0 // loop_header
    %s10 = sphi 0, %s14
    %p11 = scmp.ge.s32.totalorder %s10, 4
    %s17 = sphi 0, %s29
    %s18 = sphi 0, %s25
    %s19 = sphi 0, %s17
    %s20 = sphi 0, %s18
    %s21 = sphi 0, %s19
    %s22 = sphi 0, %s20
    %s34 = sphi 0, %s36
    %s37 = sphi 0, %s34
    %s38 = sphi 0, %s37
    %s54 = sphi 0, %s38
    %s66 = sphi 0, %s68
    %s69 = sphi 0, %s66
    %s70 = sphi 0, %s69
    %s86 = sphi 0, %s70
    %s92 = sphi 0, %s94
    %s95 = sphi 0, %s92
    %s96 = sphi 0, %s95
    %s112 = sphi 0, %s96
    %s116 = sphi 0, %s116
    %s118 = sphi 0, %s116
    %s119 = sphi 0, %s118
    %s133 = sphi 0, %s119
    %s139 = sphi 0, %s141
    %s142 = sphi 0, %s139
    %s143 = sphi 0, %s142
    %s159 = sphi 0, %s143
  $region4: #{unet_down.1} parent=0 // loop_header_branch
    %13 = sbr.rel (%p11) target = $region8
  $region5: #{unet_down.1} parent=0 // loop_body
    %s15 = ssub.s32 %s10, 1
    %s16 = ssub.s32 %s10, 2
    %s23 = sadd.s32 1, %s18
    %p24 = scmp.ge.s32.totalorder %s23, 1
    %s25 = scalar_select %p24, 0, %s23
    %s26 = sadd.s32 1, %s17
    %s27 = scalar_select %p24, %s26, %s17
    %p28 = scmp.ge.s32.totalorder %s27, 2
    %s29 = scalar_select %p28, 0, %s27
    %s30 = ssub.s32 %s17, %s29
    %s31 = ssub.s32 %s18, %s25
    %s32 = sor.u32 %s30, %s31
    %p33 = scmp.eq.s32.totalorder %s32, 0
    %s35 = sadd.s32 %s34, 1
    %s36 = scalar_select %p33, %s34, %s35
    %p39 = pneg %p33
    %p40 = scmp.eq.s32.totalorder %s10, 1
    %p41 = por %p39, %p40
    %p42 = scmp.ne.s32.totalorder %s34, %s37
    %p43 = scmp.eq.s32.totalorder %s10, 0
    %p44 = por %p42, %p43
    %p45 = scmp.ne.s32.totalorder %s34, %s37
    %p46 = scmp.eq.s32.totalorder %s15, 1
    %p47 = por %p45, %p46
    %p48 = scmp.ne.s32.totalorder %s37, %s38
    %p49 = scmp.eq.s32.totalorder %s15, 0
    %p50 = por %p48, %p49
    %p51 = scmp.ne.s32.totalorder %s37, %s38
    %p52 = scmp.eq.s32.totalorder %s16, 1
    %p53 = por %p51, %p52
    %p55 = scmp.ne.s32.totalorder %s38, %s54
    %p56 = scmp.eq.s32.totalorder %s16, 0
    %p57 = por %p55, %p56
    %s58 = sadd.s32 %s18, 1
    %s59 = smul.u32 %s58, 8
    %s60 = sadd.s32 %s25, 1
    %s61 = smul.u32 %s60, 8
    %s62 = ssub.s32 %s17, %s29
    %s63 = ssub.s32 %s59, %s61
    %s64 = sor.u32 %s62, %s63
    %p65 = scmp.eq.s32.totalorder %s64, 0
    %s67 = sadd.s32 %s66, 1
    %s68 = scalar_select %p65, %s66, %s67
    %p71 = pneg %p65
    %p72 = scmp.eq.s32.totalorder %s10, 1
    %p73 = por %p71, %p72
    %p74 = scmp.ne.s32.totalorder %s66, %s69
    %p75 = scmp.eq.s32.totalorder %s10, 0
    %p76 = por %p74, %p75
    %p77 = scmp.ne.s32.totalorder %s66, %s69
    %p78 = scmp.eq.s32.totalorder %s15, 1
    %p79 = por %p77, %p78
    %p80 = scmp.ne.s32.totalorder %s69, %s70
    %p81 = scmp.eq.s32.totalorder %s15, 0
    %p82 = por %p80, %p81
    %p83 = scmp.ne.s32.totalorder %s69, %s70
    %p84 = scmp.eq.s32.totalorder %s16, 1
    %p85 = por %p83, %p84
    %p87 = scmp.ne.s32.totalorder %s70, %s86
    %p88 = scmp.eq.s32.totalorder %s16, 0
    %p89 = por %p87, %p88
    %s90 = ssub.s32 %s18, %s25
    %p91 = scmp.eq.s32.totalorder %s90, 0
    %s93 = sadd.s32 %s92, 1
    %s94 = scalar_select %p91, %s92, %s93
    %p97 = pneg %p91
    %p98 = scmp.eq.s32.totalorder %s10, 1
    %p99 = por %p97, %p98
    %p100 = scmp.ne.s32.totalorder %s92, %s95
    %p101 = scmp.eq.s32.totalorder %s10, 0
    %p102 = por %p100, %p101
    %p103 = scmp.ne.s32.totalorder %s92, %s95
    %p104 = scmp.eq.s32.totalorder %s15, 1
    %p105 = por %p103, %p104
    %p106 = scmp.ne.s32.totalorder %s95, %s96
    %p107 = scmp.eq.s32.totalorder %s15, 0
    %p108 = por %p106, %p107
    %p109 = scmp.ne.s32.totalorder %s95, %s96
    %p110 = scmp.eq.s32.totalorder %s16, 1
    %p111 = por %p109, %p110
    %p113 = scmp.ne.s32.totalorder %s96, %s112
    %p114 = scmp.eq.s32.totalorder %s16, 0
    %p115 = por %p113, %p114
    %s117 = sadd.s32 %s116, 1
    %p120 = scmp.eq.s32.totalorder %s10, 1
    %p121 = scmp.ne.s32.totalorder %s116, %s118
    %p122 = scmp.eq.s32.totalorder %s10, 0
    %p123 = por %p121, %p122
    %p124 = scmp.ne.s32.totalorder %s116, %s118
    %p125 = scmp.eq.s32.totalorder %s15, 1
    %p126 = por %p124, %p125
    %p127 = scmp.ne.s32.totalorder %s118, %s119
    %p128 = scmp.eq.s32.totalorder %s15, 0
    %p129 = por %p127, %p128
    %p130 = scmp.ne.s32.totalorder %s118, %s119
    %p131 = scmp.eq.s32.totalorder %s16, 1
    %p132 = por %p130, %p131
    %p134 = scmp.ne.s32.totalorder %s119, %s133
    %p135 = scmp.eq.s32.totalorder %s16, 0
    %p136 = por %p134, %p135
    %s137 = ssub.s32 %s17, %s29
    %p138 = scmp.eq.s32.totalorder %s137, 0
    %s140 = sadd.s32 %s139, 1
    %s141 = scalar_select %p138, %s139, %s140
    %p144 = pneg %p138
    %p145 = scmp.eq.s32.totalorder %s10, 1
    %p146 = por %p144, %p145
    %p147 = scmp.ne.s32.totalorder %s139, %s142
    %p148 = scmp.eq.s32.totalorder %s10, 0
    %p149 = por %p147, %p148
    %p150 = scmp.ne.s32.totalorder %s139, %s142
    %p151 = scmp.eq.s32.totalorder %s15, 1
    %p152 = por %p150, %p151
    %p153 = scmp.ne.s32.totalorder %s142, %s143
    %p154 = scmp.eq.s32.totalorder %s15, 0
    %p155 = por %p153, %p154
    %p156 = scmp.ne.s32.totalorder %s142, %s143
    %p157 = scmp.eq.s32.totalorder %s16, 1
    %p158 = por %p156, %p157
    %p160 = scmp.ne.s32.totalorder %s143, %s159
    %p161 = scmp.eq.s32.totalorder %s16, 0
    %p162 = por %p160, %p161
    %p163 = scmp.le.s32.totalorder 1, %s10
    %p164 = scmp.lt.s32.totalorder %s10, 3
    %p165 = pnand %p163, %p164
    %p166 = pneg %p165
    // Predicated region
    $region9: #{unet_down.1} parent=5 // pred_check
      _
    $region10: #{unet_down.1} parent=5 // pred_check_branch
      %168 = sbr.rel (%p165) target = $region12
    $region11: #{unet_down.1} parent=5 // pred_region
      %s169 = ssub.s32 %s10, 1
      // Predicated region
      $region13: #{unet_down.1} parent=11 // pred_check
        %p170 = pneg %p108
      $region14: #{unet_down.1} parent=11 // pred_check_branch
        %172 = sbr.rel (%p170) target = $region16
      $region15: #{unet_down.1} parent=11 // pred_region
        %s173 = smul.u32 96, %s20
        %p174 = scmp.lt.s32.totalorder %s173, 95
        %s175 = scalar_select %p174, %s173, 95
        %s176 = smul.addr %s175, 8
        %s177 = scalar_lea.vmem %s2, %s176
        %s178 = smul.u32 96, %s20
      $region16: #{unet_down.1} parent=11 // pred_fallthru
        _
      // Predicated region
      $region17: #{unet_down.1} parent=11 // pred_check
        %p179 = pneg %p129
      $region18: #{unet_down.1} parent=11 // pred_check_branch
        %181 = sbr.rel (%p179) target = $region20
      $region19: #{unet_down.1} parent=11 // pred_region
        _
      $region20: #{unet_down.1} parent=11 // pred_fallthru
        _
    $region12: #{unet_down.1} parent=5 // pred_fallthru
      _
    %p182 = scmp.lt.s32.totalorder %s10, 2
    // Predicated region
    $region21: #{unet_down.1} parent=5 // pred_check
      %p183 = pneg %p182
    $region22: #{unet_down.1} parent=5 // pred_check_branch
      %185 = sbr.rel (%p183) target = $region24
    $region23: #{unet_down.1} parent=5 // pred_region
      // Predicated region
      $region25: #{unet_down.1} parent=23 // pred_check
        %p186 = pneg %p44
      $region26: #{unet_down.1} parent=23 // pred_check_branch
        %188 = sbr.rel (%p186) target = $region28
      $region27: #{unet_down.1} parent=23 // pred_region
        %s189 = smul.u32 96, %s18
        %p190 = scmp.lt.s32.totalorder %s17, 1
        %s191 = scalar_select %p190, %s17, 1
        %p192 = scmp.lt.s32.totalorder %s189, 191
        %s193 = scalar_select %p192, %s189, 191
        %s194 = smul.addr %s191, 192
        %s195 = sadd.s32 %s193, %s194
        %s196 = smul.addr %s195, 4
        %s197 = scalar_lea.vmem %s0, %s196
        %s198 = smul.u32 96, %s18
      $region28: #{unet_down.1} parent=23 // pred_fallthru
        _
      // Predicated region
      $region29: #{unet_down.1} parent=23 // pred_check
        %p199 = pneg %p76
      $region30: #{unet_down.1} parent=23 // pred_check_branch
        %201 = sbr.rel (%p199) target = $region32
      $region31: #{unet_down.1} parent=23 // pred_region
        %s202 = sadd.s32 %s18, 1
        %s203 = smul.u32 %s202, 8
        %s204 = smul.u32 12, %s203
        %p205 = scmp.lt.s32.totalorder %s17, 1
        %s206 = scalar_select %p205, %s17, 1
        %p207 = scmp.lt.s32.totalorder %s204, 191
        %s208 = scalar_select %p207, %s204, 191
        %s209 = smul.addr %s206, 192
        %s210 = sadd.s32 %s208, %s209
        %s211 = smul.addr %s210, 4
        %s212 = scalar_lea.vmem %s1, %s211
        %s213 = sadd.s32 %s18, 1
        %s214 = smul.u32 %s213, 8
        %s215 = smul.u32 12, %s214
      $region32: #{unet_down.1} parent=23 // pred_fallthru
        _
    $region24: #{unet_down.1} parent=5 // pred_fallthru
      _
    %p216 = scmp.le.s32.totalorder 1, %s10
    %p217 = scmp.lt.s32.totalorder %s10, 3
    %p218 = pnand %p216, %p217
    %p219 = pneg %p218
    // Predicated region
    $region33: #{unet_down.1} parent=5 // pred_check
      _
    $region34: #{unet_down.1} parent=5 // pred_check_branch
      %221 = sbr.rel (%p218) target = $region36
    $region35: #{unet_down.1} parent=5 // pred_region
      %s222 = ssub.s32 %s10, 1
      %s223 = smul.u32 96, %s20
      %p224 = scmp.lt.s32.totalorder %s19, 1
      %s225 = scalar_select %p224, %s19, 1
      %p226 = scmp.lt.s32.totalorder %s223, 191
      %s227 = scalar_select %p226, %s223, 191
      %s228 = smul.addr %s225, 192
      %s229 = sadd.s32 %s227, %s228
      %s230 = smul.addr %s229, 4
      %s231 = scalar_lea.vmem %s0, %s230
      %p232 = pneg %p50
      %p233 = pneg %p47
      %s234 = sadd.s32 %s20, 1
      %s235 = smul.u32 %s234, 8
      %s236 = smul.u32 12, %s235
      %p237 = scmp.lt.s32.totalorder %s19, 1
      %s238 = scalar_select %p237, %s19, 1
      %p239 = scmp.lt.s32.totalorder %s236, 191
      %s240 = scalar_select %p239, %s236, 191
      %s241 = smul.addr %s238, 192
      %s242 = sadd.s32 %s240, %s241
      %s243 = smul.addr %s242, 4
      %s244 = scalar_lea.vmem %s1, %s243
      %p245 = pneg %p82
      %p246 = pneg %p79
      %s247 = smul.u32 96, %s20
      %p248 = scmp.lt.s32.totalorder %s247, 95
      %s249 = scalar_select %p248, %s247, 95
      %s250 = smul.addr %s249, 8
      %s251 = scalar_lea.vmem %s2, %s250
      %p252 = pneg %p108
      %p253 = pneg %p105
      %p254 = pneg %p129
      %p255 = pneg %p126
      %p256 = pneg %p155
      %p257 = pneg %p152
      %p258 = scmp.lt.s32.totalorder %s19, 1
      %s259 = scalar_select %p258, %s19, 1
      %s260 = smul.addr %s259, 96
      %s261 = smul.addr %s260, 8
      %s262 = scalar_lea.vmem %s4, %s261
      %s263 = smul.u32 96, %s20
      %p264 = scmp.lt.s32.totalorder %s19, 1
      %s265 = scalar_select %p264, %s19, 1
      %p266 = scmp.lt.s32.totalorder %s263, 191
      %s267 = scalar_select %p266, %s263, 191
      %s268 = smul.addr %s265, 192
      %s269 = sadd.s32 %s267, %s268
      %s270 = smul.addr %s269, 4
      %s271 = scalar_lea.vmem %s0, %s270
      %s272 = smul.u32 96, %s20
      %s273 = sadd.s32 %s20, 1
      %s274 = smul.u32 %s273, 8
      %s275 = smul.u32 12, %s274
      %p276 = scmp.lt.s32.totalorder %s19, 1
      %s277 = scalar_select %p276, %s19, 1
      %p278 = scmp.lt.s32.totalorder %s275, 191
      %s279 = scalar_select %p278, %s275, 191
      %s280 = smul.addr %s277, 192
      %s281 = sadd.s32 %s279, %s280
      %s282 = smul.addr %s281, 4
      %s283 = scalar_lea.vmem %s1, %s282
      %s284 = sadd.s32 %s20, 1
      %s285 = smul.u32 %s284, 8
      %s286 = smul.u32 12, %s285
      %s287 = smul.u32 96, %s20
      %p288 = scmp.lt.s32.totalorder %s287, 95
      %s289 = scalar_select %p288, %s287, 95
      %s290 = smul.addr %s289, 8
      %s291 = scalar_lea.vmem %s2, %s290
      %s292 = smul.u32 96, %s20
      %p293 = scmp.lt.s32.totalorder %s19, 1
      %s294 = scalar_select %p293, %s19, 1
      %s295 = smul.addr %s294, 96
      %s296 = smul.addr %s295, 8
      %s297 = scalar_lea.vmem %s4, %s296
      %p299 = scmp.eq.s32.totalorder %s20, 0
      // Predicated region
      $region37: #{unet_down.1} parent=35 // pred_check
        %p300 = pneg %p299
      $region38: #{unet_down.1} parent=35 // pred_check_branch
        %302 = sbr.rel (%p300) target = $region40
      $region39: #{unet_down.1} parent=35 // pred_region
        %vm303 = vcmask 122880
        %304 = vst.msk [vmem:[#allocation3] sm:$0x1] %vm303, 0.0
        %305 = vst.msk [vmem:[#allocation4] sm:$0x1] %vm303, 0.0
      $region40: #{unet_down.1} parent=35 // pred_fallthru
        _
      %v306 = vld [vmem:[%s271] sm:$0xf]
      %v307 = vld [vmem:[%s271 + $0x4] sm:$0xf]
      %v308 = vld [vmem:[%s271 + $0x8] sm:$0xf]
      %v309 = vld [vmem:[%s271 + $0xc] sm:$0xf]
      %v310 = vld [vmem:[%s271 + $0x10] sm:$0xf]
      %v311 = vld [vmem:[%s271 + $0x14] sm:$0xf]
      %v312 = vld [vmem:[%s271 + $0x18] sm:$0xf]
      %v313 = vld [vmem:[%s271 + $0x1c] sm:$0xf]
      %v314 = vld [vmem:[%s271 + $0x20] sm:$0xf]
      %v315 = vld [vmem:[%s271 + $0x24] sm:$0xf]
      %v316 = vld [vmem:[%s271 + $0x28] sm:$0xf]
      %v317 = vld [vmem:[%s271 + $0x2c] sm:$0xf]
      %v318 = vld [vmem:[%s271 + $0x30] sm:$0xf]
      %v319 = vld [vmem:[%s271 + $0x34] sm:$0xf]
      %v320 = vld [vmem:[%s271 + $0x38] sm:$0xf]
      %v321 = vld [vmem:[%s271 + $0x3c] sm:$0xf]
      %v322 = vld [vmem:[%s271 + $0x40] sm:$0xf]
      %v323 = vld [vmem:[%s271 + $0x44] sm:$0xf]
      %v324 = vld [vmem:[%s271 + $0x48] sm:$0xf]
      %v325 = vld [vmem:[%s271 + $0x4c] sm:$0xf]
      %v326 = vld [vmem:[%s271 + $0x50] sm:$0xf]
      %v327 = vld [vmem:[%s271 + $0x54] sm:$0xf]
      %v328 = vld [vmem:[%s271 + $0x58] sm:$0xf]
      %v329 = vld [vmem:[%s271 + $0x5c] sm:$0xf]
      %v330 = vld [vmem:[%s271 + $0x60] sm:$0xf]
      %v331 = vld [vmem:[%s271 + $0x64] sm:$0xf]
      %v332 = vld [vmem:[%s271 + $0x68] sm:$0xf]
      %v333 = vld [vmem:[%s271 + $0x6c] sm:$0xf]
      %v334 = vld [vmem:[%s271 + $0x70] sm:$0xf]
      %v335 = vld [vmem:[%s271 + $0x74] sm:$0xf]
      %v336 = vld [vmem:[%s271 + $0x78] sm:$0xf]
      %v337 = vld [vmem:[%s271 + $0x7c] sm:$0xf]
      %v338 = vld [vmem:[%s271 + $0x80] sm:$0xf]
      %v339 = vld [vmem:[%s271 + $0x84] sm:$0xf]
      %v340 = vld [vmem:[%s271 + $0x88] sm:$0xf]
      %v341 = vld [vmem:[%s271 + $0x8c] sm:$0xf]
      %v342 = vld [vmem:[%s271 + $0x90] sm:$0xf]
      %v343 = vld [vmem:[%s271 + $0x94] sm:$0xf]
      %v344 = vld [vmem:[%s271 + $0x98] sm:$0xf]
      %v345 = vld [vmem:[%s271 + $0x9c] sm:$0xf]
      %v346 = vld [vmem:[%s271 + $0xa0] sm:$0xf]
      %v347 = vld [vmem:[%s271 + $0xa4] sm:$0xf]
      %v348 = vld [vmem:[%s271 + $0xa8] sm:$0xf]
      %v349 = vld [vmem:[%s271 + $0xac] sm:$0xf]
      %v350 = vld [vmem:[%s271 + $0xb0] sm:$0xf]
      %v351 = vld [vmem:[%s271 + $0xb4] sm:$0xf]
      %v352 = vld [vmem:[%s271 + $0xb8] sm:$0xf]
      %v353 = vld [vmem:[%s271 + $0xbc] sm:$0xf]
      %v354 = vld [vmem:[%s271 + $0xc0] sm:$0xf]
      %v355 = vld [vmem:[%s271 + $0xc4] sm:$0xf]
      %v356 = vld [vmem:[%s271 + $0xc8] sm:$0xf]
      %v357 = vld [vmem:[%s271 + $0xcc] sm:$0xf]
      %v358 = vld [vmem:[%s271 + $0xd0] sm:$0xf]
      %v359 = vld [vmem:[%s271 + $0xd4] sm:$0xf]
      %v360 = vld [vmem:[%s271 + $0xd8] sm:$0xf]
      %v361 = vld [vmem:[%s271 + $0xdc] sm:$0xf]
      %v362 = vld [vmem:[%s271 + $0xe0] sm:$0xf]
      %v363 = vld [vmem:[%s271 + $0xe4] sm:$0xf]
      %v364 = vld [vmem:[%s271 + $0xe8] sm:$0xf]
      %v365 = vld [vmem:[%s271 + $0xec] sm:$0xf]
      %v366 = vld [vmem:[%s271 + $0xf0] sm:$0xf]
      %v367 = vld [vmem:[%s271 + $0xf4] sm:$0xf]
      %v368 = vld [vmem:[%s271 + $0xf8] sm:$0xf]
      %v369 = vld [vmem:[%s271 + $0xfc] sm:$0xf]
      %v370 = vld [vmem:[%s271 + $0x100] sm:$0xf]
      %v371 = vld [vmem:[%s271 + $0x104] sm:$0xf]
      %v372 = vld [vmem:[%s271 + $0x108] sm:$0xf]
      %v373 = vld [vmem:[%s271 + $0x10c] sm:$0xf]
      %v374 = vld [vmem:[%s271 + $0x110] sm:$0xf]
      %v375 = vld [vmem:[%s271 + $0x114] sm:$0xf]
      %v376 = vld [vmem:[%s271 + $0x118] sm:$0xf]
      %v377 = vld [vmem:[%s271 + $0x11c] sm:$0xf]
      %v378 = vld [vmem:[%s271 + $0x120] sm:$0xf]
      %v379 = vld [vmem:[%s271 + $0x124] sm:$0xf]
      %v380 = vld [vmem:[%s271 + $0x128] sm:$0xf]
      %v381 = vld [vmem:[%s271 + $0x12c] sm:$0xf]
      %v382 = vld [vmem:[%s271 + $0x130] sm:$0xf]
      %v383 = vld [vmem:[%s271 + $0x134] sm:$0xf]
      %v384 = vld [vmem:[%s271 + $0x138] sm:$0xf]
      %v385 = vld [vmem:[%s271 + $0x13c] sm:$0xf]
      %v386 = vld [vmem:[%s271 + $0x140] sm:$0xf]
      %v387 = vld [vmem:[%s271 + $0x144] sm:$0xf]
      %v388 = vld [vmem:[%s271 + $0x148] sm:$0xf]
      %v389 = vld [vmem:[%s271 + $0x14c] sm:$0xf]
      %v390 = vld [vmem:[%s271 + $0x150] sm:$0xf]
      %v391 = vld [vmem:[%s271 + $0x154] sm:$0xf]
      %v392 = vld [vmem:[%s271 + $0x158] sm:$0xf]
      %v393 = vld [vmem:[%s271 + $0x15c] sm:$0xf]
      %v394 = vld [vmem:[%s271 + $0x160] sm:$0xf]
      %v395 = vld [vmem:[%s271 + $0x164] sm:$0xf]
      %v396 = vld [vmem:[%s271 + $0x168] sm:$0xf]
      %v397 = vld [vmem:[%s271 + $0x16c] sm:$0xf]
      %v398 = vld [vmem:[%s271 + $0x170] sm:$0xf]
      %v399 = vld [vmem:[%s271 + $0x174] sm:$0xf]
      %v400 = vld [vmem:[%s271 + $0x178] sm:$0xf]
      %v401 = vld [vmem:[%s271 + $0x17c] sm:$0xf]
      %vm402 = vcmask 257024
      %403 = vst.msk [vmem:[#allocation2] sm:$0xf] %vm402, %v306
      %404 = vst.msk [vmem:[#allocation2 + $0x4] sm:$0xf] %vm402, %v307
      %405 = vst.msk [vmem:[#allocation2 + $0x8] sm:$0xf] %vm402, %v308
      %406 = vst.msk [vmem:[#allocation2 + $0xc] sm:$0xf] %vm402, %v309
      %407 = vst.msk [vmem:[#allocation2 + $0x10] sm:$0xf] %vm402, %v310
      %408 = vst.msk [vmem:[#allocation2 + $0x14] sm:$0xf] %vm402, %v311
      %409 = vst.msk [vmem:[#allocation2 + $0x18] sm:$0xf] %vm402, %v312
      %410 = vst.msk [vmem:[#allocation2 + $0x1c] sm:$0xf] %vm402, %v313
      %411 = vst.msk [vmem:[#allocation2 + $0x20] sm:$0xf] %vm402, %v314
      %412 = vst.msk [vmem:[#allocation2 + $0x24] sm:$0xf] %vm402, %v315
      %413 = vst.msk [vmem:[#allocation2 + $0x28] sm:$0xf] %vm402, %v316
      %414 = vst.msk [vmem:[#allocation2 + $0x2c] sm:$0xf] %vm402, %v317
      %415 = vst.msk [vmem:[#allocation2 + $0x30] sm:$0xf] %vm402, %v318
      %416 = vst.msk [vmem:[#allocation2 + $0x34] sm:$0xf] %vm402, %v319
      %417 = vst.msk [vmem:[#allocation2 + $0x38] sm:$0xf] %vm402, %v320
      %418 = vst.msk [vmem:[#allocation2 + $0x3c] sm:$0xf] %vm402, %v321
      %419 = vst.msk [vmem:[#allocation2 + $0x40] sm:$0xf] %vm402, %v322
      %420 = vst.msk [vmem:[#allocation2 + $0x44] sm:$0xf] %vm402, %v323
      %421 = vst.msk [vmem:[#allocation2 + $0x48] sm:$0xf] %vm402, %v324
      %422 = vst.msk [vmem:[#allocation2 + $0x4c] sm:$0xf] %vm402, %v325
      %423 = vst.msk [vmem:[#allocation2 + $0x50] sm:$0xf] %vm402, %v326
      %424 = vst.msk [vmem:[#allocation2 + $0x54] sm:$0xf] %vm402, %v327
      %425 = vst.msk [vmem:[#allocation2 + $0x58] sm:$0xf] %vm402, %v328
      %426 = vst.msk [vmem:[#allocation2 + $0x5c] sm:$0xf] %vm402, %v329
      %427 = vst.msk [vmem:[#allocation2 + $0x60] sm:$0xf] %vm402, %v330
      %428 = vst.msk [vmem:[#allocation2 + $0x64] sm:$0xf] %vm402, %v331
      %429 = vst.msk [vmem:[#allocation2 + $0x68] sm:$0xf] %vm402, %v332
      %430 = vst.msk [vmem:[#allocation2 + $0x6c] sm:$0xf] %vm402, %v333
      %431 = vst.msk [vmem:[#allocation2 + $0x70] sm:$0xf] %vm402, %v334
      %432 = vst.msk [vmem:[#allocation2 + $0x74] sm:$0xf] %vm402, %v335
      %433 = vst.msk [vmem:[#allocation2 + $0x78] sm:$0xf] %vm402, %v336
      %434 = vst.msk [vmem:[#allocation2 + $0x7c] sm:$0xf] %vm402, %v337
      %435 = vst.msk [vmem:[#allocation2 + $0x80] sm:$0xf] %vm402, %v338
      %436 = vst.msk [vmem:[#allocation2 + $0x84] sm:$0xf] %vm402, %v339
      %437 = vst.msk [vmem:[#allocation2 + $0x88] sm:$0xf] %vm402, %v340
      %438 = vst.msk [vmem:[#allocation2 + $0x8c] sm:$0xf] %vm402, %v341
      %439 = vst.msk [vmem:[#allocation2 + $0x90] sm:$0xf] %vm402, %v342
      %440 = vst.msk [vmem:[#allocation2 + $0x94] sm:$0xf] %vm402, %v343
      %441 = vst.msk [vmem:[#allocation2 + $0x98] sm:$0xf] %vm402, %v344
      %442 = vst.msk [vmem:[#allocation2 + $0x9c] sm:$0xf] %vm402, %v345
      %443 = vst.msk [vmem:[#allocation2 + $0xa0] sm:$0xf] %vm402, %v346
      %444 = vst.msk [vmem:[#allocation2 + $0xa4] sm:$0xf] %vm402, %v347
      %445 = vst.msk [vmem:[#allocation2 + $0xa8] sm:$0xf] %vm402, %v348
      %446 = vst.msk [vmem:[#allocation2 + $0xac] sm:$0xf] %vm402, %v349
      %447 = vst.msk [vmem:[#allocation2 + $0xb0] sm:$0xf] %vm402, %v350
      %448 = vst.msk [vmem:[#allocation2 + $0xb4] sm:$0xf] %vm402, %v351
      %449 = vst.msk [vmem:[#allocation2 + $0xb8] sm:$0xf] %vm402, %v352
      %450 = vst.msk [vmem:[#allocation2 + $0xbc] sm:$0xf] %vm402, %v353
      %451 = vst.msk [vmem:[#allocation2 + $0xc0] sm:$0xf] %vm402, %v354
      %452 = vst.msk [vmem:[#allocation2 + $0xc4] sm:$0xf] %vm402, %v355
      %453 = vst.msk [vmem:[#allocation2 + $0xc8] sm:$0xf] %vm402, %v356
      %454 = vst.msk [vmem:[#allocation2 + $0xcc] sm:$0xf] %vm402, %v357
      %455 = vst.msk [vmem:[#allocation2 + $0xd0] sm:$0xf] %vm402, %v358
      %456 = vst.msk [vmem:[#allocation2 + $0xd4] sm:$0xf] %vm402, %v359
      %457 = vst.msk [vmem:[#allocation2 + $0xd8] sm:$0xf] %vm402, %v360
      %458 = vst.msk [vmem:[#allocation2 + $0xdc] sm:$0xf] %vm402, %v361
      %459 = vst.msk [vmem:[#allocation2 + $0xe0] sm:$0xf] %vm402, %v362
      %460 = vst.msk [vmem:[#allocation2 + $0xe4] sm:$0xf] %vm402, %v363
      %461 = vst.msk [vmem:[#allocation2 + $0xe8] sm:$0xf] %vm402, %v364
      %462 = vst.msk [vmem:[#allocation2 + $0xec] sm:$0xf] %vm402, %v365
      %463 = vst.msk [vmem:[#allocation2 + $0xf0] sm:$0xf] %vm402, %v366
      %464 = vst.msk [vmem:[#allocation2 + $0xf4] sm:$0xf] %vm402, %v367
      %465 = vst.msk [vmem:[#allocation2 + $0xf8] sm:$0xf] %vm402, %v368
      %466 = vst.msk [vmem:[#allocation2 + $0xfc] sm:$0xf] %vm402, %v369
      %467 = vst.msk [vmem:[#allocation2 + $0x100] sm:$0xf] %vm402, %v370
      %468 = vst.msk [vmem:[#allocation2 + $0x104] sm:$0xf] %vm402, %v371
      %469 = vst.msk [vmem:[#allocation2 + $0x108] sm:$0xf] %vm402, %v372
      %470 = vst.msk [vmem:[#allocation2 + $0x10c] sm:$0xf] %vm402, %v373
      %471 = vst.msk [vmem:[#allocation2 + $0x110] sm:$0xf] %vm402, %v374
      %472 = vst.msk [vmem:[#allocation2 + $0x114] sm:$0xf] %vm402, %v375
      %473 = vst.msk [vmem:[#allocation2 + $0x118] sm:$0xf] %vm402, %v376
      %474 = vst.msk [vmem:[#allocation2 + $0x11c] sm:$0xf] %vm402, %v377
      %475 = vst.msk [vmem:[#allocation2 + $0x120] sm:$0xf] %vm402, %v378
      %476 = vst.msk [vmem:[#allocation2 + $0x124] sm:$0xf] %vm402, %v379
      %477 = vst.msk [vmem:[#allocation2 + $0x128] sm:$0xf] %vm402, %v380
      %478 = vst.msk [vmem:[#allocation2 + $0x12c] sm:$0xf] %vm402, %v381
      %479 = vst.msk [vmem:[#allocation2 + $0x130] sm:$0xf] %vm402, %v382
      %480 = vst.msk [vmem:[#allocation2 + $0x134] sm:$0xf] %vm402, %v383
      %481 = vst.msk [vmem:[#allocation2 + $0x138] sm:$0xf] %vm402, %v384
      %482 = vst.msk [vmem:[#allocation2 + $0x13c] sm:$0xf] %vm402, %v385
      %483 = vst.msk [vmem:[#allocation2 + $0x140] sm:$0xf] %vm402, %v386
      %484 = vst.msk [vmem:[#allocation2 + $0x144] sm:$0xf] %vm402, %v387
      %485 = vst.msk [vmem:[#allocation2 + $0x148] sm:$0xf] %vm402, %v388
      %486 = vst.msk [vmem:[#allocation2 + $0x14c] sm:$0xf] %vm402, %v389
      %487 = vst.msk [vmem:[#allocation2 + $0x150] sm:$0xf] %vm402, %v390
      %488 = vst.msk [vmem:[#allocation2 + $0x154] sm:$0xf] %vm402, %v391
      %489 = vst.msk [vmem:[#allocation2 + $0x158] sm:$0xf] %vm402, %v392
      %490 = vst.msk [vmem:[#allocation2 + $0x15c] sm:$0xf] %vm402, %v393
      %491 = vst.msk [vmem:[#allocation2 + $0x160] sm:$0xf] %vm402, %v394
      %492 = vst.msk [vmem:[#allocation2 + $0x164] sm:$0xf] %vm402, %v395
      %493 = vst.msk [vmem:[#allocation2 + $0x168] sm:$0xf] %vm402, %v396
      %494 = vst.msk [vmem:[#allocation2 + $0x16c] sm:$0xf] %vm402, %v397
      %495 = vst.msk [vmem:[#allocation2 + $0x170] sm:$0xf] %vm402, %v398
      %496 = vst.msk [vmem:[#allocation2 + $0x174] sm:$0xf] %vm402, %v399
      %497 = vst.msk [vmem:[#allocation2 + $0x178] sm:$0xf] %vm402, %v400
      %498 = vst.msk [vmem:[#allocation2 + $0x17c] sm:$0xf] %vm402, %v401
      %v499 = vld [vmem:[%s283] sm:$0xf]
      %v500 = vld [vmem:[%s283 + $0x4] sm:$0xf]
      %v501 = vld [vmem:[%s283 + $0x8] sm:$0xf]
      %v502 = vld [vmem:[%s283 + $0xc] sm:$0xf]
      %v503 = vld [vmem:[%s283 + $0x10] sm:$0xf]
      %v504 = vld [vmem:[%s283 + $0x14] sm:$0xf]
      %v505 = vld [vmem:[%s283 + $0x18] sm:$0xf]
      %v506 = vld [vmem:[%s283 + $0x1c] sm:$0xf]
      %v507 = vld [vmem:[%s283 + $0x20] sm:$0xf]
      %v508 = vld [vmem:[%s283 + $0x24] sm:$0xf]
      %v509 = vld [vmem:[%s283 + $0x28] sm:$0xf]
      %v510 = vld [vmem:[%s283 + $0x2c] sm:$0xf]
      %511 = vst.msk [vmem:[#allocation2 + $0x180] sm:$0xf] %vm402, %v499
      %512 = vst.msk [vmem:[#allocation2 + $0x184] sm:$0xf] %vm402, %v500
      %513 = vst.msk [vmem:[#allocation2 + $0x188] sm:$0xf] %vm402, %v501
      %514 = vst.msk [vmem:[#allocation2 + $0x18c] sm:$0xf] %vm402, %v502
      %515 = vst.msk [vmem:[#allocation2 + $0x190] sm:$0xf] %vm402, %v503
      %516 = vst.msk [vmem:[#allocation2 + $0x194] sm:$0xf] %vm402, %v504
      %517 = vst.msk [vmem:[#allocation2 + $0x198] sm:$0xf] %vm402, %v505
      %518 = vst.msk [vmem:[#allocation2 + $0x19c] sm:$0xf] %vm402, %v506
      %519 = vst.msk [vmem:[#allocation2 + $0x1a0] sm:$0xf] %vm402, %v507
      %520 = vst.msk [vmem:[#allocation2 + $0x1a4] sm:$0xf] %vm402, %v508
      %521 = vst.msk [vmem:[#allocation2 + $0x1a8] sm:$0xf] %vm402, %v509
      %522 = vst.msk [vmem:[#allocation2 + $0x1ac] sm:$0xf] %vm402, %v510
      %v523 = vld [vmem:[#allocation2] sm:$0xf]
      %v524 = vld [vmem:[#allocation2 + $0x4] sm:$0xf]
      %v525 = vld [vmem:[#allocation2 + $0x8] sm:$0xf]
      %v526 = vld [vmem:[#allocation2 + $0xc] sm:$0xf]
      %v527 = vld [vmem:[#allocation2 + $0x10] sm:$0xf]
      %v528 = vld [vmem:[#allocation2 + $0x14] sm:$0xf]
      %v529 = vld [vmem:[#allocation2 + $0x18] sm:$0xf]
      %v530 = vld [vmem:[#allocation2 + $0x1c] sm:$0xf]
      %v531 = vld [vmem:[#allocation2 + $0x20] sm:$0xf]
      %v532 = vld [vmem:[#allocation2 + $0x24] sm:$0xf]
      %v533 = vld [vmem:[#allocation2 + $0x28] sm:$0xf]
      %v534 = vld [vmem:[#allocation2 + $0x2c] sm:$0xf]
      %v535 = vld [vmem:[#allocation2 + $0x30] sm:$0xf]
      %v536 = vld [vmem:[#allocation2 + $0x34] sm:$0xf]
      %v537 = vld [vmem:[#allocation2 + $0x38] sm:$0xf]
      %v538 = vld [vmem:[#allocation2 + $0x3c] sm:$0xf]
      %v539 = vld [vmem:[#allocation2 + $0x40] sm:$0xf]
      %v540 = vld [vmem:[#allocation2 + $0x44] sm:$0xf]
      %v541 = vld [vmem:[#allocation2 + $0x48] sm:$0xf]
      %v542 = vld [vmem:[#allocation2 + $0x4c] sm:$0xf]
      %v543 = vld [vmem:[#allocation2 + $0x50] sm:$0xf]
      %v544 = vld [vmem:[#allocation2 + $0x54] sm:$0xf]
      %v545 = vld [vmem:[#allocation2 + $0x58] sm:$0xf]
      %v546 = vld [vmem:[#allocation2 + $0x5c] sm:$0xf]
      %v547 = vld [vmem:[#allocation2 + $0x60] sm:$0xf]
      %v548 = vld [vmem:[#allocation2 + $0x64] sm:$0xf]
      %v549 = vld [vmem:[#allocation2 + $0x68] sm:$0xf]
      %v550 = vld [vmem:[#allocation2 + $0x6c] sm:$0xf]
      %v551 = vld [vmem:[#allocation2 + $0x70] sm:$0xf]
      %v552 = vld [vmem:[#allocation2 + $0x74] sm:$0xf]
      %v553 = vld [vmem:[#allocation2 + $0x78] sm:$0xf]
      %v554 = vld [vmem:[#allocation2 + $0x7c] sm:$0xf]
      %v555 = vld [vmem:[#allocation2 + $0x80] sm:$0xf]
      %v556 = vld [vmem:[#allocation2 + $0x84] sm:$0xf]
      %v557 = vld [vmem:[#allocation2 + $0x88] sm:$0xf]
      %v558 = vld [vmem:[#allocation2 + $0x8c] sm:$0xf]
      %v559 = vld [vmem:[#allocation2 + $0x90] sm:$0xf]
      %v560 = vld [vmem:[#allocation2 + $0x94] sm:$0xf]
      %v561 = vld [vmem:[#allocation2 + $0x98] sm:$0xf]
      %v562 = vld [vmem:[#allocation2 + $0x9c] sm:$0xf]
      %v563 = vld [vmem:[#allocation2 + $0xa0] sm:$0xf]
      %v564 = vld [vmem:[#allocation2 + $0xa4] sm:$0xf]
      %v565 = vld [vmem:[#allocation2 + $0xa8] sm:$0xf]
      %v566 = vld [vmem:[#allocation2 + $0xac] sm:$0xf]
      %v567 = vld [vmem:[#allocation2 + $0xb0] sm:$0xf]
      %v568 = vld [vmem:[#allocation2 + $0xb4] sm:$0xf]
      %v569 = vld [vmem:[#allocation2 + $0xb8] sm:$0xf]
      %v570 = vld [vmem:[#allocation2 + $0xbc] sm:$0xf]
      %v571 = vld [vmem:[#allocation2 + $0xc0] sm:$0xf]
      %v572 = vld [vmem:[#allocation2 + $0xc4] sm:$0xf]
      %v573 = vld [vmem:[#allocation2 + $0xc8] sm:$0xf]
      %v574 = vld [vmem:[#allocation2 + $0xcc] sm:$0xf]
      %v575 = vld [vmem:[#allocation2 + $0xd0] sm:$0xf]
      %v576 = vld [vmem:[#allocation2 + $0xd4] sm:$0xf]
      %v577 = vld [vmem:[#allocation2 + $0xd8] sm:$0xf]
      %v578 = vld [vmem:[#allocation2 + $0xdc] sm:$0xf]
      %v579 = vld [vmem:[#allocation2 + $0xe0] sm:$0xf]
      %v580 = vld [vmem:[#allocation2 + $0xe4] sm:$0xf]
      %v581 = vld [vmem:[#allocation2 + $0xe8] sm:$0xf]
      %v582 = vld [vmem:[#allocation2 + $0xec] sm:$0xf]
      %v583 = vld [vmem:[#allocation2 + $0xf0] sm:$0xf]
      %v584 = vld [vmem:[#allocation2 + $0xf4] sm:$0xf]
      %v585 = vld [vmem:[#allocation2 + $0xf8] sm:$0xf]
      %v586 = vld [vmem:[#allocation2 + $0xfc] sm:$0xf]
      %v587 = vld [vmem:[#allocation2 + $0x100] sm:$0xf]
      %v588 = vld [vmem:[#allocation2 + $0x104] sm:$0xf]
      %v589 = vld [vmem:[#allocation2 + $0x108] sm:$0xf]
      %v590 = vld [vmem:[#allocation2 + $0x10c] sm:$0xf]
      %v591 = vld [vmem:[#allocation2 + $0x110] sm:$0xf]
      %v592 = vld [vmem:[#allocation2 + $0x114] sm:$0xf]
      %v593 = vld [vmem:[#allocation2 + $0x118] sm:$0xf]
      %v594 = vld [vmem:[#allocation2 + $0x11c] sm:$0xf]
      %v595 = vld [vmem:[#allocation2 + $0x120] sm:$0xf]
      %v596 = vld [vmem:[#allocation2 + $0x124] sm:$0xf]
      %v597 = vld [vmem:[#allocation2 + $0x128] sm:$0xf]
      %v598 = vld [vmem:[#allocation2 + $0x12c] sm:$0xf]
      %v599 = vld [vmem:[#allocation2 + $0x130] sm:$0xf]
      %v600 = vld [vmem:[#allocation2 + $0x134] sm:$0xf]
      %v601 = vld [vmem:[#allocation2 + $0x138] sm:$0xf]
      %v602 = vld [vmem:[#allocation2 + $0x13c] sm:$0xf]
      %v603 = vld [vmem:[#allocation2 + $0x140] sm:$0xf]
      %v604 = vld [vmem:[#allocation2 + $0x144] sm:$0xf]
      %v605 = vld [vmem:[#allocation2 + $0x148] sm:$0xf]
      %v606 = vld [vmem:[#allocation2 + $0x14c] sm:$0xf]
      %v607 = vld [vmem:[#allocation2 + $0x150] sm:$0xf]
      %v608 = vld [vmem:[#allocation2 + $0x154] sm:$0xf]
      %v609 = vld [vmem:[#allocation2 + $0x158] sm:$0xf]
      %v610 = vld [vmem:[#allocation2 + $0x15c] sm:$0xf]
      %v611 = vld [vmem:[#allocation2 + $0x160] sm:$0xf]
      %v612 = vld [vmem:[#allocation2 + $0x164] sm:$0xf]
      %v613 = vld [vmem:[#allocation2 + $0x168] sm:$0xf]
      %v614 = vld [vmem:[#allocation2 + $0x16c] sm:$0xf]
      %v615 = vld [vmem:[#allocation2 + $0x170] sm:$0xf]
      %v616 = vld [vmem:[#allocation2 + $0x174] sm:$0xf]
      %v617 = vld [vmem:[#allocation2 + $0x178] sm:$0xf]
      %v618 = vld [vmem:[#allocation2 + $0x17c] sm:$0xf]
      %v619 = vld [vmem:[%s3] sm:$0xf]
      %v620 = vld [vmem:[%s3 + $0x4] sm:$0xf]
      %v621 = vld [vmem:[%s3 + $0x8] sm:$0xf]
      %v622 = vld [vmem:[%s3 + $0xc] sm:$0xf]
      %v623 = vld [vmem:[#allocation2 + $0x180] sm:$0x1]
      %v624 = vld [vmem:[%s3 + $0x10] sm:$0xf]
      %v625 = vld [vmem:[%s3 + $0x14] sm:$0xf]
      %v626 = vld [vmem:[%s3 + $0x18] sm:$0xf]
      %v627 = vld [vmem:[%s3 + $0x1c] sm:$0xf]
      %v725 = vunpack.c.l.b16 %v523
      %v726 = vunpack.c.l.b16 %v524
      %v727 = vunpack.c.l.b16 %v525
      %v728 = vunpack.c.l.b16 %v526
      %v729 = vunpack.c.l.b16 %v527
      %v730 = vunpack.c.l.b16 %v528
      %v731 = vunpack.c.l.b16 %v529
      %v732 = vunpack.c.l.b16 %v530
      %v733 = vunpack.c.l.b16 %v531
      %v734 = vunpack.c.l.b16 %v532
      %v735 = vunpack.c.l.b16 %v533
      %v736 = vunpack.c.l.b16 %v534
      %v737 = vunpack.c.l.b16 %v535
      %v738 = vunpack.c.l.b16 %v536
      %v739 = vunpack.c.l.b16 %v537
      %v740 = vunpack.c.l.b16 %v538
      %v741 = vunpack.c.l.b16 %v539
      %v742 = vunpack.c.l.b16 %v540
      %v743 = vunpack.c.l.b16 %v541
      %v744 = vunpack.c.l.b16 %v542
      %v745 = vunpack.c.l.b16 %v543
      %v746 = vunpack.c.l.b16 %v544
      %v747 = vunpack.c.l.b16 %v545
      %v748 = vunpack.c.l.b16 %v546
      %v749 = vunpack.c.l.b16 %v547
      %v750 = vunpack.c.l.b16 %v548
      %v751 = vunpack.c.l.b16 %v549
      %v752 = vunpack.c.l.b16 %v550
      %v753 = vunpack.c.l.b16 %v551
      %v754 = vunpack.c.l.b16 %v552
      %v755 = vunpack.c.l.b16 %v553
      %v756 = vunpack.c.l.b16 %v554
      %v757 = vunpack.c.l.b16 %v555
      %v758 = vunpack.c.l.b16 %v556
      %v759 = vunpack.c.l.b16 %v557
      %v760 = vunpack.c.l.b16 %v558
      %v761 = vunpack.c.l.b16 %v559
      %v762 = vunpack.c.l.b16 %v560
      %v763 = vunpack.c.l.b16 %v561
      %v764 = vunpack.c.l.b16 %v562
      %v765 = vunpack.c.l.b16 %v563
      %v766 = vunpack.c.l.b16 %v564
      %v767 = vunpack.c.l.b16 %v565
      %v768 = vunpack.c.l.b16 %v566
      %v769 = vunpack.c.l.b16 %v567
      %v770 = vunpack.c.l.b16 %v568
      %v771 = vunpack.c.l.b16 %v569
      %v772 = vunpack.c.l.b16 %v570
      %v773 = vunpack.c.l.b16 %v571
      %v774 = vunpack.c.l.b16 %v572
      %v775 = vunpack.c.l.b16 %v573
      %v776 = vunpack.c.l.b16 %v574
      %v777 = vunpack.c.l.b16 %v575
      %v778 = vunpack.c.l.b16 %v576
      %v779 = vunpack.c.l.b16 %v577
      %v780 = vunpack.c.l.b16 %v578
      %v781 = vunpack.c.l.b16 %v579
      %v782 = vunpack.c.l.b16 %v580
      %v783 = vunpack.c.l.b16 %v581
      %v784 = vunpack.c.l.b16 %v582
      %v785 = vunpack.c.l.b16 %v583
      %v786 = vunpack.c.l.b16 %v584
      %v787 = vunpack.c.l.b16 %v585
      %v788 = vunpack.c.l.b16 %v586
      %v789 = vunpack.c.l.b16 %v587
      %v790 = vunpack.c.l.b16 %v588
      %v791 = vunpack.c.l.b16 %v589
      %v792 = vunpack.c.l.b16 %v590
      %v793 = vunpack.c.l.b16 %v591
      %v794 = vunpack.c.l.b16 %v592
      %v795 = vunpack.c.l.b16 %v593
      %v796 = vunpack.c.l.b16 %v594
      %v797 = vunpack.c.l.b16 %v595
      %v798 = vunpack.c.l.b16 %v596
      %v799 = vunpack.c.l.b16 %v597
      %v800 = vunpack.c.l.b16 %v598
      %v801 = vunpack.c.l.b16 %v599
      %v802 = vunpack.c.l.b16 %v600
      %v803 = vunpack.c.l.b16 %v601
      %v804 = vunpack.c.l.b16 %v602
      %v805 = vunpack.c.l.b16 %v603
      %v806 = vunpack.c.l.b16 %v604
      %v807 = vunpack.c.l.b16 %v605
      %v808 = vunpack.c.l.b16 %v606
      %v809 = vunpack.c.l.b16 %v607
      %v810 = vunpack.c.l.b16 %v608
      %v811 = vunpack.c.l.b16 %v609
      %v812 = vunpack.c.l.b16 %v610
      %v813 = vunpack.c.l.b16 %v611
      %v814 = vunpack.c.l.b16 %v612
      %v815 = vunpack.c.l.b16 %v613
      %v816 = vunpack.c.l.b16 %v614
      %v817 = vunpack.c.l.b16 %v615
      %v818 = vunpack.c.l.b16 %v616
      %v819 = vunpack.c.l.b16 %v617
      %v820 = vunpack.c.l.b16 %v618
      %v821 = vunpack.c.l.b16 %v623
      %v822 = vpack.c.b16 %v726, %v725
      %v823 = vpack.c.b16 %v728, %v727
      %v824 = vpack.c.b16 %v730, %v729
      %v825 = vpack.c.b16 %v732, %v731
      %v826 = vpack.c.b16 %v734, %v733
      %v827 = vpack.c.b16 %v736, %v735
      %v828 = vpack.c.b16 %v738, %v737
      %v829 = vpack.c.b16 %v740, %v739
      %v830 = vpack.c.b16 %v742, %v741
      %v831 = vpack.c.b16 %v744, %v743
      %v832 = vpack.c.b16 %v746, %v745
      %v833 = vpack.c.b16 %v748, %v747
      %v834 = vpack.c.b16 %v750, %v749
      %v835 = vpack.c.b16 %v752, %v751
      %v836 = vpack.c.b16 %v754, %v753
      %v837 = vpack.c.b16 %v756, %v755
      %v838 = vpack.c.b16 %v758, %v757
      %v839 = vpack.c.b16 %v760, %v759
      %v840 = vpack.c.b16 %v762, %v761
      %v841 = vpack.c.b16 %v764, %v763
      %v842 = vpack.c.b16 %v766, %v765
      %v843 = vpack.c.b16 %v768, %v767
      %v844 = vpack.c.b16 %v770, %v769
      %v845 = vpack.c.b16 %v772, %v771
      %v846 = vpack.c.b16 %v774, %v773
      %v847 = vpack.c.b16 %v776, %v775
      %v848 = vpack.c.b16 %v778, %v777
      %v849 = vpack.c.b16 %v780, %v779
      %v850 = vpack.c.b16 %v782, %v781
      %v851 = vpack.c.b16 %v784, %v783
      %v852 = vpack.c.b16 %v786, %v785
      %v853 = vpack.c.b16 %v788, %v787
      %v854 = vpack.c.b16 %v790, %v789
      %v855 = vpack.c.b16 %v792, %v791
      %v856 = vpack.c.b16 %v794, %v793
      %v857 = vpack.c.b16 %v796, %v795
      %v858 = vpack.c.b16 %v798, %v797
      %v859 = vpack.c.b16 %v800, %v799
      %v860 = vpack.c.b16 %v802, %v801
      %v861 = vpack.c.b16 %v804, %v803
      %v862 = vpack.c.b16 %v806, %v805
      %v863 = vpack.c.b16 %v808, %v807
      %v864 = vpack.c.b16 %v810, %v809
      %v865 = vpack.c.b16 %v812, %v811
      %v866 = vpack.c.b16 %v814, %v813
      %v867 = vpack.c.b16 %v816, %v815
      %v868 = vpack.c.b16 %v818, %v817
      %v869 = vpack.c.b16 %v820, %v819
      %v870 = vpack.c.b16 %v821, %v821
      %vm871 = vsmask.f32 7424
      %v873 = vshrl.u32 %v822, 16
      %v875 = vshll.u32 %v822, 16
      %v877 = vrot.slane %v875, 1
      %v878 = vor.u32 %v873, %v877
      %v880 = vshll.u32 %v823, 16
      %v882 = vrot.slane %v880, 1
      %v883 = vsel %vm871, %v878, %v882
      %v884 = vshrl.u32 %v823, 16
      %v886 = vor.u32 %v884, %v882
      %v888 = vshll.u32 %v824, 16
      %v890 = vrot.slane %v888, 1
      %v891 = vsel %vm871, %v886, %v890
      %v892 = vshrl.u32 %v824, 16
      %v894 = vor.u32 %v892, %v890
      %v896 = vshll.u32 %v825, 16
      %v898 = vrot.slane %v896, 1
      %v899 = vsel %vm871, %v894, %v898
      %v900 = vshrl.u32 %v825, 16
      %v902 = vor.u32 %v900, %v898
      %v904 = vshll.u32 %v826, 16
      %v906 = vrot.slane %v904, 1
      %v907 = vsel %vm871, %v902, %v906
      %v908 = vshrl.u32 %v826, 16
      %v910 = vor.u32 %v908, %v906
      %v912 = vshll.u32 %v827, 16
      %v914 = vrot.slane %v912, 1
      %v915 = vsel %vm871, %v910, %v914
      %v916 = vshrl.u32 %v827, 16
      %v918 = vor.u32 %v916, %v914
      %v920 = vshll.u32 %v828, 16
      %v922 = vrot.slane %v920, 1
      %v923 = vsel %vm871, %v918, %v922
      %v924 = vshrl.u32 %v828, 16
      %v926 = vor.u32 %v924, %v922
      %v928 = vshll.u32 %v829, 16
      %v930 = vrot.slane %v928, 1
      %v931 = vsel %vm871, %v926, %v930
      %v932 = vshrl.u32 %v829, 16
      %v934 = vor.u32 %v932, %v930
      %v936 = vshll.u32 %v830, 16
      %v938 = vrot.slane %v936, 1
      %v939 = vsel %vm871, %v934, %v938
      %v940 = vshrl.u32 %v830, 16
      %v942 = vor.u32 %v940, %v938
      %v944 = vshll.u32 %v831, 16
      %v946 = vrot.slane %v944, 1
      %v947 = vsel %vm871, %v942, %v946
      %v948 = vshrl.u32 %v831, 16
      %v950 = vor.u32 %v948, %v946
      %v952 = vshll.u32 %v832, 16
      %v954 = vrot.slane %v952, 1
      %v955 = vsel %vm871, %v950, %v954
      %v956 = vshrl.u32 %v832, 16
      %v958 = vor.u32 %v956, %v954
      %v960 = vshll.u32 %v833, 16
      %v962 = vrot.slane %v960, 1
      %v963 = vsel %vm871, %v958, %v962
      %v964 = vshrl.u32 %v833, 16
      %v966 = vor.u32 %v964, %v962
      %v968 = vshll.u32 %v834, 16
      %v970 = vrot.slane %v968, 1
      %v971 = vsel %vm871, %v966, %v970
      %v972 = vshrl.u32 %v834, 16
      %v974 = vor.u32 %v972, %v970
      %v976 = vshll.u32 %v835, 16
      %v978 = vrot.slane %v976, 1
      %v979 = vsel %vm871, %v974, %v978
      %v980 = vshrl.u32 %v835, 16
      %v982 = vor.u32 %v980, %v978
      %v984 = vshll.u32 %v836, 16
      %v986 = vrot.slane %v984, 1
      %v987 = vsel %vm871, %v982, %v986
      %v988 = vshrl.u32 %v836, 16
      %v990 = vor.u32 %v988, %v986
      %v992 = vshll.u32 %v837, 16
      %v994 = vrot.slane %v992, 1
      %v995 = vsel %vm871, %v990, %v994
      %v996 = vshrl.u32 %v837, 16
      %v998 = vor.u32 %v996, %v994
      %v1000 = vshll.u32 %v838, 16
      %v1002 = vrot.slane %v1000, 1
      %v1003 = vsel %vm871, %v998, %v1002
      %v1004 = vshrl.u32 %v838, 16
      %v1006 = vor.u32 %v1004, %v1002
      %v1008 = vshll.u32 %v839, 16
      %v1010 = vrot.slane %v1008, 1
      %v1011 = vsel %vm871, %v1006, %v1010
      %v1012 = vshrl.u32 %v839, 16
      %v1014 = vor.u32 %v1012, %v1010
      %v1016 = vshll.u32 %v840, 16
      %v1018 = vrot.slane %v1016, 1
      %v1019 = vsel %vm871, %v1014, %v1018
      %v1020 = vshrl.u32 %v840, 16
      %v1022 = vor.u32 %v1020, %v1018
      %v1024 = vshll.u32 %v841, 16
      %v1026 = vrot.slane %v1024, 1
      %v1027 = vsel %vm871, %v1022, %v1026
      %v1028 = vshrl.u32 %v841, 16
      %v1030 = vor.u32 %v1028, %v1026
      %v1032 = vshll.u32 %v842, 16
      %v1034 = vrot.slane %v1032, 1
      %v1035 = vsel %vm871, %v1030, %v1034
      %v1036 = vshrl.u32 %v842, 16
      %v1038 = vor.u32 %v1036, %v1034
      %v1040 = vshll.u32 %v843, 16
      %v1042 = vrot.slane %v1040, 1
      %v1043 = vsel %vm871, %v1038, %v1042
      %v1044 = vshrl.u32 %v843, 16
      %v1046 = vor.u32 %v1044, %v1042
      %v1048 = vshll.u32 %v844, 16
      %v1050 = vrot.slane %v1048, 1
      %v1051 = vsel %vm871, %v1046, %v1050
      %v1052 = vshrl.u32 %v844, 16
      %v1054 = vor.u32 %v1052, %v1050
      %v1056 = vshll.u32 %v845, 16
      %v1058 = vrot.slane %v1056, 1
      %v1059 = vsel %vm871, %v1054, %v1058
      %v1060 = vshrl.u32 %v845, 16
      %v1062 = vor.u32 %v1060, %v1058
      %v1064 = vshll.u32 %v846, 16
      %v1066 = vrot.slane %v1064, 1
      %v1067 = vsel %vm871, %v1062, %v1066
      %v1068 = vshrl.u32 %v846, 16
      %v1070 = vor.u32 %v1068, %v1066
      %v1072 = vshll.u32 %v847, 16
      %v1074 = vrot.slane %v1072, 1
      %v1075 = vsel %vm871, %v1070, %v1074
      %v1076 = vshrl.u32 %v847, 16
      %v1078 = vor.u32 %v1076, %v1074
      %v1080 = vshll.u32 %v848, 16
      %v1082 = vrot.slane %v1080, 1
      %v1083 = vsel %vm871, %v1078, %v1082
      %v1084 = vshrl.u32 %v848, 16
      %v1086 = vor.u32 %v1084, %v1082
      %v1088 = vshll.u32 %v849, 16
      %v1090 = vrot.slane %v1088, 1
      %v1091 = vsel %vm871, %v1086, %v1090
      %v1092 = vshrl.u32 %v849, 16
      %v1094 = vor.u32 %v1092, %v1090
      %v1096 = vshll.u32 %v850, 16
      %v1098 = vrot.slane %v1096, 1
      %v1099 = vsel %vm871, %v1094, %v1098
      %v1100 = vshrl.u32 %v850, 16
      %v1102 = vor.u32 %v1100, %v1098
      %v1104 = vshll.u32 %v851, 16
      %v1106 = vrot.slane %v1104, 1
      %v1107 = vsel %vm871, %v1102, %v1106
      %v1108 = vshrl.u32 %v851, 16
      %v1110 = vor.u32 %v1108, %v1106
      %v1112 = vshll.u32 %v852, 16
      %v1114 = vrot.slane %v1112, 1
      %v1115 = vsel %vm871, %v1110, %v1114
      %v1116 = vshrl.u32 %v852, 16
      %v1118 = vor.u32 %v1116, %v1114
      %v1120 = vshll.u32 %v853, 16
      %v1122 = vrot.slane %v1120, 1
      %v1123 = vsel %vm871, %v1118, %v1122
      %v1124 = vshrl.u32 %v853, 16
      %v1126 = vor.u32 %v1124, %v1122
      %v1128 = vshll.u32 %v854, 16
      %v1130 = vrot.slane %v1128, 1
      %v1131 = vsel %vm871, %v1126, %v1130
      %v1132 = vshrl.u32 %v854, 16
      %v1134 = vor.u32 %v1132, %v1130
      %v1136 = vshll.u32 %v855, 16
      %v1138 = vrot.slane %v1136, 1
      %v1139 = vsel %vm871, %v1134, %v1138
      %v1140 = vshrl.u32 %v855, 16
      %v1142 = vor.u32 %v1140, %v1138
      %v1144 = vshll.u32 %v856, 16
      %v1146 = vrot.slane %v1144, 1
      %v1147 = vsel %vm871, %v1142, %v1146
      %v1148 = vshrl.u32 %v856, 16
      %v1150 = vor.u32 %v1148, %v1146
      %v1152 = vshll.u32 %v857, 16
      %v1154 = vrot.slane %v1152, 1
      %v1155 = vsel %vm871, %v1150, %v1154
      %v1156 = vshrl.u32 %v857, 16
      %v1158 = vor.u32 %v1156, %v1154
      %v1160 = vshll.u32 %v858, 16
      %v1162 = vrot.slane %v1160, 1
      %v1163 = vsel %vm871, %v1158, %v1162
      %v1164 = vshrl.u32 %v858, 16
      %v1166 = vor.u32 %v1164, %v1162
      %v1168 = vshll.u32 %v859, 16
      %v1170 = vrot.slane %v1168, 1
      %v1171 = vsel %vm871, %v1166, %v1170
      %v1172 = vshrl.u32 %v859, 16
      %v1174 = vor.u32 %v1172, %v1170
      %v1176 = vshll.u32 %v860, 16
      %v1178 = vrot.slane %v1176, 1
      %v1179 = vsel %vm871, %v1174, %v1178
      %v1180 = vshrl.u32 %v860, 16
      %v1182 = vor.u32 %v1180, %v1178
      %v1184 = vshll.u32 %v861, 16
      %v1186 = vrot.slane %v1184, 1
      %v1187 = vsel %vm871, %v1182, %v1186
      %v1188 = vshrl.u32 %v861, 16
      %v1190 = vor.u32 %v1188, %v1186
      %v1192 = vshll.u32 %v862, 16
      %v1194 = vrot.slane %v1192, 1
      %v1195 = vsel %vm871, %v1190, %v1194
      %v1196 = vshrl.u32 %v862, 16
      %v1198 = vor.u32 %v1196, %v1194
      %v1200 = vshll.u32 %v863, 16
      %v1202 = vrot.slane %v1200, 1
      %v1203 = vsel %vm871, %v1198, %v1202
      %v1204 = vshrl.u32 %v863, 16
      %v1206 = vor.u32 %v1204, %v1202
      %v1208 = vshll.u32 %v864, 16
      %v1210 = vrot.slane %v1208, 1
      %v1211 = vsel %vm871, %v1206, %v1210
      %v1212 = vshrl.u32 %v864, 16
      %v1214 = vor.u32 %v1212, %v1210
      %v1216 = vshll.u32 %v865, 16
      %v1218 = vrot.slane %v1216, 1
      %v1219 = vsel %vm871, %v1214, %v1218
      %v1220 = vshrl.u32 %v865, 16
      %v1222 = vor.u32 %v1220, %v1218
      %v1224 = vshll.u32 %v866, 16
      %v1226 = vrot.slane %v1224, 1
      %v1227 = vsel %vm871, %v1222, %v1226
      %v1228 = vshrl.u32 %v866, 16
      %v1230 = vor.u32 %v1228, %v1226
      %v1232 = vshll.u32 %v867, 16
      %v1234 = vrot.slane %v1232, 1
      %v1235 = vsel %vm871, %v1230, %v1234
      %v1236 = vshrl.u32 %v867, 16
      %v1238 = vor.u32 %v1236, %v1234
      %v1240 = vshll.u32 %v868, 16
      %v1242 = vrot.slane %v1240, 1
      %v1243 = vsel %vm871, %v1238, %v1242
      %v1244 = vshrl.u32 %v868, 16
      %v1246 = vor.u32 %v1244, %v1242
      %v1248 = vshll.u32 %v869, 16
      %v1250 = vrot.slane %v1248, 1
      %v1251 = vsel %vm871, %v1246, %v1250
      %v1252 = vshrl.u32 %v869, 16
      %v1254 = vor.u32 %v1252, %v1250
      %v1256 = vshll.u32 %v870, 16
      %v1258 = vrot.slane %v1256, 1
      %v1259 = vsel %vm871, %v1254, %v1258
      %v1264 = vunpack.c.l.b16 %v624
      %v1265 = vunpack.c.l.b16 %v625
      %v1266 = vunpack.c.l.b16 %v626
      %v1267 = vunpack.c.l.b16 %v627
      %v1268 = vpack.c.b16 %v1265, %v1264
      %v1269 = vpack.c.b16 %v1267, %v1266
      %vm1272 = vcmask 261120
      %v1274 = vsel %vm1272, %v883, 0
      %v1277 = vsel %vm1272, %v891, 0
      %v1280 = vsel %vm1272, %v899, 0
      %v1283 = vsel %vm1272, %v907, 0
      %v1286 = vsel %vm1272, %v915, 0
      %v1289 = vsel %vm1272, %v923, 0
      %v1292 = vsel %vm1272, %v931, 0
      %v1295 = vsel %vm1272, %v939, 0
      %v1298 = vsel %vm1272, %v947, 0
      %v1301 = vsel %vm1272, %v955, 0
      %v1304 = vsel %vm1272, %v963, 0
      %v1307 = vsel %vm1272, %v971, 0
      %v1310 = vsel %vm1272, %v979, 0
      %v1313 = vsel %vm1272, %v987, 0
      %v1316 = vsel %vm1272, %v995, 0
      %v1319 = vsel %vm1272, %v1003, 0
      %v1322 = vsel %vm1272, %v1011, 0
      %v1325 = vsel %vm1272, %v1019, 0
      %v1328 = vsel %vm1272, %v1027, 0
      %v1331 = vsel %vm1272, %v1035, 0
      %v1334 = vsel %vm1272, %v1043, 0
      %v1337 = vsel %vm1272, %v1051, 0
      %v1340 = vsel %vm1272, %v1059, 0
      %v1343 = vsel %vm1272, %v1067, 0
      %v1346 = vsel %vm1272, %v1075, 0
      %v1349 = vsel %vm1272, %v1083, 0
      %v1352 = vsel %vm1272, %v1091, 0
      %v1355 = vsel %vm1272, %v1099, 0
      %v1358 = vsel %vm1272, %v1107, 0
      %v1361 = vsel %vm1272, %v1115, 0
      %v1364 = vsel %vm1272, %v1123, 0
      %v1367 = vsel %vm1272, %v1131, 0
      %v1370 = vsel %vm1272, %v1139, 0
      %v1373 = vsel %vm1272, %v1147, 0
      %v1376 = vsel %vm1272, %v1155, 0
      %v1379 = vsel %vm1272, %v1163, 0
      %v1382 = vsel %vm1272, %v1171, 0
      %v1385 = vsel %vm1272, %v1179, 0
      %v1388 = vsel %vm1272, %v1187, 0
      %v1391 = vsel %vm1272, %v1195, 0
      %v1394 = vsel %vm1272, %v1203, 0
      %v1397 = vsel %vm1272, %v1211, 0
      %v1400 = vsel %vm1272, %v1219, 0
      %v1403 = vsel %vm1272, %v1227, 0
      %v1406 = vsel %vm1272, %v1235, 0
      %v1409 = vsel %vm1272, %v1243, 0
      %v1412 = vsel %vm1272, %v1251, 0
      %v1415 = vsel %vm1272, %v1259, 0
      %1417 = vmatprep.subr.bf16.mxu0 0
      %1418 = vmatpush1.bf16.msra.mxu0 0
      %1419 = vmatprep.subr.bf16.mxu0 0
      %1420 = vmatpush1.bf16.msra.mxu0 0
      %1421 = vmatprep.subr.bf16.mxu0 0
      %1422 = vmatpush1.bf16.msra.mxu0 0
      %1423 = vmatprep.subr.bf16.mxu0 0
      %1424 = vmatpush1.bf16.msra.mxu0 0
      %1425 = vmatprep.subr.bf16.mxu0 0
      %1426 = vmatpush1.bf16.msra.mxu0 0
      %1427 = vmatprep.subr.bf16.mxu0 0
      %1428 = vmatpush1.bf16.msra.mxu0 0
      %1429 = vmatprep.subr.bf16.mxu0 0
      %1430 = vmatpush1.bf16.msra.mxu0 %v1269
      %1431 = vmatprep.subr.bf16.mxu0 0
      %1432 = vmatpush1.bf16.msra.mxu0 %v1268
      %1433 = vmatprep.subr.bf16.mxu0 0
      %1434 = vmatpush2.bf16.msra.mxu0 0
      %1435 = vmatprep.subr.bf16.mxu0 0
      %1436 = vmatpush2.bf16.msra.mxu0 0
      %1437 = vmatprep.subr.bf16.mxu0 0
      %1438 = vmatpush2.bf16.msra.mxu0 0
      %1439 = vmatprep.subr.bf16.mxu0 0
      %1440 = vmatpush2.bf16.msra.mxu0 0
      %1441 = vmatprep.subr.bf16.mxu0 0
      %1442 = vmatpush2.bf16.msra.mxu0 0
      %1443 = vmatprep.subr.bf16.mxu0 0
      %1444 = vmatpush2.bf16.msra.mxu0 0
      %1445 = vmatprep.subr.bf16.mxu0 0
      %1446 = vmatpush2.bf16.msra.mxu0 0
      %1447 = vmatprep.subr.bf16.mxu0 0
      %1448 = vmatpush2.bf16.msra.mxu0 0
      %1449 = vmatprep.mubr.bf16.mxu0 0
      %1450 = vmatmul.mubr.bf16.gmra.mxu0 %v1274
      %v1451 = vpop.f32.mrf.mxu0
      %v1452 = vadd.f32 0.0, %v1451
      %v1453 = vpop.f32.mrf.mxu0
      %v1454 = vpop.f32.mrf.mxu0
      %v1455 = vadd.f32 0.0, %v1454
      %v1456 = vpop.f32.mrf.mxu0
      %1457 = vmatprep.mubr.bf16.mxu0 0
      %1458 = vmatmul.mubr.bf16.gmra.mxu0 %v1277
      %v1459 = vpop.f32.mrf.mxu0
      %v1460 = vadd.f32 0.0, %v1459
      %v1461 = vpop.f32.mrf.mxu0
      %v1462 = vpop.f32.mrf.mxu0
      %v1463 = vadd.f32 0.0, %v1462
      %v1464 = vpop.f32.mrf.mxu0
      %1465 = vmatprep.mubr.bf16.mxu0 0
      %1466 = vmatmul.mubr.bf16.gmra.mxu0 %v1280
      %v1467 = vpop.f32.mrf.mxu0
      %v1468 = vadd.f32 0.0, %v1467
      %v1469 = vpop.f32.mrf.mxu0
      %v1470 = vpop.f32.mrf.mxu0
      %v1471 = vadd.f32 0.0, %v1470
      %v1472 = vpop.f32.mrf.mxu0
      %1473 = vmatprep.mubr.bf16.mxu0 0
      %1474 = vmatmul.mubr.bf16.gmra.mxu0 %v1283
      %v1475 = vpop.f32.mrf.mxu0
      %v1476 = vadd.f32 0.0, %v1475
      %v1477 = vpop.f32.mrf.mxu0
      %v1478 = vpop.f32.mrf.mxu0
      %v1479 = vadd.f32 0.0, %v1478
      %v1480 = vpop.f32.mrf.mxu0
      %1481 = vmatprep.mubr.bf16.mxu0 0
      %1482 = vmatmul.mubr.bf16.gmra.mxu0 %v1286
      %v1483 = vpop.f32.mrf.mxu0
      %v1484 = vadd.f32 0.0, %v1483
      %v1485 = vpop.f32.mrf.mxu0
      %v1486 = vpop.f32.mrf.mxu0
      %v1487 = vadd.f32 0.0, %v1486
      %v1488 = vpop.f32.mrf.mxu0
      %1489 = vmatprep.mubr.bf16.mxu0 0
      %1490 = vmatmul.mubr.bf16.gmra.mxu0 %v1289
      %v1491 = vpop.f32.mrf.mxu0
      %v1492 = vadd.f32 0.0, %v1491
      %v1493 = vpop.f32.mrf.mxu0
      %v1494 = vpop.f32.mrf.mxu0
      %v1495 = vadd.f32 0.0, %v1494
      %v1496 = vpop.f32.mrf.mxu0
      %1497 = vmatprep.mubr.bf16.mxu0 0
      %1498 = vmatmul.mubr.bf16.gmra.mxu0 %v1292
      %v1499 = vpop.f32.mrf.mxu0
      %v1500 = vadd.f32 0.0, %v1499
      %v1501 = vpop.f32.mrf.mxu0
      %v1502 = vpop.f32.mrf.mxu0
      %v1503 = vadd.f32 0.0, %v1502
      %v1504 = vpop.f32.mrf.mxu0
      %1505 = vmatprep.mubr.bf16.mxu0 0
      %1506 = vmatmul.mubr.bf16.gmra.mxu0 %v1295
      %v1507 = vpop.f32.mrf.mxu0
      %v1508 = vadd.f32 0.0, %v1507
      %v1509 = vpop.f32.mrf.mxu0
      %v1510 = vpop.f32.mrf.mxu0
      %v1511 = vadd.f32 0.0, %v1510
      %v1512 = vpop.f32.mrf.mxu0
      %1513 = vmatprep.mubr.bf16.mxu0 0
      %1514 = vmatmul.mubr.bf16.gmra.mxu0 %v1298
      %v1515 = vpop.f32.mrf.mxu0
      %v1516 = vadd.f32 0.0, %v1515
      %v1517 = vpop.f32.mrf.mxu0
      %v1518 = vpop.f32.mrf.mxu0
      %v1519 = vadd.f32 0.0, %v1518
      %v1520 = vpop.f32.mrf.mxu0
      %1521 = vmatprep.mubr.bf16.mxu0 0
      %1522 = vmatmul.mubr.bf16.gmra.mxu0 %v1301
      %v1523 = vpop.f32.mrf.mxu0
      %v1524 = vadd.f32 0.0, %v1523
      %v1525 = vpop.f32.mrf.mxu0
      %v1526 = vpop.f32.mrf.mxu0
      %v1527 = vadd.f32 0.0, %v1526
      %v1528 = vpop.f32.mrf.mxu0
      %1529 = vmatprep.mubr.bf16.mxu0 0
      %1530 = vmatmul.mubr.bf16.gmra.mxu0 %v1304
      %v1531 = vpop.f32.mrf.mxu0
      %v1532 = vadd.f32 0.0, %v1531
      %v1533 = vpop.f32.mrf.mxu0
      %v1534 = vpop.f32.mrf.mxu0
      %v1535 = vadd.f32 0.0, %v1534
      %v1536 = vpop.f32.mrf.mxu0
      %1537 = vmatprep.mubr.bf16.mxu0 0
      %1538 = vmatmul.mubr.bf16.gmra.mxu0 %v1307
      %v1539 = vpop.f32.mrf.mxu0
      %v1540 = vadd.f32 0.0, %v1539
      %v1541 = vpop.f32.mrf.mxu0
      %v1542 = vpop.f32.mrf.mxu0
      %v1543 = vadd.f32 0.0, %v1542
      %v1544 = vpop.f32.mrf.mxu0
      %1545 = vmatprep.mubr.bf16.mxu0 0
      %1546 = vmatmul.mubr.bf16.gmra.mxu0 %v1310
      %v1547 = vpop.f32.mrf.mxu0
      %v1548 = vadd.f32 0.0, %v1547
      %v1549 = vpop.f32.mrf.mxu0
      %v1550 = vpop.f32.mrf.mxu0
      %v1551 = vadd.f32 0.0, %v1550
      %v1552 = vpop.f32.mrf.mxu0
      %1553 = vmatprep.mubr.bf16.mxu0 0
      %1554 = vmatmul.mubr.bf16.gmra.mxu0 %v1313
      %v1555 = vpop.f32.mrf.mxu0
      %v1556 = vadd.f32 0.0, %v1555
      %v1557 = vpop.f32.mrf.mxu0
      %v1558 = vpop.f32.mrf.mxu0
      %v1559 = vadd.f32 0.0, %v1558
      %v1560 = vpop.f32.mrf.mxu0
      %1561 = vmatprep.mubr.bf16.mxu0 0
      %1562 = vmatmul.mubr.bf16.gmra.mxu0 %v1316
      %v1563 = vpop.f32.mrf.mxu0
      %v1564 = vadd.f32 0.0, %v1563
      %v1565 = vpop.f32.mrf.mxu0
      %v1566 = vpop.f32.mrf.mxu0
      %v1567 = vadd.f32 0.0, %v1566
      %v1568 = vpop.f32.mrf.mxu0
      %1569 = vmatprep.mubr.bf16.mxu0 0
      %1570 = vmatmul.mubr.bf16.gmra.mxu0 %v1319
      %v1571 = vpop.f32.mrf.mxu0
      %v1572 = vadd.f32 0.0, %v1571
      %v1573 = vpop.f32.mrf.mxu0
      %v1574 = vpop.f32.mrf.mxu0
      %v1575 = vadd.f32 0.0, %v1574
      %v1576 = vpop.f32.mrf.mxu0
      %1577 = vmatprep.mubr.bf16.mxu0 0
      %1578 = vmatmul.mubr.bf16.gmra.mxu0 %v1322
      %v1579 = vpop.f32.mrf.mxu0
      %v1580 = vadd.f32 0.0, %v1579
      %v1581 = vpop.f32.mrf.mxu0
      %v1582 = vpop.f32.mrf.mxu0
      %v1583 = vadd.f32 0.0, %v1582
      %v1584 = vpop.f32.mrf.mxu0
      %1585 = vmatprep.mubr.bf16.mxu0 0
      %1586 = vmatmul.mubr.bf16.gmra.mxu0 %v1325
      %v1587 = vpop.f32.mrf.mxu0
      %v1588 = vadd.f32 0.0, %v1587
      %v1589 = vpop.f32.mrf.mxu0
      %v1590 = vpop.f32.mrf.mxu0
      %v1591 = vadd.f32 0.0, %v1590
      %v1592 = vpop.f32.mrf.mxu0
      %1593 = vmatprep.mubr.bf16.mxu0 0
      %1594 = vmatmul.mubr.bf16.gmra.mxu0 %v1328
      %v1595 = vpop.f32.mrf.mxu0
      %v1596 = vadd.f32 0.0, %v1595
      %v1597 = vpop.f32.mrf.mxu0
      %v1598 = vpop.f32.mrf.mxu0
      %v1599 = vadd.f32 0.0, %v1598
      %v1600 = vpop.f32.mrf.mxu0
      %1601 = vmatprep.mubr.bf16.mxu0 0
      %1602 = vmatmul.mubr.bf16.gmra.mxu0 %v1331
      %v1603 = vpop.f32.mrf.mxu0
      %v1604 = vadd.f32 0.0, %v1603
      %v1605 = vpop.f32.mrf.mxu0
      %v1606 = vpop.f32.mrf.mxu0
      %v1607 = vadd.f32 0.0, %v1606
      %v1608 = vpop.f32.mrf.mxu0
      %1609 = vmatprep.mubr.bf16.mxu0 0
      %1610 = vmatmul.mubr.bf16.gmra.mxu0 %v1334
      %v1611 = vpop.f32.mrf.mxu0
      %v1612 = vadd.f32 0.0, %v1611
      %v1613 = vpop.f32.mrf.mxu0
      %v1614 = vpop.f32.mrf.mxu0
      %v1615 = vadd.f32 0.0, %v1614
      %v1616 = vpop.f32.mrf.mxu0
      %1617 = vmatprep.mubr.bf16.mxu0 0
      %1618 = vmatmul.mubr.bf16.gmra.mxu0 %v1337
      %v1619 = vpop.f32.mrf.mxu0
      %v1620 = vadd.f32 0.0, %v1619
      %v1621 = vpop.f32.mrf.mxu0
      %v1622 = vpop.f32.mrf.mxu0
      %v1623 = vadd.f32 0.0, %v1622
      %v1624 = vpop.f32.mrf.mxu0
      %1625 = vmatprep.mubr.bf16.mxu0 0
      %1626 = vmatmul.mubr.bf16.gmra.mxu0 %v1340
      %v1627 = vpop.f32.mrf.mxu0
      %v1628 = vadd.f32 0.0, %v1627
      %v1629 = vpop.f32.mrf.mxu0
      %v1630 = vpop.f32.mrf.mxu0
      %v1631 = vadd.f32 0.0, %v1630
      %v1632 = vpop.f32.mrf.mxu0
      %1633 = vmatprep.mubr.bf16.mxu0 0
      %1634 = vmatmul.mubr.bf16.gmra.mxu0 %v1343
      %v1635 = vpop.f32.mrf.mxu0
      %v1636 = vadd.f32 0.0, %v1635
      %v1637 = vpop.f32.mrf.mxu0
      %v1638 = vpop.f32.mrf.mxu0
      %v1639 = vadd.f32 0.0, %v1638
      %v1640 = vpop.f32.mrf.mxu0
      %1641 = vmatprep.mubr.bf16.mxu0 0
      %1642 = vmatmul.mubr.bf16.gmra.mxu0 %v1346
      %v1643 = vpop.f32.mrf.mxu0
      %v1644 = vadd.f32 0.0, %v1643
      %v1645 = vpop.f32.mrf.mxu0
      %v1646 = vpop.f32.mrf.mxu0
      %v1647 = vadd.f32 0.0, %v1646
      %v1648 = vpop.f32.mrf.mxu0
      %1649 = vmatprep.mubr.bf16.mxu0 0
      %1650 = vmatmul.mubr.bf16.gmra.mxu0 %v1349
      %v1651 = vpop.f32.mrf.mxu0
      %v1652 = vadd.f32 0.0, %v1651
      %v1653 = vpop.f32.mrf.mxu0
      %v1654 = vpop.f32.mrf.mxu0
      %v1655 = vadd.f32 0.0, %v1654
      %v1656 = vpop.f32.mrf.mxu0
      %1657 = vmatprep.mubr.bf16.mxu0 0
      %1658 = vmatmul.mubr.bf16.gmra.mxu0 %v1352
      %v1659 = vpop.f32.mrf.mxu0
      %v1660 = vadd.f32 0.0, %v1659
      %v1661 = vpop.f32.mrf.mxu0
      %v1662 = vpop.f32.mrf.mxu0
      %v1663 = vadd.f32 0.0, %v1662
      %v1664 = vpop.f32.mrf.mxu0
      %1665 = vmatprep.mubr.bf16.mxu0 0
      %1666 = vmatmul.mubr.bf16.gmra.mxu0 %v1355
      %v1667 = vpop.f32.mrf.mxu0
      %v1668 = vadd.f32 0.0, %v1667
      %v1669 = vpop.f32.mrf.mxu0
      %v1670 = vpop.f32.mrf.mxu0
      %v1671 = vadd.f32 0.0, %v1670
      %v1672 = vpop.f32.mrf.mxu0
      %1673 = vmatprep.mubr.bf16.mxu0 0
      %1674 = vmatmul.mubr.bf16.gmra.mxu0 %v1358
      %v1675 = vpop.f32.mrf.mxu0
      %v1676 = vadd.f32 0.0, %v1675
      %v1677 = vpop.f32.mrf.mxu0
      %v1678 = vpop.f32.mrf.mxu0
      %v1679 = vadd.f32 0.0, %v1678
      %v1680 = vpop.f32.mrf.mxu0
      %1681 = vmatprep.mubr.bf16.mxu0 0
      %1682 = vmatmul.mubr.bf16.gmra.mxu0 %v1361
      %v1683 = vpop.f32.mrf.mxu0
      %v1684 = vadd.f32 0.0, %v1683
      %v1685 = vpop.f32.mrf.mxu0
      %v1686 = vpop.f32.mrf.mxu0
      %v1687 = vadd.f32 0.0, %v1686
      %v1688 = vpop.f32.mrf.mxu0
      %1689 = vmatprep.mubr.bf16.mxu0 0
      %1690 = vmatmul.mubr.bf16.gmra.mxu0 %v1364
      %v1691 = vpop.f32.mrf.mxu0
      %v1692 = vadd.f32 0.0, %v1691
      %v1693 = vpop.f32.mrf.mxu0
      %v1694 = vpop.f32.mrf.mxu0
      %v1695 = vadd.f32 0.0, %v1694
      %v1696 = vpop.f32.mrf.mxu0
      %1697 = vmatprep.mubr.bf16.mxu0 0
      %1698 = vmatmul.mubr.bf16.gmra.mxu0 %v1367
      %v1699 = vpop.f32.mrf.mxu0
      %v1700 = vadd.f32 0.0, %v1699
      %v1701 = vpop.f32.mrf.mxu0
      %v1702 = vpop.f32.mrf.mxu0
      %v1703 = vadd.f32 0.0, %v1702
      %v1704 = vpop.f32.mrf.mxu0
      %1705 = vmatprep.mubr.bf16.mxu0 0
      %1706 = vmatmul.mubr.bf16.gmra.mxu0 %v1370
      %v1707 = vpop.f32.mrf.mxu0
      %v1708 = vadd.f32 0.0, %v1707
      %v1709 = vpop.f32.mrf.mxu0
      %v1710 = vpop.f32.mrf.mxu0
      %v1711 = vadd.f32 0.0, %v1710
      %v1712 = vpop.f32.mrf.mxu0
      %1713 = vmatprep.mubr.bf16.mxu0 0
      %1714 = vmatmul.mubr.bf16.gmra.mxu0 %v1373
      %v1715 = vpop.f32.mrf.mxu0
      %v1716 = vadd.f32 0.0, %v1715
      %v1717 = vpop.f32.mrf.mxu0
      %v1718 = vpop.f32.mrf.mxu0
      %v1719 = vadd.f32 0.0, %v1718
      %v1720 = vpop.f32.mrf.mxu0
      %1721 = vmatprep.mubr.bf16.mxu0 0
      %1722 = vmatmul.mubr.bf16.gmra.mxu0 %v1376
      %v1723 = vpop.f32.mrf.mxu0
      %v1724 = vadd.f32 0.0, %v1723
      %v1725 = vpop.f32.mrf.mxu0
      %v1726 = vpop.f32.mrf.mxu0
      %v1727 = vadd.f32 0.0, %v1726
      %v1728 = vpop.f32.mrf.mxu0
      %1729 = vmatprep.mubr.bf16.mxu0 0
      %1730 = vmatmul.mubr.bf16.gmra.mxu0 %v1379
      %v1731 = vpop.f32.mrf.mxu0
      %v1732 = vadd.f32 0.0, %v1731
      %v1733 = vpop.f32.mrf.mxu0
      %v1734 = vpop.f32.mrf.mxu0
      %v1735 = vadd.f32 0.0, %v1734
      %v1736 = vpop.f32.mrf.mxu0
      %1737 = vmatprep.mubr.bf16.mxu0 0
      %1738 = vmatmul.mubr.bf16.gmra.mxu0 %v1382
      %v1739 = vpop.f32.mrf.mxu0
      %v1740 = vadd.f32 0.0, %v1739
      %v1741 = vpop.f32.mrf.mxu0
      %v1742 = vpop.f32.mrf.mxu0
      %v1743 = vadd.f32 0.0, %v1742
      %v1744 = vpop.f32.mrf.mxu0
      %1745 = vmatprep.mubr.bf16.mxu0 0
      %1746 = vmatmul.mubr.bf16.gmra.mxu0 %v1385
      %v1747 = vpop.f32.mrf.mxu0
      %v1748 = vadd.f32 0.0, %v1747
      %v1749 = vpop.f32.mrf.mxu0
      %v1750 = vpop.f32.mrf.mxu0
      %v1751 = vadd.f32 0.0, %v1750
      %v1752 = vpop.f32.mrf.mxu0
      %1753 = vmatprep.mubr.bf16.mxu0 0
      %1754 = vmatmul.mubr.bf16.gmra.mxu0 %v1388
      %v1755 = vpop.f32.mrf.mxu0
      %v1756 = vadd.f32 0.0, %v1755
      %v1757 = vpop.f32.mrf.mxu0
      %v1758 = vpop.f32.mrf.mxu0
      %v1759 = vadd.f32 0.0, %v1758
      %v1760 = vpop.f32.mrf.mxu0
      %1761 = vmatprep.mubr.bf16.mxu0 0
      %1762 = vmatmul.mubr.bf16.gmra.mxu0 %v1391
      %v1763 = vpop.f32.mrf.mxu0
      %v1764 = vadd.f32 0.0, %v1763
      %v1765 = vpop.f32.mrf.mxu0
      %v1766 = vpop.f32.mrf.mxu0
      %v1767 = vadd.f32 0.0, %v1766
      %v1768 = vpop.f32.mrf.mxu0
      %1769 = vmatprep.mubr.bf16.mxu0 0
      %1770 = vmatmul.mubr.bf16.gmra.mxu0 %v1394
      %v1771 = vpop.f32.mrf.mxu0
      %v1772 = vadd.f32 0.0, %v1771
      %v1773 = vpop.f32.mrf.mxu0
      %v1774 = vpop.f32.mrf.mxu0
      %v1775 = vadd.f32 0.0, %v1774
      %v1776 = vpop.f32.mrf.mxu0
      %1777 = vmatprep.mubr.bf16.mxu0 0
      %1778 = vmatmul.mubr.bf16.gmra.mxu0 %v1397
      %v1779 = vpop.f32.mrf.mxu0
      %v1780 = vadd.f32 0.0, %v1779
      %v1781 = vpop.f32.mrf.mxu0
      %v1782 = vpop.f32.mrf.mxu0
      %v1783 = vadd.f32 0.0, %v1782
      %v1784 = vpop.f32.mrf.mxu0
      %1785 = vmatprep.mubr.bf16.mxu0 0
      %1786 = vmatmul.mubr.bf16.gmra.mxu0 %v1400
      %v1787 = vpop.f32.mrf.mxu0
      %v1788 = vadd.f32 0.0, %v1787
      %v1789 = vpop.f32.mrf.mxu0
      %v1790 = vpop.f32.mrf.mxu0
      %v1791 = vadd.f32 0.0, %v1790
      %v1792 = vpop.f32.mrf.mxu0
      %1793 = vmatprep.mubr.bf16.mxu0 0
      %1794 = vmatmul.mubr.bf16.gmra.mxu0 %v1403
      %v1795 = vpop.f32.mrf.mxu0
      %v1796 = vadd.f32 0.0, %v1795
      %v1797 = vpop.f32.mrf.mxu0
      %v1798 = vpop.f32.mrf.mxu0
      %v1799 = vadd.f32 0.0, %v1798
      %v1800 = vpop.f32.mrf.mxu0
      %1801 = vmatprep.mubr.bf16.mxu0 0
      %1802 = vmatmul.mubr.bf16.gmra.mxu0 %v1406
      %v1803 = vpop.f32.mrf.mxu0
      %v1804 = vadd.f32 0.0, %v1803
      %v1805 = vpop.f32.mrf.mxu0
      %v1806 = vpop.f32.mrf.mxu0
      %v1807 = vadd.f32 0.0, %v1806
      %v1808 = vpop.f32.mrf.mxu0
      %1809 = vmatprep.mubr.bf16.mxu0 0
      %1810 = vmatmul.mubr.bf16.gmra.mxu0 %v1409
      %v1811 = vpop.f32.mrf.mxu0
      %v1812 = vadd.f32 0.0, %v1811
      %v1813 = vpop.f32.mrf.mxu0
      %v1814 = vpop.f32.mrf.mxu0
      %v1815 = vadd.f32 0.0, %v1814
      %v1816 = vpop.f32.mrf.mxu0
      %1817 = vmatprep.mubr.bf16.mxu0 0
      %1818 = vmatmul.mubr.bf16.gmra.mxu0 %v1412
      %v1819 = vpop.f32.mrf.mxu0
      %v1820 = vadd.f32 0.0, %v1819
      %v1821 = vpop.f32.mrf.mxu0
      %v1822 = vpop.f32.mrf.mxu0
      %v1823 = vadd.f32 0.0, %v1822
      %v1824 = vpop.f32.mrf.mxu0
      %1825 = vmatprep.mubr.bf16.mxu0 0
      %1826 = vmatmul.mubr.bf16.gmra.mxu0 %v1415
      %v1827 = vpop.f32.mrf.mxu0
      %v1828 = vadd.f32 0.0, %v1827
      %v1829 = vpop.f32.mrf.mxu0
      %v1830 = vpop.f32.mrf.mxu0
      %v1831 = vadd.f32 0.0, %v1830
      %v1832 = vpop.f32.mrf.mxu0
      %1833 = vdwg.mxu0
      %v1838 = vunpack.c.l.b16 %v619
      %v1839 = vunpack.c.l.b16 %v620
      %v1840 = vunpack.c.l.b16 %v621
      %v1841 = vunpack.c.l.b16 %v622
      %v1842 = vpack.c.b16 %v1839, %v1838
      %v1843 = vpack.c.b16 %v1841, %v1840
      %v1846 = vsel %vm1272, %v822, 0
      %v1848 = vsel %vm1272, %v823, 0
      %v1850 = vsel %vm1272, %v824, 0
      %v1852 = vsel %vm1272, %v825, 0
      %v1854 = vsel %vm1272, %v826, 0
      %v1856 = vsel %vm1272, %v827, 0
      %v1858 = vsel %vm1272, %v828, 0
      %v1860 = vsel %vm1272, %v829, 0
      %v1862 = vsel %vm1272, %v830, 0
      %v1864 = vsel %vm1272, %v831, 0
      %v1866 = vsel %vm1272, %v832, 0
      %v1868 = vsel %vm1272, %v833, 0
      %v1870 = vsel %vm1272, %v834, 0
      %v1872 = vsel %vm1272, %v835, 0
      %v1874 = vsel %vm1272, %v836, 0
      %v1876 = vsel %vm1272, %v837, 0
      %v1878 = vsel %vm1272, %v838, 0
      %v1880 = vsel %vm1272, %v839, 0
      %v1882 = vsel %vm1272, %v840, 0
      %v1884 = vsel %vm1272, %v841, 0
      %v1886 = vsel %vm1272, %v842, 0
      %v1888 = vsel %vm1272, %v843, 0
      %v1890 = vsel %vm1272, %v844, 0
      %v1892 = vsel %vm1272, %v845, 0
      %v1894 = vsel %vm1272, %v846, 0
      %v1896 = vsel %vm1272, %v847, 0
      %v1898 = vsel %vm1272, %v848, 0
      %v1900 = vsel %vm1272, %v849, 0
      %v1902 = vsel %vm1272, %v850, 0
      %v1904 = vsel %vm1272, %v851, 0
      %v1906 = vsel %vm1272, %v852, 0
      %v1908 = vsel %vm1272, %v853, 0
      %v1910 = vsel %vm1272, %v854, 0
      %v1912 = vsel %vm1272, %v855, 0
      %v1914 = vsel %vm1272, %v856, 0
      %v1916 = vsel %vm1272, %v857, 0
      %v1918 = vsel %vm1272, %v858, 0
      %v1920 = vsel %vm1272, %v859, 0
      %v1922 = vsel %vm1272, %v860, 0
      %v1924 = vsel %vm1272, %v861, 0
      %v1926 = vsel %vm1272, %v862, 0
      %v1928 = vsel %vm1272, %v863, 0
      %v1930 = vsel %vm1272, %v864, 0
      %v1932 = vsel %vm1272, %v865, 0
      %v1934 = vsel %vm1272, %v866, 0
      %v1936 = vsel %vm1272, %v867, 0
      %v1938 = vsel %vm1272, %v868, 0
      %v1940 = vsel %vm1272, %v869, 0
      %1942 = vmatprep.subr.bf16.mxu0 0
      %1943 = vmatpush1.bf16.msra.mxu0 0
      %1944 = vmatprep.subr.bf16.mxu0 0
      %1945 = vmatpush1.bf16.msra.mxu0 0
      %1946 = vmatprep.subr.bf16.mxu0 0
      %1947 = vmatpush1.bf16.msra.mxu0 0
      %1948 = vmatprep.subr.bf16.mxu0 0
      %1949 = vmatpush1.bf16.msra.mxu0 0
      %1950 = vmatprep.subr.bf16.mxu0 0
      %1951 = vmatpush1.bf16.msra.mxu0 0
      %1952 = vmatprep.subr.bf16.mxu0 0
      %1953 = vmatpush1.bf16.msra.mxu0 0
      %1954 = vmatprep.subr.bf16.mxu0 0
      %1955 = vmatpush1.bf16.msra.mxu0 %v1843
      %1956 = vmatprep.subr.bf16.mxu0 0
      %1957 = vmatpush1.bf16.msra.mxu0 %v1842
      %1958 = vmatprep.subr.bf16.mxu0 0
      %1959 = vmatpush2.bf16.msra.mxu0 0
      %1960 = vmatprep.subr.bf16.mxu0 0
      %1961 = vmatpush2.bf16.msra.mxu0 0
      %1962 = vmatprep.subr.bf16.mxu0 0
      %1963 = vmatpush2.bf16.msra.mxu0 0
      %1964 = vmatprep.subr.bf16.mxu0 0
      %1965 = vmatpush2.bf16.msra.mxu0 0
      %1966 = vmatprep.subr.bf16.mxu0 0
      %1967 = vmatpush2.bf16.msra.mxu0 0
      %1968 = vmatprep.subr.bf16.mxu0 0
      %1969 = vmatpush2.bf16.msra.mxu0 0
      %1970 = vmatprep.subr.bf16.mxu0 0
      %1971 = vmatpush2.bf16.msra.mxu0 0
      %1972 = vmatprep.subr.bf16.mxu0 0
      %1973 = vmatpush2.bf16.msra.mxu0 0
      %1974 = vmatprep.mubr.bf16.mxu0 0
      %1975 = vmatmul.mubr.bf16.gmra.mxu0 %v1846
      %v1976 = vpop.f32.mrf.mxu0
      %v1977 = vadd.f32 %v1452, %v1976
      %v1978 = vpop.f32.mrf.mxu0
      %v1979 = vpop.f32.mrf.mxu0
      %v1980 = vadd.f32 %v1455, %v1979
      %v1981 = vpop.f32.mrf.mxu0
      %1982 = vmatprep.mubr.bf16.mxu0 0
      %1983 = vmatmul.mubr.bf16.gmra.mxu0 %v1848
      %v1984 = vpop.f32.mrf.mxu0
      %v1985 = vadd.f32 %v1460, %v1984
      %v1986 = vpop.f32.mrf.mxu0
      %v1987 = vpop.f32.mrf.mxu0
      %v1988 = vadd.f32 %v1463, %v1987
      %v1989 = vpop.f32.mrf.mxu0
      %1990 = vmatprep.mubr.bf16.mxu0 0
      %1991 = vmatmul.mubr.bf16.gmra.mxu0 %v1850
      %v1992 = vpop.f32.mrf.mxu0
      %v1993 = vadd.f32 %v1468, %v1992
      %v1994 = vpop.f32.mrf.mxu0
      %v1995 = vpop.f32.mrf.mxu0
      %v1996 = vadd.f32 %v1471, %v1995
      %v1997 = vpop.f32.mrf.mxu0
      %1998 = vmatprep.mubr.bf16.mxu0 0
      %1999 = vmatmul.mubr.bf16.gmra.mxu0 %v1852
      %v2000 = vpop.f32.mrf.mxu0
      %v2001 = vadd.f32 %v1476, %v2000
      %v2002 = vpop.f32.mrf.mxu0
      %v2003 = vpop.f32.mrf.mxu0
      %v2004 = vadd.f32 %v1479, %v2003
      %v2005 = vpop.f32.mrf.mxu0
      %2006 = vmatprep.mubr.bf16.mxu0 0
      %2007 = vmatmul.mubr.bf16.gmra.mxu0 %v1854
      %v2008 = vpop.f32.mrf.mxu0
      %v2009 = vadd.f32 %v1484, %v2008
      %v2010 = vpop.f32.mrf.mxu0
      %v2011 = vpop.f32.mrf.mxu0
      %v2012 = vadd.f32 %v1487, %v2011
      %v2013 = vpop.f32.mrf.mxu0
      %2014 = vmatprep.mubr.bf16.mxu0 0
      %2015 = vmatmul.mubr.bf16.gmra.mxu0 %v1856
      %v2016 = vpop.f32.mrf.mxu0
      %v2017 = vadd.f32 %v1492, %v2016
      %v2018 = vpop.f32.mrf.mxu0
      %v2019 = vpop.f32.mrf.mxu0
      %v2020 = vadd.f32 %v1495, %v2019
      %v2021 = vpop.f32.mrf.mxu0
      %2022 = vmatprep.mubr.bf16.mxu0 0
      %2023 = vmatmul.mubr.bf16.gmra.mxu0 %v1858
      %v2024 = vpop.f32.mrf.mxu0
      %v2025 = vadd.f32 %v1500, %v2024
      %v2026 = vpop.f32.mrf.mxu0
      %v2027 = vpop.f32.mrf.mxu0
      %v2028 = vadd.f32 %v1503, %v2027
      %v2029 = vpop.f32.mrf.mxu0
      %2030 = vmatprep.mubr.bf16.mxu0 0
      %2031 = vmatmul.mubr.bf16.gmra.mxu0 %v1860
      %v2032 = vpop.f32.mrf.mxu0
      %v2033 = vadd.f32 %v1508, %v2032
      %v2034 = vpop.f32.mrf.mxu0
      %v2035 = vpop.f32.mrf.mxu0
      %v2036 = vadd.f32 %v1511, %v2035
      %v2037 = vpop.f32.mrf.mxu0
      %2038 = vmatprep.mubr.bf16.mxu0 0
      %2039 = vmatmul.mubr.bf16.gmra.mxu0 %v1862
      %v2040 = vpop.f32.mrf.mxu0
      %v2041 = vadd.f32 %v1516, %v2040
      %v2042 = vpop.f32.mrf.mxu0
      %v2043 = vpop.f32.mrf.mxu0
      %v2044 = vadd.f32 %v1519, %v2043
      %v2045 = vpop.f32.mrf.mxu0
      %2046 = vmatprep.mubr.bf16.mxu0 0
      %2047 = vmatmul.mubr.bf16.gmra.mxu0 %v1864
      %v2048 = vpop.f32.mrf.mxu0
      %v2049 = vadd.f32 %v1524, %v2048
      %v2050 = vpop.f32.mrf.mxu0
      %v2051 = vpop.f32.mrf.mxu0
      %v2052 = vadd.f32 %v1527, %v2051
      %v2053 = vpop.f32.mrf.mxu0
      %2054 = vmatprep.mubr.bf16.mxu0 0
      %2055 = vmatmul.mubr.bf16.gmra.mxu0 %v1866
      %v2056 = vpop.f32.mrf.mxu0
      %v2057 = vadd.f32 %v1532, %v2056
      %v2058 = vpop.f32.mrf.mxu0
      %v2059 = vpop.f32.mrf.mxu0
      %v2060 = vadd.f32 %v1535, %v2059
      %v2061 = vpop.f32.mrf.mxu0
      %2062 = vmatprep.mubr.bf16.mxu0 0
      %2063 = vmatmul.mubr.bf16.gmra.mxu0 %v1868
      %v2064 = vpop.f32.mrf.mxu0
      %v2065 = vadd.f32 %v1540, %v2064
      %v2066 = vpop.f32.mrf.mxu0
      %v2067 = vpop.f32.mrf.mxu0
      %v2068 = vadd.f32 %v1543, %v2067
      %v2069 = vpop.f32.mrf.mxu0
      %2070 = vmatprep.mubr.bf16.mxu0 0
      %2071 = vmatmul.mubr.bf16.gmra.mxu0 %v1870
      %v2072 = vpop.f32.mrf.mxu0
      %v2073 = vadd.f32 %v1548, %v2072
      %v2074 = vpop.f32.mrf.mxu0
      %v2075 = vpop.f32.mrf.mxu0
      %v2076 = vadd.f32 %v1551, %v2075
      %v2077 = vpop.f32.mrf.mxu0
      %2078 = vmatprep.mubr.bf16.mxu0 0
      %2079 = vmatmul.mubr.bf16.gmra.mxu0 %v1872
      %v2080 = vpop.f32.mrf.mxu0
      %v2081 = vadd.f32 %v1556, %v2080
      %v2082 = vpop.f32.mrf.mxu0
      %v2083 = vpop.f32.mrf.mxu0
      %v2084 = vadd.f32 %v1559, %v2083
      %v2085 = vpop.f32.mrf.mxu0
      %2086 = vmatprep.mubr.bf16.mxu0 0
      %2087 = vmatmul.mubr.bf16.gmra.mxu0 %v1874
      %v2088 = vpop.f32.mrf.mxu0
      %v2089 = vadd.f32 %v1564, %v2088
      %v2090 = vpop.f32.mrf.mxu0
      %v2091 = vpop.f32.mrf.mxu0
      %v2092 = vadd.f32 %v1567, %v2091
      %v2093 = vpop.f32.mrf.mxu0
      %2094 = vmatprep.mubr.bf16.mxu0 0
      %2095 = vmatmul.mubr.bf16.gmra.mxu0 %v1876
      %v2096 = vpop.f32.mrf.mxu0
      %v2097 = vadd.f32 %v1572, %v2096
      %v2098 = vpop.f32.mrf.mxu0
      %v2099 = vpop.f32.mrf.mxu0
      %v2100 = vadd.f32 %v1575, %v2099
      %v2101 = vpop.f32.mrf.mxu0
      %2102 = vmatprep.mubr.bf16.mxu0 0
      %2103 = vmatmul.mubr.bf16.gmra.mxu0 %v1878
      %v2104 = vpop.f32.mrf.mxu0
      %v2105 = vadd.f32 %v1580, %v2104
      %v2106 = vpop.f32.mrf.mxu0
      %v2107 = vpop.f32.mrf.mxu0
      %v2108 = vadd.f32 %v1583, %v2107
      %v2109 = vpop.f32.mrf.mxu0
      %2110 = vmatprep.mubr.bf16.mxu0 0
      %2111 = vmatmul.mubr.bf16.gmra.mxu0 %v1880
      %v2112 = vpop.f32.mrf.mxu0
      %v2113 = vadd.f32 %v1588, %v2112
      %v2114 = vpop.f32.mrf.mxu0
      %v2115 = vpop.f32.mrf.mxu0
      %v2116 = vadd.f32 %v1591, %v2115
      %v2117 = vpop.f32.mrf.mxu0
      %2118 = vmatprep.mubr.bf16.mxu0 0
      %2119 = vmatmul.mubr.bf16.gmra.mxu0 %v1882
      %v2120 = vpop.f32.mrf.mxu0
      %v2121 = vadd.f32 %v1596, %v2120
      %v2122 = vpop.f32.mrf.mxu0
      %v2123 = vpop.f32.mrf.mxu0
      %v2124 = vadd.f32 %v1599, %v2123
      %v2125 = vpop.f32.mrf.mxu0
      %2126 = vmatprep.mubr.bf16.mxu0 0
      %2127 = vmatmul.mubr.bf16.gmra.mxu0 %v1884
      %v2128 = vpop.f32.mrf.mxu0
      %v2129 = vadd.f32 %v1604, %v2128
      %v2130 = vpop.f32.mrf.mxu0
      %v2131 = vpop.f32.mrf.mxu0
      %v2132 = vadd.f32 %v1607, %v2131
      %v2133 = vpop.f32.mrf.mxu0
      %2134 = vmatprep.mubr.bf16.mxu0 0
      %2135 = vmatmul.mubr.bf16.gmra.mxu0 %v1886
      %v2136 = vpop.f32.mrf.mxu0
      %v2137 = vadd.f32 %v1612, %v2136
      %v2138 = vpop.f32.mrf.mxu0
      %v2139 = vpop.f32.mrf.mxu0
      %v2140 = vadd.f32 %v1615, %v2139
      %v2141 = vpop.f32.mrf.mxu0
      %2142 = vmatprep.mubr.bf16.mxu0 0
      %2143 = vmatmul.mubr.bf16.gmra.mxu0 %v1888
      %v2144 = vpop.f32.mrf.mxu0
      %v2145 = vadd.f32 %v1620, %v2144
      %v2146 = vpop.f32.mrf.mxu0
      %v2147 = vpop.f32.mrf.mxu0
      %v2148 = vadd.f32 %v1623, %v2147
      %v2149 = vpop.f32.mrf.mxu0
      %2150 = vmatprep.mubr.bf16.mxu0 0
      %2151 = vmatmul.mubr.bf16.gmra.mxu0 %v1890
      %v2152 = vpop.f32.mrf.mxu0
      %v2153 = vadd.f32 %v1628, %v2152
      %v2154 = vpop.f32.mrf.mxu0
      %v2155 = vpop.f32.mrf.mxu0
      %v2156 = vadd.f32 %v1631, %v2155
      %v2157 = vpop.f32.mrf.mxu0
      %2158 = vmatprep.mubr.bf16.mxu0 0
      %2159 = vmatmul.mubr.bf16.gmra.mxu0 %v1892
      %v2160 = vpop.f32.mrf.mxu0
      %v2161 = vadd.f32 %v1636, %v2160
      %v2162 = vpop.f32.mrf.mxu0
      %v2163 = vpop.f32.mrf.mxu0
      %v2164 = vadd.f32 %v1639, %v2163
      %v2165 = vpop.f32.mrf.mxu0
      %2166 = vmatprep.mubr.bf16.mxu0 0
      %2167 = vmatmul.mubr.bf16.gmra.mxu0 %v1894
      %v2168 = vpop.f32.mrf.mxu0
      %v2169 = vadd.f32 %v1644, %v2168
      %v2170 = vpop.f32.mrf.mxu0
      %v2171 = vpop.f32.mrf.mxu0
      %v2172 = vadd.f32 %v1647, %v2171
      %v2173 = vpop.f32.mrf.mxu0
      %2174 = vmatprep.mubr.bf16.mxu0 0
      %2175 = vmatmul.mubr.bf16.gmra.mxu0 %v1896
      %v2176 = vpop.f32.mrf.mxu0
      %v2177 = vadd.f32 %v1652, %v2176
      %v2178 = vpop.f32.mrf.mxu0
      %v2179 = vpop.f32.mrf.mxu0
      %v2180 = vadd.f32 %v1655, %v2179
      %v2181 = vpop.f32.mrf.mxu0
      %2182 = vmatprep.mubr.bf16.mxu0 0
      %2183 = vmatmul.mubr.bf16.gmra.mxu0 %v1898
      %v2184 = vpop.f32.mrf.mxu0
      %v2185 = vadd.f32 %v1660, %v2184
      %v2186 = vpop.f32.mrf.mxu0
      %v2187 = vpop.f32.mrf.mxu0
      %v2188 = vadd.f32 %v1663, %v2187
      %v2189 = vpop.f32.mrf.mxu0
      %2190 = vmatprep.mubr.bf16.mxu0 0
      %2191 = vmatmul.mubr.bf16.gmra.mxu0 %v1900
      %v2192 = vpop.f32.mrf.mxu0
      %v2193 = vadd.f32 %v1668, %v2192
      %v2194 = vpop.f32.mrf.mxu0
      %v2195 = vpop.f32.mrf.mxu0
      %v2196 = vadd.f32 %v1671, %v2195
      %v2197 = vpop.f32.mrf.mxu0
      %2198 = vmatprep.mubr.bf16.mxu0 0
      %2199 = vmatmul.mubr.bf16.gmra.mxu0 %v1902
      %v2200 = vpop.f32.mrf.mxu0
      %v2201 = vadd.f32 %v1676, %v2200
      %v2202 = vpop.f32.mrf.mxu0
      %v2203 = vpop.f32.mrf.mxu0
      %v2204 = vadd.f32 %v1679, %v2203
      %v2205 = vpop.f32.mrf.mxu0
      %2206 = vmatprep.mubr.bf16.mxu0 0
      %2207 = vmatmul.mubr.bf16.gmra.mxu0 %v1904
      %v2208 = vpop.f32.mrf.mxu0
      %v2209 = vadd.f32 %v1684, %v2208
      %v2210 = vpop.f32.mrf.mxu0
      %v2211 = vpop.f32.mrf.mxu0
      %v2212 = vadd.f32 %v1687, %v2211
      %v2213 = vpop.f32.mrf.mxu0
      %2214 = vmatprep.mubr.bf16.mxu0 0
      %2215 = vmatmul.mubr.bf16.gmra.mxu0 %v1906
      %v2216 = vpop.f32.mrf.mxu0
      %v2217 = vadd.f32 %v1692, %v2216
      %v2218 = vpop.f32.mrf.mxu0
      %v2219 = vpop.f32.mrf.mxu0
      %v2220 = vadd.f32 %v1695, %v2219
      %v2221 = vpop.f32.mrf.mxu0
      %2222 = vmatprep.mubr.bf16.mxu0 0
      %2223 = vmatmul.mubr.bf16.gmra.mxu0 %v1908
      %v2224 = vpop.f32.mrf.mxu0
      %v2225 = vadd.f32 %v1700, %v2224
      %v2226 = vpop.f32.mrf.mxu0
      %v2227 = vpop.f32.mrf.mxu0
      %v2228 = vadd.f32 %v1703, %v2227
      %v2229 = vpop.f32.mrf.mxu0
      %2230 = vmatprep.mubr.bf16.mxu0 0
      %2231 = vmatmul.mubr.bf16.gmra.mxu0 %v1910
      %v2232 = vpop.f32.mrf.mxu0
      %v2233 = vadd.f32 %v1708, %v2232
      %v2234 = vpop.f32.mrf.mxu0
      %v2235 = vpop.f32.mrf.mxu0
      %v2236 = vadd.f32 %v1711, %v2235
      %v2237 = vpop.f32.mrf.mxu0
      %2238 = vmatprep.mubr.bf16.mxu0 0
      %2239 = vmatmul.mubr.bf16.gmra.mxu0 %v1912
      %v2240 = vpop.f32.mrf.mxu0
      %v2241 = vadd.f32 %v1716, %v2240
      %v2242 = vpop.f32.mrf.mxu0
      %v2243 = vpop.f32.mrf.mxu0
      %v2244 = vadd.f32 %v1719, %v2243
      %v2245 = vpop.f32.mrf.mxu0
      %2246 = vmatprep.mubr.bf16.mxu0 0
      %2247 = vmatmul.mubr.bf16.gmra.mxu0 %v1914
      %v2248 = vpop.f32.mrf.mxu0
      %v2249 = vadd.f32 %v1724, %v2248
      %v2250 = vpop.f32.mrf.mxu0
      %v2251 = vpop.f32.mrf.mxu0
      %v2252 = vadd.f32 %v1727, %v2251
      %v2253 = vpop.f32.mrf.mxu0
      %2254 = vmatprep.mubr.bf16.mxu0 0
      %2255 = vmatmul.mubr.bf16.gmra.mxu0 %v1916
      %v2256 = vpop.f32.mrf.mxu0
      %v2257 = vadd.f32 %v1732, %v2256
      %v2258 = vpop.f32.mrf.mxu0
      %v2259 = vpop.f32.mrf.mxu0
      %v2260 = vadd.f32 %v1735, %v2259
      %v2261 = vpop.f32.mrf.mxu0
      %2262 = vmatprep.mubr.bf16.mxu0 0
      %2263 = vmatmul.mubr.bf16.gmra.mxu0 %v1918
      %v2264 = vpop.f32.mrf.mxu0
      %v2265 = vadd.f32 %v1740, %v2264
      %v2266 = vpop.f32.mrf.mxu0
      %v2267 = vpop.f32.mrf.mxu0
      %v2268 = vadd.f32 %v1743, %v2267
      %v2269 = vpop.f32.mrf.mxu0
      %2270 = vmatprep.mubr.bf16.mxu0 0
      %2271 = vmatmul.mubr.bf16.gmra.mxu0 %v1920
      %v2272 = vpop.f32.mrf.mxu0
      %v2273 = vadd.f32 %v1748, %v2272
      %v2274 = vpop.f32.mrf.mxu0
      %v2275 = vpop.f32.mrf.mxu0
      %v2276 = vadd.f32 %v1751, %v2275
      %v2277 = vpop.f32.mrf.mxu0
      %2278 = vmatprep.mubr.bf16.mxu0 0
      %2279 = vmatmul.mubr.bf16.gmra.mxu0 %v1922
      %v2280 = vpop.f32.mrf.mxu0
      %v2281 = vadd.f32 %v1756, %v2280
      %v2282 = vpop.f32.mrf.mxu0
      %v2283 = vpop.f32.mrf.mxu0
      %v2284 = vadd.f32 %v1759, %v2283
      %v2285 = vpop.f32.mrf.mxu0
      %2286 = vmatprep.mubr.bf16.mxu0 0
      %2287 = vmatmul.mubr.bf16.gmra.mxu0 %v1924
      %v2288 = vpop.f32.mrf.mxu0
      %v2289 = vadd.f32 %v1764, %v2288
      %v2290 = vpop.f32.mrf.mxu0
      %v2291 = vpop.f32.mrf.mxu0
      %v2292 = vadd.f32 %v1767, %v2291
      %v2293 = vpop.f32.mrf.mxu0
      %2294 = vmatprep.mubr.bf16.mxu0 0
      %2295 = vmatmul.mubr.bf16.gmra.mxu0 %v1926
      %v2296 = vpop.f32.mrf.mxu0
      %v2297 = vadd.f32 %v1772, %v2296
      %v2298 = vpop.f32.mrf.mxu0
      %v2299 = vpop.f32.mrf.mxu0
      %v2300 = vadd.f32 %v1775, %v2299
      %v2301 = vpop.f32.mrf.mxu0
      %2302 = vmatprep.mubr.bf16.mxu0 0
      %2303 = vmatmul.mubr.bf16.gmra.mxu0 %v1928
      %v2304 = vpop.f32.mrf.mxu0
      %v2305 = vadd.f32 %v1780, %v2304
      %v2306 = vpop.f32.mrf.mxu0
      %v2307 = vpop.f32.mrf.mxu0
      %v2308 = vadd.f32 %v1783, %v2307
      %v2309 = vpop.f32.mrf.mxu0
      %2310 = vmatprep.mubr.bf16.mxu0 0
      %2311 = vmatmul.mubr.bf16.gmra.mxu0 %v1930
      %v2312 = vpop.f32.mrf.mxu0
      %v2313 = vadd.f32 %v1788, %v2312
      %v2314 = vpop.f32.mrf.mxu0
      %v2315 = vpop.f32.mrf.mxu0
      %v2316 = vadd.f32 %v1791, %v2315
      %v2317 = vpop.f32.mrf.mxu0
      %2318 = vmatprep.mubr.bf16.mxu0 0
      %2319 = vmatmul.mubr.bf16.gmra.mxu0 %v1932
      %v2320 = vpop.f32.mrf.mxu0
      %v2321 = vadd.f32 %v1796, %v2320
      %v2322 = vpop.f32.mrf.mxu0
      %v2323 = vpop.f32.mrf.mxu0
      %v2324 = vadd.f32 %v1799, %v2323
      %v2325 = vpop.f32.mrf.mxu0
      %2326 = vmatprep.mubr.bf16.mxu0 0
      %2327 = vmatmul.mubr.bf16.gmra.mxu0 %v1934
      %v2328 = vpop.f32.mrf.mxu0
      %v2329 = vadd.f32 %v1804, %v2328
      %v2330 = vpop.f32.mrf.mxu0
      %v2331 = vpop.f32.mrf.mxu0
      %v2332 = vadd.f32 %v1807, %v2331
      %v2333 = vpop.f32.mrf.mxu0
      %2334 = vmatprep.mubr.bf16.mxu0 0
      %2335 = vmatmul.mubr.bf16.gmra.mxu0 %v1936
      %v2336 = vpop.f32.mrf.mxu0
      %v2337 = vadd.f32 %v1812, %v2336
      %v2338 = vpop.f32.mrf.mxu0
      %v2339 = vpop.f32.mrf.mxu0
      %v2340 = vadd.f32 %v1815, %v2339
      %v2341 = vpop.f32.mrf.mxu0
      %2342 = vmatprep.mubr.bf16.mxu0 0
      %2343 = vmatmul.mubr.bf16.gmra.mxu0 %v1938
      %v2344 = vpop.f32.mrf.mxu0
      %v2345 = vadd.f32 %v1820, %v2344
      %v2346 = vpop.f32.mrf.mxu0
      %v2347 = vpop.f32.mrf.mxu0
      %v2348 = vadd.f32 %v1823, %v2347
      %v2349 = vpop.f32.mrf.mxu0
      %2350 = vmatprep.mubr.bf16.mxu0 0
      %2351 = vmatmul.mubr.bf16.gmra.mxu0 %v1940
      %v2352 = vpop.f32.mrf.mxu0
      %v2353 = vadd.f32 %v1828, %v2352
      %v2354 = vpop.f32.mrf.mxu0
      %v2355 = vpop.f32.mrf.mxu0
      %v2356 = vadd.f32 %v1831, %v2355
      %v2357 = vpop.f32.mrf.mxu0
      %2358 = vdwg.mxu0
      %v2359 = vld [vmem:[#allocation2 + $0x4] sm:$0xf]
      %v2360 = vld [vmem:[#allocation2 + $0x8] sm:$0xf]
      %v2361 = vld [vmem:[#allocation2 + $0xc] sm:$0xf]
      %v2362 = vld [vmem:[#allocation2 + $0x10] sm:$0xf]
      %v2363 = vld [vmem:[#allocation2 + $0x14] sm:$0xf]
      %v2364 = vld [vmem:[#allocation2 + $0x18] sm:$0xf]
      %v2365 = vld [vmem:[#allocation2 + $0x1c] sm:$0xf]
      %v2366 = vld [vmem:[#allocation2 + $0x20] sm:$0xf]
      %v2367 = vld [vmem:[#allocation2 + $0x24] sm:$0xf]
      %v2368 = vld [vmem:[#allocation2 + $0x28] sm:$0xf]
      %v2369 = vld [vmem:[#allocation2 + $0x2c] sm:$0xf]
      %v2370 = vld [vmem:[#allocation2 + $0x30] sm:$0xf]
      %v2371 = vld [vmem:[#allocation2 + $0x34] sm:$0xf]
      %v2372 = vld [vmem:[#allocation2 + $0x38] sm:$0xf]
      %v2373 = vld [vmem:[#allocation2 + $0x3c] sm:$0xf]
      %v2374 = vld [vmem:[#allocation2 + $0x40] sm:$0xf]
      %v2375 = vld [vmem:[#allocation2 + $0x44] sm:$0xf]
      %v2376 = vld [vmem:[#allocation2 + $0x48] sm:$0xf]
      %v2377 = vld [vmem:[#allocation2 + $0x4c] sm:$0xf]
      %v2378 = vld [vmem:[#allocation2 + $0x50] sm:$0xf]
      %v2379 = vld [vmem:[#allocation2 + $0x54] sm:$0xf]
      %v2380 = vld [vmem:[#allocation2 + $0x58] sm:$0xf]
      %v2381 = vld [vmem:[#allocation2 + $0x5c] sm:$0xf]
      %v2382 = vld [vmem:[#allocation2 + $0x60] sm:$0xf]
      %v2383 = vld [vmem:[#allocation2 + $0x64] sm:$0xf]
      %v2384 = vld [vmem:[#allocation2 + $0x68] sm:$0xf]
      %v2385 = vld [vmem:[#allocation2 + $0x6c] sm:$0xf]
      %v2386 = vld [vmem:[#allocation2 + $0x70] sm:$0xf]
      %v2387 = vld [vmem:[#allocation2 + $0x74] sm:$0xf]
      %v2388 = vld [vmem:[#allocation2 + $0x78] sm:$0xf]
      %v2389 = vld [vmem:[#allocation2 + $0x7c] sm:$0xf]
      %v2390 = vld [vmem:[#allocation2 + $0x80] sm:$0xf]
      %v2391 = vld [vmem:[#allocation2 + $0x84] sm:$0xf]
      %v2392 = vld [vmem:[#allocation2 + $0x88] sm:$0xf]
      %v2393 = vld [vmem:[#allocation2 + $0x8c] sm:$0xf]
      %v2394 = vld [vmem:[#allocation2 + $0x90] sm:$0xf]
      %v2395 = vld [vmem:[#allocation2 + $0x94] sm:$0xf]
      %v2396 = vld [vmem:[#allocation2 + $0x98] sm:$0xf]
      %v2397 = vld [vmem:[#allocation2 + $0x9c] sm:$0xf]
      %v2398 = vld [vmem:[#allocation2 + $0xa0] sm:$0xf]
      %v2399 = vld [vmem:[#allocation2 + $0xa4] sm:$0xf]
      %v2400 = vld [vmem:[#allocation2 + $0xa8] sm:$0xf]
      %v2401 = vld [vmem:[#allocation2 + $0xac] sm:$0xf]
      %v2402 = vld [vmem:[#allocation2 + $0xb0] sm:$0xf]
      %v2403 = vld [vmem:[#allocation2 + $0xb4] sm:$0xf]
      %v2404 = vld [vmem:[#allocation2 + $0xb8] sm:$0xf]
      %v2405 = vld [vmem:[#allocation2 + $0xbc] sm:$0xf]
      %v2406 = vld [vmem:[#allocation2 + $0xc0] sm:$0xf]
      %v2407 = vld [vmem:[#allocation2 + $0xc4] sm:$0xf]
      %v2408 = vld [vmem:[#allocation2 + $0xc8] sm:$0xf]
      %v2409 = vld [vmem:[#allocation2 + $0xcc] sm:$0xf]
      %v2410 = vld [vmem:[#allocation2 + $0xd0] sm:$0xf]
      %v2411 = vld [vmem:[#allocation2 + $0xd4] sm:$0xf]
      %v2412 = vld [vmem:[#allocation2 + $0xd8] sm:$0xf]
      %v2413 = vld [vmem:[#allocation2 + $0xdc] sm:$0xf]
      %v2414 = vld [vmem:[#allocation2 + $0xe0] sm:$0xf]
      %v2415 = vld [vmem:[#allocation2 + $0xe4] sm:$0xf]
      %v2416 = vld [vmem:[#allocation2 + $0xe8] sm:$0xf]
      %v2417 = vld [vmem:[#allocation2 + $0xec] sm:$0xf]
      %v2418 = vld [vmem:[#allocation2 + $0xf0] sm:$0xf]
      %v2419 = vld [vmem:[#allocation2 + $0xf4] sm:$0xf]
      %v2420 = vld [vmem:[#allocation2 + $0xf8] sm:$0xf]
      %v2421 = vld [vmem:[#allocation2 + $0xfc] sm:$0xf]
      %v2422 = vld [vmem:[#allocation2 + $0x100] sm:$0xf]
      %v2423 = vld [vmem:[#allocation2 + $0x104] sm:$0xf]
      %v2424 = vld [vmem:[#allocation2 + $0x108] sm:$0xf]
      %v2425 = vld [vmem:[#allocation2 + $0x10c] sm:$0xf]
      %v2426 = vld [vmem:[#allocation2 + $0x110] sm:$0xf]
      %v2427 = vld [vmem:[#allocation2 + $0x114] sm:$0xf]
      %v2428 = vld [vmem:[#allocation2 + $0x118] sm:$0xf]
      %v2429 = vld [vmem:[#allocation2 + $0x11c] sm:$0xf]
      %v2430 = vld [vmem:[#allocation2 + $0x120] sm:$0xf]
      %v2431 = vld [vmem:[#allocation2 + $0x124] sm:$0xf]
      %v2432 = vld [vmem:[#allocation2 + $0x128] sm:$0xf]
      %v2433 = vld [vmem:[#allocation2 + $0x12c] sm:$0xf]
      %v2434 = vld [vmem:[#allocation2 + $0x130] sm:$0xf]
      %v2435 = vld [vmem:[#allocation2 + $0x134] sm:$0xf]
      %v2436 = vld [vmem:[#allocation2 + $0x138] sm:$0xf]
      %v2437 = vld [vmem:[#allocation2 + $0x13c] sm:$0xf]
      %v2438 = vld [vmem:[#allocation2 + $0x140] sm:$0xf]
      %v2439 = vld [vmem:[#allocation2 + $0x144] sm:$0xf]
      %v2440 = vld [vmem:[#allocation2 + $0x148] sm:$0xf]
      %v2441 = vld [vmem:[#allocation2 + $0x14c] sm:$0xf]
      %v2442 = vld [vmem:[#allocation2 + $0x150] sm:$0xf]
      %v2443 = vld [vmem:[#allocation2 + $0x154] sm:$0xf]
      %v2444 = vld [vmem:[#allocation2 + $0x158] sm:$0xf]
      %v2445 = vld [vmem:[#allocation2 + $0x15c] sm:$0xf]
      %v2446 = vld [vmem:[#allocation2 + $0x160] sm:$0xf]
      %v2447 = vld [vmem:[#allocation2 + $0x164] sm:$0xf]
      %v2448 = vld [vmem:[#allocation2 + $0x168] sm:$0xf]
      %v2449 = vld [vmem:[#allocation2 + $0x16c] sm:$0xf]
      %v2450 = vld [vmem:[#allocation2 + $0x170] sm:$0xf]
      %v2451 = vld [vmem:[#allocation2 + $0x174] sm:$0xf]
      %v2452 = vld [vmem:[#allocation2 + $0x178] sm:$0xf]
      %v2453 = vld [vmem:[#allocation2 + $0x17c] sm:$0xf]
      %v2454 = vld [vmem:[#allocation2 + $0x180] sm:$0xf]
      %v2455 = vld [vmem:[#allocation2 + $0x184] sm:$0x1]
      %v2456 = vld [vmem:[%s3 + $0x20] sm:$0xf]
      %v2457 = vld [vmem:[%s3 + $0x24] sm:$0xf]
      %v2458 = vld [vmem:[%s3 + $0x28] sm:$0xf]
      %v2459 = vld [vmem:[%s3 + $0x2c] sm:$0xf]
      %v2557 = vunpack.c.l.b16 %v2359
      %v2558 = vunpack.c.l.b16 %v2360
      %v2559 = vunpack.c.l.b16 %v2361
      %v2560 = vunpack.c.l.b16 %v2362
      %v2561 = vunpack.c.l.b16 %v2363
      %v2562 = vunpack.c.l.b16 %v2364
      %v2563 = vunpack.c.l.b16 %v2365
      %v2564 = vunpack.c.l.b16 %v2366
      %v2565 = vunpack.c.l.b16 %v2367
      %v2566 = vunpack.c.l.b16 %v2368
      %v2567 = vunpack.c.l.b16 %v2369
      %v2568 = vunpack.c.l.b16 %v2370
      %v2569 = vunpack.c.l.b16 %v2371
      %v2570 = vunpack.c.l.b16 %v2372
      %v2571 = vunpack.c.l.b16 %v2373
      %v2572 = vunpack.c.l.b16 %v2374
      %v2573 = vunpack.c.l.b16 %v2375
      %v2574 = vunpack.c.l.b16 %v2376
      %v2575 = vunpack.c.l.b16 %v2377
      %v2576 = vunpack.c.l.b16 %v2378
      %v2577 = vunpack.c.l.b16 %v2379
      %v2578 = vunpack.c.l.b16 %v2380
      %v2579 = vunpack.c.l.b16 %v2381
      %v2580 = vunpack.c.l.b16 %v2382
      %v2581 = vunpack.c.l.b16 %v2383
      %v2582 = vunpack.c.l.b16 %v2384
      %v2583 = vunpack.c.l.b16 %v2385
      %v2584 = vunpack.c.l.b16 %v2386
      %v2585 = vunpack.c.l.b16 %v2387
      %v2586 = vunpack.c.l.b16 %v2388
      %v2587 = vunpack.c.l.b16 %v2389
      %v2588 = vunpack.c.l.b16 %v2390
      %v2589 = vunpack.c.l.b16 %v2391
      %v2590 = vunpack.c.l.b16 %v2392
      %v2591 = vunpack.c.l.b16 %v2393
      %v2592 = vunpack.c.l.b16 %v2394
      %v2593 = vunpack.c.l.b16 %v2395
      %v2594 = vunpack.c.l.b16 %v2396
      %v2595 = vunpack.c.l.b16 %v2397
      %v2596 = vunpack.c.l.b16 %v2398
      %v2597 = vunpack.c.l.b16 %v2399
      %v2598 = vunpack.c.l.b16 %v2400
      %v2599 = vunpack.c.l.b16 %v2401
      %v2600 = vunpack.c.l.b16 %v2402
      %v2601 = vunpack.c.l.b16 %v2403
      %v2602 = vunpack.c.l.b16 %v2404
      %v2603 = vunpack.c.l.b16 %v2405
      %v2604 = vunpack.c.l.b16 %v2406
      %v2605 = vunpack.c.l.b16 %v2407
      %v2606 = vunpack.c.l.b16 %v2408
      %v2607 = vunpack.c.l.b16 %v2409
      %v2608 = vunpack.c.l.b16 %v2410
      %v2609 = vunpack.c.l.b16 %v2411
      %v2610 = vunpack.c.l.b16 %v2412
      %v2611 = vunpack.c.l.b16 %v2413
      %v2612 = vunpack.c.l.b16 %v2414
      %v2613 = vunpack.c.l.b16 %v2415
      %v2614 = vunpack.c.l.b16 %v2416
      %v2615 = vunpack.c.l.b16 %v2417
      %v2616 = vunpack.c.l.b16 %v2418
      %v2617 = vunpack.c.l.b16 %v2419
      %v2618 = vunpack.c.l.b16 %v2420
      %v2619 = vunpack.c.l.b16 %v2421
      %v2620 = vunpack.c.l.b16 %v2422
      %v2621 = vunpack.c.l.b16 %v2423
      %v2622 = vunpack.c.l.b16 %v2424
      %v2623 = vunpack.c.l.b16 %v2425
      %v2624 = vunpack.c.l.b16 %v2426
      %v2625 = vunpack.c.l.b16 %v2427
      %v2626 = vunpack.c.l.b16 %v2428
      %v2627 = vunpack.c.l.b16 %v2429
      %v2628 = vunpack.c.l.b16 %v2430
      %v2629 = vunpack.c.l.b16 %v2431
      %v2630 = vunpack.c.l.b16 %v2432
      %v2631 = vunpack.c.l.b16 %v2433
      %v2632 = vunpack.c.l.b16 %v2434
      %v2633 = vunpack.c.l.b16 %v2435
      %v2634 = vunpack.c.l.b16 %v2436
      %v2635 = vunpack.c.l.b16 %v2437
      %v2636 = vunpack.c.l.b16 %v2438
      %v2637 = vunpack.c.l.b16 %v2439
      %v2638 = vunpack.c.l.b16 %v2440
      %v2639 = vunpack.c.l.b16 %v2441
      %v2640 = vunpack.c.l.b16 %v2442
      %v2641 = vunpack.c.l.b16 %v2443
      %v2642 = vunpack.c.l.b16 %v2444
      %v2643 = vunpack.c.l.b16 %v2445
      %v2644 = vunpack.c.l.b16 %v2446
      %v2645 = vunpack.c.l.b16 %v2447
      %v2646 = vunpack.c.l.b16 %v2448
      %v2647 = vunpack.c.l.b16 %v2449
      %v2648 = vunpack.c.l.b16 %v2450
      %v2649 = vunpack.c.l.b16 %v2451
      %v2650 = vunpack.c.l.b16 %v2452
      %v2651 = vunpack.c.l.b16 %v2453
      %v2652 = vunpack.c.l.b16 %v2454
      %v2653 = vunpack.c.l.b16 %v2455
      %v2654 = vpack.c.b16 %v2558, %v2557
      %v2655 = vpack.c.b16 %v2560, %v2559
      %v2656 = vpack.c.b16 %v2562, %v2561
      %v2657 = vpack.c.b16 %v2564, %v2563
      %v2658 = vpack.c.b16 %v2566, %v2565
      %v2659 = vpack.c.b16 %v2568, %v2567
      %v2660 = vpack.c.b16 %v2570, %v2569
      %v2661 = vpack.c.b16 %v2572, %v2571
      %v2662 = vpack.c.b16 %v2574, %v2573
      %v2663 = vpack.c.b16 %v2576, %v2575
      %v2664 = vpack.c.b16 %v2578, %v2577
      %v2665 = vpack.c.b16 %v2580, %v2579
      %v2666 = vpack.c.b16 %v2582, %v2581
      %v2667 = vpack.c.b16 %v2584, %v2583
      %v2668 = vpack.c.b16 %v2586, %v2585
      %v2669 = vpack.c.b16 %v2588, %v2587
      %v2670 = vpack.c.b16 %v2590, %v2589
      %v2671 = vpack.c.b16 %v2592, %v2591
      %v2672 = vpack.c.b16 %v2594, %v2593
      %v2673 = vpack.c.b16 %v2596, %v2595
      %v2674 = vpack.c.b16 %v2598, %v2597
      %v2675 = vpack.c.b16 %v2600, %v2599
      %v2676 = vpack.c.b16 %v2602, %v2601
      %v2677 = vpack.c.b16 %v2604, %v2603
      %v2678 = vpack.c.b16 %v2606, %v2605
      %v2679 = vpack.c.b16 %v2608, %v2607
      %v2680 = vpack.c.b16 %v2610, %v2609
      %v2681 = vpack.c.b16 %v2612, %v2611
      %v2682 = vpack.c.b16 %v2614, %v2613
      %v2683 = vpack.c.b16 %v2616, %v2615
      %v2684 = vpack.c.b16 %v2618, %v2617
      %v2685 = vpack.c.b16 %v2620, %v2619
      %v2686 = vpack.c.b16 %v2622, %v2621
      %v2687 = vpack.c.b16 %v2624, %v2623
      %v2688 = vpack.c.b16 %v2626, %v2625
      %v2689 = vpack.c.b16 %v2628, %v2627
      %v2690 = vpack.c.b16 %v2630, %v2629
      %v2691 = vpack.c.b16 %v2632, %v2631
      %v2692 = vpack.c.b16 %v2634, %v2633
      %v2693 = vpack.c.b16 %v2636, %v2635
      %v2694 = vpack.c.b16 %v2638, %v2637
      %v2695 = vpack.c.b16 %v2640, %v2639
      %v2696 = vpack.c.b16 %v2642, %v2641
      %v2697 = vpack.c.b16 %v2644, %v2643
      %v2698 = vpack.c.b16 %v2646, %v2645
      %v2699 = vpack.c.b16 %v2648, %v2647
      %v2700 = vpack.c.b16 %v2650, %v2649
      %v2701 = vpack.c.b16 %v2652, %v2651
      %v2702 = vpack.c.b16 %v2653, %v2653
      %v2704 = vshrl.u32 %v2654, 16
      %v2706 = vshll.u32 %v2654, 16
      %v2708 = vrot.slane %v2706, 1
      %v2709 = vor.u32 %v2704, %v2708
      %v2711 = vshll.u32 %v2655, 16
      %v2713 = vrot.slane %v2711, 1
      %v2714 = vsel %vm871, %v2709, %v2713
      %v2715 = vshrl.u32 %v2655, 16
      %v2717 = vor.u32 %v2715, %v2713
      %v2719 = vshll.u32 %v2656, 16
      %v2721 = vrot.slane %v2719, 1
      %v2722 = vsel %vm871, %v2717, %v2721
      %v2723 = vshrl.u32 %v2656, 16
      %v2725 = vor.u32 %v2723, %v2721
      %v2727 = vshll.u32 %v2657, 16
      %v2729 = vrot.slane %v2727, 1
      %v2730 = vsel %vm871, %v2725, %v2729
      %v2731 = vshrl.u32 %v2657, 16
      %v2733 = vor.u32 %v2731, %v2729
      %v2735 = vshll.u32 %v2658, 16
      %v2737 = vrot.slane %v2735, 1
      %v2738 = vsel %vm871, %v2733, %v2737
      %v2739 = vshrl.u32 %v2658, 16
      %v2741 = vor.u32 %v2739, %v2737
      %v2743 = vshll.u32 %v2659, 16
      %v2745 = vrot.slane %v2743, 1
      %v2746 = vsel %vm871, %v2741, %v2745
      %v2747 = vshrl.u32 %v2659, 16
      %v2749 = vor.u32 %v2747, %v2745
      %v2751 = vshll.u32 %v2660, 16
      %v2753 = vrot.slane %v2751, 1
      %v2754 = vsel %vm871, %v2749, %v2753
      %v2755 = vshrl.u32 %v2660, 16
      %v2757 = vor.u32 %v2755, %v2753
      %v2759 = vshll.u32 %v2661, 16
      %v2761 = vrot.slane %v2759, 1
      %v2762 = vsel %vm871, %v2757, %v2761
      %v2763 = vshrl.u32 %v2661, 16
      %v2765 = vor.u32 %v2763, %v2761
      %v2767 = vshll.u32 %v2662, 16
      %v2769 = vrot.slane %v2767, 1
      %v2770 = vsel %vm871, %v2765, %v2769
      %v2771 = vshrl.u32 %v2662, 16
      %v2773 = vor.u32 %v2771, %v2769
      %v2775 = vshll.u32 %v2663, 16
      %v2777 = vrot.slane %v2775, 1
      %v2778 = vsel %vm871, %v2773, %v2777
      %v2779 = vshrl.u32 %v2663, 16
      %v2781 = vor.u32 %v2779, %v2777
      %v2783 = vshll.u32 %v2664, 16
      %v2785 = vrot.slane %v2783, 1
      %v2786 = vsel %vm871, %v2781, %v2785
      %v2787 = vshrl.u32 %v2664, 16
      %v2789 = vor.u32 %v2787, %v2785
      %v2791 = vshll.u32 %v2665, 16
      %v2793 = vrot.slane %v2791, 1
      %v2794 = vsel %vm871, %v2789, %v2793
      %v2795 = vshrl.u32 %v2665, 16
      %v2797 = vor.u32 %v2795, %v2793
      %v2799 = vshll.u32 %v2666, 16
      %v2801 = vrot.slane %v2799, 1
      %v2802 = vsel %vm871, %v2797, %v2801
      %v2803 = vshrl.u32 %v2666, 16
      %v2805 = vor.u32 %v2803, %v2801
      %v2807 = vshll.u32 %v2667, 16
      %v2809 = vrot.slane %v2807, 1
      %v2810 = vsel %vm871, %v2805, %v2809
      %v2811 = vshrl.u32 %v2667, 16
      %v2813 = vor.u32 %v2811, %v2809
      %v2815 = vshll.u32 %v2668, 16
      %v2817 = vrot.slane %v2815, 1
      %v2818 = vsel %vm871, %v2813, %v2817
      %v2819 = vshrl.u32 %v2668, 16
      %v2821 = vor.u32 %v2819, %v2817
      %v2823 = vshll.u32 %v2669, 16
      %v2825 = vrot.slane %v2823, 1
      %v2826 = vsel %vm871, %v2821, %v2825
      %v2827 = vshrl.u32 %v2669, 16
      %v2829 = vor.u32 %v2827, %v2825
      %v2831 = vshll.u32 %v2670, 16
      %v2833 = vrot.slane %v2831, 1
      %v2834 = vsel %vm871, %v2829, %v2833
      %v2835 = vshrl.u32 %v2670, 16
      %v2837 = vor.u32 %v2835, %v2833
      %v2839 = vshll.u32 %v2671, 16
      %v2841 = vrot.slane %v2839, 1
      %v2842 = vsel %vm871, %v2837, %v2841
      %v2843 = vshrl.u32 %v2671, 16
      %v2845 = vor.u32 %v2843, %v2841
      %v2847 = vshll.u32 %v2672, 16
      %v2849 = vrot.slane %v2847, 1
      %v2850 = vsel %vm871, %v2845, %v2849
      %v2851 = vshrl.u32 %v2672, 16
      %v2853 = vor.u32 %v2851, %v2849
      %v2855 = vshll.u32 %v2673, 16
      %v2857 = vrot.slane %v2855, 1
      %v2858 = vsel %vm871, %v2853, %v2857
      %v2859 = vshrl.u32 %v2673, 16
      %v2861 = vor.u32 %v2859, %v2857
      %v2863 = vshll.u32 %v2674, 16
      %v2865 = vrot.slane %v2863, 1
      %v2866 = vsel %vm871, %v2861, %v2865
      %v2867 = vshrl.u32 %v2674, 16
      %v2869 = vor.u32 %v2867, %v2865
      %v2871 = vshll.u32 %v2675, 16
      %v2873 = vrot.slane %v2871, 1
      %v2874 = vsel %vm871, %v2869, %v2873
      %v2875 = vshrl.u32 %v2675, 16
      %v2877 = vor.u32 %v2875, %v2873
      %v2879 = vshll.u32 %v2676, 16
      %v2881 = vrot.slane %v2879, 1
      %v2882 = vsel %vm871, %v2877, %v2881
      %v2883 = vshrl.u32 %v2676, 16
      %v2885 = vor.u32 %v2883, %v2881
      %v2887 = vshll.u32 %v2677, 16
      %v2889 = vrot.slane %v2887, 1
      %v2890 = vsel %vm871, %v2885, %v2889
      %v2891 = vshrl.u32 %v2677, 16
      %v2893 = vor.u32 %v2891, %v2889
      %v2895 = vshll.u32 %v2678, 16
      %v2897 = vrot.slane %v2895, 1
      %v2898 = vsel %vm871, %v2893, %v2897
      %v2899 = vshrl.u32 %v2678, 16
      %v2901 = vor.u32 %v2899, %v2897
      %v2903 = vshll.u32 %v2679, 16
      %v2905 = vrot.slane %v2903, 1
      %v2906 = vsel %vm871, %v2901, %v2905
      %v2907 = vshrl.u32 %v2679, 16
      %v2909 = vor.u32 %v2907, %v2905
      %v2911 = vshll.u32 %v2680, 16
      %v2913 = vrot.slane %v2911, 1
      %v2914 = vsel %vm871, %v2909, %v2913
      %v2915 = vshrl.u32 %v2680, 16
      %v2917 = vor.u32 %v2915, %v2913
      %v2919 = vshll.u32 %v2681, 16
      %v2921 = vrot.slane %v2919, 1
      %v2922 = vsel %vm871, %v2917, %v2921
      %v2923 = vshrl.u32 %v2681, 16
      %v2925 = vor.u32 %v2923, %v2921
      %v2927 = vshll.u32 %v2682, 16
      %v2929 = vrot.slane %v2927, 1
      %v2930 = vsel %vm871, %v2925, %v2929
      %v2931 = vshrl.u32 %v2682, 16
      %v2933 = vor.u32 %v2931, %v2929
      %v2935 = vshll.u32 %v2683, 16
      %v2937 = vrot.slane %v2935, 1
      %v2938 = vsel %vm871, %v2933, %v2937
      %v2939 = vshrl.u32 %v2683, 16
      %v2941 = vor.u32 %v2939, %v2937
      %v2943 = vshll.u32 %v2684, 16
      %v2945 = vrot.slane %v2943, 1
      %v2946 = vsel %vm871, %v2941, %v2945
      %v2947 = vshrl.u32 %v2684, 16
      %v2949 = vor.u32 %v2947, %v2945
      %v2951 = vshll.u32 %v2685, 16
      %v2953 = vrot.slane %v2951, 1
      %v2954 = vsel %vm871, %v2949, %v2953
      %v2955 = vshrl.u32 %v2685, 16
      %v2957 = vor.u32 %v2955, %v2953
      %v2959 = vshll.u32 %v2686, 16
      %v2961 = vrot.slane %v2959, 1
      %v2962 = vsel %vm871, %v2957, %v2961
      %v2963 = vshrl.u32 %v2686, 16
      %v2965 = vor.u32 %v2963, %v2961
      %v2967 = vshll.u32 %v2687, 16
      %v2969 = vrot.slane %v2967, 1
      %v2970 = vsel %vm871, %v2965, %v2969
      %v2971 = vshrl.u32 %v2687, 16
      %v2973 = vor.u32 %v2971, %v2969
      %v2975 = vshll.u32 %v2688, 16
      %v2977 = vrot.slane %v2975, 1
      %v2978 = vsel %vm871, %v2973, %v2977
      %v2979 = vshrl.u32 %v2688, 16
      %v2981 = vor.u32 %v2979, %v2977
      %v2983 = vshll.u32 %v2689, 16
      %v2985 = vrot.slane %v2983, 1
      %v2986 = vsel %vm871, %v2981, %v2985
      %v2987 = vshrl.u32 %v2689, 16
      %v2989 = vor.u32 %v2987, %v2985
      %v2991 = vshll.u32 %v2690, 16
      %v2993 = vrot.slane %v2991, 1
      %v2994 = vsel %vm871, %v2989, %v2993
      %v2995 = vshrl.u32 %v2690, 16
      %v2997 = vor.u32 %v2995, %v2993
      %v2999 = vshll.u32 %v2691, 16
      %v3001 = vrot.slane %v2999, 1
      %v3002 = vsel %vm871, %v2997, %v3001
      %v3003 = vshrl.u32 %v2691, 16
      %v3005 = vor.u32 %v3003, %v3001
      %v3007 = vshll.u32 %v2692, 16
      %v3009 = vrot.slane %v3007, 1
      %v3010 = vsel %vm871, %v3005, %v3009
      %v3011 = vshrl.u32 %v2692, 16
      %v3013 = vor.u32 %v3011, %v3009
      %v3015 = vshll.u32 %v2693, 16
      %v3017 = vrot.slane %v3015, 1
      %v3018 = vsel %vm871, %v3013, %v3017
      %v3019 = vshrl.u32 %v2693, 16
      %v3021 = vor.u32 %v3019, %v3017
      %v3023 = vshll.u32 %v2694, 16
      %v3025 = vrot.slane %v3023, 1
      %v3026 = vsel %vm871, %v3021, %v3025
      %v3027 = vshrl.u32 %v2694, 16
      %v3029 = vor.u32 %v3027, %v3025
      %v3031 = vshll.u32 %v2695, 16
      %v3033 = vrot.slane %v3031, 1
      %v3034 = vsel %vm871, %v3029, %v3033
      %v3035 = vshrl.u32 %v2695, 16
      %v3037 = vor.u32 %v3035, %v3033
      %v3039 = vshll.u32 %v2696, 16
      %v3041 = vrot.slane %v3039, 1
      %v3042 = vsel %vm871, %v3037, %v3041
      %v3043 = vshrl.u32 %v2696, 16
      %v3045 = vor.u32 %v3043, %v3041
      %v3047 = vshll.u32 %v2697, 16
      %v3049 = vrot.slane %v3047, 1
      %v3050 = vsel %vm871, %v3045, %v3049
      %v3051 = vshrl.u32 %v2697, 16
      %v3053 = vor.u32 %v3051, %v3049
      %v3055 = vshll.u32 %v2698, 16
      %v3057 = vrot.slane %v3055, 1
      %v3058 = vsel %vm871, %v3053, %v3057
      %v3059 = vshrl.u32 %v2698, 16
      %v3061 = vor.u32 %v3059, %v3057
      %v3063 = vshll.u32 %v2699, 16
      %v3065 = vrot.slane %v3063, 1
      %v3066 = vsel %vm871, %v3061, %v3065
      %v3067 = vshrl.u32 %v2699, 16
      %v3069 = vor.u32 %v3067, %v3065
      %v3071 = vshll.u32 %v2700, 16
      %v3073 = vrot.slane %v3071, 1
      %v3074 = vsel %vm871, %v3069, %v3073
      %v3075 = vshrl.u32 %v2700, 16
      %v3077 = vor.u32 %v3075, %v3073
      %v3079 = vshll.u32 %v2701, 16
      %v3081 = vrot.slane %v3079, 1
      %v3082 = vsel %vm871, %v3077, %v3081
      %v3083 = vshrl.u32 %v2701, 16
      %v3085 = vor.u32 %v3083, %v3081
      %v3087 = vshll.u32 %v2702, 16
      %v3089 = vrot.slane %v3087, 1
      %v3090 = vsel %vm871, %v3085, %v3089
      %v3095 = vunpack.c.l.b16 %v2456
      %v3096 = vunpack.c.l.b16 %v2457
      %v3097 = vunpack.c.l.b16 %v2458
      %v3098 = vunpack.c.l.b16 %v2459
      %v3099 = vpack.c.b16 %v3096, %v3095
      %v3100 = vpack.c.b16 %v3098, %v3097
      %v3104 = vsel %vm1272, %v2714, 0
      %v3107 = vsel %vm1272, %v2722, 0
      %v3110 = vsel %vm1272, %v2730, 0
      %v3113 = vsel %vm1272, %v2738, 0
      %v3116 = vsel %vm1272, %v2746, 0
      %v3119 = vsel %vm1272, %v2754, 0
      %v3122 = vsel %vm1272, %v2762, 0
      %v3125 = vsel %vm1272, %v2770, 0
      %v3128 = vsel %vm1272, %v2778, 0
      %v3131 = vsel %vm1272, %v2786, 0
      %v3134 = vsel %vm1272, %v2794, 0
      %v3137 = vsel %vm1272, %v2802, 0
      %v3140 = vsel %vm1272, %v2810, 0
      %v3143 = vsel %vm1272, %v2818, 0
      %v3146 = vsel %vm1272, %v2826, 0
      %v3149 = vsel %vm1272, %v2834, 0
      %v3152 = vsel %vm1272, %v2842, 0
      %v3155 = vsel %vm1272, %v2850, 0
      %v3158 = vsel %vm1272, %v2858, 0
      %v3161 = vsel %vm1272, %v2866, 0
      %v3164 = vsel %vm1272, %v2874, 0
      %v3167 = vsel %vm1272, %v2882, 0
      %v3170 = vsel %vm1272, %v2890, 0
      %v3173 = vsel %vm1272, %v2898, 0
      %v3176 = vsel %vm1272, %v2906, 0
      %v3179 = vsel %vm1272, %v2914, 0
      %v3182 = vsel %vm1272, %v2922, 0
      %v3185 = vsel %vm1272, %v2930, 0
      %v3188 = vsel %vm1272, %v2938, 0
      %v3191 = vsel %vm1272, %v2946, 0
      %v3194 = vsel %vm1272, %v2954, 0
      %v3197 = vsel %vm1272, %v2962, 0
      %v3200 = vsel %vm1272, %v2970, 0
      %v3203 = vsel %vm1272, %v2978, 0
      %v3206 = vsel %vm1272, %v2986, 0
      %v3209 = vsel %vm1272, %v2994, 0
      %v3212 = vsel %vm1272, %v3002, 0
      %v3215 = vsel %vm1272, %v3010, 0
      %v3218 = vsel %vm1272, %v3018, 0
      %v3221 = vsel %vm1272, %v3026, 0
      %v3224 = vsel %vm1272, %v3034, 0
      %v3227 = vsel %vm1272, %v3042, 0
      %v3230 = vsel %vm1272, %v3050, 0
      %v3233 = vsel %vm1272, %v3058, 0
      %v3236 = vsel %vm1272, %v3066, 0
      %v3239 = vsel %vm1272, %v3074, 0
      %v3242 = vsel %vm1272, %v3082, 0
      %v3245 = vsel %vm1272, %v3090, 0
      %3247 = vmatprep.subr.bf16.mxu0 0
      %3248 = vmatpush1.bf16.msra.mxu0 0
      %3249 = vmatprep.subr.bf16.mxu0 0
      %3250 = vmatpush1.bf16.msra.mxu0 0
      %3251 = vmatprep.subr.bf16.mxu0 0
      %3252 = vmatpush1.bf16.msra.mxu0 0
      %3253 = vmatprep.subr.bf16.mxu0 0
      %3254 = vmatpush1.bf16.msra.mxu0 0
      %3255 = vmatprep.subr.bf16.mxu0 0
      %3256 = vmatpush1.bf16.msra.mxu0 0
      %3257 = vmatprep.subr.bf16.mxu0 0
      %3258 = vmatpush1.bf16.msra.mxu0 0
      %3259 = vmatprep.subr.bf16.mxu0 0
      %3260 = vmatpush1.bf16.msra.mxu0 %v3100
      %3261 = vmatprep.subr.bf16.mxu0 0
      %3262 = vmatpush1.bf16.msra.mxu0 %v3099
      %3263 = vmatprep.subr.bf16.mxu0 0
      %3264 = vmatpush2.bf16.msra.mxu0 0
      %3265 = vmatprep.subr.bf16.mxu0 0
      %3266 = vmatpush2.bf16.msra.mxu0 0
      %3267 = vmatprep.subr.bf16.mxu0 0
      %3268 = vmatpush2.bf16.msra.mxu0 0
      %3269 = vmatprep.subr.bf16.mxu0 0
      %3270 = vmatpush2.bf16.msra.mxu0 0
      %3271 = vmatprep.subr.bf16.mxu0 0
      %3272 = vmatpush2.bf16.msra.mxu0 0
      %3273 = vmatprep.subr.bf16.mxu0 0
      %3274 = vmatpush2.bf16.msra.mxu0 0
      %3275 = vmatprep.subr.bf16.mxu0 0
      %3276 = vmatpush2.bf16.msra.mxu0 0
      %3277 = vmatprep.subr.bf16.mxu0 0
      %3278 = vmatpush2.bf16.msra.mxu0 0
      %3279 = vmatprep.mubr.bf16.mxu0 0
      %3280 = vmatmul.mubr.bf16.gmra.mxu0 %v3104
      %v3281 = vpop.f32.mrf.mxu0
      %v3282 = vadd.f32 0.0, %v3281
      %v3283 = vpop.f32.mrf.mxu0
      %v3284 = vpop.f32.mrf.mxu0
      %v3285 = vadd.f32 0.0, %v3284
      %v3286 = vpop.f32.mrf.mxu0
      %3287 = vmatprep.mubr.bf16.mxu0 0
      %3288 = vmatmul.mubr.bf16.gmra.mxu0 %v3107
      %v3289 = vpop.f32.mrf.mxu0
      %v3290 = vadd.f32 0.0, %v3289
      %v3291 = vpop.f32.mrf.mxu0
      %v3292 = vpop.f32.mrf.mxu0
      %v3293 = vadd.f32 0.0, %v3292
      %v3294 = vpop.f32.mrf.mxu0
      %3295 = vmatprep.mubr.bf16.mxu0 0
      %3296 = vmatmul.mubr.bf16.gmra.mxu0 %v3110
      %v3297 = vpop.f32.mrf.mxu0
      %v3298 = vadd.f32 0.0, %v3297
      %v3299 = vpop.f32.mrf.mxu0
      %v3300 = vpop.f32.mrf.mxu0
      %v3301 = vadd.f32 0.0, %v3300
      %v3302 = vpop.f32.mrf.mxu0
      %3303 = vmatprep.mubr.bf16.mxu0 0
      %3304 = vmatmul.mubr.bf16.gmra.mxu0 %v3113
      %v3305 = vpop.f32.mrf.mxu0
      %v3306 = vadd.f32 0.0, %v3305
      %v3307 = vpop.f32.mrf.mxu0
      %v3308 = vpop.f32.mrf.mxu0
      %v3309 = vadd.f32 0.0, %v3308
      %v3310 = vpop.f32.mrf.mxu0
      %3311 = vmatprep.mubr.bf16.mxu0 0
      %3312 = vmatmul.mubr.bf16.gmra.mxu0 %v3116
      %v3313 = vpop.f32.mrf.mxu0
      %v3314 = vadd.f32 0.0, %v3313
      %v3315 = vpop.f32.mrf.mxu0
      %v3316 = vpop.f32.mrf.mxu0
      %v3317 = vadd.f32 0.0, %v3316
      %v3318 = vpop.f32.mrf.mxu0
      %3319 = vmatprep.mubr.bf16.mxu0 0
      %3320 = vmatmul.mubr.bf16.gmra.mxu0 %v3119
      %v3321 = vpop.f32.mrf.mxu0
      %v3322 = vadd.f32 0.0, %v3321
      %v3323 = vpop.f32.mrf.mxu0
      %v3324 = vpop.f32.mrf.mxu0
      %v3325 = vadd.f32 0.0, %v3324
      %v3326 = vpop.f32.mrf.mxu0
      %3327 = vmatprep.mubr.bf16.mxu0 0
      %3328 = vmatmul.mubr.bf16.gmra.mxu0 %v3122
      %v3329 = vpop.f32.mrf.mxu0
      %v3330 = vadd.f32 0.0, %v3329
      %v3331 = vpop.f32.mrf.mxu0
      %v3332 = vpop.f32.mrf.mxu0
      %v3333 = vadd.f32 0.0, %v3332
      %v3334 = vpop.f32.mrf.mxu0
      %3335 = vmatprep.mubr.bf16.mxu0 0
      %3336 = vmatmul.mubr.bf16.gmra.mxu0 %v3125
      %v3337 = vpop.f32.mrf.mxu0
      %v3338 = vadd.f32 0.0, %v3337
      %v3339 = vpop.f32.mrf.mxu0
      %v3340 = vpop.f32.mrf.mxu0
      %v3341 = vadd.f32 0.0, %v3340
      %v3342 = vpop.f32.mrf.mxu0
      %3343 = vmatprep.mubr.bf16.mxu0 0
      %3344 = vmatmul.mubr.bf16.gmra.mxu0 %v3128
      %v3345 = vpop.f32.mrf.mxu0
      %v3346 = vadd.f32 0.0, %v3345
      %v3347 = vpop.f32.mrf.mxu0
      %v3348 = vpop.f32.mrf.mxu0
      %v3349 = vadd.f32 0.0, %v3348
      %v3350 = vpop.f32.mrf.mxu0
      %3351 = vmatprep.mubr.bf16.mxu0 0
      %3352 = vmatmul.mubr.bf16.gmra.mxu0 %v3131
      %v3353 = vpop.f32.mrf.mxu0
      %v3354 = vadd.f32 0.0, %v3353
      %v3355 = vpop.f32.mrf.mxu0
      %v3356 = vpop.f32.mrf.mxu0
      %v3357 = vadd.f32 0.0, %v3356
      %v3358 = vpop.f32.mrf.mxu0
      %3359 = vmatprep.mubr.bf16.mxu0 0
      %3360 = vmatmul.mubr.bf16.gmra.mxu0 %v3134
      %v3361 = vpop.f32.mrf.mxu0
      %v3362 = vadd.f32 0.0, %v3361
      %v3363 = vpop.f32.mrf.mxu0
      %v3364 = vpop.f32.mrf.mxu0
      %v3365 = vadd.f32 0.0, %v3364
      %v3366 = vpop.f32.mrf.mxu0
      %3367 = vmatprep.mubr.bf16.mxu0 0
      %3368 = vmatmul.mubr.bf16.gmra.mxu0 %v3137
      %v3369 = vpop.f32.mrf.mxu0
      %v3370 = vadd.f32 0.0, %v3369
      %v3371 = vpop.f32.mrf.mxu0
      %v3372 = vpop.f32.mrf.mxu0
      %v3373 = vadd.f32 0.0, %v3372
      %v3374 = vpop.f32.mrf.mxu0
      %3375 = vmatprep.mubr.bf16.mxu0 0
      %3376 = vmatmul.mubr.bf16.gmra.mxu0 %v3140
      %v3377 = vpop.f32.mrf.mxu0
      %v3378 = vadd.f32 0.0, %v3377
      %v3379 = vpop.f32.mrf.mxu0
      %v3380 = vpop.f32.mrf.mxu0
      %v3381 = vadd.f32 0.0, %v3380
      %v3382 = vpop.f32.mrf.mxu0
      %3383 = vmatprep.mubr.bf16.mxu0 0
      %3384 = vmatmul.mubr.bf16.gmra.mxu0 %v3143
      %v3385 = vpop.f32.mrf.mxu0
      %v3386 = vadd.f32 0.0, %v3385
      %v3387 = vpop.f32.mrf.mxu0
      %v3388 = vpop.f32.mrf.mxu0
      %v3389 = vadd.f32 0.0, %v3388
      %v3390 = vpop.f32.mrf.mxu0
      %3391 = vmatprep.mubr.bf16.mxu0 0
      %3392 = vmatmul.mubr.bf16.gmra.mxu0 %v3146
      %v3393 = vpop.f32.mrf.mxu0
      %v3394 = vadd.f32 0.0, %v3393
      %v3395 = vpop.f32.mrf.mxu0
      %v3396 = vpop.f32.mrf.mxu0
      %v3397 = vadd.f32 0.0, %v3396
      %v3398 = vpop.f32.mrf.mxu0
      %3399 = vmatprep.mubr.bf16.mxu0 0
      %3400 = vmatmul.mubr.bf16.gmra.mxu0 %v3149
      %v3401 = vpop.f32.mrf.mxu0
      %v3402 = vadd.f32 0.0, %v3401
      %v3403 = vpop.f32.mrf.mxu0
      %v3404 = vpop.f32.mrf.mxu0
      %v3405 = vadd.f32 0.0, %v3404
      %v3406 = vpop.f32.mrf.mxu0
      %3407 = vmatprep.mubr.bf16.mxu0 0
      %3408 = vmatmul.mubr.bf16.gmra.mxu0 %v3152
      %v3409 = vpop.f32.mrf.mxu0
      %v3410 = vadd.f32 0.0, %v3409
      %v3411 = vpop.f32.mrf.mxu0
      %v3412 = vpop.f32.mrf.mxu0
      %v3413 = vadd.f32 0.0, %v3412
      %v3414 = vpop.f32.mrf.mxu0
      %3415 = vmatprep.mubr.bf16.mxu0 0
      %3416 = vmatmul.mubr.bf16.gmra.mxu0 %v3155
      %v3417 = vpop.f32.mrf.mxu0
      %v3418 = vadd.f32 0.0, %v3417
      %v3419 = vpop.f32.mrf.mxu0
      %v3420 = vpop.f32.mrf.mxu0
      %v3421 = vadd.f32 0.0, %v3420
      %v3422 = vpop.f32.mrf.mxu0
      %3423 = vmatprep.mubr.bf16.mxu0 0
      %3424 = vmatmul.mubr.bf16.gmra.mxu0 %v3158
      %v3425 = vpop.f32.mrf.mxu0
      %v3426 = vadd.f32 0.0, %v3425
      %v3427 = vpop.f32.mrf.mxu0
      %v3428 = vpop.f32.mrf.mxu0
      %v3429 = vadd.f32 0.0, %v3428
      %v3430 = vpop.f32.mrf.mxu0
      %3431 = vmatprep.mubr.bf16.mxu0 0
      %3432 = vmatmul.mubr.bf16.gmra.mxu0 %v3161
      %v3433 = vpop.f32.mrf.mxu0
      %v3434 = vadd.f32 0.0, %v3433
      %v3435 = vpop.f32.mrf.mxu0
      %v3436 = vpop.f32.mrf.mxu0
      %v3437 = vadd.f32 0.0, %v3436
      %v3438 = vpop.f32.mrf.mxu0
      %3439 = vmatprep.mubr.bf16.mxu0 0
      %3440 = vmatmul.mubr.bf16.gmra.mxu0 %v3164
      %v3441 = vpop.f32.mrf.mxu0
      %v3442 = vadd.f32 0.0, %v3441
      %v3443 = vpop.f32.mrf.mxu0
      %v3444 = vpop.f32.mrf.mxu0
      %v3445 = vadd.f32 0.0, %v3444
      %v3446 = vpop.f32.mrf.mxu0
      %3447 = vmatprep.mubr.bf16.mxu0 0
      %3448 = vmatmul.mubr.bf16.gmra.mxu0 %v3167
      %v3449 = vpop.f32.mrf.mxu0
      %v3450 = vadd.f32 0.0, %v3449
      %v3451 = vpop.f32.mrf.mxu0
      %v3452 = vpop.f32.mrf.mxu0
      %v3453 = vadd.f32 0.0, %v3452
      %v3454 = vpop.f32.mrf.mxu0
      %3455 = vmatprep.mubr.bf16.mxu0 0
      %3456 = vmatmul.mubr.bf16.gmra.mxu0 %v3170
      %v3457 = vpop.f32.mrf.mxu0
      %v3458 = vadd.f32 0.0, %v3457
      %v3459 = vpop.f32.mrf.mxu0
      %v3460 = vpop.f32.mrf.mxu0
      %v3461 = vadd.f32 0.0, %v3460
      %v3462 = vpop.f32.mrf.mxu0
      %3463 = vmatprep.mubr.bf16.mxu0 0
      %3464 = vmatmul.mubr.bf16.gmra.mxu0 %v3173
      %v3465 = vpop.f32.mrf.mxu0
      %v3466 = vadd.f32 0.0, %v3465
      %v3467 = vpop.f32.mrf.mxu0
      %v3468 = vpop.f32.mrf.mxu0
      %v3469 = vadd.f32 0.0, %v3468
      %v3470 = vpop.f32.mrf.mxu0
      %3471 = vmatprep.mubr.bf16.mxu0 0
      %3472 = vmatmul.mubr.bf16.gmra.mxu0 %v3176
      %v3473 = vpop.f32.mrf.mxu0
      %v3474 = vadd.f32 0.0, %v3473
      %v3475 = vpop.f32.mrf.mxu0
      %v3476 = vpop.f32.mrf.mxu0
      %v3477 = vadd.f32 0.0, %v3476
      %v3478 = vpop.f32.mrf.mxu0
      %3479 = vmatprep.mubr.bf16.mxu0 0
      %3480 = vmatmul.mubr.bf16.gmra.mxu0 %v3179
      %v3481 = vpop.f32.mrf.mxu0
      %v3482 = vadd.f32 0.0, %v3481
      %v3483 = vpop.f32.mrf.mxu0
      %v3484 = vpop.f32.mrf.mxu0
      %v3485 = vadd.f32 0.0, %v3484
      %v3486 = vpop.f32.mrf.mxu0
      %3487 = vmatprep.mubr.bf16.mxu0 0
      %3488 = vmatmul.mubr.bf16.gmra.mxu0 %v3182
      %v3489 = vpop.f32.mrf.mxu0
      %v3490 = vadd.f32 0.0, %v3489
      %v3491 = vpop.f32.mrf.mxu0
      %v3492 = vpop.f32.mrf.mxu0
      %v3493 = vadd.f32 0.0, %v3492
      %v3494 = vpop.f32.mrf.mxu0
      %3495 = vmatprep.mubr.bf16.mxu0 0
      %3496 = vmatmul.mubr.bf16.gmra.mxu0 %v3185
      %v3497 = vpop.f32.mrf.mxu0
      %v3498 = vadd.f32 0.0, %v3497
      %v3499 = vpop.f32.mrf.mxu0
      %v3500 = vpop.f32.mrf.mxu0
      %v3501 = vadd.f32 0.0, %v3500
      %v3502 = vpop.f32.mrf.mxu0
      %3503 = vmatprep.mubr.bf16.mxu0 0
      %3504 = vmatmul.mubr.bf16.gmra.mxu0 %v3188
      %v3505 = vpop.f32.mrf.mxu0
      %v3506 = vadd.f32 0.0, %v3505
      %v3507 = vpop.f32.mrf.mxu0
      %v3508 = vpop.f32.mrf.mxu0
      %v3509 = vadd.f32 0.0, %v3508
      %v3510 = vpop.f32.mrf.mxu0
      %3511 = vmatprep.mubr.bf16.mxu0 0
      %3512 = vmatmul.mubr.bf16.gmra.mxu0 %v3191
      %v3513 = vpop.f32.mrf.mxu0
      %v3514 = vadd.f32 0.0, %v3513
      %v3515 = vpop.f32.mrf.mxu0
      %v3516 = vpop.f32.mrf.mxu0
      %v3517 = vadd.f32 0.0, %v3516
      %v3518 = vpop.f32.mrf.mxu0
      %3519 = vmatprep.mubr.bf16.mxu0 0
      %3520 = vmatmul.mubr.bf16.gmra.mxu0 %v3194
      %v3521 = vpop.f32.mrf.mxu0
      %v3522 = vadd.f32 0.0, %v3521
      %v3523 = vpop.f32.mrf.mxu0
      %v3524 = vpop.f32.mrf.mxu0
      %v3525 = vadd.f32 0.0, %v3524
      %v3526 = vpop.f32.mrf.mxu0
      %3527 = vmatprep.mubr.bf16.mxu0 0
      %3528 = vmatmul.mubr.bf16.gmra.mxu0 %v3197
      %v3529 = vpop.f32.mrf.mxu0
      %v3530 = vadd.f32 0.0, %v3529
      %v3531 = vpop.f32.mrf.mxu0
      %v3532 = vpop.f32.mrf.mxu0
      %v3533 = vadd.f32 0.0, %v3532
      %v3534 = vpop.f32.mrf.mxu0
      %3535 = vmatprep.mubr.bf16.mxu0 0
      %3536 = vmatmul.mubr.bf16.gmra.mxu0 %v3200
      %v3537 = vpop.f32.mrf.mxu0
      %v3538 = vadd.f32 0.0, %v3537
      %v3539 = vpop.f32.mrf.mxu0
      %v3540 = vpop.f32.mrf.mxu0
      %v3541 = vadd.f32 0.0, %v3540
      %v3542 = vpop.f32.mrf.mxu0
      %3543 = vmatprep.mubr.bf16.mxu0 0
      %3544 = vmatmul.mubr.bf16.gmra.mxu0 %v3203
      %v3545 = vpop.f32.mrf.mxu0
      %v3546 = vadd.f32 0.0, %v3545
      %v3547 = vpop.f32.mrf.mxu0
      %v3548 = vpop.f32.mrf.mxu0
      %v3549 = vadd.f32 0.0, %v3548
      %v3550 = vpop.f32.mrf.mxu0
      %3551 = vmatprep.mubr.bf16.mxu0 0
      %3552 = vmatmul.mubr.bf16.gmra.mxu0 %v3206
      %v3553 = vpop.f32.mrf.mxu0
      %v3554 = vadd.f32 0.0, %v3553
      %v3555 = vpop.f32.mrf.mxu0
      %v3556 = vpop.f32.mrf.mxu0
      %v3557 = vadd.f32 0.0, %v3556
      %v3558 = vpop.f32.mrf.mxu0
      %3559 = vmatprep.mubr.bf16.mxu0 0
      %3560 = vmatmul.mubr.bf16.gmra.mxu0 %v3209
      %v3561 = vpop.f32.mrf.mxu0
      %v3562 = vadd.f32 0.0, %v3561
      %v3563 = vpop.f32.mrf.mxu0
      %v3564 = vpop.f32.mrf.mxu0
      %v3565 = vadd.f32 0.0, %v3564
      %v3566 = vpop.f32.mrf.mxu0
      %3567 = vmatprep.mubr.bf16.mxu0 0
      %3568 = vmatmul.mubr.bf16.gmra.mxu0 %v3212
      %v3569 = vpop.f32.mrf.mxu0
      %v3570 = vadd.f32 0.0, %v3569
      %v3571 = vpop.f32.mrf.mxu0
      %v3572 = vpop.f32.mrf.mxu0
      %v3573 = vadd.f32 0.0, %v3572
      %v3574 = vpop.f32.mrf.mxu0
      %3575 = vmatprep.mubr.bf16.mxu0 0
      %3576 = vmatmul.mubr.bf16.gmra.mxu0 %v3215
      %v3577 = vpop.f32.mrf.mxu0
      %v3578 = vadd.f32 0.0, %v3577
      %v3579 = vpop.f32.mrf.mxu0
      %v3580 = vpop.f32.mrf.mxu0
      %v3581 = vadd.f32 0.0, %v3580
      %v3582 = vpop.f32.mrf.mxu0
      %3583 = vmatprep.mubr.bf16.mxu0 0
      %3584 = vmatmul.mubr.bf16.gmra.mxu0 %v3218
      %v3585 = vpop.f32.mrf.mxu0
      %v3586 = vadd.f32 0.0, %v3585
      %v3587 = vpop.f32.mrf.mxu0
      %v3588 = vpop.f32.mrf.mxu0
      %v3589 = vadd.f32 0.0, %v3588
      %v3590 = vpop.f32.mrf.mxu0
      %3591 = vmatprep.mubr.bf16.mxu0 0
      %3592 = vmatmul.mubr.bf16.gmra.mxu0 %v3221
      %v3593 = vpop.f32.mrf.mxu0
      %v3594 = vadd.f32 0.0, %v3593
      %v3595 = vpop.f32.mrf.mxu0
      %v3596 = vpop.f32.mrf.mxu0
      %v3597 = vadd.f32 0.0, %v3596
      %v3598 = vpop.f32.mrf.mxu0
      %3599 = vmatprep.mubr.bf16.mxu0 0
      %3600 = vmatmul.mubr.bf16.gmra.mxu0 %v3224
      %v3601 = vpop.f32.mrf.mxu0
      %v3602 = vadd.f32 0.0, %v3601
      %v3603 = vpop.f32.mrf.mxu0
      %v3604 = vpop.f32.mrf.mxu0
      %v3605 = vadd.f32 0.0, %v3604
      %v3606 = vpop.f32.mrf.mxu0
      %3607 = vmatprep.mubr.bf16.mxu0 0
      %3608 = vmatmul.mubr.bf16.gmra.mxu0 %v3227
      %v3609 = vpop.f32.mrf.mxu0
      %v3610 = vadd.f32 0.0, %v3609
      %v3611 = vpop.f32.mrf.mxu0
      %v3612 = vpop.f32.mrf.mxu0
      %v3613 = vadd.f32 0.0, %v3612
      %v3614 = vpop.f32.mrf.mxu0
      %3615 = vmatprep.mubr.bf16.mxu0 0
      %3616 = vmatmul.mubr.bf16.gmra.mxu0 %v3230
      %v3617 = vpop.f32.mrf.mxu0
      %v3618 = vadd.f32 0.0, %v3617
      %v3619 = vpop.f32.mrf.mxu0
      %v3620 = vpop.f32.mrf.mxu0
      %v3621 = vadd.f32 0.0, %v3620
      %v3622 = vpop.f32.mrf.mxu0
      %3623 = vmatprep.mubr.bf16.mxu0 0
      %3624 = vmatmul.mubr.bf16.gmra.mxu0 %v3233
      %v3625 = vpop.f32.mrf.mxu0
      %v3626 = vadd.f32 0.0, %v3625
      %v3627 = vpop.f32.mrf.mxu0
      %v3628 = vpop.f32.mrf.mxu0
      %v3629 = vadd.f32 0.0, %v3628
      %v3630 = vpop.f32.mrf.mxu0
      %3631 = vmatprep.mubr.bf16.mxu0 0
      %3632 = vmatmul.mubr.bf16.gmra.mxu0 %v3236
      %v3633 = vpop.f32.mrf.mxu0
      %v3634 = vadd.f32 0.0, %v3633
      %v3635 = vpop.f32.mrf.mxu0
      %v3636 = vpop.f32.mrf.mxu0
      %v3637 = vadd.f32 0.0, %v3636
      %v3638 = vpop.f32.mrf.mxu0
      %3639 = vmatprep.mubr.bf16.mxu0 0
      %3640 = vmatmul.mubr.bf16.gmra.mxu0 %v3239
      %v3641 = vpop.f32.mrf.mxu0
      %v3642 = vadd.f32 0.0, %v3641
      %v3643 = vpop.f32.mrf.mxu0
      %v3644 = vpop.f32.mrf.mxu0
      %v3645 = vadd.f32 0.0, %v3644
      %v3646 = vpop.f32.mrf.mxu0
      %3647 = vmatprep.mubr.bf16.mxu0 0
      %3648 = vmatmul.mubr.bf16.gmra.mxu0 %v3242
      %v3649 = vpop.f32.mrf.mxu0
      %v3650 = vadd.f32 0.0, %v3649
      %v3651 = vpop.f32.mrf.mxu0
      %v3652 = vpop.f32.mrf.mxu0
      %v3653 = vadd.f32 0.0, %v3652
      %v3654 = vpop.f32.mrf.mxu0
      %3655 = vmatprep.mubr.bf16.mxu0 0
      %3656 = vmatmul.mubr.bf16.gmra.mxu0 %v3245
      %v3657 = vpop.f32.mrf.mxu0
      %v3658 = vadd.f32 0.0, %v3657
      %v3659 = vpop.f32.mrf.mxu0
      %v3660 = vpop.f32.mrf.mxu0
      %v3661 = vadd.f32 0.0, %v3660
      %v3662 = vpop.f32.mrf.mxu0
      %3663 = vdwg.mxu0
      %v3664 = vadd.f32 %v1977, %v3282
      %v3665 = vadd.f32 %v1980, %v3285
      %v3666 = vadd.f32 %v1985, %v3290
      %v3667 = vadd.f32 %v1988, %v3293
      %v3668 = vadd.f32 %v1993, %v3298
      %v3669 = vadd.f32 %v1996, %v3301
      %v3670 = vadd.f32 %v2001, %v3306
      %v3671 = vadd.f32 %v2004, %v3309
      %v3672 = vadd.f32 %v2009, %v3314
      %v3673 = vadd.f32 %v2012, %v3317
      %v3674 = vadd.f32 %v2017, %v3322
      %v3675 = vadd.f32 %v2020, %v3325
      %v3676 = vadd.f32 %v2025, %v3330
      %v3677 = vadd.f32 %v2028, %v3333
      %v3678 = vadd.f32 %v2033, %v3338
      %v3679 = vadd.f32 %v2036, %v3341
      %v3680 = vadd.f32 %v2041, %v3346
      %v3681 = vadd.f32 %v2044, %v3349
      %v3682 = vadd.f32 %v2049, %v3354
      %v3683 = vadd.f32 %v2052, %v3357
      %v3684 = vadd.f32 %v2057, %v3362
      %v3685 = vadd.f32 %v2060, %v3365
      %v3686 = vadd.f32 %v2065, %v3370
      %v3687 = vadd.f32 %v2068, %v3373
      %v3688 = vadd.f32 %v2073, %v3378
      %v3689 = vadd.f32 %v2076, %v3381
      %v3690 = vadd.f32 %v2081, %v3386
      %v3691 = vadd.f32 %v2084, %v3389
      %v3692 = vadd.f32 %v2089, %v3394
      %v3693 = vadd.f32 %v2092, %v3397
      %v3694 = vadd.f32 %v2097, %v3402
      %v3695 = vadd.f32 %v2100, %v3405
      %v3696 = vadd.f32 %v2105, %v3410
      %v3697 = vadd.f32 %v2108, %v3413
      %v3698 = vadd.f32 %v2113, %v3418
      %v3699 = vadd.f32 %v2116, %v3421
      %v3700 = vadd.f32 %v2121, %v3426
      %v3701 = vadd.f32 %v2124, %v3429
      %v3702 = vadd.f32 %v2129, %v3434
      %v3703 = vadd.f32 %v2132, %v3437
      %v3704 = vadd.f32 %v2137, %v3442
      %v3705 = vadd.f32 %v2140, %v3445
      %v3706 = vadd.f32 %v2145, %v3450
      %v3707 = vadd.f32 %v2148, %v3453
      %v3708 = vadd.f32 %v2153, %v3458
      %v3709 = vadd.f32 %v2156, %v3461
      %v3710 = vadd.f32 %v2161, %v3466
      %v3711 = vadd.f32 %v2164, %v3469
      %v3712 = vadd.f32 %v2169, %v3474
      %v3713 = vadd.f32 %v2172, %v3477
      %v3714 = vadd.f32 %v2177, %v3482
      %v3715 = vadd.f32 %v2180, %v3485
      %v3716 = vadd.f32 %v2185, %v3490
      %v3717 = vadd.f32 %v2188, %v3493
      %v3718 = vadd.f32 %v2193, %v3498
      %v3719 = vadd.f32 %v2196, %v3501
      %v3720 = vadd.f32 %v2201, %v3506
      %v3721 = vadd.f32 %v2204, %v3509
      %v3722 = vadd.f32 %v2209, %v3514
      %v3723 = vadd.f32 %v2212, %v3517
      %v3724 = vadd.f32 %v2217, %v3522
      %v3725 = vadd.f32 %v2220, %v3525
      %v3726 = vadd.f32 %v2225, %v3530
      %v3727 = vadd.f32 %v2228, %v3533
      %v3728 = vadd.f32 %v2233, %v3538
      %v3729 = vadd.f32 %v2236, %v3541
      %v3730 = vadd.f32 %v2241, %v3546
      %v3731 = vadd.f32 %v2244, %v3549
      %v3732 = vadd.f32 %v2249, %v3554
      %v3733 = vadd.f32 %v2252, %v3557
      %v3734 = vadd.f32 %v2257, %v3562
      %v3735 = vadd.f32 %v2260, %v3565
      %v3736 = vadd.f32 %v2265, %v3570
      %v3737 = vadd.f32 %v2268, %v3573
      %v3738 = vadd.f32 %v2273, %v3578
      %v3739 = vadd.f32 %v2276, %v3581
      %v3740 = vadd.f32 %v2281, %v3586
      %v3741 = vadd.f32 %v2284, %v3589
      %v3742 = vadd.f32 %v2289, %v3594
      %v3743 = vadd.f32 %v2292, %v3597
      %v3744 = vadd.f32 %v2297, %v3602
      %v3745 = vadd.f32 %v2300, %v3605
      %v3746 = vadd.f32 %v2305, %v3610
      %v3747 = vadd.f32 %v2308, %v3613
      %v3748 = vadd.f32 %v2313, %v3618
      %v3749 = vadd.f32 %v2316, %v3621
      %v3750 = vadd.f32 %v2321, %v3626
      %v3751 = vadd.f32 %v2324, %v3629
      %v3752 = vadd.f32 %v2329, %v3634
      %v3753 = vadd.f32 %v2332, %v3637
      %v3754 = vadd.f32 %v2337, %v3642
      %v3755 = vadd.f32 %v2340, %v3645
      %v3756 = vadd.f32 %v2345, %v3650
      %v3757 = vadd.f32 %v2348, %v3653
      %v3758 = vadd.f32 %v2353, %v3658
      %v3759 = vadd.f32 %v2356, %v3661
      %v3760 = vld [vmem:[#allocation2 + $0x4] sm:$0xe]
      %v3761 = vld [vmem:[%s3 + $0x30] sm:$0xf]
      %v3762 = vld [vmem:[%s3 + $0x34] sm:$0xf]
      %v3763 = vld [vmem:[%s3 + $0x38] sm:$0xf]
      %v3764 = vld [vmem:[%s3 + $0x3c] sm:$0xf]
      %v3766 = vunpack.c.l.b16 %v3760
      %v3767 = vpack.c.b16 %v2558, %v3766
      %vm3768 = vcmask 1046528
      %v3769 = vrot.slane %v3767, 1
      %v3770 = vrot.slane %v2655, 1
      %v3771 = vsel %vm3768, %v3769, %v3770
      %v3772 = vrot.slane %v2656, 1
      %v3773 = vsel %vm3768, %v3770, %v3772
      %v3774 = vrot.slane %v2657, 1
      %v3775 = vsel %vm3768, %v3772, %v3774
      %v3776 = vrot.slane %v2658, 1
      %v3777 = vsel %vm3768, %v3774, %v3776
      %v3778 = vrot.slane %v2659, 1
      %v3779 = vsel %vm3768, %v3776, %v3778
      %v3780 = vrot.slane %v2660, 1
      %v3781 = vsel %vm3768, %v3778, %v3780
      %v3782 = vrot.slane %v2661, 1
      %v3783 = vsel %vm3768, %v3780, %v3782
      %v3784 = vrot.slane %v2662, 1
      %v3785 = vsel %vm3768, %v3782, %v3784
      %v3786 = vrot.slane %v2663, 1
      %v3787 = vsel %vm3768, %v3784, %v3786
      %v3788 = vrot.slane %v2664, 1
      %v3789 = vsel %vm3768, %v3786, %v3788
      %v3790 = vrot.slane %v2665, 1
      %v3791 = vsel %vm3768, %v3788, %v3790
      %v3792 = vrot.slane %v2666, 1
      %v3793 = vsel %vm3768, %v3790, %v3792
      %v3794 = vrot.slane %v2667, 1
      %v3795 = vsel %vm3768, %v3792, %v3794
      %v3796 = vrot.slane %v2668, 1
      %v3797 = vsel %vm3768, %v3794, %v3796
      %v3798 = vrot.slane %v2669, 1
      %v3799 = vsel %vm3768, %v3796, %v3798
      %v3800 = vrot.slane %v2670, 1
      %v3801 = vsel %vm3768, %v3798, %v3800
      %v3802 = vrot.slane %v2671, 1
      %v3803 = vsel %vm3768, %v3800, %v3802
      %v3804 = vrot.slane %v2672, 1
      %v3805 = vsel %vm3768, %v3802, %v3804
      %v3806 = vrot.slane %v2673, 1
      %v3807 = vsel %vm3768, %v3804, %v3806
      %v3808 = vrot.slane %v2674, 1
      %v3809 = vsel %vm3768, %v3806, %v3808
      %v3810 = vrot.slane %v2675, 1
      %v3811 = vsel %vm3768, %v3808, %v3810
      %v3812 = vrot.slane %v2676, 1
      %v3813 = vsel %vm3768, %v3810, %v3812
      %v3814 = vrot.slane %v2677, 1
      %v3815 = vsel %vm3768, %v3812, %v3814
      %v3816 = vrot.slane %v2678, 1
      %v3817 = vsel %vm3768, %v3814, %v3816
      %v3818 = vrot.slane %v2679, 1
      %v3819 = vsel %vm3768, %v3816, %v3818
      %v3820 = vrot.slane %v2680, 1
      %v3821 = vsel %vm3768, %v3818, %v3820
      %v3822 = vrot.slane %v2681, 1
      %v3823 = vsel %vm3768, %v3820, %v3822
      %v3824 = vrot.slane %v2682, 1
      %v3825 = vsel %vm3768, %v3822, %v3824
      %v3826 = vrot.slane %v2683, 1
      %v3827 = vsel %vm3768, %v3824, %v3826
      %v3828 = vrot.slane %v2684, 1
      %v3829 = vsel %vm3768, %v3826, %v3828
      %v3830 = vrot.slane %v2685, 1
      %v3831 = vsel %vm3768, %v3828, %v3830
      %v3832 = vrot.slane %v2686, 1
      %v3833 = vsel %vm3768, %v3830, %v3832
      %v3834 = vrot.slane %v2687, 1
      %v3835 = vsel %vm3768, %v3832, %v3834
      %v3836 = vrot.slane %v2688, 1
      %v3837 = vsel %vm3768, %v3834, %v3836
      %v3838 = vrot.slane %v2689, 1
      %v3839 = vsel %vm3768, %v3836, %v3838
      %v3840 = vrot.slane %v2690, 1
      %v3841 = vsel %vm3768, %v3838, %v3840
      %v3842 = vrot.slane %v2691, 1
      %v3843 = vsel %vm3768, %v3840, %v3842
      %v3844 = vrot.slane %v2692, 1
      %v3845 = vsel %vm3768, %v3842, %v3844
      %v3846 = vrot.slane %v2693, 1
      %v3847 = vsel %vm3768, %v3844, %v3846
      %v3848 = vrot.slane %v2694, 1
      %v3849 = vsel %vm3768, %v3846, %v3848
      %v3850 = vrot.slane %v2695, 1
      %v3851 = vsel %vm3768, %v3848, %v3850
      %v3852 = vrot.slane %v2696, 1
      %v3853 = vsel %vm3768, %v3850, %v3852
      %v3854 = vrot.slane %v2697, 1
      %v3855 = vsel %vm3768, %v3852, %v3854
      %v3856 = vrot.slane %v2698, 1
      %v3857 = vsel %vm3768, %v3854, %v3856
      %v3858 = vrot.slane %v2699, 1
      %v3859 = vsel %vm3768, %v3856, %v3858
      %v3860 = vrot.slane %v2700, 1
      %v3861 = vsel %vm3768, %v3858, %v3860
      %v3862 = vrot.slane %v2701, 1
      %v3863 = vsel %vm3768, %v3860, %v3862
      %v3864 = vrot.slane %v2702, 1
      %v3865 = vsel %vm3768, %v3862, %v3864
      %v3870 = vunpack.c.l.b16 %v3761
      %v3871 = vunpack.c.l.b16 %v3762
      %v3872 = vunpack.c.l.b16 %v3763
      %v3873 = vunpack.c.l.b16 %v3764
      %v3874 = vpack.c.b16 %v3871, %v3870
      %v3875 = vpack.c.b16 %v3873, %v3872
      %v3879 = vsel %vm1272, %v3771, 0
      %v3882 = vsel %vm1272, %v3773, 0
      %v3885 = vsel %vm1272, %v3775, 0
      %v3888 = vsel %vm1272, %v3777, 0
      %v3891 = vsel %vm1272, %v3779, 0
      %v3894 = vsel %vm1272, %v3781, 0
      %v3897 = vsel %vm1272, %v3783, 0
      %v3900 = vsel %vm1272, %v3785, 0
      %v3903 = vsel %vm1272, %v3787, 0
      %v3906 = vsel %vm1272, %v3789, 0
      %v3909 = vsel %vm1272, %v3791, 0
      %v3912 = vsel %vm1272, %v3793, 0
      %v3915 = vsel %vm1272, %v3795, 0
      %v3918 = vsel %vm1272, %v3797, 0
      %v3921 = vsel %vm1272, %v3799, 0
      %v3924 = vsel %vm1272, %v3801, 0
      %v3927 = vsel %vm1272, %v3803, 0
      %v3930 = vsel %vm1272, %v3805, 0
      %v3933 = vsel %vm1272, %v3807, 0
      %v3936 = vsel %vm1272, %v3809, 0
      %v3939 = vsel %vm1272, %v3811, 0
      %v3942 = vsel %vm1272, %v3813, 0
      %v3945 = vsel %vm1272, %v3815, 0
      %v3948 = vsel %vm1272, %v3817, 0
      %v3951 = vsel %vm1272, %v3819, 0
      %v3954 = vsel %vm1272, %v3821, 0
      %v3957 = vsel %vm1272, %v3823, 0
      %v3960 = vsel %vm1272, %v3825, 0
      %v3963 = vsel %vm1272, %v3827, 0
      %v3966 = vsel %vm1272, %v3829, 0
      %v3969 = vsel %vm1272, %v3831, 0
      %v3972 = vsel %vm1272, %v3833, 0
      %v3975 = vsel %vm1272, %v3835, 0
      %v3978 = vsel %vm1272, %v3837, 0
      %v3981 = vsel %vm1272, %v3839, 0
      %v3984 = vsel %vm1272, %v3841, 0
      %v3987 = vsel %vm1272, %v3843, 0
      %v3990 = vsel %vm1272, %v3845, 0
      %v3993 = vsel %vm1272, %v3847, 0
      %v3996 = vsel %vm1272, %v3849, 0
      %v3999 = vsel %vm1272, %v3851, 0
      %v4002 = vsel %vm1272, %v3853, 0
      %v4005 = vsel %vm1272, %v3855, 0
      %v4008 = vsel %vm1272, %v3857, 0
      %v4011 = vsel %vm1272, %v3859, 0
      %v4014 = vsel %vm1272, %v3861, 0
      %v4017 = vsel %vm1272, %v3863, 0
      %v4020 = vsel %vm1272, %v3865, 0
      %4022 = vmatprep.subr.bf16.mxu0 0
      %4023 = vmatpush1.bf16.msra.mxu0 0
      %4024 = vmatprep.subr.bf16.mxu0 0
      %4025 = vmatpush1.bf16.msra.mxu0 0
      %4026 = vmatprep.subr.bf16.mxu0 0
      %4027 = vmatpush1.bf16.msra.mxu0 0
      %4028 = vmatprep.subr.bf16.mxu0 0
      %4029 = vmatpush1.bf16.msra.mxu0 0
      %4030 = vmatprep.subr.bf16.mxu0 0
      %4031 = vmatpush1.bf16.msra.mxu0 0
      %4032 = vmatprep.subr.bf16.mxu0 0
      %4033 = vmatpush1.bf16.msra.mxu0 0
      %4034 = vmatprep.subr.bf16.mxu0 0
      %4035 = vmatpush1.bf16.msra.mxu0 %v3875
      %4036 = vmatprep.subr.bf16.mxu0 0
      %4037 = vmatpush1.bf16.msra.mxu0 %v3874
      %4038 = vmatprep.subr.bf16.mxu0 0
      %4039 = vmatpush2.bf16.msra.mxu0 0
      %4040 = vmatprep.subr.bf16.mxu0 0
      %4041 = vmatpush2.bf16.msra.mxu0 0
      %4042 = vmatprep.subr.bf16.mxu0 0
      %4043 = vmatpush2.bf16.msra.mxu0 0
      %4044 = vmatprep.subr.bf16.mxu0 0
      %4045 = vmatpush2.bf16.msra.mxu0 0
      %4046 = vmatprep.subr.bf16.mxu0 0
      %4047 = vmatpush2.bf16.msra.mxu0 0
      %4048 = vmatprep.subr.bf16.mxu0 0
      %4049 = vmatpush2.bf16.msra.mxu0 0
      %4050 = vmatprep.subr.bf16.mxu0 0
      %4051 = vmatpush2.bf16.msra.mxu0 0
      %4052 = vmatprep.subr.bf16.mxu0 0
      %4053 = vmatpush2.bf16.msra.mxu0 0
      %4054 = vmatprep.mubr.bf16.mxu0 0
      %4055 = vmatmul.mubr.bf16.gmra.mxu0 %v3879
      %v4056 = vpop.f32.mrf.mxu0
      %v4057 = vadd.f32 0.0, %v4056
      %v4058 = vpop.f32.mrf.mxu0
      %v4059 = vpop.f32.mrf.mxu0
      %v4060 = vadd.f32 0.0, %v4059
      %v4061 = vpop.f32.mrf.mxu0
      %4062 = vmatprep.mubr.bf16.mxu0 0
      %4063 = vmatmul.mubr.bf16.gmra.mxu0 %v3882
      %v4064 = vpop.f32.mrf.mxu0
      %v4065 = vadd.f32 0.0, %v4064
      %v4066 = vpop.f32.mrf.mxu0
      %v4067 = vpop.f32.mrf.mxu0
      %v4068 = vadd.f32 0.0, %v4067
      %v4069 = vpop.f32.mrf.mxu0
      %4070 = vmatprep.mubr.bf16.mxu0 0
      %4071 = vmatmul.mubr.bf16.gmra.mxu0 %v3885
      %v4072 = vpop.f32.mrf.mxu0
      %v4073 = vadd.f32 0.0, %v4072
      %v4074 = vpop.f32.mrf.mxu0
      %v4075 = vpop.f32.mrf.mxu0
      %v4076 = vadd.f32 0.0, %v4075
      %v4077 = vpop.f32.mrf.mxu0
      %4078 = vmatprep.mubr.bf16.mxu0 0
      %4079 = vmatmul.mubr.bf16.gmra.mxu0 %v3888
      %v4080 = vpop.f32.mrf.mxu0
      %v4081 = vadd.f32 0.0, %v4080
      %v4082 = vpop.f32.mrf.mxu0
      %v4083 = vpop.f32.mrf.mxu0
      %v4084 = vadd.f32 0.0, %v4083
      %v4085 = vpop.f32.mrf.mxu0
      %4086 = vmatprep.mubr.bf16.mxu0 0
      %4087 = vmatmul.mubr.bf16.gmra.mxu0 %v3891
      %v4088 = vpop.f32.mrf.mxu0
      %v4089 = vadd.f32 0.0, %v4088
      %v4090 = vpop.f32.mrf.mxu0
      %v4091 = vpop.f32.mrf.mxu0
      %v4092 = vadd.f32 0.0, %v4091
      %v4093 = vpop.f32.mrf.mxu0
      %4094 = vmatprep.mubr.bf16.mxu0 0
      %4095 = vmatmul.mubr.bf16.gmra.mxu0 %v3894
      %v4096 = vpop.f32.mrf.mxu0
      %v4097 = vadd.f32 0.0, %v4096
      %v4098 = vpop.f32.mrf.mxu0
      %v4099 = vpop.f32.mrf.mxu0
      %v4100 = vadd.f32 0.0, %v4099
      %v4101 = vpop.f32.mrf.mxu0
      %4102 = vmatprep.mubr.bf16.mxu0 0
      %4103 = vmatmul.mubr.bf16.gmra.mxu0 %v3897
      %v4104 = vpop.f32.mrf.mxu0
      %v4105 = vadd.f32 0.0, %v4104
      %v4106 = vpop.f32.mrf.mxu0
      %v4107 = vpop.f32.mrf.mxu0
      %v4108 = vadd.f32 0.0, %v4107
      %v4109 = vpop.f32.mrf.mxu0
      %4110 = vmatprep.mubr.bf16.mxu0 0
      %4111 = vmatmul.mubr.bf16.gmra.mxu0 %v3900
      %v4112 = vpop.f32.mrf.mxu0
      %v4113 = vadd.f32 0.0, %v4112
      %v4114 = vpop.f32.mrf.mxu0
      %v4115 = vpop.f32.mrf.mxu0
      %v4116 = vadd.f32 0.0, %v4115
      %v4117 = vpop.f32.mrf.mxu0
      %4118 = vmatprep.mubr.bf16.mxu0 0
      %4119 = vmatmul.mubr.bf16.gmra.mxu0 %v3903
      %v4120 = vpop.f32.mrf.mxu0
      %v4121 = vadd.f32 0.0, %v4120
      %v4122 = vpop.f32.mrf.mxu0
      %v4123 = vpop.f32.mrf.mxu0
      %v4124 = vadd.f32 0.0, %v4123
      %v4125 = vpop.f32.mrf.mxu0
      %4126 = vmatprep.mubr.bf16.mxu0 0
      %4127 = vmatmul.mubr.bf16.gmra.mxu0 %v3906
      %v4128 = vpop.f32.mrf.mxu0
      %v4129 = vadd.f32 0.0, %v4128
      %v4130 = vpop.f32.mrf.mxu0
      %v4131 = vpop.f32.mrf.mxu0
      %v4132 = vadd.f32 0.0, %v4131
      %v4133 = vpop.f32.mrf.mxu0
      %4134 = vmatprep.mubr.bf16.mxu0 0
      %4135 = vmatmul.mubr.bf16.gmra.mxu0 %v3909
      %v4136 = vpop.f32.mrf.mxu0
      %v4137 = vadd.f32 0.0, %v4136
      %v4138 = vpop.f32.mrf.mxu0
      %v4139 = vpop.f32.mrf.mxu0
      %v4140 = vadd.f32 0.0, %v4139
      %v4141 = vpop.f32.mrf.mxu0
      %4142 = vmatprep.mubr.bf16.mxu0 0
      %4143 = vmatmul.mubr.bf16.gmra.mxu0 %v3912
      %v4144 = vpop.f32.mrf.mxu0
      %v4145 = vadd.f32 0.0, %v4144
      %v4146 = vpop.f32.mrf.mxu0
      %v4147 = vpop.f32.mrf.mxu0
      %v4148 = vadd.f32 0.0, %v4147
      %v4149 = vpop.f32.mrf.mxu0
      %4150 = vmatprep.mubr.bf16.mxu0 0
      %4151 = vmatmul.mubr.bf16.gmra.mxu0 %v3915
      %v4152 = vpop.f32.mrf.mxu0
      %v4153 = vadd.f32 0.0, %v4152
      %v4154 = vpop.f32.mrf.mxu0
      %v4155 = vpop.f32.mrf.mxu0
      %v4156 = vadd.f32 0.0, %v4155
      %v4157 = vpop.f32.mrf.mxu0
      %4158 = vmatprep.mubr.bf16.mxu0 0
      %4159 = vmatmul.mubr.bf16.gmra.mxu0 %v3918
      %v4160 = vpop.f32.mrf.mxu0
      %v4161 = vadd.f32 0.0, %v4160
      %v4162 = vpop.f32.mrf.mxu0
      %v4163 = vpop.f32.mrf.mxu0
      %v4164 = vadd.f32 0.0, %v4163
      %v4165 = vpop.f32.mrf.mxu0
      %4166 = vmatprep.mubr.bf16.mxu0 0
      %4167 = vmatmul.mubr.bf16.gmra.mxu0 %v3921
      %v4168 = vpop.f32.mrf.mxu0
      %v4169 = vadd.f32 0.0, %v4168
      %v4170 = vpop.f32.mrf.mxu0
      %v4171 = vpop.f32.mrf.mxu0
      %v4172 = vadd.f32 0.0, %v4171
      %v4173 = vpop.f32.mrf.mxu0
      %4174 = vmatprep.mubr.bf16.mxu0 0
      %4175 = vmatmul.mubr.bf16.gmra.mxu0 %v3924
      %v4176 = vpop.f32.mrf.mxu0
      %v4177 = vadd.f32 0.0, %v4176
      %v4178 = vpop.f32.mrf.mxu0
      %v4179 = vpop.f32.mrf.mxu0
      %v4180 = vadd.f32 0.0, %v4179
      %v4181 = vpop.f32.mrf.mxu0
      %4182 = vmatprep.mubr.bf16.mxu0 0
      %4183 = vmatmul.mubr.bf16.gmra.mxu0 %v3927
      %v4184 = vpop.f32.mrf.mxu0
      %v4185 = vadd.f32 0.0, %v4184
      %v4186 = vpop.f32.mrf.mxu0
      %v4187 = vpop.f32.mrf.mxu0
      %v4188 = vadd.f32 0.0, %v4187
      %v4189 = vpop.f32.mrf.mxu0
      %4190 = vmatprep.mubr.bf16.mxu0 0
      %4191 = vmatmul.mubr.bf16.gmra.mxu0 %v3930
      %v4192 = vpop.f32.mrf.mxu0
      %v4193 = vadd.f32 0.0, %v4192
      %v4194 = vpop.f32.mrf.mxu0
      %v4195 = vpop.f32.mrf.mxu0
      %v4196 = vadd.f32 0.0, %v4195
      %v4197 = vpop.f32.mrf.mxu0
      %4198 = vmatprep.mubr.bf16.mxu0 0
      %4199 = vmatmul.mubr.bf16.gmra.mxu0 %v3933
      %v4200 = vpop.f32.mrf.mxu0
      %v4201 = vadd.f32 0.0, %v4200
      %v4202 = vpop.f32.mrf.mxu0
      %v4203 = vpop.f32.mrf.mxu0
      %v4204 = vadd.f32 0.0, %v4203
      %v4205 = vpop.f32.mrf.mxu0
      %4206 = vmatprep.mubr.bf16.mxu0 0
      %4207 = vmatmul.mubr.bf16.gmra.mxu0 %v3936
      %v4208 = vpop.f32.mrf.mxu0
      %v4209 = vadd.f32 0.0, %v4208
      %v4210 = vpop.f32.mrf.mxu0
      %v4211 = vpop.f32.mrf.mxu0
      %v4212 = vadd.f32 0.0, %v4211
      %v4213 = vpop.f32.mrf.mxu0
      %4214 = vmatprep.mubr.bf16.mxu0 0
      %4215 = vmatmul.mubr.bf16.gmra.mxu0 %v3939
      %v4216 = vpop.f32.mrf.mxu0
      %v4217 = vadd.f32 0.0, %v4216
      %v4218 = vpop.f32.mrf.mxu0
      %v4219 = vpop.f32.mrf.mxu0
      %v4220 = vadd.f32 0.0, %v4219
      %v4221 = vpop.f32.mrf.mxu0
      %4222 = vmatprep.mubr.bf16.mxu0 0
      %4223 = vmatmul.mubr.bf16.gmra.mxu0 %v3942
      %v4224 = vpop.f32.mrf.mxu0
      %v4225 = vadd.f32 0.0, %v4224
      %v4226 = vpop.f32.mrf.mxu0
      %v4227 = vpop.f32.mrf.mxu0
      %v4228 = vadd.f32 0.0, %v4227
      %v4229 = vpop.f32.mrf.mxu0
      %4230 = vmatprep.mubr.bf16.mxu0 0
      %4231 = vmatmul.mubr.bf16.gmra.mxu0 %v3945
      %v4232 = vpop.f32.mrf.mxu0
      %v4233 = vadd.f32 0.0, %v4232
      %v4234 = vpop.f32.mrf.mxu0
      %v4235 = vpop.f32.mrf.mxu0
      %v4236 = vadd.f32 0.0, %v4235
      %v4237 = vpop.f32.mrf.mxu0
      %4238 = vmatprep.mubr.bf16.mxu0 0
      %4239 = vmatmul.mubr.bf16.gmra.mxu0 %v3948
      %v4240 = vpop.f32.mrf.mxu0
      %v4241 = vadd.f32 0.0, %v4240
      %v4242 = vpop.f32.mrf.mxu0
      %v4243 = vpop.f32.mrf.mxu0
      %v4244 = vadd.f32 0.0, %v4243
      %v4245 = vpop.f32.mrf.mxu0
      %4246 = vmatprep.mubr.bf16.mxu0 0
      %4247 = vmatmul.mubr.bf16.gmra.mxu0 %v3951
      %v4248 = vpop.f32.mrf.mxu0
      %v4249 = vadd.f32 0.0, %v4248
      %v4250 = vpop.f32.mrf.mxu0
      %v4251 = vpop.f32.mrf.mxu0
      %v4252 = vadd.f32 0.0, %v4251
      %v4253 = vpop.f32.mrf.mxu0
      %4254 = vmatprep.mubr.bf16.mxu0 0
      %4255 = vmatmul.mubr.bf16.gmra.mxu0 %v3954
      %v4256 = vpop.f32.mrf.mxu0
      %v4257 = vadd.f32 0.0, %v4256
      %v4258 = vpop.f32.mrf.mxu0
      %v4259 = vpop.f32.mrf.mxu0
      %v4260 = vadd.f32 0.0, %v4259
      %v4261 = vpop.f32.mrf.mxu0
      %4262 = vmatprep.mubr.bf16.mxu0 0
      %4263 = vmatmul.mubr.bf16.gmra.mxu0 %v3957
      %v4264 = vpop.f32.mrf.mxu0
      %v4265 = vadd.f32 0.0, %v4264
      %v4266 = vpop.f32.mrf.mxu0
      %v4267 = vpop.f32.mrf.mxu0
      %v4268 = vadd.f32 0.0, %v4267
      %v4269 = vpop.f32.mrf.mxu0
      %4270 = vmatprep.mubr.bf16.mxu0 0
      %4271 = vmatmul.mubr.bf16.gmra.mxu0 %v3960
      %v4272 = vpop.f32.mrf.mxu0
      %v4273 = vadd.f32 0.0, %v4272
      %v4274 = vpop.f32.mrf.mxu0
      %v4275 = vpop.f32.mrf.mxu0
      %v4276 = vadd.f32 0.0, %v4275
      %v4277 = vpop.f32.mrf.mxu0
      %4278 = vmatprep.mubr.bf16.mxu0 0
      %4279 = vmatmul.mubr.bf16.gmra.mxu0 %v3963
      %v4280 = vpop.f32.mrf.mxu0
      %v4281 = vadd.f32 0.0, %v4280
      %v4282 = vpop.f32.mrf.mxu0
      %v4283 = vpop.f32.mrf.mxu0
      %v4284 = vadd.f32 0.0, %v4283
      %v4285 = vpop.f32.mrf.mxu0
      %4286 = vmatprep.mubr.bf16.mxu0 0
      %4287 = vmatmul.mubr.bf16.gmra.mxu0 %v3966
      %v4288 = vpop.f32.mrf.mxu0
      %v4289 = vadd.f32 0.0, %v4288
      %v4290 = vpop.f32.mrf.mxu0
      %v4291 = vpop.f32.mrf.mxu0
      %v4292 = vadd.f32 0.0, %v4291
      %v4293 = vpop.f32.mrf.mxu0
      %4294 = vmatprep.mubr.bf16.mxu0 0
      %4295 = vmatmul.mubr.bf16.gmra.mxu0 %v3969
      %v4296 = vpop.f32.mrf.mxu0
      %v4297 = vadd.f32 0.0, %v4296
      %v4298 = vpop.f32.mrf.mxu0
      %v4299 = vpop.f32.mrf.mxu0
      %v4300 = vadd.f32 0.0, %v4299
      %v4301 = vpop.f32.mrf.mxu0
      %4302 = vmatprep.mubr.bf16.mxu0 0
      %4303 = vmatmul.mubr.bf16.gmra.mxu0 %v3972
      %v4304 = vpop.f32.mrf.mxu0
      %v4305 = vadd.f32 0.0, %v4304
      %v4306 = vpop.f32.mrf.mxu0
      %v4307 = vpop.f32.mrf.mxu0
      %v4308 = vadd.f32 0.0, %v4307
      %v4309 = vpop.f32.mrf.mxu0
      %4310 = vmatprep.mubr.bf16.mxu0 0
      %4311 = vmatmul.mubr.bf16.gmra.mxu0 %v3975
      %v4312 = vpop.f32.mrf.mxu0
      %v4313 = vadd.f32 0.0, %v4312
      %v4314 = vpop.f32.mrf.mxu0
      %v4315 = vpop.f32.mrf.mxu0
      %v4316 = vadd.f32 0.0, %v4315
      %v4317 = vpop.f32.mrf.mxu0
      %4318 = vmatprep.mubr.bf16.mxu0 0
      %4319 = vmatmul.mubr.bf16.gmra.mxu0 %v3978
      %v4320 = vpop.f32.mrf.mxu0
      %v4321 = vadd.f32 0.0, %v4320
      %v4322 = vpop.f32.mrf.mxu0
      %v4323 = vpop.f32.mrf.mxu0
      %v4324 = vadd.f32 0.0, %v4323
      %v4325 = vpop.f32.mrf.mxu0
      %4326 = vmatprep.mubr.bf16.mxu0 0
      %4327 = vmatmul.mubr.bf16.gmra.mxu0 %v3981
      %v4328 = vpop.f32.mrf.mxu0
      %v4329 = vadd.f32 0.0, %v4328
      %v4330 = vpop.f32.mrf.mxu0
      %v4331 = vpop.f32.mrf.mxu0
      %v4332 = vadd.f32 0.0, %v4331
      %v4333 = vpop.f32.mrf.mxu0
      %4334 = vmatprep.mubr.bf16.mxu0 0
      %4335 = vmatmul.mubr.bf16.gmra.mxu0 %v3984
      %v4336 = vpop.f32.mrf.mxu0
      %v4337 = vadd.f32 0.0, %v4336
      %v4338 = vpop.f32.mrf.mxu0
      %v4339 = vpop.f32.mrf.mxu0
      %v4340 = vadd.f32 0.0, %v4339
      %v4341 = vpop.f32.mrf.mxu0
      %4342 = vmatprep.mubr.bf16.mxu0 0
      %4343 = vmatmul.mubr.bf16.gmra.mxu0 %v3987
      %v4344 = vpop.f32.mrf.mxu0
      %v4345 = vadd.f32 0.0, %v4344
      %v4346 = vpop.f32.mrf.mxu0
      %v4347 = vpop.f32.mrf.mxu0
      %v4348 = vadd.f32 0.0, %v4347
      %v4349 = vpop.f32.mrf.mxu0
      %4350 = vmatprep.mubr.bf16.mxu0 0
      %4351 = vmatmul.mubr.bf16.gmra.mxu0 %v3990
      %v4352 = vpop.f32.mrf.mxu0
      %v4353 = vadd.f32 0.0, %v4352
      %v4354 = vpop.f32.mrf.mxu0
      %v4355 = vpop.f32.mrf.mxu0
      %v4356 = vadd.f32 0.0, %v4355
      %v4357 = vpop.f32.mrf.mxu0
      %4358 = vmatprep.mubr.bf16.mxu0 0
      %4359 = vmatmul.mubr.bf16.gmra.mxu0 %v3993
      %v4360 = vpop.f32.mrf.mxu0
      %v4361 = vadd.f32 0.0, %v4360
      %v4362 = vpop.f32.mrf.mxu0
      %v4363 = vpop.f32.mrf.mxu0
      %v4364 = vadd.f32 0.0, %v4363
      %v4365 = vpop.f32.mrf.mxu0
      %4366 = vmatprep.mubr.bf16.mxu0 0
      %4367 = vmatmul.mubr.bf16.gmra.mxu0 %v3996
      %v4368 = vpop.f32.mrf.mxu0
      %v4369 = vadd.f32 0.0, %v4368
      %v4370 = vpop.f32.mrf.mxu0
      %v4371 = vpop.f32.mrf.mxu0
      %v4372 = vadd.f32 0.0, %v4371
      %v4373 = vpop.f32.mrf.mxu0
      %4374 = vmatprep.mubr.bf16.mxu0 0
      %4375 = vmatmul.mubr.bf16.gmra.mxu0 %v3999
      %v4376 = vpop.f32.mrf.mxu0
      %v4377 = vadd.f32 0.0, %v4376
      %v4378 = vpop.f32.mrf.mxu0
      %v4379 = vpop.f32.mrf.mxu0
      %v4380 = vadd.f32 0.0, %v4379
      %v4381 = vpop.f32.mrf.mxu0
      %4382 = vmatprep.mubr.bf16.mxu0 0
      %4383 = vmatmul.mubr.bf16.gmra.mxu0 %v4002
      %v4384 = vpop.f32.mrf.mxu0
      %v4385 = vadd.f32 0.0, %v4384
      %v4386 = vpop.f32.mrf.mxu0
      %v4387 = vpop.f32.mrf.mxu0
      %v4388 = vadd.f32 0.0, %v4387
      %v4389 = vpop.f32.mrf.mxu0
      %4390 = vmatprep.mubr.bf16.mxu0 0
      %4391 = vmatmul.mubr.bf16.gmra.mxu0 %v4005
      %v4392 = vpop.f32.mrf.mxu0
      %v4393 = vadd.f32 0.0, %v4392
      %v4394 = vpop.f32.mrf.mxu0
      %v4395 = vpop.f32.mrf.mxu0
      %v4396 = vadd.f32 0.0, %v4395
      %v4397 = vpop.f32.mrf.mxu0
      %4398 = vmatprep.mubr.bf16.mxu0 0
      %4399 = vmatmul.mubr.bf16.gmra.mxu0 %v4008
      %v4400 = vpop.f32.mrf.mxu0
      %v4401 = vadd.f32 0.0, %v4400
      %v4402 = vpop.f32.mrf.mxu0
      %v4403 = vpop.f32.mrf.mxu0
      %v4404 = vadd.f32 0.0, %v4403
      %v4405 = vpop.f32.mrf.mxu0
      %4406 = vmatprep.mubr.bf16.mxu0 0
      %4407 = vmatmul.mubr.bf16.gmra.mxu0 %v4011
      %v4408 = vpop.f32.mrf.mxu0
      %v4409 = vadd.f32 0.0, %v4408
      %v4410 = vpop.f32.mrf.mxu0
      %v4411 = vpop.f32.mrf.mxu0
      %v4412 = vadd.f32 0.0, %v4411
      %v4413 = vpop.f32.mrf.mxu0
      %4414 = vmatprep.mubr.bf16.mxu0 0
      %4415 = vmatmul.mubr.bf16.gmra.mxu0 %v4014
      %v4416 = vpop.f32.mrf.mxu0
      %v4417 = vadd.f32 0.0, %v4416
      %v4418 = vpop.f32.mrf.mxu0
      %v4419 = vpop.f32.mrf.mxu0
      %v4420 = vadd.f32 0.0, %v4419
      %v4421 = vpop.f32.mrf.mxu0
      %4422 = vmatprep.mubr.bf16.mxu0 0
      %4423 = vmatmul.mubr.bf16.gmra.mxu0 %v4017
      %v4424 = vpop.f32.mrf.mxu0
      %v4425 = vadd.f32 0.0, %v4424
      %v4426 = vpop.f32.mrf.mxu0
      %v4427 = vpop.f32.mrf.mxu0
      %v4428 = vadd.f32 0.0, %v4427
      %v4429 = vpop.f32.mrf.mxu0
      %4430 = vmatprep.mubr.bf16.mxu0 0
      %4431 = vmatmul.mubr.bf16.gmra.mxu0 %v4020
      %v4432 = vpop.f32.mrf.mxu0
      %v4433 = vadd.f32 0.0, %v4432
      %v4434 = vpop.f32.mrf.mxu0
      %v4435 = vpop.f32.mrf.mxu0
      %v4436 = vadd.f32 0.0, %v4435
      %v4437 = vpop.f32.mrf.mxu0
      %4438 = vdwg.mxu0
      %v4439 = vadd.f32 %v3664, %v4057
      %v4440 = vadd.f32 %v3665, %v4060
      %v4441 = vadd.f32 %v3666, %v4065
      %v4442 = vadd.f32 %v3667, %v4068
      %v4443 = vadd.f32 %v3668, %v4073
      %v4444 = vadd.f32 %v3669, %v4076
      %v4445 = vadd.f32 %v3670, %v4081
      %v4446 = vadd.f32 %v3671, %v4084
      %v4447 = vadd.f32 %v3672, %v4089
      %v4448 = vadd.f32 %v3673, %v4092
      %v4449 = vadd.f32 %v3674, %v4097
      %v4450 = vadd.f32 %v3675, %v4100
      %v4451 = vadd.f32 %v3676, %v4105
      %v4452 = vadd.f32 %v3677, %v4108
      %v4453 = vadd.f32 %v3678, %v4113
      %v4454 = vadd.f32 %v3679, %v4116
      %v4455 = vadd.f32 %v3680, %v4121
      %v4456 = vadd.f32 %v3681, %v4124
      %v4457 = vadd.f32 %v3682, %v4129
      %v4458 = vadd.f32 %v3683, %v4132
      %v4459 = vadd.f32 %v3684, %v4137
      %v4460 = vadd.f32 %v3685, %v4140
      %v4461 = vadd.f32 %v3686, %v4145
      %v4462 = vadd.f32 %v3687, %v4148
      %v4463 = vadd.f32 %v3688, %v4153
      %v4464 = vadd.f32 %v3689, %v4156
      %v4465 = vadd.f32 %v3690, %v4161
      %v4466 = vadd.f32 %v3691, %v4164
      %v4467 = vadd.f32 %v3692, %v4169
      %v4468 = vadd.f32 %v3693, %v4172
      %v4469 = vadd.f32 %v3694, %v4177
      %v4470 = vadd.f32 %v3695, %v4180
      %v4471 = vadd.f32 %v3696, %v4185
      %v4472 = vadd.f32 %v3697, %v4188
      %v4473 = vadd.f32 %v3698, %v4193
      %v4474 = vadd.f32 %v3699, %v4196
      %v4475 = vadd.f32 %v3700, %v4201
      %v4476 = vadd.f32 %v3701, %v4204
      %v4477 = vadd.f32 %v3702, %v4209
      %v4478 = vadd.f32 %v3703, %v4212
      %v4479 = vadd.f32 %v3704, %v4217
      %v4480 = vadd.f32 %v3705, %v4220
      %v4481 = vadd.f32 %v3706, %v4225
      %v4482 = vadd.f32 %v3707, %v4228
      %v4483 = vadd.f32 %v3708, %v4233
      %v4484 = vadd.f32 %v3709, %v4236
      %v4485 = vadd.f32 %v3710, %v4241
      %v4486 = vadd.f32 %v3711, %v4244
      %v4487 = vadd.f32 %v3712, %v4249
      %v4488 = vadd.f32 %v3713, %v4252
      %v4489 = vadd.f32 %v3714, %v4257
      %v4490 = vadd.f32 %v3715, %v4260
      %v4491 = vadd.f32 %v3716, %v4265
      %v4492 = vadd.f32 %v3717, %v4268
      %v4493 = vadd.f32 %v3718, %v4273
      %v4494 = vadd.f32 %v3719, %v4276
      %v4495 = vadd.f32 %v3720, %v4281
      %v4496 = vadd.f32 %v3721, %v4284
      %v4497 = vadd.f32 %v3722, %v4289
      %v4498 = vadd.f32 %v3723, %v4292
      %v4499 = vadd.f32 %v3724, %v4297
      %v4500 = vadd.f32 %v3725, %v4300
      %v4501 = vadd.f32 %v3726, %v4305
      %v4502 = vadd.f32 %v3727, %v4308
      %v4503 = vadd.f32 %v3728, %v4313
      %v4504 = vadd.f32 %v3729, %v4316
      %v4505 = vadd.f32 %v3730, %v4321
      %v4506 = vadd.f32 %v3731, %v4324
      %v4507 = vadd.f32 %v3732, %v4329
      %v4508 = vadd.f32 %v3733, %v4332
      %v4509 = vadd.f32 %v3734, %v4337
      %v4510 = vadd.f32 %v3735, %v4340
      %v4511 = vadd.f32 %v3736, %v4345
      %v4512 = vadd.f32 %v3737, %v4348
      %v4513 = vadd.f32 %v3738, %v4353
      %v4514 = vadd.f32 %v3739, %v4356
      %v4515 = vadd.f32 %v3740, %v4361
      %v4516 = vadd.f32 %v3741, %v4364
      %v4517 = vadd.f32 %v3742, %v4369
      %v4518 = vadd.f32 %v3743, %v4372
      %v4519 = vadd.f32 %v3744, %v4377
      %v4520 = vadd.f32 %v3745, %v4380
      %v4521 = vadd.f32 %v3746, %v4385
      %v4522 = vadd.f32 %v3747, %v4388
      %v4523 = vadd.f32 %v3748, %v4393
      %v4524 = vadd.f32 %v3749, %v4396
      %v4525 = vadd.f32 %v3750, %v4401
      %v4526 = vadd.f32 %v3751, %v4404
      %v4527 = vadd.f32 %v3752, %v4409
      %v4528 = vadd.f32 %v3753, %v4412
      %v4529 = vadd.f32 %v3754, %v4417
      %v4530 = vadd.f32 %v3755, %v4420
      %v4531 = vadd.f32 %v3756, %v4425
      %v4532 = vadd.f32 %v3757, %v4428
      %v4533 = vadd.f32 %v3758, %v4433
      %v4534 = vadd.f32 %v3759, %v4436
      %v4535 = vld [vmem:[#allocation2 + $0x28] sm:$0xf]
      %v4536 = vld [vmem:[#allocation2 + $0x2c] sm:$0xf]
      %v4537 = vld [vmem:[#allocation2 + $0x30] sm:$0xf]
      %v4538 = vld [vmem:[#allocation2 + $0x34] sm:$0xf]
      %v4539 = vld [vmem:[#allocation2 + $0x38] sm:$0xf]
      %v4540 = vld [vmem:[#allocation2 + $0x3c] sm:$0xf]
      %v4541 = vld [vmem:[#allocation2 + $0x40] sm:$0xf]
      %v4542 = vld [vmem:[#allocation2 + $0x44] sm:$0xf]
      %v4543 = vld [vmem:[#allocation2 + $0x48] sm:$0xf]
      %v4544 = vld [vmem:[#allocation2 + $0x4c] sm:$0xf]
      %v4545 = vld [vmem:[#allocation2 + $0x50] sm:$0xf]
      %v4546 = vld [vmem:[#allocation2 + $0x54] sm:$0xf]
      %v4547 = vld [vmem:[#allocation2 + $0x58] sm:$0xf]
      %v4548 = vld [vmem:[#allocation2 + $0x5c] sm:$0xf]
      %v4549 = vld [vmem:[#allocation2 + $0x60] sm:$0xf]
      %v4550 = vld [vmem:[#allocation2 + $0x64] sm:$0xf]
      %v4551 = vld [vmem:[#allocation2 + $0x68] sm:$0xf]
      %v4552 = vld [vmem:[#allocation2 + $0x6c] sm:$0xf]
      %v4553 = vld [vmem:[#allocation2 + $0x70] sm:$0xf]
      %v4554 = vld [vmem:[#allocation2 + $0x74] sm:$0xf]
      %v4555 = vld [vmem:[#allocation2 + $0x78] sm:$0xf]
      %v4556 = vld [vmem:[#allocation2 + $0x7c] sm:$0xf]
      %v4557 = vld [vmem:[#allocation2 + $0x80] sm:$0xf]
      %v4558 = vld [vmem:[#allocation2 + $0x84] sm:$0xf]
      %v4559 = vld [vmem:[#allocation2 + $0x88] sm:$0xf]
      %v4560 = vld [vmem:[#allocation2 + $0x8c] sm:$0xf]
      %v4561 = vld [vmem:[#allocation2 + $0x90] sm:$0xf]
      %v4562 = vld [vmem:[#allocation2 + $0x94] sm:$0xf]
      %v4563 = vld [vmem:[#allocation2 + $0x98] sm:$0xf]
      %v4564 = vld [vmem:[#allocation2 + $0x9c] sm:$0xf]
      %v4565 = vld [vmem:[#allocation2 + $0xa0] sm:$0xf]
      %v4566 = vld [vmem:[#allocation2 + $0xa4] sm:$0xf]
      %v4567 = vld [vmem:[#allocation2 + $0xa8] sm:$0xf]
      %v4568 = vld [vmem:[#allocation2 + $0xac] sm:$0xf]
      %v4569 = vld [vmem:[#allocation2 + $0xb0] sm:$0xf]
      %v4570 = vld [vmem:[#allocation2 + $0xb4] sm:$0xf]
      %v4571 = vld [vmem:[#allocation2 + $0xb8] sm:$0xf]
      %v4572 = vld [vmem:[#allocation2 + $0xbc] sm:$0xf]
      %v4573 = vld [vmem:[#allocation2 + $0xc0] sm:$0xf]
      %v4574 = vld [vmem:[#allocation2 + $0xc4] sm:$0xf]
      %v4575 = vld [vmem:[#allocation2 + $0xc8] sm:$0xf]
      %v4576 = vld [vmem:[#allocation2 + $0xcc] sm:$0xf]
      %v4577 = vld [vmem:[#allocation2 + $0xd0] sm:$0xf]
      %v4578 = vld [vmem:[#allocation2 + $0xd4] sm:$0xf]
      %v4579 = vld [vmem:[#allocation2 + $0xd8] sm:$0xf]
      %v4580 = vld [vmem:[#allocation2 + $0xdc] sm:$0xf]
      %v4581 = vld [vmem:[#allocation2 + $0xe0] sm:$0xf]
      %v4582 = vld [vmem:[#allocation2 + $0xe4] sm:$0xf]
      %v4583 = vld [vmem:[#allocation2 + $0xe8] sm:$0xf]
      %v4584 = vld [vmem:[#allocation2 + $0xec] sm:$0xf]
      %v4585 = vld [vmem:[#allocation2 + $0xf0] sm:$0xf]
      %v4586 = vld [vmem:[#allocation2 + $0xf4] sm:$0xf]
      %v4587 = vld [vmem:[#allocation2 + $0xf8] sm:$0xf]
      %v4588 = vld [vmem:[#allocation2 + $0xfc] sm:$0xf]
      %v4589 = vld [vmem:[#allocation2 + $0x100] sm:$0xf]
      %v4590 = vld [vmem:[#allocation2 + $0x104] sm:$0xf]
      %v4591 = vld [vmem:[#allocation2 + $0x108] sm:$0xf]
      %v4592 = vld [vmem:[#allocation2 + $0x10c] sm:$0xf]
      %v4593 = vld [vmem:[#allocation2 + $0x110] sm:$0xf]
      %v4594 = vld [vmem:[#allocation2 + $0x114] sm:$0xf]
      %v4595 = vld [vmem:[#allocation2 + $0x118] sm:$0xf]
      %v4596 = vld [vmem:[#allocation2 + $0x11c] sm:$0xf]
      %v4597 = vld [vmem:[#allocation2 + $0x120] sm:$0xf]
      %v4598 = vld [vmem:[#allocation2 + $0x124] sm:$0xf]
      %v4599 = vld [vmem:[#allocation2 + $0x128] sm:$0xf]
      %v4600 = vld [vmem:[#allocation2 + $0x12c] sm:$0xf]
      %v4601 = vld [vmem:[#allocation2 + $0x130] sm:$0xf]
      %v4602 = vld [vmem:[#allocation2 + $0x134] sm:$0xf]
      %v4603 = vld [vmem:[#allocation2 + $0x138] sm:$0xf]
      %v4604 = vld [vmem:[#allocation2 + $0x13c] sm:$0xf]
      %v4605 = vld [vmem:[#allocation2 + $0x140] sm:$0xf]
      %v4606 = vld [vmem:[#allocation2 + $0x144] sm:$0xf]
      %v4607 = vld [vmem:[#allocation2 + $0x148] sm:$0xf]
      %v4608 = vld [vmem:[#allocation2 + $0x14c] sm:$0xf]
      %v4609 = vld [vmem:[#allocation2 + $0x150] sm:$0xf]
      %v4610 = vld [vmem:[#allocation2 + $0x154] sm:$0xf]
      %v4611 = vld [vmem:[#allocation2 + $0x158] sm:$0xf]
      %v4612 = vld [vmem:[#allocation2 + $0x15c] sm:$0xf]
      %v4613 = vld [vmem:[#allocation2 + $0x160] sm:$0xf]
      %v4614 = vld [vmem:[#allocation2 + $0x164] sm:$0xf]
      %v4615 = vld [vmem:[#allocation2 + $0x168] sm:$0xf]
      %v4616 = vld [vmem:[#allocation2 + $0x16c] sm:$0xf]
      %v4617 = vld [vmem:[#allocation2 + $0x170] sm:$0xf]
      %v4618 = vld [vmem:[#allocation2 + $0x174] sm:$0xf]
      %v4619 = vld [vmem:[#allocation2 + $0x178] sm:$0xf]
      %v4620 = vld [vmem:[#allocation2 + $0x17c] sm:$0xf]
      %v4621 = vld [vmem:[#allocation2 + $0x180] sm:$0xf]
      %v4622 = vld [vmem:[#allocation2 + $0x184] sm:$0xf]
      %v4623 = vld [vmem:[#allocation2 + $0x188] sm:$0xf]
      %v4624 = vld [vmem:[#allocation2 + $0x18c] sm:$0xf]
      %v4625 = vld [vmem:[#allocation2 + $0x190] sm:$0xf]
      %v4626 = vld [vmem:[#allocation2 + $0x194] sm:$0xf]
      %v4627 = vld [vmem:[#allocation2 + $0x198] sm:$0xf]
      %v4628 = vld [vmem:[#allocation2 + $0x19c] sm:$0xf]
      %v4629 = vld [vmem:[#allocation2 + $0x1a0] sm:$0xf]
      %v4630 = vld [vmem:[#allocation2 + $0x1a4] sm:$0xf]
      %v4631 = vld [vmem:[#allocation2 + $0x1a8] sm:$0x1]
      %v4632 = vld [vmem:[%s3 + $0x40] sm:$0xf]
      %v4633 = vld [vmem:[%s3 + $0x44] sm:$0xf]
      %v4634 = vld [vmem:[%s3 + $0x48] sm:$0xf]
      %v4635 = vld [vmem:[%s3 + $0x4c] sm:$0xf]
      %v4733 = vunpack.c.l.b16 %v4535
      %v4734 = vunpack.c.l.b16 %v4536
      %v4735 = vunpack.c.l.b16 %v4537
      %v4736 = vunpack.c.l.b16 %v4538
      %v4737 = vunpack.c.l.b16 %v4539
      %v4738 = vunpack.c.l.b16 %v4540
      %v4739 = vunpack.c.l.b16 %v4541
      %v4740 = vunpack.c.l.b16 %v4542
      %v4741 = vunpack.c.l.b16 %v4543
      %v4742 = vunpack.c.l.b16 %v4544
      %v4743 = vunpack.c.l.b16 %v4545
      %v4744 = vunpack.c.l.b16 %v4546
      %v4745 = vunpack.c.l.b16 %v4547
      %v4746 = vunpack.c.l.b16 %v4548
      %v4747 = vunpack.c.l.b16 %v4549
      %v4748 = vunpack.c.l.b16 %v4550
      %v4749 = vunpack.c.l.b16 %v4551
      %v4750 = vunpack.c.l.b16 %v4552
      %v4751 = vunpack.c.l.b16 %v4553
      %v4752 = vunpack.c.l.b16 %v4554
      %v4753 = vunpack.c.l.b16 %v4555
      %v4754 = vunpack.c.l.b16 %v4556
      %v4755 = vunpack.c.l.b16 %v4557
      %v4756 = vunpack.c.l.b16 %v4558
      %v4757 = vunpack.c.l.b16 %v4559
      %v4758 = vunpack.c.l.b16 %v4560
      %v4759 = vunpack.c.l.b16 %v4561
      %v4760 = vunpack.c.l.b16 %v4562
      %v4761 = vunpack.c.l.b16 %v4563
      %v4762 = vunpack.c.l.b16 %v4564
      %v4763 = vunpack.c.l.b16 %v4565
      %v4764 = vunpack.c.l.b16 %v4566
      %v4765 = vunpack.c.l.b16 %v4567
      %v4766 = vunpack.c.l.b16 %v4568
      %v4767 = vunpack.c.l.b16 %v4569
      %v4768 = vunpack.c.l.b16 %v4570
      %v4769 = vunpack.c.l.b16 %v4571
      %v4770 = vunpack.c.l.b16 %v4572
      %v4771 = vunpack.c.l.b16 %v4573
      %v4772 = vunpack.c.l.b16 %v4574
      %v4773 = vunpack.c.l.b16 %v4575
      %v4774 = vunpack.c.l.b16 %v4576
      %v4775 = vunpack.c.l.b16 %v4577
      %v4776 = vunpack.c.l.b16 %v4578
      %v4777 = vunpack.c.l.b16 %v4579
      %v4778 = vunpack.c.l.b16 %v4580
      %v4779 = vunpack.c.l.b16 %v4581
      %v4780 = vunpack.c.l.b16 %v4582
      %v4781 = vunpack.c.l.b16 %v4583
      %v4782 = vunpack.c.l.b16 %v4584
      %v4783 = vunpack.c.l.b16 %v4585
      %v4784 = vunpack.c.l.b16 %v4586
      %v4785 = vunpack.c.l.b16 %v4587
      %v4786 = vunpack.c.l.b16 %v4588
      %v4787 = vunpack.c.l.b16 %v4589
      %v4788 = vunpack.c.l.b16 %v4590
      %v4789 = vunpack.c.l.b16 %v4591
      %v4790 = vunpack.c.l.b16 %v4592
      %v4791 = vunpack.c.l.b16 %v4593
      %v4792 = vunpack.c.l.b16 %v4594
      %v4793 = vunpack.c.l.b16 %v4595
      %v4794 = vunpack.c.l.b16 %v4596
      %v4795 = vunpack.c.l.b16 %v4597
      %v4796 = vunpack.c.l.b16 %v4598
      %v4797 = vunpack.c.l.b16 %v4599
      %v4798 = vunpack.c.l.b16 %v4600
      %v4799 = vunpack.c.l.b16 %v4601
      %v4800 = vunpack.c.l.b16 %v4602
      %v4801 = vunpack.c.l.b16 %v4603
      %v4802 = vunpack.c.l.b16 %v4604
      %v4803 = vunpack.c.l.b16 %v4605
      %v4804 = vunpack.c.l.b16 %v4606
      %v4805 = vunpack.c.l.b16 %v4607
      %v4806 = vunpack.c.l.b16 %v4608
      %v4807 = vunpack.c.l.b16 %v4609
      %v4808 = vunpack.c.l.b16 %v4610
      %v4809 = vunpack.c.l.b16 %v4611
      %v4810 = vunpack.c.l.b16 %v4612
      %v4811 = vunpack.c.l.b16 %v4613
      %v4812 = vunpack.c.l.b16 %v4614
      %v4813 = vunpack.c.l.b16 %v4615
      %v4814 = vunpack.c.l.b16 %v4616
      %v4815 = vunpack.c.l.b16 %v4617
      %v4816 = vunpack.c.l.b16 %v4618
      %v4817 = vunpack.c.l.b16 %v4619
      %v4818 = vunpack.c.l.b16 %v4620
      %v4819 = vunpack.c.l.b16 %v4621
      %v4820 = vunpack.c.l.b16 %v4622
      %v4821 = vunpack.c.l.b16 %v4623
      %v4822 = vunpack.c.l.b16 %v4624
      %v4823 = vunpack.c.l.b16 %v4625
      %v4824 = vunpack.c.l.b16 %v4626
      %v4825 = vunpack.c.l.b16 %v4627
      %v4826 = vunpack.c.l.b16 %v4628
      %v4827 = vunpack.c.l.b16 %v4629
      %v4828 = vunpack.c.l.b16 %v4630
      %v4829 = vunpack.c.l.b16 %v4631
      %v4830 = vpack.c.b16 %v4734, %v4733
      %v4831 = vpack.c.b16 %v4736, %v4735
      %v4832 = vpack.c.b16 %v4738, %v4737
      %v4833 = vpack.c.b16 %v4740, %v4739
      %v4834 = vpack.c.b16 %v4742, %v4741
      %v4835 = vpack.c.b16 %v4744, %v4743
      %v4836 = vpack.c.b16 %v4746, %v4745
      %v4837 = vpack.c.b16 %v4748, %v4747
      %v4838 = vpack.c.b16 %v4750, %v4749
      %v4839 = vpack.c.b16 %v4752, %v4751
      %v4840 = vpack.c.b16 %v4754, %v4753
      %v4841 = vpack.c.b16 %v4756, %v4755
      %v4842 = vpack.c.b16 %v4758, %v4757
      %v4843 = vpack.c.b16 %v4760, %v4759
      %v4844 = vpack.c.b16 %v4762, %v4761
      %v4845 = vpack.c.b16 %v4764, %v4763
      %v4846 = vpack.c.b16 %v4766, %v4765
      %v4847 = vpack.c.b16 %v4768, %v4767
      %v4848 = vpack.c.b16 %v4770, %v4769
      %v4849 = vpack.c.b16 %v4772, %v4771
      %v4850 = vpack.c.b16 %v4774, %v4773
      %v4851 = vpack.c.b16 %v4776, %v4775
      %v4852 = vpack.c.b16 %v4778, %v4777
      %v4853 = vpack.c.b16 %v4780, %v4779
      %v4854 = vpack.c.b16 %v4782, %v4781
      %v4855 = vpack.c.b16 %v4784, %v4783
      %v4856 = vpack.c.b16 %v4786, %v4785
      %v4857 = vpack.c.b16 %v4788, %v4787
      %v4858 = vpack.c.b16 %v4790, %v4789
      %v4859 = vpack.c.b16 %v4792, %v4791
      %v4860 = vpack.c.b16 %v4794, %v4793
      %v4861 = vpack.c.b16 %v4796, %v4795
      %v4862 = vpack.c.b16 %v4798, %v4797
      %v4863 = vpack.c.b16 %v4800, %v4799
      %v4864 = vpack.c.b16 %v4802, %v4801
      %v4865 = vpack.c.b16 %v4804, %v4803
      %v4866 = vpack.c.b16 %v4806, %v4805
      %v4867 = vpack.c.b16 %v4808, %v4807
      %v4868 = vpack.c.b16 %v4810, %v4809
      %v4869 = vpack.c.b16 %v4812, %v4811
      %v4870 = vpack.c.b16 %v4814, %v4813
      %v4871 = vpack.c.b16 %v4816, %v4815
      %v4872 = vpack.c.b16 %v4818, %v4817
      %v4873 = vpack.c.b16 %v4820, %v4819
      %v4874 = vpack.c.b16 %v4822, %v4821
      %v4875 = vpack.c.b16 %v4824, %v4823
      %v4876 = vpack.c.b16 %v4826, %v4825
      %v4877 = vpack.c.b16 %v4828, %v4827
      %v4878 = vpack.c.b16 %v4829, %v4829
      %v4880 = vshrl.u32 %v4830, 16
      %v4882 = vshll.u32 %v4830, 16
      %v4884 = vrot.slane %v4882, 1
      %v4885 = vor.u32 %v4880, %v4884
      %v4887 = vshll.u32 %v4831, 16
      %v4889 = vrot.slane %v4887, 1
      %v4890 = vsel %vm871, %v4885, %v4889
      %v4891 = vshrl.u32 %v4831, 16
      %v4893 = vor.u32 %v4891, %v4889
      %v4895 = vshll.u32 %v4832, 16
      %v4897 = vrot.slane %v4895, 1
      %v4898 = vsel %vm871, %v4893, %v4897
      %v4899 = vshrl.u32 %v4832, 16
      %v4901 = vor.u32 %v4899, %v4897
      %v4903 = vshll.u32 %v4833, 16
      %v4905 = vrot.slane %v4903, 1
      %v4906 = vsel %vm871, %v4901, %v4905
      %v4907 = vshrl.u32 %v4833, 16
      %v4909 = vor.u32 %v4907, %v4905
      %v4911 = vshll.u32 %v4834, 16
      %v4913 = vrot.slane %v4911, 1
      %v4914 = vsel %vm871, %v4909, %v4913
      %v4915 = vshrl.u32 %v4834, 16
      %v4917 = vor.u32 %v4915, %v4913
      %v4919 = vshll.u32 %v4835, 16
      %v4921 = vrot.slane %v4919, 1
      %v4922 = vsel %vm871, %v4917, %v4921
      %v4923 = vshrl.u32 %v4835, 16
      %v4925 = vor.u32 %v4923, %v4921
      %v4927 = vshll.u32 %v4836, 16
      %v4929 = vrot.slane %v4927, 1
      %v4930 = vsel %vm871, %v4925, %v4929
      %v4931 = vshrl.u32 %v4836, 16
      %v4933 = vor.u32 %v4931, %v4929
      %v4935 = vshll.u32 %v4837, 16
      %v4937 = vrot.slane %v4935, 1
      %v4938 = vsel %vm871, %v4933, %v4937
      %v4939 = vshrl.u32 %v4837, 16
      %v4941 = vor.u32 %v4939, %v4937
      %v4943 = vshll.u32 %v4838, 16
      %v4945 = vrot.slane %v4943, 1
      %v4946 = vsel %vm871, %v4941, %v4945
      %v4947 = vshrl.u32 %v4838, 16
      %v4949 = vor.u32 %v4947, %v4945
      %v4951 = vshll.u32 %v4839, 16
      %v4953 = vrot.slane %v4951, 1
      %v4954 = vsel %vm871, %v4949, %v4953
      %v4955 = vshrl.u32 %v4839, 16
      %v4957 = vor.u32 %v4955, %v4953
      %v4959 = vshll.u32 %v4840, 16
      %v4961 = vrot.slane %v4959, 1
      %v4962 = vsel %vm871, %v4957, %v4961
      %v4963 = vshrl.u32 %v4840, 16
      %v4965 = vor.u32 %v4963, %v4961
      %v4967 = vshll.u32 %v4841, 16
      %v4969 = vrot.slane %v4967, 1
      %v4970 = vsel %vm871, %v4965, %v4969
      %v4971 = vshrl.u32 %v4841, 16
      %v4973 = vor.u32 %v4971, %v4969
      %v4975 = vshll.u32 %v4842, 16
      %v4977 = vrot.slane %v4975, 1
      %v4978 = vsel %vm871, %v4973, %v4977
      %v4979 = vshrl.u32 %v4842, 16
      %v4981 = vor.u32 %v4979, %v4977
      %v4983 = vshll.u32 %v4843, 16
      %v4985 = vrot.slane %v4983, 1
      %v4986 = vsel %vm871, %v4981, %v4985
      %v4987 = vshrl.u32 %v4843, 16
      %v4989 = vor.u32 %v4987, %v4985
      %v4991 = vshll.u32 %v4844, 16
      %v4993 = vrot.slane %v4991, 1
      %v4994 = vsel %vm871, %v4989, %v4993
      %v4995 = vshrl.u32 %v4844, 16
      %v4997 = vor.u32 %v4995, %v4993
      %v4999 = vshll.u32 %v4845, 16
      %v5001 = vrot.slane %v4999, 1
      %v5002 = vsel %vm871, %v4997, %v5001
      %v5003 = vshrl.u32 %v4845, 16
      %v5005 = vor.u32 %v5003, %v5001
      %v5007 = vshll.u32 %v4846, 16
      %v5009 = vrot.slane %v5007, 1
      %v5010 = vsel %vm871, %v5005, %v5009
      %v5011 = vshrl.u32 %v4846, 16
      %v5013 = vor.u32 %v5011, %v5009
      %v5015 = vshll.u32 %v4847, 16
      %v5017 = vrot.slane %v5015, 1
      %v5018 = vsel %vm871, %v5013, %v5017
      %v5019 = vshrl.u32 %v4847, 16
      %v5021 = vor.u32 %v5019, %v5017
      %v5023 = vshll.u32 %v4848, 16
      %v5025 = vrot.slane %v5023, 1
      %v5026 = vsel %vm871, %v5021, %v5025
      %v5027 = vshrl.u32 %v4848, 16
      %v5029 = vor.u32 %v5027, %v5025
      %v5031 = vshll.u32 %v4849, 16
      %v5033 = vrot.slane %v5031, 1
      %v5034 = vsel %vm871, %v5029, %v5033
      %v5035 = vshrl.u32 %v4849, 16
      %v5037 = vor.u32 %v5035, %v5033
      %v5039 = vshll.u32 %v4850, 16
      %v5041 = vrot.slane %v5039, 1
      %v5042 = vsel %vm871, %v5037, %v5041
      %v5043 = vshrl.u32 %v4850, 16
      %v5045 = vor.u32 %v5043, %v5041
      %v5047 = vshll.u32 %v4851, 16
      %v5049 = vrot.slane %v5047, 1
      %v5050 = vsel %vm871, %v5045, %v5049
      %v5051 = vshrl.u32 %v4851, 16
      %v5053 = vor.u32 %v5051, %v5049
      %v5055 = vshll.u32 %v4852, 16
      %v5057 = vrot.slane %v5055, 1
      %v5058 = vsel %vm871, %v5053, %v5057
      %v5059 = vshrl.u32 %v4852, 16
      %v5061 = vor.u32 %v5059, %v5057
      %v5063 = vshll.u32 %v4853, 16
      %v5065 = vrot.slane %v5063, 1
      %v5066 = vsel %vm871, %v5061, %v5065
      %v5067 = vshrl.u32 %v4853, 16
      %v5069 = vor.u32 %v5067, %v5065
      %v5071 = vshll.u32 %v4854, 16
      %v5073 = vrot.slane %v5071, 1
      %v5074 = vsel %vm871, %v5069, %v5073
      %v5075 = vshrl.u32 %v4854, 16
      %v5077 = vor.u32 %v5075, %v5073
      %v5079 = vshll.u32 %v4855, 16
      %v5081 = vrot.slane %v5079, 1
      %v5082 = vsel %vm871, %v5077, %v5081
      %v5083 = vshrl.u32 %v4855, 16
      %v5085 = vor.u32 %v5083, %v5081
      %v5087 = vshll.u32 %v4856, 16
      %v5089 = vrot.slane %v5087, 1
      %v5090 = vsel %vm871, %v5085, %v5089
      %v5091 = vshrl.u32 %v4856, 16
      %v5093 = vor.u32 %v5091, %v5089
      %v5095 = vshll.u32 %v4857, 16
      %v5097 = vrot.slane %v5095, 1
      %v5098 = vsel %vm871, %v5093, %v5097
      %v5099 = vshrl.u32 %v4857, 16
      %v5101 = vor.u32 %v5099, %v5097
      %v5103 = vshll.u32 %v4858, 16
      %v5105 = vrot.slane %v5103, 1
      %v5106 = vsel %vm871, %v5101, %v5105
      %v5107 = vshrl.u32 %v4858, 16
      %v5109 = vor.u32 %v5107, %v5105
      %v5111 = vshll.u32 %v4859, 16
      %v5113 = vrot.slane %v5111, 1
      %v5114 = vsel %vm871, %v5109, %v5113
      %v5115 = vshrl.u32 %v4859, 16
      %v5117 = vor.u32 %v5115, %v5113
      %v5119 = vshll.u32 %v4860, 16
      %v5121 = vrot.slane %v5119, 1
      %v5122 = vsel %vm871, %v5117, %v5121
      %v5123 = vshrl.u32 %v4860, 16
      %v5125 = vor.u32 %v5123, %v5121
      %v5127 = vshll.u32 %v4861, 16
      %v5129 = vrot.slane %v5127, 1
      %v5130 = vsel %vm871, %v5125, %v5129
      %v5131 = vshrl.u32 %v4861, 16
      %v5133 = vor.u32 %v5131, %v5129
      %v5135 = vshll.u32 %v4862, 16
      %v5137 = vrot.slane %v5135, 1
      %v5138 = vsel %vm871, %v5133, %v5137
      %v5139 = vshrl.u32 %v4862, 16
      %v5141 = vor.u32 %v5139, %v5137
      %v5143 = vshll.u32 %v4863, 16
      %v5145 = vrot.slane %v5143, 1
      %v5146 = vsel %vm871, %v5141, %v5145
      %v5147 = vshrl.u32 %v4863, 16
      %v5149 = vor.u32 %v5147, %v5145
      %v5151 = vshll.u32 %v4864, 16
      %v5153 = vrot.slane %v5151, 1
      %v5154 = vsel %vm871, %v5149, %v5153
      %v5155 = vshrl.u32 %v4864, 16
      %v5157 = vor.u32 %v5155, %v5153
      %v5159 = vshll.u32 %v4865, 16
      %v5161 = vrot.slane %v5159, 1
      %v5162 = vsel %vm871, %v5157, %v5161
      %v5163 = vshrl.u32 %v4865, 16
      %v5165 = vor.u32 %v5163, %v5161
      %v5167 = vshll.u32 %v4866, 16
      %v5169 = vrot.slane %v5167, 1
      %v5170 = vsel %vm871, %v5165, %v5169
      %v5171 = vshrl.u32 %v4866, 16
      %v5173 = vor.u32 %v5171, %v5169
      %v5175 = vshll.u32 %v4867, 16
      %v5177 = vrot.slane %v5175, 1
      %v5178 = vsel %vm871, %v5173, %v5177
      %v5179 = vshrl.u32 %v4867, 16
      %v5181 = vor.u32 %v5179, %v5177
      %v5183 = vshll.u32 %v4868, 16
      %v5185 = vrot.slane %v5183, 1
      %v5186 = vsel %vm871, %v5181, %v5185
      %v5187 = vshrl.u32 %v4868, 16
      %v5189 = vor.u32 %v5187, %v5185
      %v5191 = vshll.u32 %v4869, 16
      %v5193 = vrot.slane %v5191, 1
      %v5194 = vsel %vm871, %v5189, %v5193
      %v5195 = vshrl.u32 %v4869, 16
      %v5197 = vor.u32 %v5195, %v5193
      %v5199 = vshll.u32 %v4870, 16
      %v5201 = vrot.slane %v5199, 1
      %v5202 = vsel %vm871, %v5197, %v5201
      %v5203 = vshrl.u32 %v4870, 16
      %v5205 = vor.u32 %v5203, %v5201
      %v5207 = vshll.u32 %v4871, 16
      %v5209 = vrot.slane %v5207, 1
      %v5210 = vsel %vm871, %v5205, %v5209
      %v5211 = vshrl.u32 %v4871, 16
      %v5213 = vor.u32 %v5211, %v5209
      %v5215 = vshll.u32 %v4872, 16
      %v5217 = vrot.slane %v5215, 1
      %v5218 = vsel %vm871, %v5213, %v5217
      %v5219 = vshrl.u32 %v4872, 16
      %v5221 = vor.u32 %v5219, %v5217
      %v5223 = vshll.u32 %v4873, 16
      %v5225 = vrot.slane %v5223, 1
      %v5226 = vsel %vm871, %v5221, %v5225
      %v5227 = vshrl.u32 %v4873, 16
      %v5229 = vor.u32 %v5227, %v5225
      %v5231 = vshll.u32 %v4874, 16
      %v5233 = vrot.slane %v5231, 1
      %v5234 = vsel %vm871, %v5229, %v5233
      %v5235 = vshrl.u32 %v4874, 16
      %v5237 = vor.u32 %v5235, %v5233
      %v5239 = vshll.u32 %v4875, 16
      %v5241 = vrot.slane %v5239, 1
      %v5242 = vsel %vm871, %v5237, %v5241
      %v5243 = vshrl.u32 %v4875, 16
      %v5245 = vor.u32 %v5243, %v5241
      %v5247 = vshll.u32 %v4876, 16
      %v5249 = vrot.slane %v5247, 1
      %v5250 = vsel %vm871, %v5245, %v5249
      %v5251 = vshrl.u32 %v4876, 16
      %v5253 = vor.u32 %v5251, %v5249
      %v5255 = vshll.u32 %v4877, 16
      %v5257 = vrot.slane %v5255, 1
      %v5258 = vsel %vm871, %v5253, %v5257
      %v5259 = vshrl.u32 %v4877, 16
      %v5261 = vor.u32 %v5259, %v5257
      %v5263 = vshll.u32 %v4878, 16
      %v5265 = vrot.slane %v5263, 1
      %v5266 = vsel %vm871, %v5261, %v5265
      %v5271 = vunpack.c.l.b16 %v4632
      %v5272 = vunpack.c.l.b16 %v4633
      %v5273 = vunpack.c.l.b16 %v4634
      %v5274 = vunpack.c.l.b16 %v4635
      %v5275 = vpack.c.b16 %v5272, %v5271
      %v5276 = vpack.c.b16 %v5274, %v5273
      %v5280 = vsel %vm1272, %v4890, 0
      %v5283 = vsel %vm1272, %v4898, 0
      %v5286 = vsel %vm1272, %v4906, 0
      %v5289 = vsel %vm1272, %v4914, 0
      %v5292 = vsel %vm1272, %v4922, 0
      %v5295 = vsel %vm1272, %v4930, 0
      %v5298 = vsel %vm1272, %v4938, 0
      %v5301 = vsel %vm1272, %v4946, 0
      %v5304 = vsel %vm1272, %v4954, 0
      %v5307 = vsel %vm1272, %v4962, 0
      %v5310 = vsel %vm1272, %v4970, 0
      %v5313 = vsel %vm1272, %v4978, 0
      %v5316 = vsel %vm1272, %v4986, 0
      %v5319 = vsel %vm1272, %v4994, 0
      %v5322 = vsel %vm1272, %v5002, 0
      %v5325 = vsel %vm1272, %v5010, 0
      %v5328 = vsel %vm1272, %v5018, 0
      %v5331 = vsel %vm1272, %v5026, 0
      %v5334 = vsel %vm1272, %v5034, 0
      %v5337 = vsel %vm1272, %v5042, 0
      %v5340 = vsel %vm1272, %v5050, 0
      %v5343 = vsel %vm1272, %v5058, 0
      %v5346 = vsel %vm1272, %v5066, 0
      %v5349 = vsel %vm1272, %v5074, 0
      %v5352 = vsel %vm1272, %v5082, 0
      %v5355 = vsel %vm1272, %v5090, 0
      %v5358 = vsel %vm1272, %v5098, 0
      %v5361 = vsel %vm1272, %v5106, 0
      %v5364 = vsel %vm1272, %v5114, 0
      %v5367 = vsel %vm1272, %v5122, 0
      %v5370 = vsel %vm1272, %v5130, 0
      %v5373 = vsel %vm1272, %v5138, 0
      %v5376 = vsel %vm1272, %v5146, 0
      %v5379 = vsel %vm1272, %v5154, 0
      %v5382 = vsel %vm1272, %v5162, 0
      %v5385 = vsel %vm1272, %v5170, 0
      %v5388 = vsel %vm1272, %v5178, 0
      %v5391 = vsel %vm1272, %v5186, 0
      %v5394 = vsel %vm1272, %v5194, 0
      %v5397 = vsel %vm1272, %v5202, 0
      %v5400 = vsel %vm1272, %v5210, 0
      %v5403 = vsel %vm1272, %v5218, 0
      %v5406 = vsel %vm1272, %v5226, 0
      %v5409 = vsel %vm1272, %v5234, 0
      %v5412 = vsel %vm1272, %v5242, 0
      %v5415 = vsel %vm1272, %v5250, 0
      %v5418 = vsel %vm1272, %v5258, 0
      %v5421 = vsel %vm1272, %v5266, 0
      %5423 = vmatprep.subr.bf16.mxu0 0
      %5424 = vmatpush1.bf16.msra.mxu0 0
      %5425 = vmatprep.subr.bf16.mxu0 0
      %5426 = vmatpush1.bf16.msra.mxu0 0
      %5427 = vmatprep.subr.bf16.mxu0 0
      %5428 = vmatpush1.bf16.msra.mxu0 0
      %5429 = vmatprep.subr.bf16.mxu0 0
      %5430 = vmatpush1.bf16.msra.mxu0 0
      %5431 = vmatprep.subr.bf16.mxu0 0
      %5432 = vmatpush1.bf16.msra.mxu0 0
      %5433 = vmatprep.subr.bf16.mxu0 0
      %5434 = vmatpush1.bf16.msra.mxu0 0
      %5435 = vmatprep.subr.bf16.mxu0 0
      %5436 = vmatpush1.bf16.msra.mxu0 %v5276
      %5437 = vmatprep.subr.bf16.mxu0 0
      %5438 = vmatpush1.bf16.msra.mxu0 %v5275
      %5439 = vmatprep.subr.bf16.mxu0 0
      %5440 = vmatpush2.bf16.msra.mxu0 0
      %5441 = vmatprep.subr.bf16.mxu0 0
      %5442 = vmatpush2.bf16.msra.mxu0 0
      %5443 = vmatprep.subr.bf16.mxu0 0
      %5444 = vmatpush2.bf16.msra.mxu0 0
      %5445 = vmatprep.subr.bf16.mxu0 0
      %5446 = vmatpush2.bf16.msra.mxu0 0
      %5447 = vmatprep.subr.bf16.mxu0 0
      %5448 = vmatpush2.bf16.msra.mxu0 0
      %5449 = vmatprep.subr.bf16.mxu0 0
      %5450 = vmatpush2.bf16.msra.mxu0 0
      %5451 = vmatprep.subr.bf16.mxu0 0
      %5452 = vmatpush2.bf16.msra.mxu0 0
      %5453 = vmatprep.subr.bf16.mxu0 0
      %5454 = vmatpush2.bf16.msra.mxu0 0
      %5455 = vmatprep.mubr.bf16.mxu0 0
      %5456 = vmatmul.mubr.bf16.gmra.mxu0 %v5280
      %v5457 = vpop.f32.mrf.mxu0
      %v5458 = vadd.f32 0.0, %v5457
      %v5459 = vpop.f32.mrf.mxu0
      %v5460 = vpop.f32.mrf.mxu0
      %v5461 = vadd.f32 0.0, %v5460
      %v5462 = vpop.f32.mrf.mxu0
      %5463 = vmatprep.mubr.bf16.mxu0 0
      %5464 = vmatmul.mubr.bf16.gmra.mxu0 %v5283
      %v5465 = vpop.f32.mrf.mxu0
      %v5466 = vadd.f32 0.0, %v5465
      %v5467 = vpop.f32.mrf.mxu0
      %v5468 = vpop.f32.mrf.mxu0
      %v5469 = vadd.f32 0.0, %v5468
      %v5470 = vpop.f32.mrf.mxu0
      %5471 = vmatprep.mubr.bf16.mxu0 0
      %5472 = vmatmul.mubr.bf16.gmra.mxu0 %v5286
      %v5473 = vpop.f32.mrf.mxu0
      %v5474 = vadd.f32 0.0, %v5473
      %v5475 = vpop.f32.mrf.mxu0
      %v5476 = vpop.f32.mrf.mxu0
      %v5477 = vadd.f32 0.0, %v5476
      %v5478 = vpop.f32.mrf.mxu0
      %5479 = vmatprep.mubr.bf16.mxu0 0
      %5480 = vmatmul.mubr.bf16.gmra.mxu0 %v5289
      %v5481 = vpop.f32.mrf.mxu0
      %v5482 = vadd.f32 0.0, %v5481
      %v5483 = vpop.f32.mrf.mxu0
      %v5484 = vpop.f32.mrf.mxu0
      %v5485 = vadd.f32 0.0, %v5484
      %v5486 = vpop.f32.mrf.mxu0
      %5487 = vmatprep.mubr.bf16.mxu0 0
      %5488 = vmatmul.mubr.bf16.gmra.mxu0 %v5292
      %v5489 = vpop.f32.mrf.mxu0
      %v5490 = vadd.f32 0.0, %v5489
      %v5491 = vpop.f32.mrf.mxu0
      %v5492 = vpop.f32.mrf.mxu0
      %v5493 = vadd.f32 0.0, %v5492
      %v5494 = vpop.f32.mrf.mxu0
      %5495 = vmatprep.mubr.bf16.mxu0 0
      %5496 = vmatmul.mubr.bf16.gmra.mxu0 %v5295
      %v5497 = vpop.f32.mrf.mxu0
      %v5498 = vadd.f32 0.0, %v5497
      %v5499 = vpop.f32.mrf.mxu0
      %v5500 = vpop.f32.mrf.mxu0
      %v5501 = vadd.f32 0.0, %v5500
      %v5502 = vpop.f32.mrf.mxu0
      %5503 = vmatprep.mubr.bf16.mxu0 0
      %5504 = vmatmul.mubr.bf16.gmra.mxu0 %v5298
      %v5505 = vpop.f32.mrf.mxu0
      %v5506 = vadd.f32 0.0, %v5505
      %v5507 = vpop.f32.mrf.mxu0
      %v5508 = vpop.f32.mrf.mxu0
      %v5509 = vadd.f32 0.0, %v5508
      %v5510 = vpop.f32.mrf.mxu0
      %5511 = vmatprep.mubr.bf16.mxu0 0
      %5512 = vmatmul.mubr.bf16.gmra.mxu0 %v5301
      %v5513 = vpop.f32.mrf.mxu0
      %v5514 = vadd.f32 0.0, %v5513
      %v5515 = vpop.f32.mrf.mxu0
      %v5516 = vpop.f32.mrf.mxu0
      %v5517 = vadd.f32 0.0, %v5516
      %v5518 = vpop.f32.mrf.mxu0
      %5519 = vmatprep.mubr.bf16.mxu0 0
      %5520 = vmatmul.mubr.bf16.gmra.mxu0 %v5304
      %v5521 = vpop.f32.mrf.mxu0
      %v5522 = vadd.f32 0.0, %v5521
      %v5523 = vpop.f32.mrf.mxu0
      %v5524 = vpop.f32.mrf.mxu0
      %v5525 = vadd.f32 0.0, %v5524
      %v5526 = vpop.f32.mrf.mxu0
      %5527 = vmatprep.mubr.bf16.mxu0 0
      %5528 = vmatmul.mubr.bf16.gmra.mxu0 %v5307
      %v5529 = vpop.f32.mrf.mxu0
      %v5530 = vadd.f32 0.0, %v5529
      %v5531 = vpop.f32.mrf.mxu0
      %v5532 = vpop.f32.mrf.mxu0
      %v5533 = vadd.f32 0.0, %v5532
      %v5534 = vpop.f32.mrf.mxu0
      %5535 = vmatprep.mubr.bf16.mxu0 0
      %5536 = vmatmul.mubr.bf16.gmra.mxu0 %v5310
      %v5537 = vpop.f32.mrf.mxu0
      %v5538 = vadd.f32 0.0, %v5537
      %v5539 = vpop.f32.mrf.mxu0
      %v5540 = vpop.f32.mrf.mxu0
      %v5541 = vadd.f32 0.0, %v5540
      %v5542 = vpop.f32.mrf.mxu0
      %5543 = vmatprep.mubr.bf16.mxu0 0
      %5544 = vmatmul.mubr.bf16.gmra.mxu0 %v5313
      %v5545 = vpop.f32.mrf.mxu0
      %v5546 = vadd.f32 0.0, %v5545
      %v5547 = vpop.f32.mrf.mxu0
      %v5548 = vpop.f32.mrf.mxu0
      %v5549 = vadd.f32 0.0, %v5548
      %v5550 = vpop.f32.mrf.mxu0
      %5551 = vmatprep.mubr.bf16.mxu0 0
      %5552 = vmatmul.mubr.bf16.gmra.mxu0 %v5316
      %v5553 = vpop.f32.mrf.mxu0
      %v5554 = vadd.f32 0.0, %v5553
      %v5555 = vpop.f32.mrf.mxu0
      %v5556 = vpop.f32.mrf.mxu0
      %v5557 = vadd.f32 0.0, %v5556
      %v5558 = vpop.f32.mrf.mxu0
      %5559 = vmatprep.mubr.bf16.mxu0 0
      %5560 = vmatmul.mubr.bf16.gmra.mxu0 %v5319
      %v5561 = vpop.f32.mrf.mxu0
      %v5562 = vadd.f32 0.0, %v5561
      %v5563 = vpop.f32.mrf.mxu0
      %v5564 = vpop.f32.mrf.mxu0
      %v5565 = vadd.f32 0.0, %v5564
      %v5566 = vpop.f32.mrf.mxu0
      %5567 = vmatprep.mubr.bf16.mxu0 0
      %5568 = vmatmul.mubr.bf16.gmra.mxu0 %v5322
      %v5569 = vpop.f32.mrf.mxu0
      %v5570 = vadd.f32 0.0, %v5569
      %v5571 = vpop.f32.mrf.mxu0
      %v5572 = vpop.f32.mrf.mxu0
      %v5573 = vadd.f32 0.0, %v5572
      %v5574 = vpop.f32.mrf.mxu0
      %5575 = vmatprep.mubr.bf16.mxu0 0
      %5576 = vmatmul.mubr.bf16.gmra.mxu0 %v5325
      %v5577 = vpop.f32.mrf.mxu0
      %v5578 = vadd.f32 0.0, %v5577
      %v5579 = vpop.f32.mrf.mxu0
      %v5580 = vpop.f32.mrf.mxu0
      %v5581 = vadd.f32 0.0, %v5580
      %v5582 = vpop.f32.mrf.mxu0
      %5583 = vmatprep.mubr.bf16.mxu0 0
      %5584 = vmatmul.mubr.bf16.gmra.mxu0 %v5328
      %v5585 = vpop.f32.mrf.mxu0
      %v5586 = vadd.f32 0.0, %v5585
      %v5587 = vpop.f32.mrf.mxu0
      %v5588 = vpop.f32.mrf.mxu0
      %v5589 = vadd.f32 0.0, %v5588
      %v5590 = vpop.f32.mrf.mxu0
      %5591 = vmatprep.mubr.bf16.mxu0 0
      %5592 = vmatmul.mubr.bf16.gmra.mxu0 %v5331
      %v5593 = vpop.f32.mrf.mxu0
      %v5594 = vadd.f32 0.0, %v5593
      %v5595 = vpop.f32.mrf.mxu0
      %v5596 = vpop.f32.mrf.mxu0
      %v5597 = vadd.f32 0.0, %v5596
      %v5598 = vpop.f32.mrf.mxu0
      %5599 = vmatprep.mubr.bf16.mxu0 0
      %5600 = vmatmul.mubr.bf16.gmra.mxu0 %v5334
      %v5601 = vpop.f32.mrf.mxu0
      %v5602 = vadd.f32 0.0, %v5601
      %v5603 = vpop.f32.mrf.mxu0
      %v5604 = vpop.f32.mrf.mxu0
      %v5605 = vadd.f32 0.0, %v5604
      %v5606 = vpop.f32.mrf.mxu0
      %5607 = vmatprep.mubr.bf16.mxu0 0
      %5608 = vmatmul.mubr.bf16.gmra.mxu0 %v5337
      %v5609 = vpop.f32.mrf.mxu0
      %v5610 = vadd.f32 0.0, %v5609
      %v5611 = vpop.f32.mrf.mxu0
      %v5612 = vpop.f32.mrf.mxu0
      %v5613 = vadd.f32 0.0, %v5612
      %v5614 = vpop.f32.mrf.mxu0
      %5615 = vmatprep.mubr.bf16.mxu0 0
      %5616 = vmatmul.mubr.bf16.gmra.mxu0 %v5340
      %v5617 = vpop.f32.mrf.mxu0
      %v5618 = vadd.f32 0.0, %v5617
      %v5619 = vpop.f32.mrf.mxu0
      %v5620 = vpop.f32.mrf.mxu0
      %v5621 = vadd.f32 0.0, %v5620
      %v5622 = vpop.f32.mrf.mxu0
      %5623 = vmatprep.mubr.bf16.mxu0 0
      %5624 = vmatmul.mubr.bf16.gmra.mxu0 %v5343
      %v5625 = vpop.f32.mrf.mxu0
      %v5626 = vadd.f32 0.0, %v5625
      %v5627 = vpop.f32.mrf.mxu0
      %v5628 = vpop.f32.mrf.mxu0
      %v5629 = vadd.f32 0.0, %v5628
      %v5630 = vpop.f32.mrf.mxu0
      %5631 = vmatprep.mubr.bf16.mxu0 0
      %5632 = vmatmul.mubr.bf16.gmra.mxu0 %v5346
      %v5633 = vpop.f32.mrf.mxu0
      %v5634 = vadd.f32 0.0, %v5633
      %v5635 = vpop.f32.mrf.mxu0
      %v5636 = vpop.f32.mrf.mxu0
      %v5637 = vadd.f32 0.0, %v5636
      %v5638 = vpop.f32.mrf.mxu0
      %5639 = vmatprep.mubr.bf16.mxu0 0
      %5640 = vmatmul.mubr.bf16.gmra.mxu0 %v5349
      %v5641 = vpop.f32.mrf.mxu0
      %v5642 = vadd.f32 0.0, %v5641
      %v5643 = vpop.f32.mrf.mxu0
      %v5644 = vpop.f32.mrf.mxu0
      %v5645 = vadd.f32 0.0, %v5644
      %v5646 = vpop.f32.mrf.mxu0
      %5647 = vmatprep.mubr.bf16.mxu0 0
      %5648 = vmatmul.mubr.bf16.gmra.mxu0 %v5352
      %v5649 = vpop.f32.mrf.mxu0
      %v5650 = vadd.f32 0.0, %v5649
      %v5651 = vpop.f32.mrf.mxu0
      %v5652 = vpop.f32.mrf.mxu0
      %v5653 = vadd.f32 0.0, %v5652
      %v5654 = vpop.f32.mrf.mxu0
      %5655 = vmatprep.mubr.bf16.mxu0 0
      %5656 = vmatmul.mubr.bf16.gmra.mxu0 %v5355
      %v5657 = vpop.f32.mrf.mxu0
      %v5658 = vadd.f32 0.0, %v5657
      %v5659 = vpop.f32.mrf.mxu0
      %v5660 = vpop.f32.mrf.mxu0
      %v5661 = vadd.f32 0.0, %v5660
      %v5662 = vpop.f32.mrf.mxu0
      %5663 = vmatprep.mubr.bf16.mxu0 0
      %5664 = vmatmul.mubr.bf16.gmra.mxu0 %v5358
      %v5665 = vpop.f32.mrf.mxu0
      %v5666 = vadd.f32 0.0, %v5665
      %v5667 = vpop.f32.mrf.mxu0
      %v5668 = vpop.f32.mrf.mxu0
      %v5669 = vadd.f32 0.0, %v5668
      %v5670 = vpop.f32.mrf.mxu0
      %5671 = vmatprep.mubr.bf16.mxu0 0
      %5672 = vmatmul.mubr.bf16.gmra.mxu0 %v5361
      %v5673 = vpop.f32.mrf.mxu0
      %v5674 = vadd.f32 0.0, %v5673
      %v5675 = vpop.f32.mrf.mxu0
      %v5676 = vpop.f32.mrf.mxu0
      %v5677 = vadd.f32 0.0, %v5676
      %v5678 = vpop.f32.mrf.mxu0
      %5679 = vmatprep.mubr.bf16.mxu0 0
      %5680 = vmatmul.mubr.bf16.gmra.mxu0 %v5364
      %v5681 = vpop.f32.mrf.mxu0
      %v5682 = vadd.f32 0.0, %v5681
      %v5683 = vpop.f32.mrf.mxu0
      %v5684 = vpop.f32.mrf.mxu0
      %v5685 = vadd.f32 0.0, %v5684
      %v5686 = vpop.f32.mrf.mxu0
      %5687 = vmatprep.mubr.bf16.mxu0 0
      %5688 = vmatmul.mubr.bf16.gmra.mxu0 %v5367
      %v5689 = vpop.f32.mrf.mxu0
      %v5690 = vadd.f32 0.0, %v5689
      %v5691 = vpop.f32.mrf.mxu0
      %v5692 = vpop.f32.mrf.mxu0
      %v5693 = vadd.f32 0.0, %v5692
      %v5694 = vpop.f32.mrf.mxu0
      %5695 = vmatprep.mubr.bf16.mxu0 0
      %5696 = vmatmul.mubr.bf16.gmra.mxu0 %v5370
      %v5697 = vpop.f32.mrf.mxu0
      %v5698 = vadd.f32 0.0, %v5697
      %v5699 = vpop.f32.mrf.mxu0
      %v5700 = vpop.f32.mrf.mxu0
      %v5701 = vadd.f32 0.0, %v5700
      %v5702 = vpop.f32.mrf.mxu0
      %5703 = vmatprep.mubr.bf16.mxu0 0
      %5704 = vmatmul.mubr.bf16.gmra.mxu0 %v5373
      %v5705 = vpop.f32.mrf.mxu0
      %v5706 = vadd.f32 0.0, %v5705
      %v5707 = vpop.f32.mrf.mxu0
      %v5708 = vpop.f32.mrf.mxu0
      %v5709 = vadd.f32 0.0, %v5708
      %v5710 = vpop.f32.mrf.mxu0
      %5711 = vmatprep.mubr.bf16.mxu0 0
      %5712 = vmatmul.mubr.bf16.gmra.mxu0 %v5376
      %v5713 = vpop.f32.mrf.mxu0
      %v5714 = vadd.f32 0.0, %v5713
      %v5715 = vpop.f32.mrf.mxu0
      %v5716 = vpop.f32.mrf.mxu0
      %v5717 = vadd.f32 0.0, %v5716
      %v5718 = vpop.f32.mrf.mxu0
      %5719 = vmatprep.mubr.bf16.mxu0 0
      %5720 = vmatmul.mubr.bf16.gmra.mxu0 %v5379
      %v5721 = vpop.f32.mrf.mxu0
      %v5722 = vadd.f32 0.0, %v5721
      %v5723 = vpop.f32.mrf.mxu0
      %v5724 = vpop.f32.mrf.mxu0
      %v5725 = vadd.f32 0.0, %v5724
      %v5726 = vpop.f32.mrf.mxu0
      %5727 = vmatprep.mubr.bf16.mxu0 0
      %5728 = vmatmul.mubr.bf16.gmra.mxu0 %v5382
      %v5729 = vpop.f32.mrf.mxu0
      %v5730 = vadd.f32 0.0, %v5729
      %v5731 = vpop.f32.mrf.mxu0
      %v5732 = vpop.f32.mrf.mxu0
      %v5733 = vadd.f32 0.0, %v5732
      %v5734 = vpop.f32.mrf.mxu0
      %5735 = vmatprep.mubr.bf16.mxu0 0
      %5736 = vmatmul.mubr.bf16.gmra.mxu0 %v5385
      %v5737 = vpop.f32.mrf.mxu0
      %v5738 = vadd.f32 0.0, %v5737
      %v5739 = vpop.f32.mrf.mxu0
      %v5740 = vpop.f32.mrf.mxu0
      %v5741 = vadd.f32 0.0, %v5740
      %v5742 = vpop.f32.mrf.mxu0
      %5743 = vmatprep.mubr.bf16.mxu0 0
      %5744 = vmatmul.mubr.bf16.gmra.mxu0 %v5388
      %v5745 = vpop.f32.mrf.mxu0
      %v5746 = vadd.f32 0.0, %v5745
      %v5747 = vpop.f32.mrf.mxu0
      %v5748 = vpop.f32.mrf.mxu0
      %v5749 = vadd.f32 0.0, %v5748
      %v5750 = vpop.f32.mrf.mxu0
      %5751 = vmatprep.mubr.bf16.mxu0 0
      %5752 = vmatmul.mubr.bf16.gmra.mxu0 %v5391
      %v5753 = vpop.f32.mrf.mxu0
      %v5754 = vadd.f32 0.0, %v5753
      %v5755 = vpop.f32.mrf.mxu0
      %v5756 = vpop.f32.mrf.mxu0
      %v5757 = vadd.f32 0.0, %v5756
      %v5758 = vpop.f32.mrf.mxu0
      %5759 = vmatprep.mubr.bf16.mxu0 0
      %5760 = vmatmul.mubr.bf16.gmra.mxu0 %v5394
      %v5761 = vpop.f32.mrf.mxu0
      %v5762 = vadd.f32 0.0, %v5761
      %v5763 = vpop.f32.mrf.mxu0
      %v5764 = vpop.f32.mrf.mxu0
      %v5765 = vadd.f32 0.0, %v5764
      %v5766 = vpop.f32.mrf.mxu0
      %5767 = vmatprep.mubr.bf16.mxu0 0
      %5768 = vmatmul.mubr.bf16.gmra.mxu0 %v5397
      %v5769 = vpop.f32.mrf.mxu0
      %v5770 = vadd.f32 0.0, %v5769
      %v5771 = vpop.f32.mrf.mxu0
      %v5772 = vpop.f32.mrf.mxu0
      %v5773 = vadd.f32 0.0, %v5772
      %v5774 = vpop.f32.mrf.mxu0
      %5775 = vmatprep.mubr.bf16.mxu0 0
      %5776 = vmatmul.mubr.bf16.gmra.mxu0 %v5400
      %v5777 = vpop.f32.mrf.mxu0
      %v5778 = vadd.f32 0.0, %v5777
      %v5779 = vpop.f32.mrf.mxu0
      %v5780 = vpop.f32.mrf.mxu0
      %v5781 = vadd.f32 0.0, %v5780
      %v5782 = vpop.f32.mrf.mxu0
      %5783 = vmatprep.mubr.bf16.mxu0 0
      %5784 = vmatmul.mubr.bf16.gmra.mxu0 %v5403
      %v5785 = vpop.f32.mrf.mxu0
      %v5786 = vadd.f32 0.0, %v5785
      %v5787 = vpop.f32.mrf.mxu0
      %v5788 = vpop.f32.mrf.mxu0
      %v5789 = vadd.f32 0.0, %v5788
      %v5790 = vpop.f32.mrf.mxu0
      %5791 = vmatprep.mubr.bf16.mxu0 0
      %5792 = vmatmul.mubr.bf16.gmra.mxu0 %v5406
      %v5793 = vpop.f32.mrf.mxu0
      %v5794 = vadd.f32 0.0, %v5793
      %v5795 = vpop.f32.mrf.mxu0
      %v5796 = vpop.f32.mrf.mxu0
      %v5797 = vadd.f32 0.0, %v5796
      %v5798 = vpop.f32.mrf.mxu0
      %5799 = vmatprep.mubr.bf16.mxu0 0
      %5800 = vmatmul.mubr.bf16.gmra.mxu0 %v5409
      %v5801 = vpop.f32.mrf.mxu0
      %v5802 = vadd.f32 0.0, %v5801
      %v5803 = vpop.f32.mrf.mxu0
      %v5804 = vpop.f32.mrf.mxu0
      %v5805 = vadd.f32 0.0, %v5804
      %v5806 = vpop.f32.mrf.mxu0
      %5807 = vmatprep.mubr.bf16.mxu0 0
      %5808 = vmatmul.mubr.bf16.gmra.mxu0 %v5412
      %v5809 = vpop.f32.mrf.mxu0
      %v5810 = vadd.f32 0.0, %v5809
      %v5811 = vpop.f32.mrf.mxu0
      %v5812 = vpop.f32.mrf.mxu0
      %v5813 = vadd.f32 0.0, %v5812
      %v5814 = vpop.f32.mrf.mxu0
      %5815 = vmatprep.mubr.bf16.mxu0 0
      %5816 = vmatmul.mubr.bf16.gmra.mxu0 %v5415
      %v5817 = vpop.f32.mrf.mxu0
      %v5818 = vadd.f32 0.0, %v5817
      %v5819 = vpop.f32.mrf.mxu0
      %v5820 = vpop.f32.mrf.mxu0
      %v5821 = vadd.f32 0.0, %v5820
      %v5822 = vpop.f32.mrf.mxu0
      %5823 = vmatprep.mubr.bf16.mxu0 0
      %5824 = vmatmul.mubr.bf16.gmra.mxu0 %v5418
      %v5825 = vpop.f32.mrf.mxu0
      %v5826 = vadd.f32 0.0, %v5825
      %v5827 = vpop.f32.mrf.mxu0
      %v5828 = vpop.f32.mrf.mxu0
      %v5829 = vadd.f32 0.0, %v5828
      %v5830 = vpop.f32.mrf.mxu0
      %5831 = vmatprep.mubr.bf16.mxu0 0
      %5832 = vmatmul.mubr.bf16.gmra.mxu0 %v5421
      %v5833 = vpop.f32.mrf.mxu0
      %v5834 = vadd.f32 0.0, %v5833
      %v5835 = vpop.f32.mrf.mxu0
      %v5836 = vpop.f32.mrf.mxu0
      %v5837 = vadd.f32 0.0, %v5836
      %v5838 = vpop.f32.mrf.mxu0
      %5839 = vdwg.mxu0
      %v5840 = vadd.f32 %v4439, %v5458
      %v5841 = vadd.f32 %v4440, %v5461
      %v5842 = vadd.f32 %v4441, %v5466
      %v5843 = vadd.f32 %v4442, %v5469
      %v5844 = vadd.f32 %v4443, %v5474
      %v5845 = vadd.f32 %v4444, %v5477
      %v5846 = vadd.f32 %v4445, %v5482
      %v5847 = vadd.f32 %v4446, %v5485
      %v5848 = vadd.f32 %v4447, %v5490
      %v5849 = vadd.f32 %v4448, %v5493
      %v5850 = vadd.f32 %v4449, %v5498
      %v5851 = vadd.f32 %v4450, %v5501
      %v5852 = vadd.f32 %v4451, %v5506
      %v5853 = vadd.f32 %v4452, %v5509
      %v5854 = vadd.f32 %v4453, %v5514
      %v5855 = vadd.f32 %v4454, %v5517
      %v5856 = vadd.f32 %v4455, %v5522
      %v5857 = vadd.f32 %v4456, %v5525
      %v5858 = vadd.f32 %v4457, %v5530
      %v5859 = vadd.f32 %v4458, %v5533
      %v5860 = vadd.f32 %v4459, %v5538
      %v5861 = vadd.f32 %v4460, %v5541
      %v5862 = vadd.f32 %v4461, %v5546
      %v5863 = vadd.f32 %v4462, %v5549
      %v5864 = vadd.f32 %v4463, %v5554
      %v5865 = vadd.f32 %v4464, %v5557
      %v5866 = vadd.f32 %v4465, %v5562
      %v5867 = vadd.f32 %v4466, %v5565
      %v5868 = vadd.f32 %v4467, %v5570
      %v5869 = vadd.f32 %v4468, %v5573
      %v5870 = vadd.f32 %v4469, %v5578
      %v5871 = vadd.f32 %v4470, %v5581
      %v5872 = vadd.f32 %v4471, %v5586
      %v5873 = vadd.f32 %v4472, %v5589
      %v5874 = vadd.f32 %v4473, %v5594
      %v5875 = vadd.f32 %v4474, %v5597
      %v5876 = vadd.f32 %v4475, %v5602
      %v5877 = vadd.f32 %v4476, %v5605
      %v5878 = vadd.f32 %v4477, %v5610
      %v5879 = vadd.f32 %v4478, %v5613
      %v5880 = vadd.f32 %v4479, %v5618
      %v5881 = vadd.f32 %v4480, %v5621
      %v5882 = vadd.f32 %v4481, %v5626
      %v5883 = vadd.f32 %v4482, %v5629
      %v5884 = vadd.f32 %v4483, %v5634
      %v5885 = vadd.f32 %v4484, %v5637
      %v5886 = vadd.f32 %v4485, %v5642
      %v5887 = vadd.f32 %v4486, %v5645
      %v5888 = vadd.f32 %v4487, %v5650
      %v5889 = vadd.f32 %v4488, %v5653
      %v5890 = vadd.f32 %v4489, %v5658
      %v5891 = vadd.f32 %v4490, %v5661
      %v5892 = vadd.f32 %v4491, %v5666
      %v5893 = vadd.f32 %v4492, %v5669
      %v5894 = vadd.f32 %v4493, %v5674
      %v5895 = vadd.f32 %v4494, %v5677
      %v5896 = vadd.f32 %v4495, %v5682
      %v5897 = vadd.f32 %v4496, %v5685
      %v5898 = vadd.f32 %v4497, %v5690
      %v5899 = vadd.f32 %v4498, %v5693
      %v5900 = vadd.f32 %v4499, %v5698
      %v5901 = vadd.f32 %v4500, %v5701
      %v5902 = vadd.f32 %v4501, %v5706
      %v5903 = vadd.f32 %v4502, %v5709
      %v5904 = vadd.f32 %v4503, %v5714
      %v5905 = vadd.f32 %v4504, %v5717
      %v5906 = vadd.f32 %v4505, %v5722
      %v5907 = vadd.f32 %v4506, %v5725
      %v5908 = vadd.f32 %v4507, %v5730
      %v5909 = vadd.f32 %v4508, %v5733
      %v5910 = vadd.f32 %v4509, %v5738
      %v5911 = vadd.f32 %v4510, %v5741
      %v5912 = vadd.f32 %v4511, %v5746
      %v5913 = vadd.f32 %v4512, %v5749
      %v5914 = vadd.f32 %v4513, %v5754
      %v5915 = vadd.f32 %v4514, %v5757
      %v5916 = vadd.f32 %v4515, %v5762
      %v5917 = vadd.f32 %v4516, %v5765
      %v5918 = vadd.f32 %v4517, %v5770
      %v5919 = vadd.f32 %v4518, %v5773
      %v5920 = vadd.f32 %v4519, %v5778
      %v5921 = vadd.f32 %v4520, %v5781
      %v5922 = vadd.f32 %v4521, %v5786
      %v5923 = vadd.f32 %v4522, %v5789
      %v5924 = vadd.f32 %v4523, %v5794
      %v5925 = vadd.f32 %v4524, %v5797
      %v5926 = vadd.f32 %v4525, %v5802
      %v5927 = vadd.f32 %v4526, %v5805
      %v5928 = vadd.f32 %v4527, %v5810
      %v5929 = vadd.f32 %v4528, %v5813
      %v5930 = vadd.f32 %v4529, %v5818
      %v5931 = vadd.f32 %v4530, %v5821
      %v5932 = vadd.f32 %v4531, %v5826
      %v5933 = vadd.f32 %v4532, %v5829
      %v5934 = vadd.f32 %v4533, %v5834
      %v5935 = vadd.f32 %v4534, %v5837
      %v5936 = vld [vmem:[#allocation2 + $0x28] sm:$0xe]
      %v5937 = vld [vmem:[%s3 + $0x50] sm:$0xf]
      %v5938 = vld [vmem:[%s3 + $0x54] sm:$0xf]
      %v5939 = vld [vmem:[%s3 + $0x58] sm:$0xf]
      %v5940 = vld [vmem:[%s3 + $0x5c] sm:$0xf]
      %v5942 = vunpack.c.l.b16 %v5936
      %v5943 = vpack.c.b16 %v4734, %v5942
      %v5944 = vrot.slane %v5943, 1
      %v5945 = vrot.slane %v4831, 1
      %v5946 = vsel %vm3768, %v5944, %v5945
      %v5947 = vrot.slane %v4832, 1
      %v5948 = vsel %vm3768, %v5945, %v5947
      %v5949 = vrot.slane %v4833, 1
      %v5950 = vsel %vm3768, %v5947, %v5949
      %v5951 = vrot.slane %v4834, 1
      %v5952 = vsel %vm3768, %v5949, %v5951
      %v5953 = vrot.slane %v4835, 1
      %v5954 = vsel %vm3768, %v5951, %v5953
      %v5955 = vrot.slane %v4836, 1
      %v5956 = vsel %vm3768, %v5953, %v5955
      %v5957 = vrot.slane %v4837, 1
      %v5958 = vsel %vm3768, %v5955, %v5957
      %v5959 = vrot.slane %v4838, 1
      %v5960 = vsel %vm3768, %v5957, %v5959
      %v5961 = vrot.slane %v4839, 1
      %v5962 = vsel %vm3768, %v5959, %v5961
      %v5963 = vrot.slane %v4840, 1
      %v5964 = vsel %vm3768, %v5961, %v5963
      %v5965 = vrot.slane %v4841, 1
      %v5966 = vsel %vm3768, %v5963, %v5965
      %v5967 = vrot.slane %v4842, 1
      %v5968 = vsel %vm3768, %v5965, %v5967
      %v5969 = vrot.slane %v4843, 1
      %v5970 = vsel %vm3768, %v5967, %v5969
      %v5971 = vrot.slane %v4844, 1
      %v5972 = vsel %vm3768, %v5969, %v5971
      %v5973 = vrot.slane %v4845, 1
      %v5974 = vsel %vm3768, %v5971, %v5973
      %v5975 = vrot.slane %v4846, 1
      %v5976 = vsel %vm3768, %v5973, %v5975
      %v5977 = vrot.slane %v4847, 1
      %v5978 = vsel %vm3768, %v5975, %v5977
      %v5979 = vrot.slane %v4848, 1
      %v5980 = vsel %vm3768, %v5977, %v5979
      %v5981 = vrot.slane %v4849, 1
      %v5982 = vsel %vm3768, %v5979, %v5981
      %v5983 = vrot.slane %v4850, 1
      %v5984 = vsel %vm3768, %v5981, %v5983
      %v5985 = vrot.slane %v4851, 1
      %v5986 = vsel %vm3768, %v5983, %v5985
      %v5987 = vrot.slane %v4852, 1
      %v5988 = vsel %vm3768, %v5985, %v5987
      %v5989 = vrot.slane %v4853, 1
      %v5990 = vsel %vm3768, %v5987, %v5989
      %v5991 = vrot.slane %v4854, 1
      %v5992 = vsel %vm3768, %v5989, %v5991
      %v5993 = vrot.slane %v4855, 1
      %v5994 = vsel %vm3768, %v5991, %v5993
      %v5995 = vrot.slane %v4856, 1
      %v5996 = vsel %vm3768, %v5993, %v5995
      %v5997 = vrot.slane %v4857, 1
      %v5998 = vsel %vm3768, %v5995, %v5997
      %v5999 = vrot.slane %v4858, 1
      %v6000 = vsel %vm3768, %v5997, %v5999
      %v6001 = vrot.slane %v4859, 1
      %v6002 = vsel %vm3768, %v5999, %v6001
      %v6003 = vrot.slane %v4860, 1
      %v6004 = vsel %vm3768, %v6001, %v6003
      %v6005 = vrot.slane %v4861, 1
      %v6006 = vsel %vm3768, %v6003, %v6005
      %v6007 = vrot.slane %v4862, 1
      %v6008 = vsel %vm3768, %v6005, %v6007
      %v6009 = vrot.slane %v4863, 1
      %v6010 = vsel %vm3768, %v6007, %v6009
      %v6011 = vrot.slane %v4864, 1
      %v6012 = vsel %vm3768, %v6009, %v6011
      %v6013 = vrot.slane %v4865, 1
      %v6014 = vsel %vm3768, %v6011, %v6013
      %v6015 = vrot.slane %v4866, 1
      %v6016 = vsel %vm3768, %v6013, %v6015
      %v6017 = vrot.slane %v4867, 1
      %v6018 = vsel %vm3768, %v6015, %v6017
      %v6019 = vrot.slane %v4868, 1
      %v6020 = vsel %vm3768, %v6017, %v6019
      %v6021 = vrot.slane %v4869, 1
      %v6022 = vsel %vm3768, %v6019, %v6021
      %v6023 = vrot.slane %v4870, 1
      %v6024 = vsel %vm3768, %v6021, %v6023
      %v6025 = vrot.slane %v4871, 1
      %v6026 = vsel %vm3768, %v6023, %v6025
      %v6027 = vrot.slane %v4872, 1
      %v6028 = vsel %vm3768, %v6025, %v6027
      %v6029 = vrot.slane %v4873, 1
      %v6030 = vsel %vm3768, %v6027, %v6029
      %v6031 = vrot.slane %v4874, 1
      %v6032 = vsel %vm3768, %v6029, %v6031
      %v6033 = vrot.slane %v4875, 1
      %v6034 = vsel %vm3768, %v6031, %v6033
      %v6035 = vrot.slane %v4876, 1
      %v6036 = vsel %vm3768, %v6033, %v6035
      %v6037 = vrot.slane %v4877, 1
      %v6038 = vsel %vm3768, %v6035, %v6037
      %v6039 = vrot.slane %v4878, 1
      %v6040 = vsel %vm3768, %v6037, %v6039
      %v6045 = vunpack.c.l.b16 %v5937
      %v6046 = vunpack.c.l.b16 %v5938
      %v6047 = vunpack.c.l.b16 %v5939
      %v6048 = vunpack.c.l.b16 %v5940
      %v6049 = vpack.c.b16 %v6046, %v6045
      %v6050 = vpack.c.b16 %v6048, %v6047
      %v6054 = vsel %vm1272, %v5946, 0
      %v6057 = vsel %vm1272, %v5948, 0
      %v6060 = vsel %vm1272, %v5950, 0
      %v6063 = vsel %vm1272, %v5952, 0
      %v6066 = vsel %vm1272, %v5954, 0
      %v6069 = vsel %vm1272, %v5956, 0
      %v6072 = vsel %vm1272, %v5958, 0
      %v6075 = vsel %vm1272, %v5960, 0
      %v6078 = vsel %vm1272, %v5962, 0
      %v6081 = vsel %vm1272, %v5964, 0
      %v6084 = vsel %vm1272, %v5966, 0
      %v6087 = vsel %vm1272, %v5968, 0
      %v6090 = vsel %vm1272, %v5970, 0
      %v6093 = vsel %vm1272, %v5972, 0
      %v6096 = vsel %vm1272, %v5974, 0
      %v6099 = vsel %vm1272, %v5976, 0
      %v6102 = vsel %vm1272, %v5978, 0
      %v6105 = vsel %vm1272, %v5980, 0
      %v6108 = vsel %vm1272, %v5982, 0
      %v6111 = vsel %vm1272, %v5984, 0
      %v6114 = vsel %vm1272, %v5986, 0
      %v6117 = vsel %vm1272, %v5988, 0
      %v6120 = vsel %vm1272, %v5990, 0
      %v6123 = vsel %vm1272, %v5992, 0
      %v6126 = vsel %vm1272, %v5994, 0
      %v6129 = vsel %vm1272, %v5996, 0
      %v6132 = vsel %vm1272, %v5998, 0
      %v6135 = vsel %vm1272, %v6000, 0
      %v6138 = vsel %vm1272, %v6002, 0
      %v6141 = vsel %vm1272, %v6004, 0
      %v6144 = vsel %vm1272, %v6006, 0
      %v6147 = vsel %vm1272, %v6008, 0
      %v6150 = vsel %vm1272, %v6010, 0
      %v6153 = vsel %vm1272, %v6012, 0
      %v6156 = vsel %vm1272, %v6014, 0
      %v6159 = vsel %vm1272, %v6016, 0
      %v6162 = vsel %vm1272, %v6018, 0
      %v6165 = vsel %vm1272, %v6020, 0
      %v6168 = vsel %vm1272, %v6022, 0
      %v6171 = vsel %vm1272, %v6024, 0
      %v6174 = vsel %vm1272, %v6026, 0
      %v6177 = vsel %vm1272, %v6028, 0
      %v6180 = vsel %vm1272, %v6030, 0
      %v6183 = vsel %vm1272, %v6032, 0
      %v6186 = vsel %vm1272, %v6034, 0
      %v6189 = vsel %vm1272, %v6036, 0
      %v6192 = vsel %vm1272, %v6038, 0
      %v6195 = vsel %vm1272, %v6040, 0
      %6197 = vmatprep.subr.bf16.mxu0 0
      %6198 = vmatpush1.bf16.msra.mxu0 0
      %6199 = vmatprep.subr.bf16.mxu0 0
      %6200 = vmatpush1.bf16.msra.mxu0 0
      %6201 = vmatprep.subr.bf16.mxu0 0
      %6202 = vmatpush1.bf16.msra.mxu0 0
      %6203 = vmatprep.subr.bf16.mxu0 0
      %6204 = vmatpush1.bf16.msra.mxu0 0
      %6205 = vmatprep.subr.bf16.mxu0 0
      %6206 = vmatpush1.bf16.msra.mxu0 0
      %6207 = vmatprep.subr.bf16.mxu0 0
      %6208 = vmatpush1.bf16.msra.mxu0 0
      %6209 = vmatprep.subr.bf16.mxu0 0
      %6210 = vmatpush1.bf16.msra.mxu0 %v6050
      %6211 = vmatprep.subr.bf16.mxu0 0
      %6212 = vmatpush1.bf16.msra.mxu0 %v6049
      %6213 = vmatprep.subr.bf16.mxu0 0
      %6214 = vmatpush2.bf16.msra.mxu0 0
      %6215 = vmatprep.subr.bf16.mxu0 0
      %6216 = vmatpush2.bf16.msra.mxu0 0
      %6217 = vmatprep.subr.bf16.mxu0 0
      %6218 = vmatpush2.bf16.msra.mxu0 0
      %6219 = vmatprep.subr.bf16.mxu0 0
      %6220 = vmatpush2.bf16.msra.mxu0 0
      %6221 = vmatprep.subr.bf16.mxu0 0
      %6222 = vmatpush2.bf16.msra.mxu0 0
      %6223 = vmatprep.subr.bf16.mxu0 0
      %6224 = vmatpush2.bf16.msra.mxu0 0
      %6225 = vmatprep.subr.bf16.mxu0 0
      %6226 = vmatpush2.bf16.msra.mxu0 0
      %6227 = vmatprep.subr.bf16.mxu0 0
      %6228 = vmatpush2.bf16.msra.mxu0 0
      %6229 = vmatprep.mubr.bf16.mxu0 0
      %6230 = vmatmul.mubr.bf16.gmra.mxu0 %v6054
      %v6231 = vpop.f32.mrf.mxu0
      %v6232 = vadd.f32 0.0, %v6231
      %v6233 = vpop.f32.mrf.mxu0
      %v6234 = vpop.f32.mrf.mxu0
      %v6235 = vadd.f32 0.0, %v6234
      %v6236 = vpop.f32.mrf.mxu0
      %6237 = vmatprep.mubr.bf16.mxu0 0
      %6238 = vmatmul.mubr.bf16.gmra.mxu0 %v6057
      %v6239 = vpop.f32.mrf.mxu0
      %v6240 = vadd.f32 0.0, %v6239
      %v6241 = vpop.f32.mrf.mxu0
      %v6242 = vpop.f32.mrf.mxu0
      %v6243 = vadd.f32 0.0, %v6242
      %v6244 = vpop.f32.mrf.mxu0
      %6245 = vmatprep.mubr.bf16.mxu0 0
      %6246 = vmatmul.mubr.bf16.gmra.mxu0 %v6060
      %v6247 = vpop.f32.mrf.mxu0
      %v6248 = vadd.f32 0.0, %v6247
      %v6249 = vpop.f32.mrf.mxu0
      %v6250 = vpop.f32.mrf.mxu0
      %v6251 = vadd.f32 0.0, %v6250
      %v6252 = vpop.f32.mrf.mxu0
      %6253 = vmatprep.mubr.bf16.mxu0 0
      %6254 = vmatmul.mubr.bf16.gmra.mxu0 %v6063
      %v6255 = vpop.f32.mrf.mxu0
      %v6256 = vadd.f32 0.0, %v6255
      %v6257 = vpop.f32.mrf.mxu0
      %v6258 = vpop.f32.mrf.mxu0
      %v6259 = vadd.f32 0.0, %v6258
      %v6260 = vpop.f32.mrf.mxu0
      %6261 = vmatprep.mubr.bf16.mxu0 0
      %6262 = vmatmul.mubr.bf16.gmra.mxu0 %v6066
      %v6263 = vpop.f32.mrf.mxu0
      %v6264 = vadd.f32 0.0, %v6263
      %v6265 = vpop.f32.mrf.mxu0
      %v6266 = vpop.f32.mrf.mxu0
      %v6267 = vadd.f32 0.0, %v6266
      %v6268 = vpop.f32.mrf.mxu0
      %6269 = vmatprep.mubr.bf16.mxu0 0
      %6270 = vmatmul.mubr.bf16.gmra.mxu0 %v6069
      %v6271 = vpop.f32.mrf.mxu0
      %v6272 = vadd.f32 0.0, %v6271
      %v6273 = vpop.f32.mrf.mxu0
      %v6274 = vpop.f32.mrf.mxu0
      %v6275 = vadd.f32 0.0, %v6274
      %v6276 = vpop.f32.mrf.mxu0
      %6277 = vmatprep.mubr.bf16.mxu0 0
      %6278 = vmatmul.mubr.bf16.gmra.mxu0 %v6072
      %v6279 = vpop.f32.mrf.mxu0
      %v6280 = vadd.f32 0.0, %v6279
      %v6281 = vpop.f32.mrf.mxu0
      %v6282 = vpop.f32.mrf.mxu0
      %v6283 = vadd.f32 0.0, %v6282
      %v6284 = vpop.f32.mrf.mxu0
      %6285 = vmatprep.mubr.bf16.mxu0 0
      %6286 = vmatmul.mubr.bf16.gmra.mxu0 %v6075
      %v6287 = vpop.f32.mrf.mxu0
      %v6288 = vadd.f32 0.0, %v6287
      %v6289 = vpop.f32.mrf.mxu0
      %v6290 = vpop.f32.mrf.mxu0
      %v6291 = vadd.f32 0.0, %v6290
      %v6292 = vpop.f32.mrf.mxu0
      %6293 = vmatprep.mubr.bf16.mxu0 0
      %6294 = vmatmul.mubr.bf16.gmra.mxu0 %v6078
      %v6295 = vpop.f32.mrf.mxu0
      %v6296 = vadd.f32 0.0, %v6295
      %v6297 = vpop.f32.mrf.mxu0
      %v6298 = vpop.f32.mrf.mxu0
      %v6299 = vadd.f32 0.0, %v6298
      %v6300 = vpop.f32.mrf.mxu0
      %6301 = vmatprep.mubr.bf16.mxu0 0
      %6302 = vmatmul.mubr.bf16.gmra.mxu0 %v6081
      %v6303 = vpop.f32.mrf.mxu0
      %v6304 = vadd.f32 0.0, %v6303
      %v6305 = vpop.f32.mrf.mxu0
      %v6306 = vpop.f32.mrf.mxu0
      %v6307 = vadd.f32 0.0, %v6306
      %v6308 = vpop.f32.mrf.mxu0
      %6309 = vmatprep.mubr.bf16.mxu0 0
      %6310 = vmatmul.mubr.bf16.gmra.mxu0 %v6084
      %v6311 = vpop.f32.mrf.mxu0
      %v6312 = vadd.f32 0.0, %v6311
      %v6313 = vpop.f32.mrf.mxu0
      %v6314 = vpop.f32.mrf.mxu0
      %v6315 = vadd.f32 0.0, %v6314
      %v6316 = vpop.f32.mrf.mxu0
      %6317 = vmatprep.mubr.bf16.mxu0 0
      %6318 = vmatmul.mubr.bf16.gmra.mxu0 %v6087
      %v6319 = vpop.f32.mrf.mxu0
      %v6320 = vadd.f32 0.0, %v6319
      %v6321 = vpop.f32.mrf.mxu0
      %v6322 = vpop.f32.mrf.mxu0
      %v6323 = vadd.f32 0.0, %v6322
      %v6324 = vpop.f32.mrf.mxu0
      %6325 = vmatprep.mubr.bf16.mxu0 0
      %6326 = vmatmul.mubr.bf16.gmra.mxu0 %v6090
      %v6327 = vpop.f32.mrf.mxu0
      %v6328 = vadd.f32 0.0, %v6327
      %v6329 = vpop.f32.mrf.mxu0
      %v6330 = vpop.f32.mrf.mxu0
      %v6331 = vadd.f32 0.0, %v6330
      %v6332 = vpop.f32.mrf.mxu0
      %6333 = vmatprep.mubr.bf16.mxu0 0
      %6334 = vmatmul.mubr.bf16.gmra.mxu0 %v6093
      %v6335 = vpop.f32.mrf.mxu0
      %v6336 = vadd.f32 0.0, %v6335
      %v6337 = vpop.f32.mrf.mxu0
      %v6338 = vpop.f32.mrf.mxu0
      %v6339 = vadd.f32 0.0, %v6338
      %v6340 = vpop.f32.mrf.mxu0
      %6341 = vmatprep.mubr.bf16.mxu0 0
      %6342 = vmatmul.mubr.bf16.gmra.mxu0 %v6096
      %v6343 = vpop.f32.mrf.mxu0
      %v6344 = vadd.f32 0.0, %v6343
      %v6345 = vpop.f32.mrf.mxu0
      %v6346 = vpop.f32.mrf.mxu0
      %v6347 = vadd.f32 0.0, %v6346
      %v6348 = vpop.f32.mrf.mxu0
      %6349 = vmatprep.mubr.bf16.mxu0 0
      %6350 = vmatmul.mubr.bf16.gmra.mxu0 %v6099
      %v6351 = vpop.f32.mrf.mxu0
      %v6352 = vadd.f32 0.0, %v6351
      %v6353 = vpop.f32.mrf.mxu0
      %v6354 = vpop.f32.mrf.mxu0
      %v6355 = vadd.f32 0.0, %v6354
      %v6356 = vpop.f32.mrf.mxu0
      %6357 = vmatprep.mubr.bf16.mxu0 0
      %6358 = vmatmul.mubr.bf16.gmra.mxu0 %v6102
      %v6359 = vpop.f32.mrf.mxu0
      %v6360 = vadd.f32 0.0, %v6359
      %v6361 = vpop.f32.mrf.mxu0
      %v6362 = vpop.f32.mrf.mxu0
      %v6363 = vadd.f32 0.0, %v6362
      %v6364 = vpop.f32.mrf.mxu0
      %6365 = vmatprep.mubr.bf16.mxu0 0
      %6366 = vmatmul.mubr.bf16.gmra.mxu0 %v6105
      %v6367 = vpop.f32.mrf.mxu0
      %v6368 = vadd.f32 0.0, %v6367
      %v6369 = vpop.f32.mrf.mxu0
      %v6370 = vpop.f32.mrf.mxu0
      %v6371 = vadd.f32 0.0, %v6370
      %v6372 = vpop.f32.mrf.mxu0
      %6373 = vmatprep.mubr.bf16.mxu0 0
      %6374 = vmatmul.mubr.bf16.gmra.mxu0 %v6108
      %v6375 = vpop.f32.mrf.mxu0
      %v6376 = vadd.f32 0.0, %v6375
      %v6377 = vpop.f32.mrf.mxu0
      %v6378 = vpop.f32.mrf.mxu0
      %v6379 = vadd.f32 0.0, %v6378
      %v6380 = vpop.f32.mrf.mxu0
      %6381 = vmatprep.mubr.bf16.mxu0 0
      %6382 = vmatmul.mubr.bf16.gmra.mxu0 %v6111
      %v6383 = vpop.f32.mrf.mxu0
      %v6384 = vadd.f32 0.0, %v6383
      %v6385 = vpop.f32.mrf.mxu0
      %v6386 = vpop.f32.mrf.mxu0
      %v6387 = vadd.f32 0.0, %v6386
      %v6388 = vpop.f32.mrf.mxu0
      %6389 = vmatprep.mubr.bf16.mxu0 0
      %6390 = vmatmul.mubr.bf16.gmra.mxu0 %v6114
      %v6391 = vpop.f32.mrf.mxu0
      %v6392 = vadd.f32 0.0, %v6391
      %v6393 = vpop.f32.mrf.mxu0
      %v6394 = vpop.f32.mrf.mxu0
      %v6395 = vadd.f32 0.0, %v6394
      %v6396 = vpop.f32.mrf.mxu0
      %6397 = vmatprep.mubr.bf16.mxu0 0
      %6398 = vmatmul.mubr.bf16.gmra.mxu0 %v6117
      %v6399 = vpop.f32.mrf.mxu0
      %v6400 = vadd.f32 0.0, %v6399
      %v6401 = vpop.f32.mrf.mxu0
      %v6402 = vpop.f32.mrf.mxu0
      %v6403 = vadd.f32 0.0, %v6402
      %v6404 = vpop.f32.mrf.mxu0
      %6405 = vmatprep.mubr.bf16.mxu0 0
      %6406 = vmatmul.mubr.bf16.gmra.mxu0 %v6120
      %v6407 = vpop.f32.mrf.mxu0
      %v6408 = vadd.f32 0.0, %v6407
      %v6409 = vpop.f32.mrf.mxu0
      %v6410 = vpop.f32.mrf.mxu0
      %v6411 = vadd.f32 0.0, %v6410
      %v6412 = vpop.f32.mrf.mxu0
      %6413 = vmatprep.mubr.bf16.mxu0 0
      %6414 = vmatmul.mubr.bf16.gmra.mxu0 %v6123
      %v6415 = vpop.f32.mrf.mxu0
      %v6416 = vadd.f32 0.0, %v6415
      %v6417 = vpop.f32.mrf.mxu0
      %v6418 = vpop.f32.mrf.mxu0
      %v6419 = vadd.f32 0.0, %v6418
      %v6420 = vpop.f32.mrf.mxu0
      %6421 = vmatprep.mubr.bf16.mxu0 0
      %6422 = vmatmul.mubr.bf16.gmra.mxu0 %v6126
      %v6423 = vpop.f32.mrf.mxu0
      %v6424 = vadd.f32 0.0, %v6423
      %v6425 = vpop.f32.mrf.mxu0
      %v6426 = vpop.f32.mrf.mxu0
      %v6427 = vadd.f32 0.0, %v6426
      %v6428 = vpop.f32.mrf.mxu0
      %6429 = vmatprep.mubr.bf16.mxu0 0
      %6430 = vmatmul.mubr.bf16.gmra.mxu0 %v6129
      %v6431 = vpop.f32.mrf.mxu0
      %v6432 = vadd.f32 0.0, %v6431
      %v6433 = vpop.f32.mrf.mxu0
      %v6434 = vpop.f32.mrf.mxu0
      %v6435 = vadd.f32 0.0, %v6434
      %v6436 = vpop.f32.mrf.mxu0
      %6437 = vmatprep.mubr.bf16.mxu0 0
      %6438 = vmatmul.mubr.bf16.gmra.mxu0 %v6132
      %v6439 = vpop.f32.mrf.mxu0
      %v6440 = vadd.f32 0.0, %v6439
      %v6441 = vpop.f32.mrf.mxu0
      %v6442 = vpop.f32.mrf.mxu0
      %v6443 = vadd.f32 0.0, %v6442
      %v6444 = vpop.f32.mrf.mxu0
      %6445 = vmatprep.mubr.bf16.mxu0 0
      %6446 = vmatmul.mubr.bf16.gmra.mxu0 %v6135
      %v6447 = vpop.f32.mrf.mxu0
      %v6448 = vadd.f32 0.0, %v6447
      %v6449 = vpop.f32.mrf.mxu0
      %v6450 = vpop.f32.mrf.mxu0
      %v6451 = vadd.f32 0.0, %v6450
      %v6452 = vpop.f32.mrf.mxu0
      %6453 = vmatprep.mubr.bf16.mxu0 0
      %6454 = vmatmul.mubr.bf16.gmra.mxu0 %v6138
      %v6455 = vpop.f32.mrf.mxu0
      %v6456 = vadd.f32 0.0, %v6455
      %v6457 = vpop.f32.mrf.mxu0
      %v6458 = vpop.f32.mrf.mxu0
      %v6459 = vadd.f32 0.0, %v6458
      %v6460 = vpop.f32.mrf.mxu0
      %6461 = vmatprep.mubr.bf16.mxu0 0
      %6462 = vmatmul.mubr.bf16.gmra.mxu0 %v6141
      %v6463 = vpop.f32.mrf.mxu0
      %v6464 = vadd.f32 0.0, %v6463
      %v6465 = vpop.f32.mrf.mxu0
      %v6466 = vpop.f32.mrf.mxu0
      %v6467 = vadd.f32 0.0, %v6466
      %v6468 = vpop.f32.mrf.mxu0
      %6469 = vmatprep.mubr.bf16.mxu0 0
      %6470 = vmatmul.mubr.bf16.gmra.mxu0 %v6144
      %v6471 = vpop.f32.mrf.mxu0
      %v6472 = vadd.f32 0.0, %v6471
      %v6473 = vpop.f32.mrf.mxu0
      %v6474 = vpop.f32.mrf.mxu0
      %v6475 = vadd.f32 0.0, %v6474
      %v6476 = vpop.f32.mrf.mxu0
      %6477 = vmatprep.mubr.bf16.mxu0 0
      %6478 = vmatmul.mubr.bf16.gmra.mxu0 %v6147
      %v6479 = vpop.f32.mrf.mxu0
      %v6480 = vadd.f32 0.0, %v6479
      %v6481 = vpop.f32.mrf.mxu0
      %v6482 = vpop.f32.mrf.mxu0
      %v6483 = vadd.f32 0.0, %v6482
      %v6484 = vpop.f32.mrf.mxu0
      %6485 = vmatprep.mubr.bf16.mxu0 0
      %6486 = vmatmul.mubr.bf16.gmra.mxu0 %v6150
      %v6487 = vpop.f32.mrf.mxu0
      %v6488 = vadd.f32 0.0, %v6487
      %v6489 = vpop.f32.mrf.mxu0
      %v6490 = vpop.f32.mrf.mxu0
      %v6491 = vadd.f32 0.0, %v6490
      %v6492 = vpop.f32.mrf.mxu0
      %6493 = vmatprep.mubr.bf16.mxu0 0
      %6494 = vmatmul.mubr.bf16.gmra.mxu0 %v6153
      %v6495 = vpop.f32.mrf.mxu0
      %v6496 = vadd.f32 0.0, %v6495
      %v6497 = vpop.f32.mrf.mxu0
      %v6498 = vpop.f32.mrf.mxu0
      %v6499 = vadd.f32 0.0, %v6498
      %v6500 = vpop.f32.mrf.mxu0
      %6501 = vmatprep.mubr.bf16.mxu0 0
      %6502 = vmatmul.mubr.bf16.gmra.mxu0 %v6156
      %v6503 = vpop.f32.mrf.mxu0
      %v6504 = vadd.f32 0.0, %v6503
      %v6505 = vpop.f32.mrf.mxu0
      %v6506 = vpop.f32.mrf.mxu0
      %v6507 = vadd.f32 0.0, %v6506
      %v6508 = vpop.f32.mrf.mxu0
      %6509 = vmatprep.mubr.bf16.mxu0 0
      %6510 = vmatmul.mubr.bf16.gmra.mxu0 %v6159
      %v6511 = vpop.f32.mrf.mxu0
      %v6512 = vadd.f32 0.0, %v6511
      %v6513 = vpop.f32.mrf.mxu0
      %v6514 = vpop.f32.mrf.mxu0
      %v6515 = vadd.f32 0.0, %v6514
      %v6516 = vpop.f32.mrf.mxu0
      %6517 = vmatprep.mubr.bf16.mxu0 0
      %6518 = vmatmul.mubr.bf16.gmra.mxu0 %v6162
      %v6519 = vpop.f32.mrf.mxu0
      %v6520 = vadd.f32 0.0, %v6519
      %v6521 = vpop.f32.mrf.mxu0
      %v6522 = vpop.f32.mrf.mxu0
      %v6523 = vadd.f32 0.0, %v6522
      %v6524 = vpop.f32.mrf.mxu0
      %6525 = vmatprep.mubr.bf16.mxu0 0
      %6526 = vmatmul.mubr.bf16.gmra.mxu0 %v6165
      %v6527 = vpop.f32.mrf.mxu0
      %v6528 = vadd.f32 0.0, %v6527
      %v6529 = vpop.f32.mrf.mxu0
      %v6530 = vpop.f32.mrf.mxu0
      %v6531 = vadd.f32 0.0, %v6530
      %v6532 = vpop.f32.mrf.mxu0
      %6533 = vmatprep.mubr.bf16.mxu0 0
      %6534 = vmatmul.mubr.bf16.gmra.mxu0 %v6168
      %v6535 = vpop.f32.mrf.mxu0
      %v6536 = vadd.f32 0.0, %v6535
      %v6537 = vpop.f32.mrf.mxu0
      %v6538 = vpop.f32.mrf.mxu0
      %v6539 = vadd.f32 0.0, %v6538
      %v6540 = vpop.f32.mrf.mxu0
      %6541 = vmatprep.mubr.bf16.mxu0 0
      %6542 = vmatmul.mubr.bf16.gmra.mxu0 %v6171
      %v6543 = vpop.f32.mrf.mxu0
      %v6544 = vadd.f32 0.0, %v6543
      %v6545 = vpop.f32.mrf.mxu0
      %v6546 = vpop.f32.mrf.mxu0
      %v6547 = vadd.f32 0.0, %v6546
      %v6548 = vpop.f32.mrf.mxu0
      %6549 = vmatprep.mubr.bf16.mxu0 0
      %6550 = vmatmul.mubr.bf16.gmra.mxu0 %v6174
      %v6551 = vpop.f32.mrf.mxu0
      %v6552 = vadd.f32 0.0, %v6551
      %v6553 = vpop.f32.mrf.mxu0
      %v6554 = vpop.f32.mrf.mxu0
      %v6555 = vadd.f32 0.0, %v6554
      %v6556 = vpop.f32.mrf.mxu0
      %6557 = vmatprep.mubr.bf16.mxu0 0
      %6558 = vmatmul.mubr.bf16.gmra.mxu0 %v6177
      %v6559 = vpop.f32.mrf.mxu0
      %v6560 = vadd.f32 0.0, %v6559
      %v6561 = vpop.f32.mrf.mxu0
      %v6562 = vpop.f32.mrf.mxu0
      %v6563 = vadd.f32 0.0, %v6562
      %v6564 = vpop.f32.mrf.mxu0
      %6565 = vmatprep.mubr.bf16.mxu0 0
      %6566 = vmatmul.mubr.bf16.gmra.mxu0 %v6180
      %v6567 = vpop.f32.mrf.mxu0
      %v6568 = vadd.f32 0.0, %v6567
      %v6569 = vpop.f32.mrf.mxu0
      %v6570 = vpop.f32.mrf.mxu0
      %v6571 = vadd.f32 0.0, %v6570
      %v6572 = vpop.f32.mrf.mxu0
      %6573 = vmatprep.mubr.bf16.mxu0 0
      %6574 = vmatmul.mubr.bf16.gmra.mxu0 %v6183
      %v6575 = vpop.f32.mrf.mxu0
      %v6576 = vadd.f32 0.0, %v6575
      %v6577 = vpop.f32.mrf.mxu0
      %v6578 = vpop.f32.mrf.mxu0
      %v6579 = vadd.f32 0.0, %v6578
      %v6580 = vpop.f32.mrf.mxu0
      %6581 = vmatprep.mubr.bf16.mxu0 0
      %6582 = vmatmul.mubr.bf16.gmra.mxu0 %v6186
      %v6583 = vpop.f32.mrf.mxu0
      %v6584 = vadd.f32 0.0, %v6583
      %v6585 = vpop.f32.mrf.mxu0
      %v6586 = vpop.f32.mrf.mxu0
      %v6587 = vadd.f32 0.0, %v6586
      %v6588 = vpop.f32.mrf.mxu0
      %6589 = vmatprep.mubr.bf16.mxu0 0
      %6590 = vmatmul.mubr.bf16.gmra.mxu0 %v6189
      %v6591 = vpop.f32.mrf.mxu0
      %v6592 = vadd.f32 0.0, %v6591
      %v6593 = vpop.f32.mrf.mxu0
      %v6594 = vpop.f32.mrf.mxu0
      %v6595 = vadd.f32 0.0, %v6594
      %v6596 = vpop.f32.mrf.mxu0
      %6597 = vmatprep.mubr.bf16.mxu0 0
      %6598 = vmatmul.mubr.bf16.gmra.mxu0 %v6192
      %v6599 = vpop.f32.mrf.mxu0
      %v6600 = vadd.f32 0.0, %v6599
      %v6601 = vpop.f32.mrf.mxu0
      %v6602 = vpop.f32.mrf.mxu0
      %v6603 = vadd.f32 0.0, %v6602
      %v6604 = vpop.f32.mrf.mxu0
      %6605 = vmatprep.mubr.bf16.mxu0 0
      %6606 = vmatmul.mubr.bf16.gmra.mxu0 %v6195
      %v6607 = vpop.f32.mrf.mxu0
      %v6608 = vadd.f32 0.0, %v6607
      %v6609 = vpop.f32.mrf.mxu0
      %v6610 = vpop.f32.mrf.mxu0
      %v6611 = vadd.f32 0.0, %v6610
      %v6612 = vpop.f32.mrf.mxu0
      %6613 = vdwg.mxu0
      %v6614 = vadd.f32 %v5840, %v6232
      %v6615 = vadd.f32 %v5841, %v6235
      %v6616 = vadd.f32 %v5842, %v6240
      %v6617 = vadd.f32 %v5843, %v6243
      %v6618 = vadd.f32 %v5844, %v6248
      %v6619 = vadd.f32 %v5845, %v6251
      %v6620 = vadd.f32 %v5846, %v6256
      %v6621 = vadd.f32 %v5847, %v6259
      %v6622 = vadd.f32 %v5848, %v6264
      %v6623 = vadd.f32 %v5849, %v6267
      %v6624 = vadd.f32 %v5850, %v6272
      %v6625 = vadd.f32 %v5851, %v6275
      %v6626 = vadd.f32 %v5852, %v6280
      %v6627 = vadd.f32 %v5853, %v6283
      %v6628 = vadd.f32 %v5854, %v6288
      %v6629 = vadd.f32 %v5855, %v6291
      %v6630 = vadd.f32 %v5856, %v6296
      %v6631 = vadd.f32 %v5857, %v6299
      %v6632 = vadd.f32 %v5858, %v6304
      %v6633 = vadd.f32 %v5859, %v6307
      %v6634 = vadd.f32 %v5860, %v6312
      %v6635 = vadd.f32 %v5861, %v6315
      %v6636 = vadd.f32 %v5862, %v6320
      %v6637 = vadd.f32 %v5863, %v6323
      %v6638 = vadd.f32 %v5864, %v6328
      %v6639 = vadd.f32 %v5865, %v6331
      %v6640 = vadd.f32 %v5866, %v6336
      %v6641 = vadd.f32 %v5867, %v6339
      %v6642 = vadd.f32 %v5868, %v6344
      %v6643 = vadd.f32 %v5869, %v6347
      %v6644 = vadd.f32 %v5870, %v6352
      %v6645 = vadd.f32 %v5871, %v6355
      %v6646 = vadd.f32 %v5872, %v6360
      %v6647 = vadd.f32 %v5873, %v6363
      %v6648 = vadd.f32 %v5874, %v6368
      %v6649 = vadd.f32 %v5875, %v6371
      %v6650 = vadd.f32 %v5876, %v6376
      %v6651 = vadd.f32 %v5877, %v6379
      %v6652 = vadd.f32 %v5878, %v6384
      %v6653 = vadd.f32 %v5879, %v6387
      %v6654 = vadd.f32 %v5880, %v6392
      %v6655 = vadd.f32 %v5881, %v6395
      %v6656 = vadd.f32 %v5882, %v6400
      %v6657 = vadd.f32 %v5883, %v6403
      %v6658 = vadd.f32 %v5884, %v6408
      %v6659 = vadd.f32 %v5885, %v6411
      %v6660 = vadd.f32 %v5886, %v6416
      %v6661 = vadd.f32 %v5887, %v6419
      %v6662 = vadd.f32 %v5888, %v6424
      %v6663 = vadd.f32 %v5889, %v6427
      %v6664 = vadd.f32 %v5890, %v6432
      %v6665 = vadd.f32 %v5891, %v6435
      %v6666 = vadd.f32 %v5892, %v6440
      %v6667 = vadd.f32 %v5893, %v6443
      %v6668 = vadd.f32 %v5894, %v6448
      %v6669 = vadd.f32 %v5895, %v6451
      %v6670 = vadd.f32 %v5896, %v6456
      %v6671 = vadd.f32 %v5897, %v6459
      %v6672 = vadd.f32 %v5898, %v6464
      %v6673 = vadd.f32 %v5899, %v6467
      %v6674 = vadd.f32 %v5900, %v6472
      %v6675 = vadd.f32 %v5901, %v6475
      %v6676 = vadd.f32 %v5902, %v6480
      %v6677 = vadd.f32 %v5903, %v6483
      %v6678 = vadd.f32 %v5904, %v6488
      %v6679 = vadd.f32 %v5905, %v6491
      %v6680 = vadd.f32 %v5906, %v6496
      %v6681 = vadd.f32 %v5907, %v6499
      %v6682 = vadd.f32 %v5908, %v6504
      %v6683 = vadd.f32 %v5909, %v6507
      %v6684 = vadd.f32 %v5910, %v6512
      %v6685 = vadd.f32 %v5911, %v6515
      %v6686 = vadd.f32 %v5912, %v6520
      %v6687 = vadd.f32 %v5913, %v6523
      %v6688 = vadd.f32 %v5914, %v6528
      %v6689 = vadd.f32 %v5915, %v6531
      %v6690 = vadd.f32 %v5916, %v6536
      %v6691 = vadd.f32 %v5917, %v6539
      %v6692 = vadd.f32 %v5918, %v6544
      %v6693 = vadd.f32 %v5919, %v6547
      %v6694 = vadd.f32 %v5920, %v6552
      %v6695 = vadd.f32 %v5921, %v6555
      %v6696 = vadd.f32 %v5922, %v6560
      %v6697 = vadd.f32 %v5923, %v6563
      %v6698 = vadd.f32 %v5924, %v6568
      %v6699 = vadd.f32 %v5925, %v6571
      %v6700 = vadd.f32 %v5926, %v6576
      %v6701 = vadd.f32 %v5927, %v6579
      %v6702 = vadd.f32 %v5928, %v6584
      %v6703 = vadd.f32 %v5929, %v6587
      %v6704 = vadd.f32 %v5930, %v6592
      %v6705 = vadd.f32 %v5931, %v6595
      %v6706 = vadd.f32 %v5932, %v6600
      %v6707 = vadd.f32 %v5933, %v6603
      %v6708 = vadd.f32 %v5934, %v6608
      %v6709 = vadd.f32 %v5935, %v6611
      %v6710 = vld [vmem:[#allocation2 + $0x2c] sm:$0xe]
      %v6711 = vld [vmem:[#allocation2 + $0x30] sm:$0xf]
      %v6712 = vld [vmem:[#allocation2 + $0x34] sm:$0xf]
      %v6713 = vld [vmem:[#allocation2 + $0x38] sm:$0xf]
      %v6714 = vld [vmem:[#allocation2 + $0x3c] sm:$0xf]
      %v6715 = vld [vmem:[#allocation2 + $0x40] sm:$0xf]
      %v6716 = vld [vmem:[#allocation2 + $0x44] sm:$0xf]
      %v6717 = vld [vmem:[#allocation2 + $0x48] sm:$0xf]
      %v6718 = vld [vmem:[#allocation2 + $0x4c] sm:$0xf]
      %v6719 = vld [vmem:[#allocation2 + $0x50] sm:$0xf]
      %v6720 = vld [vmem:[#allocation2 + $0x54] sm:$0xf]
      %v6721 = vld [vmem:[#allocation2 + $0x58] sm:$0xf]
      %v6722 = vld [vmem:[#allocation2 + $0x5c] sm:$0xf]
      %v6723 = vld [vmem:[#allocation2 + $0x60] sm:$0xf]
      %v6724 = vld [vmem:[#allocation2 + $0x64] sm:$0xf]
      %v6725 = vld [vmem:[#allocation2 + $0x68] sm:$0xf]
      %v6726 = vld [vmem:[#allocation2 + $0x6c] sm:$0xf]
      %v6727 = vld [vmem:[#allocation2 + $0x70] sm:$0xf]
      %v6728 = vld [vmem:[#allocation2 + $0x74] sm:$0xf]
      %v6729 = vld [vmem:[#allocation2 + $0x78] sm:$0xf]
      %v6730 = vld [vmem:[#allocation2 + $0x7c] sm:$0xf]
      %v6731 = vld [vmem:[#allocation2 + $0x80] sm:$0xf]
      %v6732 = vld [vmem:[#allocation2 + $0x84] sm:$0xf]
      %v6733 = vld [vmem:[#allocation2 + $0x88] sm:$0xf]
      %v6734 = vld [vmem:[#allocation2 + $0x8c] sm:$0xf]
      %v6735 = vld [vmem:[#allocation2 + $0x90] sm:$0xf]
      %v6736 = vld [vmem:[#allocation2 + $0x94] sm:$0xf]
      %v6737 = vld [vmem:[#allocation2 + $0x98] sm:$0xf]
      %v6738 = vld [vmem:[#allocation2 + $0x9c] sm:$0xf]
      %v6739 = vld [vmem:[#allocation2 + $0xa0] sm:$0xf]
      %v6740 = vld [vmem:[#allocation2 + $0xa4] sm:$0xf]
      %v6741 = vld [vmem:[#allocation2 + $0xa8] sm:$0xf]
      %v6742 = vld [vmem:[#allocation2 + $0xac] sm:$0xf]
      %v6743 = vld [vmem:[#allocation2 + $0xb0] sm:$0xf]
      %v6744 = vld [vmem:[#allocation2 + $0xb4] sm:$0xf]
      %v6745 = vld [vmem:[#allocation2 + $0xb8] sm:$0xf]
      %v6746 = vld [vmem:[#allocation2 + $0xbc] sm:$0xf]
      %v6747 = vld [vmem:[#allocation2 + $0xc0] sm:$0xf]
      %v6748 = vld [vmem:[#allocation2 + $0xc4] sm:$0xf]
      %v6749 = vld [vmem:[#allocation2 + $0xc8] sm:$0xf]
      %v6750 = vld [vmem:[#allocation2 + $0xcc] sm:$0xf]
      %v6751 = vld [vmem:[#allocation2 + $0xd0] sm:$0xf]
      %v6752 = vld [vmem:[#allocation2 + $0xd4] sm:$0xf]
      %v6753 = vld [vmem:[#allocation2 + $0xd8] sm:$0xf]
      %v6754 = vld [vmem:[#allocation2 + $0xdc] sm:$0xf]
      %v6755 = vld [vmem:[#allocation2 + $0xe0] sm:$0xf]
      %v6756 = vld [vmem:[#allocation2 + $0xe4] sm:$0xf]
      %v6757 = vld [vmem:[#allocation2 + $0xe8] sm:$0xf]
      %v6758 = vld [vmem:[#allocation2 + $0xec] sm:$0xf]
      %v6759 = vld [vmem:[#allocation2 + $0xf0] sm:$0xf]
      %v6760 = vld [vmem:[#allocation2 + $0xf4] sm:$0xf]
      %v6761 = vld [vmem:[#allocation2 + $0xf8] sm:$0xf]
      %v6762 = vld [vmem:[#allocation2 + $0xfc] sm:$0xf]
      %v6763 = vld [vmem:[#allocation2 + $0x100] sm:$0xf]
      %v6764 = vld [vmem:[#allocation2 + $0x104] sm:$0xf]
      %v6765 = vld [vmem:[#allocation2 + $0x108] sm:$0xf]
      %v6766 = vld [vmem:[#allocation2 + $0x10c] sm:$0xf]
      %v6767 = vld [vmem:[#allocation2 + $0x110] sm:$0xf]
      %v6768 = vld [vmem:[#allocation2 + $0x114] sm:$0xf]
      %v6769 = vld [vmem:[#allocation2 + $0x118] sm:$0xf]
      %v6770 = vld [vmem:[#allocation2 + $0x11c] sm:$0xf]
      %v6771 = vld [vmem:[#allocation2 + $0x120] sm:$0xf]
      %v6772 = vld [vmem:[#allocation2 + $0x124] sm:$0xf]
      %v6773 = vld [vmem:[#allocation2 + $0x128] sm:$0xf]
      %v6774 = vld [vmem:[#allocation2 + $0x12c] sm:$0xf]
      %v6775 = vld [vmem:[#allocation2 + $0x130] sm:$0xf]
      %v6776 = vld [vmem:[#allocation2 + $0x134] sm:$0xf]
      %v6777 = vld [vmem:[#allocation2 + $0x138] sm:$0xf]
      %v6778 = vld [vmem:[#allocation2 + $0x13c] sm:$0xf]
      %v6779 = vld [vmem:[#allocation2 + $0x140] sm:$0xf]
      %v6780 = vld [vmem:[#allocation2 + $0x144] sm:$0xf]
      %v6781 = vld [vmem:[#allocation2 + $0x148] sm:$0xf]
      %v6782 = vld [vmem:[#allocation2 + $0x14c] sm:$0xf]
      %v6783 = vld [vmem:[#allocation2 + $0x150] sm:$0xf]
      %v6784 = vld [vmem:[#allocation2 + $0x154] sm:$0xf]
      %v6785 = vld [vmem:[#allocation2 + $0x158] sm:$0xf]
      %v6786 = vld [vmem:[#allocation2 + $0x15c] sm:$0xf]
      %v6787 = vld [vmem:[#allocation2 + $0x160] sm:$0xf]
      %v6788 = vld [vmem:[#allocation2 + $0x164] sm:$0xf]
      %v6789 = vld [vmem:[#allocation2 + $0x168] sm:$0xf]
      %v6790 = vld [vmem:[#allocation2 + $0x16c] sm:$0xf]
      %v6791 = vld [vmem:[#allocation2 + $0x170] sm:$0xf]
      %v6792 = vld [vmem:[#allocation2 + $0x174] sm:$0xf]
      %v6793 = vld [vmem:[#allocation2 + $0x178] sm:$0xf]
      %v6794 = vld [vmem:[#allocation2 + $0x17c] sm:$0xf]
      %v6795 = vld [vmem:[#allocation2 + $0x180] sm:$0xf]
      %v6796 = vld [vmem:[#allocation2 + $0x184] sm:$0xf]
      %v6797 = vld [vmem:[#allocation2 + $0x188] sm:$0xf]
      %v6798 = vld [vmem:[#allocation2 + $0x18c] sm:$0xf]
      %v6799 = vld [vmem:[#allocation2 + $0x190] sm:$0xf]
      %v6800 = vld [vmem:[#allocation2 + $0x194] sm:$0xf]
      %v6801 = vld [vmem:[#allocation2 + $0x198] sm:$0xf]
      %v6802 = vld [vmem:[#allocation2 + $0x19c] sm:$0xf]
      %v6803 = vld [vmem:[#allocation2 + $0x1a0] sm:$0xf]
      %v6804 = vld [vmem:[#allocation2 + $0x1a4] sm:$0xf]
      %v6805 = vld [vmem:[#allocation2 + $0x1a8] sm:$0xf]
      %v6806 = vld [vmem:[#allocation2 + $0x1ac] sm:$0x1]
      %v6807 = vld [vmem:[%s3 + $0x60] sm:$0xf]
      %v6808 = vld [vmem:[%s3 + $0x64] sm:$0xf]
      %v6809 = vld [vmem:[%s3 + $0x68] sm:$0xf]
      %v6810 = vld [vmem:[%s3 + $0x6c] sm:$0xf]
      %v6908 = vunpack.c.l.b16 %v6710
      %v6909 = vunpack.c.l.b16 %v6711
      %v6910 = vunpack.c.l.b16 %v6712
      %v6911 = vunpack.c.l.b16 %v6713
      %v6912 = vunpack.c.l.b16 %v6714
      %v6913 = vunpack.c.l.b16 %v6715
      %v6914 = vunpack.c.l.b16 %v6716
      %v6915 = vunpack.c.l.b16 %v6717
      %v6916 = vunpack.c.l.b16 %v6718
      %v6917 = vunpack.c.l.b16 %v6719
      %v6918 = vunpack.c.l.b16 %v6720
      %v6919 = vunpack.c.l.b16 %v6721
      %v6920 = vunpack.c.l.b16 %v6722
      %v6921 = vunpack.c.l.b16 %v6723
      %v6922 = vunpack.c.l.b16 %v6724
      %v6923 = vunpack.c.l.b16 %v6725
      %v6924 = vunpack.c.l.b16 %v6726
      %v6925 = vunpack.c.l.b16 %v6727
      %v6926 = vunpack.c.l.b16 %v6728
      %v6927 = vunpack.c.l.b16 %v6729
      %v6928 = vunpack.c.l.b16 %v6730
      %v6929 = vunpack.c.l.b16 %v6731
      %v6930 = vunpack.c.l.b16 %v6732
      %v6931 = vunpack.c.l.b16 %v6733
      %v6932 = vunpack.c.l.b16 %v6734
      %v6933 = vunpack.c.l.b16 %v6735
      %v6934 = vunpack.c.l.b16 %v6736
      %v6935 = vunpack.c.l.b16 %v6737
      %v6936 = vunpack.c.l.b16 %v6738
      %v6937 = vunpack.c.l.b16 %v6739
      %v6938 = vunpack.c.l.b16 %v6740
      %v6939 = vunpack.c.l.b16 %v6741
      %v6940 = vunpack.c.l.b16 %v6742
      %v6941 = vunpack.c.l.b16 %v6743
      %v6942 = vunpack.c.l.b16 %v6744
      %v6943 = vunpack.c.l.b16 %v6745
      %v6944 = vunpack.c.l.b16 %v6746
      %v6945 = vunpack.c.l.b16 %v6747
      %v6946 = vunpack.c.l.b16 %v6748
      %v6947 = vunpack.c.l.b16 %v6749
      %v6948 = vunpack.c.l.b16 %v6750
      %v6949 = vunpack.c.l.b16 %v6751
      %v6950 = vunpack.c.l.b16 %v6752
      %v6951 = vunpack.c.l.b16 %v6753
      %v6952 = vunpack.c.l.b16 %v6754
      %v6953 = vunpack.c.l.b16 %v6755
      %v6954 = vunpack.c.l.b16 %v6756
      %v6955 = vunpack.c.l.b16 %v6757
      %v6956 = vunpack.c.l.b16 %v6758
      %v6957 = vunpack.c.l.b16 %v6759
      %v6958 = vunpack.c.l.b16 %v6760
      %v6959 = vunpack.c.l.b16 %v6761
      %v6960 = vunpack.c.l.b16 %v6762
      %v6961 = vunpack.c.l.b16 %v6763
      %v6962 = vunpack.c.l.b16 %v6764
      %v6963 = vunpack.c.l.b16 %v6765
      %v6964 = vunpack.c.l.b16 %v6766
      %v6965 = vunpack.c.l.b16 %v6767
      %v6966 = vunpack.c.l.b16 %v6768
      %v6967 = vunpack.c.l.b16 %v6769
      %v6968 = vunpack.c.l.b16 %v6770
      %v6969 = vunpack.c.l.b16 %v6771
      %v6970 = vunpack.c.l.b16 %v6772
      %v6971 = vunpack.c.l.b16 %v6773
      %v6972 = vunpack.c.l.b16 %v6774
      %v6973 = vunpack.c.l.b16 %v6775
      %v6974 = vunpack.c.l.b16 %v6776
      %v6975 = vunpack.c.l.b16 %v6777
      %v6976 = vunpack.c.l.b16 %v6778
      %v6977 = vunpack.c.l.b16 %v6779
      %v6978 = vunpack.c.l.b16 %v6780
      %v6979 = vunpack.c.l.b16 %v6781
      %v6980 = vunpack.c.l.b16 %v6782
      %v6981 = vunpack.c.l.b16 %v6783
      %v6982 = vunpack.c.l.b16 %v6784
      %v6983 = vunpack.c.l.b16 %v6785
      %v6984 = vunpack.c.l.b16 %v6786
      %v6985 = vunpack.c.l.b16 %v6787
      %v6986 = vunpack.c.l.b16 %v6788
      %v6987 = vunpack.c.l.b16 %v6789
      %v6988 = vunpack.c.l.b16 %v6790
      %v6989 = vunpack.c.l.b16 %v6791
      %v6990 = vunpack.c.l.b16 %v6792
      %v6991 = vunpack.c.l.b16 %v6793
      %v6992 = vunpack.c.l.b16 %v6794
      %v6993 = vunpack.c.l.b16 %v6795
      %v6994 = vunpack.c.l.b16 %v6796
      %v6995 = vunpack.c.l.b16 %v6797
      %v6996 = vunpack.c.l.b16 %v6798
      %v6997 = vunpack.c.l.b16 %v6799
      %v6998 = vunpack.c.l.b16 %v6800
      %v6999 = vunpack.c.l.b16 %v6801
      %v7000 = vunpack.c.l.b16 %v6802
      %v7001 = vunpack.c.l.b16 %v6803
      %v7002 = vunpack.c.l.b16 %v6804
      %v7003 = vunpack.c.l.b16 %v6805
      %v7004 = vunpack.c.l.b16 %v6806
      %v7005 = vpack.c.b16 %v6909, %v6908
      %v7006 = vpack.c.b16 %v6911, %v6910
      %v7007 = vpack.c.b16 %v6913, %v6912
      %v7008 = vpack.c.b16 %v6915, %v6914
      %v7009 = vpack.c.b16 %v6917, %v6916
      %v7010 = vpack.c.b16 %v6919, %v6918
      %v7011 = vpack.c.b16 %v6921, %v6920
      %v7012 = vpack.c.b16 %v6923, %v6922
      %v7013 = vpack.c.b16 %v6925, %v6924
      %v7014 = vpack.c.b16 %v6927, %v6926
      %v7015 = vpack.c.b16 %v6929, %v6928
      %v7016 = vpack.c.b16 %v6931, %v6930
      %v7017 = vpack.c.b16 %v6933, %v6932
      %v7018 = vpack.c.b16 %v6935, %v6934
      %v7019 = vpack.c.b16 %v6937, %v6936
      %v7020 = vpack.c.b16 %v6939, %v6938
      %v7021 = vpack.c.b16 %v6941, %v6940
      %v7022 = vpack.c.b16 %v6943, %v6942
      %v7023 = vpack.c.b16 %v6945, %v6944
      %v7024 = vpack.c.b16 %v6947, %v6946
      %v7025 = vpack.c.b16 %v6949, %v6948
      %v7026 = vpack.c.b16 %v6951, %v6950
      %v7027 = vpack.c.b16 %v6953, %v6952
      %v7028 = vpack.c.b16 %v6955, %v6954
      %v7029 = vpack.c.b16 %v6957, %v6956
      %v7030 = vpack.c.b16 %v6959, %v6958
      %v7031 = vpack.c.b16 %v6961, %v6960
      %v7032 = vpack.c.b16 %v6963, %v6962
      %v7033 = vpack.c.b16 %v6965, %v6964
      %v7034 = vpack.c.b16 %v6967, %v6966
      %v7035 = vpack.c.b16 %v6969, %v6968
      %v7036 = vpack.c.b16 %v6971, %v6970
      %v7037 = vpack.c.b16 %v6973, %v6972
      %v7038 = vpack.c.b16 %v6975, %v6974
      %v7039 = vpack.c.b16 %v6977, %v6976
      %v7040 = vpack.c.b16 %v6979, %v6978
      %v7041 = vpack.c.b16 %v6981, %v6980
      %v7042 = vpack.c.b16 %v6983, %v6982
      %v7043 = vpack.c.b16 %v6985, %v6984
      %v7044 = vpack.c.b16 %v6987, %v6986
      %v7045 = vpack.c.b16 %v6989, %v6988
      %v7046 = vpack.c.b16 %v6991, %v6990
      %v7047 = vpack.c.b16 %v6993, %v6992
      %v7048 = vpack.c.b16 %v6995, %v6994
      %v7049 = vpack.c.b16 %v6997, %v6996
      %v7050 = vpack.c.b16 %v6999, %v6998
      %v7051 = vpack.c.b16 %v7001, %v7000
      %v7052 = vpack.c.b16 %v7003, %v7002
      %v7053 = vpack.c.b16 %v7004, %v7004
      %v7054 = vrot.slane %v7005, 1
      %v7055 = vrot.slane %v7006, 1
      %v7056 = vsel %vm3768, %v7054, %v7055
      %v7057 = vrot.slane %v7007, 1
      %v7058 = vsel %vm3768, %v7055, %v7057
      %v7059 = vrot.slane %v7008, 1
      %v7060 = vsel %vm3768, %v7057, %v7059
      %v7061 = vrot.slane %v7009, 1
      %v7062 = vsel %vm3768, %v7059, %v7061
      %v7063 = vrot.slane %v7010, 1
      %v7064 = vsel %vm3768, %v7061, %v7063
      %v7065 = vrot.slane %v7011, 1
      %v7066 = vsel %vm3768, %v7063, %v7065
      %v7067 = vrot.slane %v7012, 1
      %v7068 = vsel %vm3768, %v7065, %v7067
      %v7069 = vrot.slane %v7013, 1
      %v7070 = vsel %vm3768, %v7067, %v7069
      %v7071 = vrot.slane %v7014, 1
      %v7072 = vsel %vm3768, %v7069, %v7071
      %v7073 = vrot.slane %v7015, 1
      %v7074 = vsel %vm3768, %v7071, %v7073
      %v7075 = vrot.slane %v7016, 1
      %v7076 = vsel %vm3768, %v7073, %v7075
      %v7077 = vrot.slane %v7017, 1
      %v7078 = vsel %vm3768, %v7075, %v7077
      %v7079 = vrot.slane %v7018, 1
      %v7080 = vsel %vm3768, %v7077, %v7079
      %v7081 = vrot.slane %v7019, 1
      %v7082 = vsel %vm3768, %v7079, %v7081
      %v7083 = vrot.slane %v7020, 1
      %v7084 = vsel %vm3768, %v7081, %v7083
      %v7085 = vrot.slane %v7021, 1
      %v7086 = vsel %vm3768, %v7083, %v7085
      %v7087 = vrot.slane %v7022, 1
      %v7088 = vsel %vm3768, %v7085, %v7087
      %v7089 = vrot.slane %v7023, 1
      %v7090 = vsel %vm3768, %v7087, %v7089
      %v7091 = vrot.slane %v7024, 1
      %v7092 = vsel %vm3768, %v7089, %v7091
      %v7093 = vrot.slane %v7025, 1
      %v7094 = vsel %vm3768, %v7091, %v7093
      %v7095 = vrot.slane %v7026, 1
      %v7096 = vsel %vm3768, %v7093, %v7095
      %v7097 = vrot.slane %v7027, 1
      %v7098 = vsel %vm3768, %v7095, %v7097
      %v7099 = vrot.slane %v7028, 1
      %v7100 = vsel %vm3768, %v7097, %v7099
      %v7101 = vrot.slane %v7029, 1
      %v7102 = vsel %vm3768, %v7099, %v7101
      %v7103 = vrot.slane %v7030, 1
      %v7104 = vsel %vm3768, %v7101, %v7103
      %v7105 = vrot.slane %v7031, 1
      %v7106 = vsel %vm3768, %v7103, %v7105
      %v7107 = vrot.slane %v7032, 1
      %v7108 = vsel %vm3768, %v7105, %v7107
      %v7109 = vrot.slane %v7033, 1
      %v7110 = vsel %vm3768, %v7107, %v7109
      %v7111 = vrot.slane %v7034, 1
      %v7112 = vsel %vm3768, %v7109, %v7111
      %v7113 = vrot.slane %v7035, 1
      %v7114 = vsel %vm3768, %v7111, %v7113
      %v7115 = vrot.slane %v7036, 1
      %v7116 = vsel %vm3768, %v7113, %v7115
      %v7117 = vrot.slane %v7037, 1
      %v7118 = vsel %vm3768, %v7115, %v7117
      %v7119 = vrot.slane %v7038, 1
      %v7120 = vsel %vm3768, %v7117, %v7119
      %v7121 = vrot.slane %v7039, 1
      %v7122 = vsel %vm3768, %v7119, %v7121
      %v7123 = vrot.slane %v7040, 1
      %v7124 = vsel %vm3768, %v7121, %v7123
      %v7125 = vrot.slane %v7041, 1
      %v7126 = vsel %vm3768, %v7123, %v7125
      %v7127 = vrot.slane %v7042, 1
      %v7128 = vsel %vm3768, %v7125, %v7127
      %v7129 = vrot.slane %v7043, 1
      %v7130 = vsel %vm3768, %v7127, %v7129
      %v7131 = vrot.slane %v7044, 1
      %v7132 = vsel %vm3768, %v7129, %v7131
      %v7133 = vrot.slane %v7045, 1
      %v7134 = vsel %vm3768, %v7131, %v7133
      %v7135 = vrot.slane %v7046, 1
      %v7136 = vsel %vm3768, %v7133, %v7135
      %v7137 = vrot.slane %v7047, 1
      %v7138 = vsel %vm3768, %v7135, %v7137
      %v7139 = vrot.slane %v7048, 1
      %v7140 = vsel %vm3768, %v7137, %v7139
      %v7141 = vrot.slane %v7049, 1
      %v7142 = vsel %vm3768, %v7139, %v7141
      %v7143 = vrot.slane %v7050, 1
      %v7144 = vsel %vm3768, %v7141, %v7143
      %v7145 = vrot.slane %v7051, 1
      %v7146 = vsel %vm3768, %v7143, %v7145
      %v7147 = vrot.slane %v7052, 1
      %v7148 = vsel %vm3768, %v7145, %v7147
      %v7149 = vrot.slane %v7053, 1
      %v7150 = vsel %vm3768, %v7147, %v7149
      %v7155 = vunpack.c.l.b16 %v6807
      %v7156 = vunpack.c.l.b16 %v6808
      %v7157 = vunpack.c.l.b16 %v6809
      %v7158 = vunpack.c.l.b16 %v6810
      %v7159 = vpack.c.b16 %v7156, %v7155
      %v7160 = vpack.c.b16 %v7158, %v7157
      %v7164 = vsel %vm1272, %v7056, 0
      %v7167 = vsel %vm1272, %v7058, 0
      %v7170 = vsel %vm1272, %v7060, 0
      %v7173 = vsel %vm1272, %v7062, 0
      %v7176 = vsel %vm1272, %v7064, 0
      %v7179 = vsel %vm1272, %v7066, 0
      %v7182 = vsel %vm1272, %v7068, 0
      %v7185 = vsel %vm1272, %v7070, 0
      %v7188 = vsel %vm1272, %v7072, 0
      %v7191 = vsel %vm1272, %v7074, 0
      %v7194 = vsel %vm1272, %v7076, 0
      %v7197 = vsel %vm1272, %v7078, 0
      %v7200 = vsel %vm1272, %v7080, 0
      %v7203 = vsel %vm1272, %v7082, 0
      %v7206 = vsel %vm1272, %v7084, 0
      %v7209 = vsel %vm1272, %v7086, 0
      %v7212 = vsel %vm1272, %v7088, 0
      %v7215 = vsel %vm1272, %v7090, 0
      %v7218 = vsel %vm1272, %v7092, 0
      %v7221 = vsel %vm1272, %v7094, 0
      %v7224 = vsel %vm1272, %v7096, 0
      %v7227 = vsel %vm1272, %v7098, 0
      %v7230 = vsel %vm1272, %v7100, 0
      %v7233 = vsel %vm1272, %v7102, 0
      %v7236 = vsel %vm1272, %v7104, 0
      %v7239 = vsel %vm1272, %v7106, 0
      %v7242 = vsel %vm1272, %v7108, 0
      %v7245 = vsel %vm1272, %v7110, 0
      %v7248 = vsel %vm1272, %v7112, 0
      %v7251 = vsel %vm1272, %v7114, 0
      %v7254 = vsel %vm1272, %v7116, 0
      %v7257 = vsel %vm1272, %v7118, 0
      %v7260 = vsel %vm1272, %v7120, 0
      %v7263 = vsel %vm1272, %v7122, 0
      %v7266 = vsel %vm1272, %v7124, 0
      %v7269 = vsel %vm1272, %v7126, 0
      %v7272 = vsel %vm1272, %v7128, 0
      %v7275 = vsel %vm1272, %v7130, 0
      %v7278 = vsel %vm1272, %v7132, 0
      %v7281 = vsel %vm1272, %v7134, 0
      %v7284 = vsel %vm1272, %v7136, 0
      %v7287 = vsel %vm1272, %v7138, 0
      %v7290 = vsel %vm1272, %v7140, 0
      %v7293 = vsel %vm1272, %v7142, 0
      %v7296 = vsel %vm1272, %v7144, 0
      %v7299 = vsel %vm1272, %v7146, 0
      %v7302 = vsel %vm1272, %v7148, 0
      %v7305 = vsel %vm1272, %v7150, 0
      %7307 = vmatprep.subr.bf16.mxu0 0
      %7308 = vmatpush1.bf16.msra.mxu0 0
      %7309 = vmatprep.subr.bf16.mxu0 0
      %7310 = vmatpush1.bf16.msra.mxu0 0
      %7311 = vmatprep.subr.bf16.mxu0 0
      %7312 = vmatpush1.bf16.msra.mxu0 0
      %7313 = vmatprep.subr.bf16.mxu0 0
      %7314 = vmatpush1.bf16.msra.mxu0 0
      %7315 = vmatprep.subr.bf16.mxu0 0
      %7316 = vmatpush1.bf16.msra.mxu0 0
      %7317 = vmatprep.subr.bf16.mxu0 0
      %7318 = vmatpush1.bf16.msra.mxu0 0
      %7319 = vmatprep.subr.bf16.mxu0 0
      %7320 = vmatpush1.bf16.msra.mxu0 %v7160
      %7321 = vmatprep.subr.bf16.mxu0 0
      %7322 = vmatpush1.bf16.msra.mxu0 %v7159
      %7323 = vmatprep.subr.bf16.mxu0 0
      %7324 = vmatpush2.bf16.msra.mxu0 0
      %7325 = vmatprep.subr.bf16.mxu0 0
      %7326 = vmatpush2.bf16.msra.mxu0 0
      %7327 = vmatprep.subr.bf16.mxu0 0
      %7328 = vmatpush2.bf16.msra.mxu0 0
      %7329 = vmatprep.subr.bf16.mxu0 0
      %7330 = vmatpush2.bf16.msra.mxu0 0
      %7331 = vmatprep.subr.bf16.mxu0 0
      %7332 = vmatpush2.bf16.msra.mxu0 0
      %7333 = vmatprep.subr.bf16.mxu0 0
      %7334 = vmatpush2.bf16.msra.mxu0 0
      %7335 = vmatprep.subr.bf16.mxu0 0
      %7336 = vmatpush2.bf16.msra.mxu0 0
      %7337 = vmatprep.subr.bf16.mxu0 0
      %7338 = vmatpush2.bf16.msra.mxu0 0
      %7339 = vmatprep.mubr.bf16.mxu0 0
      %7340 = vmatmul.mubr.bf16.gmra.mxu0 %v7164
      %v7341 = vpop.f32.mrf.mxu0
      %v7342 = vadd.f32 0.0, %v7341
      %v7343 = vpop.f32.mrf.mxu0
      %v7344 = vpop.f32.mrf.mxu0
      %v7345 = vadd.f32 0.0, %v7344
      %v7346 = vpop.f32.mrf.mxu0
      %7347 = vmatprep.mubr.bf16.mxu0 0
      %7348 = vmatmul.mubr.bf16.gmra.mxu0 %v7167
      %v7349 = vpop.f32.mrf.mxu0
      %v7350 = vadd.f32 0.0, %v7349
      %v7351 = vpop.f32.mrf.mxu0
      %v7352 = vpop.f32.mrf.mxu0
      %v7353 = vadd.f32 0.0, %v7352
      %v7354 = vpop.f32.mrf.mxu0
      %7355 = vmatprep.mubr.bf16.mxu0 0
      %7356 = vmatmul.mubr.bf16.gmra.mxu0 %v7170
      %v7357 = vpop.f32.mrf.mxu0
      %v7358 = vadd.f32 0.0, %v7357
      %v7359 = vpop.f32.mrf.mxu0
      %v7360 = vpop.f32.mrf.mxu0
      %v7361 = vadd.f32 0.0, %v7360
      %v7362 = vpop.f32.mrf.mxu0
      %7363 = vmatprep.mubr.bf16.mxu0 0
      %7364 = vmatmul.mubr.bf16.gmra.mxu0 %v7173
      %v7365 = vpop.f32.mrf.mxu0
      %v7366 = vadd.f32 0.0, %v7365
      %v7367 = vpop.f32.mrf.mxu0
      %v7368 = vpop.f32.mrf.mxu0
      %v7369 = vadd.f32 0.0, %v7368
      %v7370 = vpop.f32.mrf.mxu0
      %7371 = vmatprep.mubr.bf16.mxu0 0
      %7372 = vmatmul.mubr.bf16.gmra.mxu0 %v7176
      %v7373 = vpop.f32.mrf.mxu0
      %v7374 = vadd.f32 0.0, %v7373
      %v7375 = vpop.f32.mrf.mxu0
      %v7376 = vpop.f32.mrf.mxu0
      %v7377 = vadd.f32 0.0, %v7376
      %v7378 = vpop.f32.mrf.mxu0
      %7379 = vmatprep.mubr.bf16.mxu0 0
      %7380 = vmatmul.mubr.bf16.gmra.mxu0 %v7179
      %v7381 = vpop.f32.mrf.mxu0
      %v7382 = vadd.f32 0.0, %v7381
      %v7383 = vpop.f32.mrf.mxu0
      %v7384 = vpop.f32.mrf.mxu0
      %v7385 = vadd.f32 0.0, %v7384
      %v7386 = vpop.f32.mrf.mxu0
      %7387 = vmatprep.mubr.bf16.mxu0 0
      %7388 = vmatmul.mubr.bf16.gmra.mxu0 %v7182
      %v7389 = vpop.f32.mrf.mxu0
      %v7390 = vadd.f32 0.0, %v7389
      %v7391 = vpop.f32.mrf.mxu0
      %v7392 = vpop.f32.mrf.mxu0
      %v7393 = vadd.f32 0.0, %v7392
      %v7394 = vpop.f32.mrf.mxu0
      %7395 = vmatprep.mubr.bf16.mxu0 0
      %7396 = vmatmul.mubr.bf16.gmra.mxu0 %v7185
      %v7397 = vpop.f32.mrf.mxu0
      %v7398 = vadd.f32 0.0, %v7397
      %v7399 = vpop.f32.mrf.mxu0
      %v7400 = vpop.f32.mrf.mxu0
      %v7401 = vadd.f32 0.0, %v7400
      %v7402 = vpop.f32.mrf.mxu0
      %7403 = vmatprep.mubr.bf16.mxu0 0
      %7404 = vmatmul.mubr.bf16.gmra.mxu0 %v7188
      %v7405 = vpop.f32.mrf.mxu0
      %v7406 = vadd.f32 0.0, %v7405
      %v7407 = vpop.f32.mrf.mxu0
      %v7408 = vpop.f32.mrf.mxu0
      %v7409 = vadd.f32 0.0, %v7408
      %v7410 = vpop.f32.mrf.mxu0
      %7411 = vmatprep.mubr.bf16.mxu0 0
      %7412 = vmatmul.mubr.bf16.gmra.mxu0 %v7191
      %v7413 = vpop.f32.mrf.mxu0
      %v7414 = vadd.f32 0.0, %v7413
      %v7415 = vpop.f32.mrf.mxu0
      %v7416 = vpop.f32.mrf.mxu0
      %v7417 = vadd.f32 0.0, %v7416
      %v7418 = vpop.f32.mrf.mxu0
      %7419 = vmatprep.mubr.bf16.mxu0 0
      %7420 = vmatmul.mubr.bf16.gmra.mxu0 %v7194
      %v7421 = vpop.f32.mrf.mxu0
      %v7422 = vadd.f32 0.0, %v7421
      %v7423 = vpop.f32.mrf.mxu0
      %v7424 = vpop.f32.mrf.mxu0
      %v7425 = vadd.f32 0.0, %v7424
      %v7426 = vpop.f32.mrf.mxu0
      %7427 = vmatprep.mubr.bf16.mxu0 0
      %7428 = vmatmul.mubr.bf16.gmra.mxu0 %v7197
      %v7429 = vpop.f32.mrf.mxu0
      %v7430 = vadd.f32 0.0, %v7429
      %v7431 = vpop.f32.mrf.mxu0
      %v7432 = vpop.f32.mrf.mxu0
      %v7433 = vadd.f32 0.0, %v7432
      %v7434 = vpop.f32.mrf.mxu0
      %7435 = vmatprep.mubr.bf16.mxu0 0
      %7436 = vmatmul.mubr.bf16.gmra.mxu0 %v7200
      %v7437 = vpop.f32.mrf.mxu0
      %v7438 = vadd.f32 0.0, %v7437
      %v7439 = vpop.f32.mrf.mxu0
      %v7440 = vpop.f32.mrf.mxu0
      %v7441 = vadd.f32 0.0, %v7440
      %v7442 = vpop.f32.mrf.mxu0
      %7443 = vmatprep.mubr.bf16.mxu0 0
      %7444 = vmatmul.mubr.bf16.gmra.mxu0 %v7203
      %v7445 = vpop.f32.mrf.mxu0
      %v7446 = vadd.f32 0.0, %v7445
      %v7447 = vpop.f32.mrf.mxu0
      %v7448 = vpop.f32.mrf.mxu0
      %v7449 = vadd.f32 0.0, %v7448
      %v7450 = vpop.f32.mrf.mxu0
      %7451 = vmatprep.mubr.bf16.mxu0 0
      %7452 = vmatmul.mubr.bf16.gmra.mxu0 %v7206
      %v7453 = vpop.f32.mrf.mxu0
      %v7454 = vadd.f32 0.0, %v7453
      %v7455 = vpop.f32.mrf.mxu0
      %v7456 = vpop.f32.mrf.mxu0
      %v7457 = vadd.f32 0.0, %v7456
      %v7458 = vpop.f32.mrf.mxu0
      %7459 = vmatprep.mubr.bf16.mxu0 0
      %7460 = vmatmul.mubr.bf16.gmra.mxu0 %v7209
      %v7461 = vpop.f32.mrf.mxu0
      %v7462 = vadd.f32 0.0, %v7461
      %v7463 = vpop.f32.mrf.mxu0
      %v7464 = vpop.f32.mrf.mxu0
      %v7465 = vadd.f32 0.0, %v7464
      %v7466 = vpop.f32.mrf.mxu0
      %7467 = vmatprep.mubr.bf16.mxu0 0
      %7468 = vmatmul.mubr.bf16.gmra.mxu0 %v7212
      %v7469 = vpop.f32.mrf.mxu0
      %v7470 = vadd.f32 0.0, %v7469
      %v7471 = vpop.f32.mrf.mxu0
      %v7472 = vpop.f32.mrf.mxu0
      %v7473 = vadd.f32 0.0, %v7472
      %v7474 = vpop.f32.mrf.mxu0
      %7475 = vmatprep.mubr.bf16.mxu0 0
      %7476 = vmatmul.mubr.bf16.gmra.mxu0 %v7215
      %v7477 = vpop.f32.mrf.mxu0
      %v7478 = vadd.f32 0.0, %v7477
      %v7479 = vpop.f32.mrf.mxu0
      %v7480 = vpop.f32.mrf.mxu0
      %v7481 = vadd.f32 0.0, %v7480
      %v7482 = vpop.f32.mrf.mxu0
      %7483 = vmatprep.mubr.bf16.mxu0 0
      %7484 = vmatmul.mubr.bf16.gmra.mxu0 %v7218
      %v7485 = vpop.f32.mrf.mxu0
      %v7486 = vadd.f32 0.0, %v7485
      %v7487 = vpop.f32.mrf.mxu0
      %v7488 = vpop.f32.mrf.mxu0
      %v7489 = vadd.f32 0.0, %v7488
      %v7490 = vpop.f32.mrf.mxu0
      %7491 = vmatprep.mubr.bf16.mxu0 0
      %7492 = vmatmul.mubr.bf16.gmra.mxu0 %v7221
      %v7493 = vpop.f32.mrf.mxu0
      %v7494 = vadd.f32 0.0, %v7493
      %v7495 = vpop.f32.mrf.mxu0
      %v7496 = vpop.f32.mrf.mxu0
      %v7497 = vadd.f32 0.0, %v7496
      %v7498 = vpop.f32.mrf.mxu0
      %7499 = vmatprep.mubr.bf16.mxu0 0
      %7500 = vmatmul.mubr.bf16.gmra.mxu0 %v7224
      %v7501 = vpop.f32.mrf.mxu0
      %v7502 = vadd.f32 0.0, %v7501
      %v7503 = vpop.f32.mrf.mxu0
      %v7504 = vpop.f32.mrf.mxu0
      %v7505 = vadd.f32 0.0, %v7504
      %v7506 = vpop.f32.mrf.mxu0
      %7507 = vmatprep.mubr.bf16.mxu0 0
      %7508 = vmatmul.mubr.bf16.gmra.mxu0 %v7227
      %v7509 = vpop.f32.mrf.mxu0
      %v7510 = vadd.f32 0.0, %v7509
      %v7511 = vpop.f32.mrf.mxu0
      %v7512 = vpop.f32.mrf.mxu0
      %v7513 = vadd.f32 0.0, %v7512
      %v7514 = vpop.f32.mrf.mxu0
      %7515 = vmatprep.mubr.bf16.mxu0 0
      %7516 = vmatmul.mubr.bf16.gmra.mxu0 %v7230
      %v7517 = vpop.f32.mrf.mxu0
      %v7518 = vadd.f32 0.0, %v7517
      %v7519 = vpop.f32.mrf.mxu0
      %v7520 = vpop.f32.mrf.mxu0
      %v7521 = vadd.f32 0.0, %v7520
      %v7522 = vpop.f32.mrf.mxu0
      %7523 = vmatprep.mubr.bf16.mxu0 0
      %7524 = vmatmul.mubr.bf16.gmra.mxu0 %v7233
      %v7525 = vpop.f32.mrf.mxu0
      %v7526 = vadd.f32 0.0, %v7525
      %v7527 = vpop.f32.mrf.mxu0
      %v7528 = vpop.f32.mrf.mxu0
      %v7529 = vadd.f32 0.0, %v7528
      %v7530 = vpop.f32.mrf.mxu0
      %7531 = vmatprep.mubr.bf16.mxu0 0
      %7532 = vmatmul.mubr.bf16.gmra.mxu0 %v7236
      %v7533 = vpop.f32.mrf.mxu0
      %v7534 = vadd.f32 0.0, %v7533
      %v7535 = vpop.f32.mrf.mxu0
      %v7536 = vpop.f32.mrf.mxu0
      %v7537 = vadd.f32 0.0, %v7536
      %v7538 = vpop.f32.mrf.mxu0
      %7539 = vmatprep.mubr.bf16.mxu0 0
      %7540 = vmatmul.mubr.bf16.gmra.mxu0 %v7239
      %v7541 = vpop.f32.mrf.mxu0
      %v7542 = vadd.f32 0.0, %v7541
      %v7543 = vpop.f32.mrf.mxu0
      %v7544 = vpop.f32.mrf.mxu0
      %v7545 = vadd.f32 0.0, %v7544
      %v7546 = vpop.f32.mrf.mxu0
      %7547 = vmatprep.mubr.bf16.mxu0 0
      %7548 = vmatmul.mubr.bf16.gmra.mxu0 %v7242
      %v7549 = vpop.f32.mrf.mxu0
      %v7550 = vadd.f32 0.0, %v7549
      %v7551 = vpop.f32.mrf.mxu0
      %v7552 = vpop.f32.mrf.mxu0
      %v7553 = vadd.f32 0.0, %v7552
      %v7554 = vpop.f32.mrf.mxu0
      %7555 = vmatprep.mubr.bf16.mxu0 0
      %7556 = vmatmul.mubr.bf16.gmra.mxu0 %v7245
      %v7557 = vpop.f32.mrf.mxu0
      %v7558 = vadd.f32 0.0, %v7557
      %v7559 = vpop.f32.mrf.mxu0
      %v7560 = vpop.f32.mrf.mxu0
      %v7561 = vadd.f32 0.0, %v7560
      %v7562 = vpop.f32.mrf.mxu0
      %7563 = vmatprep.mubr.bf16.mxu0 0
      %7564 = vmatmul.mubr.bf16.gmra.mxu0 %v7248
      %v7565 = vpop.f32.mrf.mxu0
      %v7566 = vadd.f32 0.0, %v7565
      %v7567 = vpop.f32.mrf.mxu0
      %v7568 = vpop.f32.mrf.mxu0
      %v7569 = vadd.f32 0.0, %v7568
      %v7570 = vpop.f32.mrf.mxu0
      %7571 = vmatprep.mubr.bf16.mxu0 0
      %7572 = vmatmul.mubr.bf16.gmra.mxu0 %v7251
      %v7573 = vpop.f32.mrf.mxu0
      %v7574 = vadd.f32 0.0, %v7573
      %v7575 = vpop.f32.mrf.mxu0
      %v7576 = vpop.f32.mrf.mxu0
      %v7577 = vadd.f32 0.0, %v7576
      %v7578 = vpop.f32.mrf.mxu0
      %7579 = vmatprep.mubr.bf16.mxu0 0
      %7580 = vmatmul.mubr.bf16.gmra.mxu0 %v7254
      %v7581 = vpop.f32.mrf.mxu0
      %v7582 = vadd.f32 0.0, %v7581
      %v7583 = vpop.f32.mrf.mxu0
      %v7584 = vpop.f32.mrf.mxu0
      %v7585 = vadd.f32 0.0, %v7584
      %v7586 = vpop.f32.mrf.mxu0
      %7587 = vmatprep.mubr.bf16.mxu0 0
      %7588 = vmatmul.mubr.bf16.gmra.mxu0 %v7257
      %v7589 = vpop.f32.mrf.mxu0
      %v7590 = vadd.f32 0.0, %v7589
      %v7591 = vpop.f32.mrf.mxu0
      %v7592 = vpop.f32.mrf.mxu0
      %v7593 = vadd.f32 0.0, %v7592
      %v7594 = vpop.f32.mrf.mxu0
      %7595 = vmatprep.mubr.bf16.mxu0 0
      %7596 = vmatmul.mubr.bf16.gmra.mxu0 %v7260
      %v7597 = vpop.f32.mrf.mxu0
      %v7598 = vadd.f32 0.0, %v7597
      %v7599 = vpop.f32.mrf.mxu0
      %v7600 = vpop.f32.mrf.mxu0
      %v7601 = vadd.f32 0.0, %v7600
      %v7602 = vpop.f32.mrf.mxu0
      %7603 = vmatprep.mubr.bf16.mxu0 0
      %7604 = vmatmul.mubr.bf16.gmra.mxu0 %v7263
      %v7605 = vpop.f32.mrf.mxu0
      %v7606 = vadd.f32 0.0, %v7605
      %v7607 = vpop.f32.mrf.mxu0
      %v7608 = vpop.f32.mrf.mxu0
      %v7609 = vadd.f32 0.0, %v7608
      %v7610 = vpop.f32.mrf.mxu0
      %7611 = vmatprep.mubr.bf16.mxu0 0
      %7612 = vmatmul.mubr.bf16.gmra.mxu0 %v7266
      %v7613 = vpop.f32.mrf.mxu0
      %v7614 = vadd.f32 0.0, %v7613
      %v7615 = vpop.f32.mrf.mxu0
      %v7616 = vpop.f32.mrf.mxu0
      %v7617 = vadd.f32 0.0, %v7616
      %v7618 = vpop.f32.mrf.mxu0
      %7619 = vmatprep.mubr.bf16.mxu0 0
      %7620 = vmatmul.mubr.bf16.gmra.mxu0 %v7269
      %v7621 = vpop.f32.mrf.mxu0
      %v7622 = vadd.f32 0.0, %v7621
      %v7623 = vpop.f32.mrf.mxu0
      %v7624 = vpop.f32.mrf.mxu0
      %v7625 = vadd.f32 0.0, %v7624
      %v7626 = vpop.f32.mrf.mxu0
      %7627 = vmatprep.mubr.bf16.mxu0 0
      %7628 = vmatmul.mubr.bf16.gmra.mxu0 %v7272
      %v7629 = vpop.f32.mrf.mxu0
      %v7630 = vadd.f32 0.0, %v7629
      %v7631 = vpop.f32.mrf.mxu0
      %v7632 = vpop.f32.mrf.mxu0
      %v7633 = vadd.f32 0.0, %v7632
      %v7634 = vpop.f32.mrf.mxu0
      %7635 = vmatprep.mubr.bf16.mxu0 0
      %7636 = vmatmul.mubr.bf16.gmra.mxu0 %v7275
      %v7637 = vpop.f32.mrf.mxu0
      %v7638 = vadd.f32 0.0, %v7637
      %v7639 = vpop.f32.mrf.mxu0
      %v7640 = vpop.f32.mrf.mxu0
      %v7641 = vadd.f32 0.0, %v7640
      %v7642 = vpop.f32.mrf.mxu0
      %7643 = vmatprep.mubr.bf16.mxu0 0
      %7644 = vmatmul.mubr.bf16.gmra.mxu0 %v7278
      %v7645 = vpop.f32.mrf.mxu0
      %v7646 = vadd.f32 0.0, %v7645
      %v7647 = vpop.f32.mrf.mxu0
      %v7648 = vpop.f32.mrf.mxu0
      %v7649 = vadd.f32 0.0, %v7648
      %v7650 = vpop.f32.mrf.mxu0
      %7651 = vmatprep.mubr.bf16.mxu0 0
      %7652 = vmatmul.mubr.bf16.gmra.mxu0 %v7281
      %v7653 = vpop.f32.mrf.mxu0
      %v7654 = vadd.f32 0.0, %v7653
      %v7655 = vpop.f32.mrf.mxu0
      %v7656 = vpop.f32.mrf.mxu0
      %v7657 = vadd.f32 0.0, %v7656
      %v7658 = vpop.f32.mrf.mxu0
      %7659 = vmatprep.mubr.bf16.mxu0 0
      %7660 = vmatmul.mubr.bf16.gmra.mxu0 %v7284
      %v7661 = vpop.f32.mrf.mxu0
      %v7662 = vadd.f32 0.0, %v7661
      %v7663 = vpop.f32.mrf.mxu0
      %v7664 = vpop.f32.mrf.mxu0
      %v7665 = vadd.f32 0.0, %v7664
      %v7666 = vpop.f32.mrf.mxu0
      %7667 = vmatprep.mubr.bf16.mxu0 0
      %7668 = vmatmul.mubr.bf16.gmra.mxu0 %v7287
      %v7669 = vpop.f32.mrf.mxu0
      %v7670 = vadd.f32 0.0, %v7669
      %v7671 = vpop.f32.mrf.mxu0
      %v7672 = vpop.f32.mrf.mxu0
      %v7673 = vadd.f32 0.0, %v7672
      %v7674 = vpop.f32.mrf.mxu0
      %7675 = vmatprep.mubr.bf16.mxu0 0
      %7676 = vmatmul.mubr.bf16.gmra.mxu0 %v7290
      %v7677 = vpop.f32.mrf.mxu0
      %v7678 = vadd.f32 0.0, %v7677
      %v7679 = vpop.f32.mrf.mxu0
      %v7680 = vpop.f32.mrf.mxu0
      %v7681 = vadd.f32 0.0, %v7680
      %v7682 = vpop.f32.mrf.mxu0
      %7683 = vmatprep.mubr.bf16.mxu0 0
      %7684 = vmatmul.mubr.bf16.gmra.mxu0 %v7293
      %v7685 = vpop.f32.mrf.mxu0
      %v7686 = vadd.f32 0.0, %v7685
      %v7687 = vpop.f32.mrf.mxu0
      %v7688 = vpop.f32.mrf.mxu0
      %v7689 = vadd.f32 0.0, %v7688
      %v7690 = vpop.f32.mrf.mxu0
      %7691 = vmatprep.mubr.bf16.mxu0 0
      %7692 = vmatmul.mubr.bf16.gmra.mxu0 %v7296
      %v7693 = vpop.f32.mrf.mxu0
      %v7694 = vadd.f32 0.0, %v7693
      %v7695 = vpop.f32.mrf.mxu0
      %v7696 = vpop.f32.mrf.mxu0
      %v7697 = vadd.f32 0.0, %v7696
      %v7698 = vpop.f32.mrf.mxu0
      %7699 = vmatprep.mubr.bf16.mxu0 0
      %7700 = vmatmul.mubr.bf16.gmra.mxu0 %v7299
      %v7701 = vpop.f32.mrf.mxu0
      %v7702 = vadd.f32 0.0, %v7701
      %v7703 = vpop.f32.mrf.mxu0
      %v7704 = vpop.f32.mrf.mxu0
      %v7705 = vadd.f32 0.0, %v7704
      %v7706 = vpop.f32.mrf.mxu0
      %7707 = vmatprep.mubr.bf16.mxu0 0
      %7708 = vmatmul.mubr.bf16.gmra.mxu0 %v7302
      %v7709 = vpop.f32.mrf.mxu0
      %v7710 = vadd.f32 0.0, %v7709
      %v7711 = vpop.f32.mrf.mxu0
      %v7712 = vpop.f32.mrf.mxu0
      %v7713 = vadd.f32 0.0, %v7712
      %v7714 = vpop.f32.mrf.mxu0
      %7715 = vmatprep.mubr.bf16.mxu0 0
      %7716 = vmatmul.mubr.bf16.gmra.mxu0 %v7305
      %v7717 = vpop.f32.mrf.mxu0
      %v7718 = vadd.f32 0.0, %v7717
      %v7719 = vpop.f32.mrf.mxu0
      %v7720 = vpop.f32.mrf.mxu0
      %v7721 = vadd.f32 0.0, %v7720
      %v7722 = vpop.f32.mrf.mxu0
      %7723 = vdwg.mxu0
      %v7724 = vadd.f32 %v6614, %v7342
      %v7725 = vadd.f32 %v6615, %v7345
      %v7726 = vadd.f32 %v6616, %v7350
      %v7727 = vadd.f32 %v6617, %v7353
      %v7728 = vadd.f32 %v6618, %v7358
      %v7729 = vadd.f32 %v6619, %v7361
      %v7730 = vadd.f32 %v6620, %v7366
      %v7731 = vadd.f32 %v6621, %v7369
      %v7732 = vadd.f32 %v6622, %v7374
      %v7733 = vadd.f32 %v6623, %v7377
      %v7734 = vadd.f32 %v6624, %v7382
      %v7735 = vadd.f32 %v6625, %v7385
      %v7736 = vadd.f32 %v6626, %v7390
      %v7737 = vadd.f32 %v6627, %v7393
      %v7738 = vadd.f32 %v6628, %v7398
      %v7739 = vadd.f32 %v6629, %v7401
      %v7740 = vadd.f32 %v6630, %v7406
      %v7741 = vadd.f32 %v6631, %v7409
      %v7742 = vadd.f32 %v6632, %v7414
      %v7743 = vadd.f32 %v6633, %v7417
      %v7744 = vadd.f32 %v6634, %v7422
      %v7745 = vadd.f32 %v6635, %v7425
      %v7746 = vadd.f32 %v6636, %v7430
      %v7747 = vadd.f32 %v6637, %v7433
      %v7748 = vadd.f32 %v6638, %v7438
      %v7749 = vadd.f32 %v6639, %v7441
      %v7750 = vadd.f32 %v6640, %v7446
      %v7751 = vadd.f32 %v6641, %v7449
      %v7752 = vadd.f32 %v6642, %v7454
      %v7753 = vadd.f32 %v6643, %v7457
      %v7754 = vadd.f32 %v6644, %v7462
      %v7755 = vadd.f32 %v6645, %v7465
      %v7756 = vadd.f32 %v6646, %v7470
      %v7757 = vadd.f32 %v6647, %v7473
      %v7758 = vadd.f32 %v6648, %v7478
      %v7759 = vadd.f32 %v6649, %v7481
      %v7760 = vadd.f32 %v6650, %v7486
      %v7761 = vadd.f32 %v6651, %v7489
      %v7762 = vadd.f32 %v6652, %v7494
      %v7763 = vadd.f32 %v6653, %v7497
      %v7764 = vadd.f32 %v6654, %v7502
      %v7765 = vadd.f32 %v6655, %v7505
      %v7766 = vadd.f32 %v6656, %v7510
      %v7767 = vadd.f32 %v6657, %v7513
      %v7768 = vadd.f32 %v6658, %v7518
      %v7769 = vadd.f32 %v6659, %v7521
      %v7770 = vadd.f32 %v6660, %v7526
      %v7771 = vadd.f32 %v6661, %v7529
      %v7772 = vadd.f32 %v6662, %v7534
      %v7773 = vadd.f32 %v6663, %v7537
      %v7774 = vadd.f32 %v6664, %v7542
      %v7775 = vadd.f32 %v6665, %v7545
      %v7776 = vadd.f32 %v6666, %v7550
      %v7777 = vadd.f32 %v6667, %v7553
      %v7778 = vadd.f32 %v6668, %v7558
      %v7779 = vadd.f32 %v6669, %v7561
      %v7780 = vadd.f32 %v6670, %v7566
      %v7781 = vadd.f32 %v6671, %v7569
      %v7782 = vadd.f32 %v6672, %v7574
      %v7783 = vadd.f32 %v6673, %v7577
      %v7784 = vadd.f32 %v6674, %v7582
      %v7785 = vadd.f32 %v6675, %v7585
      %v7786 = vadd.f32 %v6676, %v7590
      %v7787 = vadd.f32 %v6677, %v7593
      %v7788 = vadd.f32 %v6678, %v7598
      %v7789 = vadd.f32 %v6679, %v7601
      %v7790 = vadd.f32 %v6680, %v7606
      %v7791 = vadd.f32 %v6681, %v7609
      %v7792 = vadd.f32 %v6682, %v7614
      %v7793 = vadd.f32 %v6683, %v7617
      %v7794 = vadd.f32 %v6684, %v7622
      %v7795 = vadd.f32 %v6685, %v7625
      %v7796 = vadd.f32 %v6686, %v7630
      %v7797 = vadd.f32 %v6687, %v7633
      %v7798 = vadd.f32 %v6688, %v7638
      %v7799 = vadd.f32 %v6689, %v7641
      %v7800 = vadd.f32 %v6690, %v7646
      %v7801 = vadd.f32 %v6691, %v7649
      %v7802 = vadd.f32 %v6692, %v7654
      %v7803 = vadd.f32 %v6693, %v7657
      %v7804 = vadd.f32 %v6694, %v7662
      %v7805 = vadd.f32 %v6695, %v7665
      %v7806 = vadd.f32 %v6696, %v7670
      %v7807 = vadd.f32 %v6697, %v7673
      %v7808 = vadd.f32 %v6698, %v7678
      %v7809 = vadd.f32 %v6699, %v7681
      %v7810 = vadd.f32 %v6700, %v7686
      %v7811 = vadd.f32 %v6701, %v7689
      %v7812 = vadd.f32 %v6702, %v7694
      %v7813 = vadd.f32 %v6703, %v7697
      %v7814 = vadd.f32 %v6704, %v7702
      %v7815 = vadd.f32 %v6705, %v7705
      %v7816 = vadd.f32 %v6706, %v7710
      %v7817 = vadd.f32 %v6707, %v7713
      %v7818 = vadd.f32 %v6708, %v7718
      %v7819 = vadd.f32 %v6709, %v7721
      %v7820 = vld [vmem:[#allocation2 + $0x1ac] sm:$0x3]
      %v7821 = vld [vmem:[%s3 + $0x70] sm:$0xf]
      %v7822 = vld [vmem:[%s3 + $0x74] sm:$0xf]
      %v7823 = vld [vmem:[%s3 + $0x78] sm:$0xf]
      %v7824 = vld [vmem:[%s3 + $0x7c] sm:$0xf]
      %v7826 = vunpack.c.l.b16 %v7820
      %v7827 = vpack.c.b16 %v7826, %v7826
      %vm7828 = vsmask.f32 6400
      %v7830 = vshrl.u32 %v7005, 16
      %v7832 = vrot.slane %v7830, 1
      %v7833 = vshll.u32 %v7005, 16
      %v7835 = vrot.slane %v7833, 2
      %v7836 = vor.u32 %v7832, %v7835
      %v7838 = vshrl.u32 %v7006, 16
      %v7840 = vrot.slane %v7838, 1
      %v7841 = vshll.u32 %v7006, 16
      %v7843 = vrot.slane %v7841, 2
      %v7844 = vor.u32 %v7840, %v7843
      %v7845 = vsel %vm7828, %v7836, %v7844
      %v7847 = vshrl.u32 %v7007, 16
      %v7849 = vrot.slane %v7847, 1
      %v7850 = vshll.u32 %v7007, 16
      %v7852 = vrot.slane %v7850, 2
      %v7853 = vor.u32 %v7849, %v7852
      %v7854 = vsel %vm7828, %v7844, %v7853
      %v7856 = vshrl.u32 %v7008, 16
      %v7858 = vrot.slane %v7856, 1
      %v7859 = vshll.u32 %v7008, 16
      %v7861 = vrot.slane %v7859, 2
      %v7862 = vor.u32 %v7858, %v7861
      %v7863 = vsel %vm7828, %v7853, %v7862
      %v7865 = vshrl.u32 %v7009, 16
      %v7867 = vrot.slane %v7865, 1
      %v7868 = vshll.u32 %v7009, 16
      %v7870 = vrot.slane %v7868, 2
      %v7871 = vor.u32 %v7867, %v7870
      %v7872 = vsel %vm7828, %v7862, %v7871
      %v7874 = vshrl.u32 %v7010, 16
      %v7876 = vrot.slane %v7874, 1
      %v7877 = vshll.u32 %v7010, 16
      %v7879 = vrot.slane %v7877, 2
      %v7880 = vor.u32 %v7876, %v7879
      %v7881 = vsel %vm7828, %v7871, %v7880
      %v7883 = vshrl.u32 %v7011, 16
      %v7885 = vrot.slane %v7883, 1
      %v7886 = vshll.u32 %v7011, 16
      %v7888 = vrot.slane %v7886, 2
      %v7889 = vor.u32 %v7885, %v7888
      %v7890 = vsel %vm7828, %v7880, %v7889
      %v7892 = vshrl.u32 %v7012, 16
      %v7894 = vrot.slane %v7892, 1
      %v7895 = vshll.u32 %v7012, 16
      %v7897 = vrot.slane %v7895, 2
      %v7898 = vor.u32 %v7894, %v7897
      %v7899 = vsel %vm7828, %v7889, %v7898
      %v7901 = vshrl.u32 %v7013, 16
      %v7903 = vrot.slane %v7901, 1
      %v7904 = vshll.u32 %v7013, 16
      %v7906 = vrot.slane %v7904, 2
      %v7907 = vor.u32 %v7903, %v7906
      %v7908 = vsel %vm7828, %v7898, %v7907
      %v7910 = vshrl.u32 %v7014, 16
      %v7912 = vrot.slane %v7910, 1
      %v7913 = vshll.u32 %v7014, 16
      %v7915 = vrot.slane %v7913, 2
      %v7916 = vor.u32 %v7912, %v7915
      %v7917 = vsel %vm7828, %v7907, %v7916
      %v7919 = vshrl.u32 %v7015, 16
      %v7921 = vrot.slane %v7919, 1
      %v7922 = vshll.u32 %v7015, 16
      %v7924 = vrot.slane %v7922, 2
      %v7925 = vor.u32 %v7921, %v7924
      %v7926 = vsel %vm7828, %v7916, %v7925
      %v7928 = vshrl.u32 %v7016, 16
      %v7930 = vrot.slane %v7928, 1
      %v7931 = vshll.u32 %v7016, 16
      %v7933 = vrot.slane %v7931, 2
      %v7934 = vor.u32 %v7930, %v7933
      %v7935 = vsel %vm7828, %v7925, %v7934
      %v7937 = vshrl.u32 %v7017, 16
      %v7939 = vrot.slane %v7937, 1
      %v7940 = vshll.u32 %v7017, 16
      %v7942 = vrot.slane %v7940, 2
      %v7943 = vor.u32 %v7939, %v7942
      %v7944 = vsel %vm7828, %v7934, %v7943
      %v7946 = vshrl.u32 %v7018, 16
      %v7948 = vrot.slane %v7946, 1
      %v7949 = vshll.u32 %v7018, 16
      %v7951 = vrot.slane %v7949, 2
      %v7952 = vor.u32 %v7948, %v7951
      %v7953 = vsel %vm7828, %v7943, %v7952
      %v7955 = vshrl.u32 %v7019, 16
      %v7957 = vrot.slane %v7955, 1
      %v7958 = vshll.u32 %v7019, 16
      %v7960 = vrot.slane %v7958, 2
      %v7961 = vor.u32 %v7957, %v7960
      %v7962 = vsel %vm7828, %v7952, %v7961
      %v7964 = vshrl.u32 %v7020, 16
      %v7966 = vrot.slane %v7964, 1
      %v7967 = vshll.u32 %v7020, 16
      %v7969 = vrot.slane %v7967, 2
      %v7970 = vor.u32 %v7966, %v7969
      %v7971 = vsel %vm7828, %v7961, %v7970
      %v7973 = vshrl.u32 %v7021, 16
      %v7975 = vrot.slane %v7973, 1
      %v7976 = vshll.u32 %v7021, 16
      %v7978 = vrot.slane %v7976, 2
      %v7979 = vor.u32 %v7975, %v7978
      %v7980 = vsel %vm7828, %v7970, %v7979
      %v7982 = vshrl.u32 %v7022, 16
      %v7984 = vrot.slane %v7982, 1
      %v7985 = vshll.u32 %v7022, 16
      %v7987 = vrot.slane %v7985, 2
      %v7988 = vor.u32 %v7984, %v7987
      %v7989 = vsel %vm7828, %v7979, %v7988
      %v7991 = vshrl.u32 %v7023, 16
      %v7993 = vrot.slane %v7991, 1
      %v7994 = vshll.u32 %v7023, 16
      %v7996 = vrot.slane %v7994, 2
      %v7997 = vor.u32 %v7993, %v7996
      %v7998 = vsel %vm7828, %v7988, %v7997
      %v8000 = vshrl.u32 %v7024, 16
      %v8002 = vrot.slane %v8000, 1
      %v8003 = vshll.u32 %v7024, 16
      %v8005 = vrot.slane %v8003, 2
      %v8006 = vor.u32 %v8002, %v8005
      %v8007 = vsel %vm7828, %v7997, %v8006
      %v8009 = vshrl.u32 %v7025, 16
      %v8011 = vrot.slane %v8009, 1
      %v8012 = vshll.u32 %v7025, 16
      %v8014 = vrot.slane %v8012, 2
      %v8015 = vor.u32 %v8011, %v8014
      %v8016 = vsel %vm7828, %v8006, %v8015
      %v8018 = vshrl.u32 %v7026, 16
      %v8020 = vrot.slane %v8018, 1
      %v8021 = vshll.u32 %v7026, 16
      %v8023 = vrot.slane %v8021, 2
      %v8024 = vor.u32 %v8020, %v8023
      %v8025 = vsel %vm7828, %v8015, %v8024
      %v8027 = vshrl.u32 %v7027, 16
      %v8029 = vrot.slane %v8027, 1
      %v8030 = vshll.u32 %v7027, 16
      %v8032 = vrot.slane %v8030, 2
      %v8033 = vor.u32 %v8029, %v8032
      %v8034 = vsel %vm7828, %v8024, %v8033
      %v8036 = vshrl.u32 %v7028, 16
      %v8038 = vrot.slane %v8036, 1
      %v8039 = vshll.u32 %v7028, 16
      %v8041 = vrot.slane %v8039, 2
      %v8042 = vor.u32 %v8038, %v8041
      %v8043 = vsel %vm7828, %v8033, %v8042
      %v8045 = vshrl.u32 %v7029, 16
      %v8047 = vrot.slane %v8045, 1
      %v8048 = vshll.u32 %v7029, 16
      %v8050 = vrot.slane %v8048, 2
      %v8051 = vor.u32 %v8047, %v8050
      %v8052 = vsel %vm7828, %v8042, %v8051
      %v8054 = vshrl.u32 %v7030, 16
      %v8056 = vrot.slane %v8054, 1
      %v8057 = vshll.u32 %v7030, 16
      %v8059 = vrot.slane %v8057, 2
      %v8060 = vor.u32 %v8056, %v8059
      %v8061 = vsel %vm7828, %v8051, %v8060
      %v8063 = vshrl.u32 %v7031, 16
      %v8065 = vrot.slane %v8063, 1
      %v8066 = vshll.u32 %v7031, 16
      %v8068 = vrot.slane %v8066, 2
      %v8069 = vor.u32 %v8065, %v8068
      %v8070 = vsel %vm7828, %v8060, %v8069
      %v8072 = vshrl.u32 %v7032, 16
      %v8074 = vrot.slane %v8072, 1
      %v8075 = vshll.u32 %v7032, 16
      %v8077 = vrot.slane %v8075, 2
      %v8078 = vor.u32 %v8074, %v8077
      %v8079 = vsel %vm7828, %v8069, %v8078
      %v8081 = vshrl.u32 %v7033, 16
      %v8083 = vrot.slane %v8081, 1
      %v8084 = vshll.u32 %v7033, 16
      %v8086 = vrot.slane %v8084, 2
      %v8087 = vor.u32 %v8083, %v8086
      %v8088 = vsel %vm7828, %v8078, %v8087
      %v8090 = vshrl.u32 %v7034, 16
      %v8092 = vrot.slane %v8090, 1
      %v8093 = vshll.u32 %v7034, 16
      %v8095 = vrot.slane %v8093, 2
      %v8096 = vor.u32 %v8092, %v8095
      %v8097 = vsel %vm7828, %v8087, %v8096
      %v8099 = vshrl.u32 %v7035, 16
      %v8101 = vrot.slane %v8099, 1
      %v8102 = vshll.u32 %v7035, 16
      %v8104 = vrot.slane %v8102, 2
      %v8105 = vor.u32 %v8101, %v8104
      %v8106 = vsel %vm7828, %v8096, %v8105
      %v8108 = vshrl.u32 %v7036, 16
      %v8110 = vrot.slane %v8108, 1
      %v8111 = vshll.u32 %v7036, 16
      %v8113 = vrot.slane %v8111, 2
      %v8114 = vor.u32 %v8110, %v8113
      %v8115 = vsel %vm7828, %v8105, %v8114
      %v8117 = vshrl.u32 %v7037, 16
      %v8119 = vrot.slane %v8117, 1
      %v8120 = vshll.u32 %v7037, 16
      %v8122 = vrot.slane %v8120, 2
      %v8123 = vor.u32 %v8119, %v8122
      %v8124 = vsel %vm7828, %v8114, %v8123
      %v8126 = vshrl.u32 %v7038, 16
      %v8128 = vrot.slane %v8126, 1
      %v8129 = vshll.u32 %v7038, 16
      %v8131 = vrot.slane %v8129, 2
      %v8132 = vor.u32 %v8128, %v8131
      %v8133 = vsel %vm7828, %v8123, %v8132
      %v8135 = vshrl.u32 %v7039, 16
      %v8137 = vrot.slane %v8135, 1
      %v8138 = vshll.u32 %v7039, 16
      %v8140 = vrot.slane %v8138, 2
      %v8141 = vor.u32 %v8137, %v8140
      %v8142 = vsel %vm7828, %v8132, %v8141
      %v8144 = vshrl.u32 %v7040, 16
      %v8146 = vrot.slane %v8144, 1
      %v8147 = vshll.u32 %v7040, 16
      %v8149 = vrot.slane %v8147, 2
      %v8150 = vor.u32 %v8146, %v8149
      %v8151 = vsel %vm7828, %v8141, %v8150
      %v8153 = vshrl.u32 %v7041, 16
      %v8155 = vrot.slane %v8153, 1
      %v8156 = vshll.u32 %v7041, 16
      %v8158 = vrot.slane %v8156, 2
      %v8159 = vor.u32 %v8155, %v8158
      %v8160 = vsel %vm7828, %v8150, %v8159
      %v8162 = vshrl.u32 %v7042, 16
      %v8164 = vrot.slane %v8162, 1
      %v8165 = vshll.u32 %v7042, 16
      %v8167 = vrot.slane %v8165, 2
      %v8168 = vor.u32 %v8164, %v8167
      %v8169 = vsel %vm7828, %v8159, %v8168
      %v8171 = vshrl.u32 %v7043, 16
      %v8173 = vrot.slane %v8171, 1
      %v8174 = vshll.u32 %v7043, 16
      %v8176 = vrot.slane %v8174, 2
      %v8177 = vor.u32 %v8173, %v8176
      %v8178 = vsel %vm7828, %v8168, %v8177
      %v8180 = vshrl.u32 %v7044, 16
      %v8182 = vrot.slane %v8180, 1
      %v8183 = vshll.u32 %v7044, 16
      %v8185 = vrot.slane %v8183, 2
      %v8186 = vor.u32 %v8182, %v8185
      %v8187 = vsel %vm7828, %v8177, %v8186
      %v8189 = vshrl.u32 %v7045, 16
      %v8191 = vrot.slane %v8189, 1
      %v8192 = vshll.u32 %v7045, 16
      %v8194 = vrot.slane %v8192, 2
      %v8195 = vor.u32 %v8191, %v8194
      %v8196 = vsel %vm7828, %v8186, %v8195
      %v8198 = vshrl.u32 %v7046, 16
      %v8200 = vrot.slane %v8198, 1
      %v8201 = vshll.u32 %v7046, 16
      %v8203 = vrot.slane %v8201, 2
      %v8204 = vor.u32 %v8200, %v8203
      %v8205 = vsel %vm7828, %v8195, %v8204
      %v8207 = vshrl.u32 %v7047, 16
      %v8209 = vrot.slane %v8207, 1
      %v8210 = vshll.u32 %v7047, 16
      %v8212 = vrot.slane %v8210, 2
      %v8213 = vor.u32 %v8209, %v8212
      %v8214 = vsel %vm7828, %v8204, %v8213
      %v8216 = vshrl.u32 %v7048, 16
      %v8218 = vrot.slane %v8216, 1
      %v8219 = vshll.u32 %v7048, 16
      %v8221 = vrot.slane %v8219, 2
      %v8222 = vor.u32 %v8218, %v8221
      %v8223 = vsel %vm7828, %v8213, %v8222
      %v8225 = vshrl.u32 %v7049, 16
      %v8227 = vrot.slane %v8225, 1
      %v8228 = vshll.u32 %v7049, 16
      %v8230 = vrot.slane %v8228, 2
      %v8231 = vor.u32 %v8227, %v8230
      %v8232 = vsel %vm7828, %v8222, %v8231
      %v8234 = vshrl.u32 %v7050, 16
      %v8236 = vrot.slane %v8234, 1
      %v8237 = vshll.u32 %v7050, 16
      %v8239 = vrot.slane %v8237, 2
      %v8240 = vor.u32 %v8236, %v8239
      %v8241 = vsel %vm7828, %v8231, %v8240
      %v8243 = vshrl.u32 %v7051, 16
      %v8245 = vrot.slane %v8243, 1
      %v8246 = vshll.u32 %v7051, 16
      %v8248 = vrot.slane %v8246, 2
      %v8249 = vor.u32 %v8245, %v8248
      %v8250 = vsel %vm7828, %v8240, %v8249
      %v8252 = vshrl.u32 %v7052, 16
      %v8254 = vrot.slane %v8252, 1
      %v8255 = vshll.u32 %v7052, 16
      %v8257 = vrot.slane %v8255, 2
      %v8258 = vor.u32 %v8254, %v8257
      %v8259 = vsel %vm7828, %v8249, %v8258
      %v8261 = vshrl.u32 %v7827, 16
      %v8263 = vrot.slane %v8261, 1
      %v8264 = vshll.u32 %v7827, 16
      %v8266 = vrot.slane %v8264, 2
      %v8267 = vor.u32 %v8263, %v8266
      %v8268 = vsel %vm7828, %v8258, %v8267
      %v8273 = vunpack.c.l.b16 %v7821
      %v8274 = vunpack.c.l.b16 %v7822
      %v8275 = vunpack.c.l.b16 %v7823
      %v8276 = vunpack.c.l.b16 %v7824
      %v8277 = vpack.c.b16 %v8274, %v8273
      %v8278 = vpack.c.b16 %v8276, %v8275
      %v8282 = vsel %vm1272, %v7845, 0
      %v8285 = vsel %vm1272, %v7854, 0
      %v8288 = vsel %vm1272, %v7863, 0
      %v8291 = vsel %vm1272, %v7872, 0
      %v8294 = vsel %vm1272, %v7881, 0
      %v8297 = vsel %vm1272, %v7890, 0
      %v8300 = vsel %vm1272, %v7899, 0
      %v8303 = vsel %vm1272, %v7908, 0
      %v8306 = vsel %vm1272, %v7917, 0
      %v8309 = vsel %vm1272, %v7926, 0
      %v8312 = vsel %vm1272, %v7935, 0
      %v8315 = vsel %vm1272, %v7944, 0
      %v8318 = vsel %vm1272, %v7953, 0
      %v8321 = vsel %vm1272, %v7962, 0
      %v8324 = vsel %vm1272, %v7971, 0
      %v8327 = vsel %vm1272, %v7980, 0
      %v8330 = vsel %vm1272, %v7989, 0
      %v8333 = vsel %vm1272, %v7998, 0
      %v8336 = vsel %vm1272, %v8007, 0
      %v8339 = vsel %vm1272, %v8016, 0
      %v8342 = vsel %vm1272, %v8025, 0
      %v8345 = vsel %vm1272, %v8034, 0
      %v8348 = vsel %vm1272, %v8043, 0
      %v8351 = vsel %vm1272, %v8052, 0
      %v8354 = vsel %vm1272, %v8061, 0
      %v8357 = vsel %vm1272, %v8070, 0
      %v8360 = vsel %vm1272, %v8079, 0
      %v8363 = vsel %vm1272, %v8088, 0
      %v8366 = vsel %vm1272, %v8097, 0
      %v8369 = vsel %vm1272, %v8106, 0
      %v8372 = vsel %vm1272, %v8115, 0
      %v8375 = vsel %vm1272, %v8124, 0
      %v8378 = vsel %vm1272, %v8133, 0
      %v8381 = vsel %vm1272, %v8142, 0
      %v8384 = vsel %vm1272, %v8151, 0
      %v8387 = vsel %vm1272, %v8160, 0
      %v8390 = vsel %vm1272, %v8169, 0
      %v8393 = vsel %vm1272, %v8178, 0
      %v8396 = vsel %vm1272, %v8187, 0
      %v8399 = vsel %vm1272, %v8196, 0
      %v8402 = vsel %vm1272, %v8205, 0
      %v8405 = vsel %vm1272, %v8214, 0
      %v8408 = vsel %vm1272, %v8223, 0
      %v8411 = vsel %vm1272, %v8232, 0
      %v8414 = vsel %vm1272, %v8241, 0
      %v8417 = vsel %vm1272, %v8250, 0
      %v8420 = vsel %vm1272, %v8259, 0
      %v8423 = vsel %vm1272, %v8268, 0
      %8425 = vmatprep.subr.bf16.mxu0 0
      %8426 = vmatpush1.bf16.msra.mxu0 0
      %8427 = vmatprep.subr.bf16.mxu0 0
      %8428 = vmatpush1.bf16.msra.mxu0 0
      %8429 = vmatprep.subr.bf16.mxu0 0
      %8430 = vmatpush1.bf16.msra.mxu0 0
      %8431 = vmatprep.subr.bf16.mxu0 0
      %8432 = vmatpush1.bf16.msra.mxu0 0
      %8433 = vmatprep.subr.bf16.mxu0 0
      %8434 = vmatpush1.bf16.msra.mxu0 0
      %8435 = vmatprep.subr.bf16.mxu0 0
      %8436 = vmatpush1.bf16.msra.mxu0 0
      %8437 = vmatprep.subr.bf16.mxu0 0
      %8438 = vmatpush1.bf16.msra.mxu0 %v8278
      %8439 = vmatprep.subr.bf16.mxu0 0
      %8440 = vmatpush1.bf16.msra.mxu0 %v8277
      %8441 = vmatprep.subr.bf16.mxu0 0
      %8442 = vmatpush2.bf16.msra.mxu0 0
      %8443 = vmatprep.subr.bf16.mxu0 0
      %8444 = vmatpush2.bf16.msra.mxu0 0
      %8445 = vmatprep.subr.bf16.mxu0 0
      %8446 = vmatpush2.bf16.msra.mxu0 0
      %8447 = vmatprep.subr.bf16.mxu0 0
      %8448 = vmatpush2.bf16.msra.mxu0 0
      %8449 = vmatprep.subr.bf16.mxu0 0
      %8450 = vmatpush2.bf16.msra.mxu0 0
      %8451 = vmatprep.subr.bf16.mxu0 0
      %8452 = vmatpush2.bf16.msra.mxu0 0
      %8453 = vmatprep.subr.bf16.mxu0 0
      %8454 = vmatpush2.bf16.msra.mxu0 0
      %8455 = vmatprep.subr.bf16.mxu0 0
      %8456 = vmatpush2.bf16.msra.mxu0 0
      %8457 = vmatprep.mubr.bf16.mxu0 0
      %8458 = vmatmul.mubr.bf16.gmra.mxu0 %v8282
      %v8459 = vpop.f32.mrf.mxu0
      %v8460 = vadd.f32 0.0, %v8459
      %v8461 = vpop.f32.mrf.mxu0
      %v8462 = vpop.f32.mrf.mxu0
      %v8463 = vadd.f32 0.0, %v8462
      %v8464 = vpop.f32.mrf.mxu0
      %8465 = vmatprep.mubr.bf16.mxu0 0
      %8466 = vmatmul.mubr.bf16.gmra.mxu0 %v8285
      %v8467 = vpop.f32.mrf.mxu0
      %v8468 = vadd.f32 0.0, %v8467
      %v8469 = vpop.f32.mrf.mxu0
      %v8470 = vpop.f32.mrf.mxu0
      %v8471 = vadd.f32 0.0, %v8470
      %v8472 = vpop.f32.mrf.mxu0
      %8473 = vmatprep.mubr.bf16.mxu0 0
      %8474 = vmatmul.mubr.bf16.gmra.mxu0 %v8288
      %v8475 = vpop.f32.mrf.mxu0
      %v8476 = vadd.f32 0.0, %v8475
      %v8477 = vpop.f32.mrf.mxu0
      %v8478 = vpop.f32.mrf.mxu0
      %v8479 = vadd.f32 0.0, %v8478
      %v8480 = vpop.f32.mrf.mxu0
      %8481 = vmatprep.mubr.bf16.mxu0 0
      %8482 = vmatmul.mubr.bf16.gmra.mxu0 %v8291
      %v8483 = vpop.f32.mrf.mxu0
      %v8484 = vadd.f32 0.0, %v8483
      %v8485 = vpop.f32.mrf.mxu0
      %v8486 = vpop.f32.mrf.mxu0
      %v8487 = vadd.f32 0.0, %v8486
      %v8488 = vpop.f32.mrf.mxu0
      %8489 = vmatprep.mubr.bf16.mxu0 0
      %8490 = vmatmul.mubr.bf16.gmra.mxu0 %v8294
      %v8491 = vpop.f32.mrf.mxu0
      %v8492 = vadd.f32 0.0, %v8491
      %v8493 = vpop.f32.mrf.mxu0
      %v8494 = vpop.f32.mrf.mxu0
      %v8495 = vadd.f32 0.0, %v8494
      %v8496 = vpop.f32.mrf.mxu0
      %8497 = vmatprep.mubr.bf16.mxu0 0
      %8498 = vmatmul.mubr.bf16.gmra.mxu0 %v8297
      %v8499 = vpop.f32.mrf.mxu0
      %v8500 = vadd.f32 0.0, %v8499
      %v8501 = vpop.f32.mrf.mxu0
      %v8502 = vpop.f32.mrf.mxu0
      %v8503 = vadd.f32 0.0, %v8502
      %v8504 = vpop.f32.mrf.mxu0
      %8505 = vmatprep.mubr.bf16.mxu0 0
      %8506 = vmatmul.mubr.bf16.gmra.mxu0 %v8300
      %v8507 = vpop.f32.mrf.mxu0
      %v8508 = vadd.f32 0.0, %v8507
      %v8509 = vpop.f32.mrf.mxu0
      %v8510 = vpop.f32.mrf.mxu0
      %v8511 = vadd.f32 0.0, %v8510
      %v8512 = vpop.f32.mrf.mxu0
      %8513 = vmatprep.mubr.bf16.mxu0 0
      %8514 = vmatmul.mubr.bf16.gmra.mxu0 %v8303
      %v8515 = vpop.f32.mrf.mxu0
      %v8516 = vadd.f32 0.0, %v8515
      %v8517 = vpop.f32.mrf.mxu0
      %v8518 = vpop.f32.mrf.mxu0
      %v8519 = vadd.f32 0.0, %v8518
      %v8520 = vpop.f32.mrf.mxu0
      %8521 = vmatprep.mubr.bf16.mxu0 0
      %8522 = vmatmul.mubr.bf16.gmra.mxu0 %v8306
      %v8523 = vpop.f32.mrf.mxu0
      %v8524 = vadd.f32 0.0, %v8523
      %v8525 = vpop.f32.mrf.mxu0
      %v8526 = vpop.f32.mrf.mxu0
      %v8527 = vadd.f32 0.0, %v8526
      %v8528 = vpop.f32.mrf.mxu0
      %8529 = vmatprep.mubr.bf16.mxu0 0
      %8530 = vmatmul.mubr.bf16.gmra.mxu0 %v8309
      %v8531 = vpop.f32.mrf.mxu0
      %v8532 = vadd.f32 0.0, %v8531
      %v8533 = vpop.f32.mrf.mxu0
      %v8534 = vpop.f32.mrf.mxu0
      %v8535 = vadd.f32 0.0, %v8534
      %v8536 = vpop.f32.mrf.mxu0
      %8537 = vmatprep.mubr.bf16.mxu0 0
      %8538 = vmatmul.mubr.bf16.gmra.mxu0 %v8312
      %v8539 = vpop.f32.mrf.mxu0
      %v8540 = vadd.f32 0.0, %v8539
      %v8541 = vpop.f32.mrf.mxu0
      %v8542 = vpop.f32.mrf.mxu0
      %v8543 = vadd.f32 0.0, %v8542
      %v8544 = vpop.f32.mrf.mxu0
      %8545 = vmatprep.mubr.bf16.mxu0 0
      %8546 = vmatmul.mubr.bf16.gmra.mxu0 %v8315
      %v8547 = vpop.f32.mrf.mxu0
      %v8548 = vadd.f32 0.0, %v8547
      %v8549 = vpop.f32.mrf.mxu0
      %v8550 = vpop.f32.mrf.mxu0
      %v8551 = vadd.f32 0.0, %v8550
      %v8552 = vpop.f32.mrf.mxu0
      %8553 = vmatprep.mubr.bf16.mxu0 0
      %8554 = vmatmul.mubr.bf16.gmra.mxu0 %v8318
      %v8555 = vpop.f32.mrf.mxu0
      %v8556 = vadd.f32 0.0, %v8555
      %v8557 = vpop.f32.mrf.mxu0
      %v8558 = vpop.f32.mrf.mxu0
      %v8559 = vadd.f32 0.0, %v8558
      %v8560 = vpop.f32.mrf.mxu0
      %8561 = vmatprep.mubr.bf16.mxu0 0
      %8562 = vmatmul.mubr.bf16.gmra.mxu0 %v8321
      %v8563 = vpop.f32.mrf.mxu0
      %v8564 = vadd.f32 0.0, %v8563
      %v8565 = vpop.f32.mrf.mxu0
      %v8566 = vpop.f32.mrf.mxu0
      %v8567 = vadd.f32 0.0, %v8566
      %v8568 = vpop.f32.mrf.mxu0
      %8569 = vmatprep.mubr.bf16.mxu0 0
      %8570 = vmatmul.mubr.bf16.gmra.mxu0 %v8324
      %v8571 = vpop.f32.mrf.mxu0
      %v8572 = vadd.f32 0.0, %v8571
      %v8573 = vpop.f32.mrf.mxu0
      %v8574 = vpop.f32.mrf.mxu0
      %v8575 = vadd.f32 0.0, %v8574
      %v8576 = vpop.f32.mrf.mxu0
      %8577 = vmatprep.mubr.bf16.mxu0 0
      %8578 = vmatmul.mubr.bf16.gmra.mxu0 %v8327
      %v8579 = vpop.f32.mrf.mxu0
      %v8580 = vadd.f32 0.0, %v8579
      %v8581 = vpop.f32.mrf.mxu0
      %v8582 = vpop.f32.mrf.mxu0
      %v8583 = vadd.f32 0.0, %v8582
      %v8584 = vpop.f32.mrf.mxu0
      %8585 = vmatprep.mubr.bf16.mxu0 0
      %8586 = vmatmul.mubr.bf16.gmra.mxu0 %v8330
      %v8587 = vpop.f32.mrf.mxu0
      %v8588 = vadd.f32 0.0, %v8587
      %v8589 = vpop.f32.mrf.mxu0
      %v8590 = vpop.f32.mrf.mxu0
      %v8591 = vadd.f32 0.0, %v8590
      %v8592 = vpop.f32.mrf.mxu0
      %8593 = vmatprep.mubr.bf16.mxu0 0
      %8594 = vmatmul.mubr.bf16.gmra.mxu0 %v8333
      %v8595 = vpop.f32.mrf.mxu0
      %v8596 = vadd.f32 0.0, %v8595
      %v8597 = vpop.f32.mrf.mxu0
      %v8598 = vpop.f32.mrf.mxu0
      %v8599 = vadd.f32 0.0, %v8598
      %v8600 = vpop.f32.mrf.mxu0
      %8601 = vmatprep.mubr.bf16.mxu0 0
      %8602 = vmatmul.mubr.bf16.gmra.mxu0 %v8336
      %v8603 = vpop.f32.mrf.mxu0
      %v8604 = vadd.f32 0.0, %v8603
      %v8605 = vpop.f32.mrf.mxu0
      %v8606 = vpop.f32.mrf.mxu0
      %v8607 = vadd.f32 0.0, %v8606
      %v8608 = vpop.f32.mrf.mxu0
      %8609 = vmatprep.mubr.bf16.mxu0 0
      %8610 = vmatmul.mubr.bf16.gmra.mxu0 %v8339
      %v8611 = vpop.f32.mrf.mxu0
      %v8612 = vadd.f32 0.0, %v8611
      %v8613 = vpop.f32.mrf.mxu0
      %v8614 = vpop.f32.mrf.mxu0
      %v8615 = vadd.f32 0.0, %v8614
      %v8616 = vpop.f32.mrf.mxu0
      %8617 = vmatprep.mubr.bf16.mxu0 0
      %8618 = vmatmul.mubr.bf16.gmra.mxu0 %v8342
      %v8619 = vpop.f32.mrf.mxu0
      %v8620 = vadd.f32 0.0, %v8619
      %v8621 = vpop.f32.mrf.mxu0
      %v8622 = vpop.f32.mrf.mxu0
      %v8623 = vadd.f32 0.0, %v8622
      %v8624 = vpop.f32.mrf.mxu0
      %8625 = vmatprep.mubr.bf16.mxu0 0
      %8626 = vmatmul.mubr.bf16.gmra.mxu0 %v8345
      %v8627 = vpop.f32.mrf.mxu0
      %v8628 = vadd.f32 0.0, %v8627
      %v8629 = vpop.f32.mrf.mxu0
      %v8630 = vpop.f32.mrf.mxu0
      %v8631 = vadd.f32 0.0, %v8630
      %v8632 = vpop.f32.mrf.mxu0
      %8633 = vmatprep.mubr.bf16.mxu0 0
      %8634 = vmatmul.mubr.bf16.gmra.mxu0 %v8348
      %v8635 = vpop.f32.mrf.mxu0
      %v8636 = vadd.f32 0.0, %v8635
      %v8637 = vpop.f32.mrf.mxu0
      %v8638 = vpop.f32.mrf.mxu0
      %v8639 = vadd.f32 0.0, %v8638
      %v8640 = vpop.f32.mrf.mxu0
      %8641 = vmatprep.mubr.bf16.mxu0 0
      %8642 = vmatmul.mubr.bf16.gmra.mxu0 %v8351
      %v8643 = vpop.f32.mrf.mxu0
      %v8644 = vadd.f32 0.0, %v8643
      %v8645 = vpop.f32.mrf.mxu0
      %v8646 = vpop.f32.mrf.mxu0
      %v8647 = vadd.f32 0.0, %v8646
      %v8648 = vpop.f32.mrf.mxu0
      %8649 = vmatprep.mubr.bf16.mxu0 0
      %8650 = vmatmul.mubr.bf16.gmra.mxu0 %v8354
      %v8651 = vpop.f32.mrf.mxu0
      %v8652 = vadd.f32 0.0, %v8651
      %v8653 = vpop.f32.mrf.mxu0
      %v8654 = vpop.f32.mrf.mxu0
      %v8655 = vadd.f32 0.0, %v8654
      %v8656 = vpop.f32.mrf.mxu0
      %8657 = vmatprep.mubr.bf16.mxu0 0
      %8658 = vmatmul.mubr.bf16.gmra.mxu0 %v8357
      %v8659 = vpop.f32.mrf.mxu0
      %v8660 = vadd.f32 0.0, %v8659
      %v8661 = vpop.f32.mrf.mxu0
      %v8662 = vpop.f32.mrf.mxu0
      %v8663 = vadd.f32 0.0, %v8662
      %v8664 = vpop.f32.mrf.mxu0
      %8665 = vmatprep.mubr.bf16.mxu0 0
      %8666 = vmatmul.mubr.bf16.gmra.mxu0 %v8360
      %v8667 = vpop.f32.mrf.mxu0
      %v8668 = vadd.f32 0.0, %v8667
      %v8669 = vpop.f32.mrf.mxu0
      %v8670 = vpop.f32.mrf.mxu0
      %v8671 = vadd.f32 0.0, %v8670
      %v8672 = vpop.f32.mrf.mxu0
      %8673 = vmatprep.mubr.bf16.mxu0 0
      %8674 = vmatmul.mubr.bf16.gmra.mxu0 %v8363
      %v8675 = vpop.f32.mrf.mxu0
      %v8676 = vadd.f32 0.0, %v8675
      %v8677 = vpop.f32.mrf.mxu0
      %v8678 = vpop.f32.mrf.mxu0
      %v8679 = vadd.f32 0.0, %v8678
      %v8680 = vpop.f32.mrf.mxu0
      %8681 = vmatprep.mubr.bf16.mxu0 0
      %8682 = vmatmul.mubr.bf16.gmra.mxu0 %v8366
      %v8683 = vpop.f32.mrf.mxu0
      %v8684 = vadd.f32 0.0, %v8683
      %v8685 = vpop.f32.mrf.mxu0
      %v8686 = vpop.f32.mrf.mxu0
      %v8687 = vadd.f32 0.0, %v8686
      %v8688 = vpop.f32.mrf.mxu0
      %8689 = vmatprep.mubr.bf16.mxu0 0
      %8690 = vmatmul.mubr.bf16.gmra.mxu0 %v8369
      %v8691 = vpop.f32.mrf.mxu0
      %v8692 = vadd.f32 0.0, %v8691
      %v8693 = vpop.f32.mrf.mxu0
      %v8694 = vpop.f32.mrf.mxu0
      %v8695 = vadd.f32 0.0, %v8694
      %v8696 = vpop.f32.mrf.mxu0
      %8697 = vmatprep.mubr.bf16.mxu0 0
      %8698 = vmatmul.mubr.bf16.gmra.mxu0 %v8372
      %v8699 = vpop.f32.mrf.mxu0
      %v8700 = vadd.f32 0.0, %v8699
      %v8701 = vpop.f32.mrf.mxu0
      %v8702 = vpop.f32.mrf.mxu0
      %v8703 = vadd.f32 0.0, %v8702
      %v8704 = vpop.f32.mrf.mxu0
      %8705 = vmatprep.mubr.bf16.mxu0 0
      %8706 = vmatmul.mubr.bf16.gmra.mxu0 %v8375
      %v8707 = vpop.f32.mrf.mxu0
      %v8708 = vadd.f32 0.0, %v8707
      %v8709 = vpop.f32.mrf.mxu0
      %v8710 = vpop.f32.mrf.mxu0
      %v8711 = vadd.f32 0.0, %v8710
      %v8712 = vpop.f32.mrf.mxu0
      %8713 = vmatprep.mubr.bf16.mxu0 0
      %8714 = vmatmul.mubr.bf16.gmra.mxu0 %v8378
      %v8715 = vpop.f32.mrf.mxu0
      %v8716 = vadd.f32 0.0, %v8715
      %v8717 = vpop.f32.mrf.mxu0
      %v8718 = vpop.f32.mrf.mxu0
      %v8719 = vadd.f32 0.0, %v8718
      %v8720 = vpop.f32.mrf.mxu0
      %8721 = vmatprep.mubr.bf16.mxu0 0
      %8722 = vmatmul.mubr.bf16.gmra.mxu0 %v8381
      %v8723 = vpop.f32.mrf.mxu0
      %v8724 = vadd.f32 0.0, %v8723
      %v8725 = vpop.f32.mrf.mxu0
      %v8726 = vpop.f32.mrf.mxu0
      %v8727 = vadd.f32 0.0, %v8726
      %v8728 = vpop.f32.mrf.mxu0
      %8729 = vmatprep.mubr.bf16.mxu0 0
      %8730 = vmatmul.mubr.bf16.gmra.mxu0 %v8384
      %v8731 = vpop.f32.mrf.mxu0
      %v8732 = vadd.f32 0.0, %v8731
      %v8733 = vpop.f32.mrf.mxu0
      %v8734 = vpop.f32.mrf.mxu0
      %v8735 = vadd.f32 0.0, %v8734
      %v8736 = vpop.f32.mrf.mxu0
      %8737 = vmatprep.mubr.bf16.mxu0 0
      %8738 = vmatmul.mubr.bf16.gmra.mxu0 %v8387
      %v8739 = vpop.f32.mrf.mxu0
      %v8740 = vadd.f32 0.0, %v8739
      %v8741 = vpop.f32.mrf.mxu0
      %v8742 = vpop.f32.mrf.mxu0
      %v8743 = vadd.f32 0.0, %v8742
      %v8744 = vpop.f32.mrf.mxu0
      %8745 = vmatprep.mubr.bf16.mxu0 0
      %8746 = vmatmul.mubr.bf16.gmra.mxu0 %v8390
      %v8747 = vpop.f32.mrf.mxu0
      %v8748 = vadd.f32 0.0, %v8747
      %v8749 = vpop.f32.mrf.mxu0
      %v8750 = vpop.f32.mrf.mxu0
      %v8751 = vadd.f32 0.0, %v8750
      %v8752 = vpop.f32.mrf.mxu0
      %8753 = vmatprep.mubr.bf16.mxu0 0
      %8754 = vmatmul.mubr.bf16.gmra.mxu0 %v8393
      %v8755 = vpop.f32.mrf.mxu0
      %v8756 = vadd.f32 0.0, %v8755
      %v8757 = vpop.f32.mrf.mxu0
      %v8758 = vpop.f32.mrf.mxu0
      %v8759 = vadd.f32 0.0, %v8758
      %v8760 = vpop.f32.mrf.mxu0
      %8761 = vmatprep.mubr.bf16.mxu0 0
      %8762 = vmatmul.mubr.bf16.gmra.mxu0 %v8396
      %v8763 = vpop.f32.mrf.mxu0
      %v8764 = vadd.f32 0.0, %v8763
      %v8765 = vpop.f32.mrf.mxu0
      %v8766 = vpop.f32.mrf.mxu0
      %v8767 = vadd.f32 0.0, %v8766
      %v8768 = vpop.f32.mrf.mxu0
      %8769 = vmatprep.mubr.bf16.mxu0 0
      %8770 = vmatmul.mubr.bf16.gmra.mxu0 %v8399
      %v8771 = vpop.f32.mrf.mxu0
      %v8772 = vadd.f32 0.0, %v8771
      %v8773 = vpop.f32.mrf.mxu0
      %v8774 = vpop.f32.mrf.mxu0
      %v8775 = vadd.f32 0.0, %v8774
      %v8776 = vpop.f32.mrf.mxu0
      %8777 = vmatprep.mubr.bf16.mxu0 0
      %8778 = vmatmul.mubr.bf16.gmra.mxu0 %v8402
      %v8779 = vpop.f32.mrf.mxu0
      %v8780 = vadd.f32 0.0, %v8779
      %v8781 = vpop.f32.mrf.mxu0
      %v8782 = vpop.f32.mrf.mxu0
      %v8783 = vadd.f32 0.0, %v8782
      %v8784 = vpop.f32.mrf.mxu0
      %8785 = vmatprep.mubr.bf16.mxu0 0
      %8786 = vmatmul.mubr.bf16.gmra.mxu0 %v8405
      %v8787 = vpop.f32.mrf.mxu0
      %v8788 = vadd.f32 0.0, %v8787
      %v8789 = vpop.f32.mrf.mxu0
      %v8790 = vpop.f32.mrf.mxu0
      %v8791 = vadd.f32 0.0, %v8790
      %v8792 = vpop.f32.mrf.mxu0
      %8793 = vmatprep.mubr.bf16.mxu0 0
      %8794 = vmatmul.mubr.bf16.gmra.mxu0 %v8408
      %v8795 = vpop.f32.mrf.mxu0
      %v8796 = vadd.f32 0.0, %v8795
      %v8797 = vpop.f32.mrf.mxu0
      %v8798 = vpop.f32.mrf.mxu0
      %v8799 = vadd.f32 0.0, %v8798
      %v8800 = vpop.f32.mrf.mxu0
      %8801 = vmatprep.mubr.bf16.mxu0 0
      %8802 = vmatmul.mubr.bf16.gmra.mxu0 %v8411
      %v8803 = vpop.f32.mrf.mxu0
      %v8804 = vadd.f32 0.0, %v8803
      %v8805 = vpop.f32.mrf.mxu0
      %v8806 = vpop.f32.mrf.mxu0
      %v8807 = vadd.f32 0.0, %v8806
      %v8808 = vpop.f32.mrf.mxu0
      %8809 = vmatprep.mubr.bf16.mxu0 0
      %8810 = vmatmul.mubr.bf16.gmra.mxu0 %v8414
      %v8811 = vpop.f32.mrf.mxu0
      %v8812 = vadd.f32 0.0, %v8811
      %v8813 = vpop.f32.mrf.mxu0
      %v8814 = vpop.f32.mrf.mxu0
      %v8815 = vadd.f32 0.0, %v8814
      %v8816 = vpop.f32.mrf.mxu0
      %8817 = vmatprep.mubr.bf16.mxu0 0
      %8818 = vmatmul.mubr.bf16.gmra.mxu0 %v8417
      %v8819 = vpop.f32.mrf.mxu0
      %v8820 = vadd.f32 0.0, %v8819
      %v8821 = vpop.f32.mrf.mxu0
      %v8822 = vpop.f32.mrf.mxu0
      %v8823 = vadd.f32 0.0, %v8822
      %v8824 = vpop.f32.mrf.mxu0
      %8825 = vmatprep.mubr.bf16.mxu0 0
      %8826 = vmatmul.mubr.bf16.gmra.mxu0 %v8420
      %v8827 = vpop.f32.mrf.mxu0
      %v8828 = vadd.f32 0.0, %v8827
      %v8829 = vpop.f32.mrf.mxu0
      %v8830 = vpop.f32.mrf.mxu0
      %v8831 = vadd.f32 0.0, %v8830
      %v8832 = vpop.f32.mrf.mxu0
      %8833 = vmatprep.mubr.bf16.mxu0 0
      %8834 = vmatmul.mubr.bf16.gmra.mxu0 %v8423
      %v8835 = vpop.f32.mrf.mxu0
      %v8836 = vadd.f32 0.0, %v8835
      %v8837 = vpop.f32.mrf.mxu0
      %v8838 = vpop.f32.mrf.mxu0
      %v8839 = vadd.f32 0.0, %v8838
      %v8840 = vpop.f32.mrf.mxu0
      %8841 = vdwg.mxu0
      %v8842 = vadd.f32 %v7724, %v8460
      %v8843 = vadd.f32 %v7725, %v8463
      %v8844 = vadd.f32 %v7726, %v8468
      %v8845 = vadd.f32 %v7727, %v8471
      %v8846 = vadd.f32 %v7728, %v8476
      %v8847 = vadd.f32 %v7729, %v8479
      %v8848 = vadd.f32 %v7730, %v8484
      %v8849 = vadd.f32 %v7731, %v8487
      %v8850 = vadd.f32 %v7732, %v8492
      %v8851 = vadd.f32 %v7733, %v8495
      %v8852 = vadd.f32 %v7734, %v8500
      %v8853 = vadd.f32 %v7735, %v8503
      %v8854 = vadd.f32 %v7736, %v8508
      %v8855 = vadd.f32 %v7737, %v8511
      %v8856 = vadd.f32 %v7738, %v8516
      %v8857 = vadd.f32 %v7739, %v8519
      %v8858 = vadd.f32 %v7740, %v8524
      %v8859 = vadd.f32 %v7741, %v8527
      %v8860 = vadd.f32 %v7742, %v8532
      %v8861 = vadd.f32 %v7743, %v8535
      %v8862 = vadd.f32 %v7744, %v8540
      %v8863 = vadd.f32 %v7745, %v8543
      %v8864 = vadd.f32 %v7746, %v8548
      %v8865 = vadd.f32 %v7747, %v8551
      %v8866 = vadd.f32 %v7748, %v8556
      %v8867 = vadd.f32 %v7749, %v8559
      %v8868 = vadd.f32 %v7750, %v8564
      %v8869 = vadd.f32 %v7751, %v8567
      %v8870 = vadd.f32 %v7752, %v8572
      %v8871 = vadd.f32 %v7753, %v8575
      %v8872 = vadd.f32 %v7754, %v8580
      %v8873 = vadd.f32 %v7755, %v8583
      %v8874 = vadd.f32 %v7756, %v8588
      %v8875 = vadd.f32 %v7757, %v8591
      %v8876 = vadd.f32 %v7758, %v8596
      %v8877 = vadd.f32 %v7759, %v8599
      %v8878 = vadd.f32 %v7760, %v8604
      %v8879 = vadd.f32 %v7761, %v8607
      %v8880 = vadd.f32 %v7762, %v8612
      %v8881 = vadd.f32 %v7763, %v8615
      %v8882 = vadd.f32 %v7764, %v8620
      %v8883 = vadd.f32 %v7765, %v8623
      %v8884 = vadd.f32 %v7766, %v8628
      %v8885 = vadd.f32 %v7767, %v8631
      %v8886 = vadd.f32 %v7768, %v8636
      %v8887 = vadd.f32 %v7769, %v8639
      %v8888 = vadd.f32 %v7770, %v8644
      %v8889 = vadd.f32 %v7771, %v8647
      %v8890 = vadd.f32 %v7772, %v8652
      %v8891 = vadd.f32 %v7773, %v8655
      %v8892 = vadd.f32 %v7774, %v8660
      %v8893 = vadd.f32 %v7775, %v8663
      %v8894 = vadd.f32 %v7776, %v8668
      %v8895 = vadd.f32 %v7777, %v8671
      %v8896 = vadd.f32 %v7778, %v8676
      %v8897 = vadd.f32 %v7779, %v8679
      %v8898 = vadd.f32 %v7780, %v8684
      %v8899 = vadd.f32 %v7781, %v8687
      %v8900 = vadd.f32 %v7782, %v8692
      %v8901 = vadd.f32 %v7783, %v8695
      %v8902 = vadd.f32 %v7784, %v8700
      %v8903 = vadd.f32 %v7785, %v8703
      %v8904 = vadd.f32 %v7786, %v8708
      %v8905 = vadd.f32 %v7787, %v8711
      %v8906 = vadd.f32 %v7788, %v8716
      %v8907 = vadd.f32 %v7789, %v8719
      %v8908 = vadd.f32 %v7790, %v8724
      %v8909 = vadd.f32 %v7791, %v8727
      %v8910 = vadd.f32 %v7792, %v8732
      %v8911 = vadd.f32 %v7793, %v8735
      %v8912 = vadd.f32 %v7794, %v8740
      %v8913 = vadd.f32 %v7795, %v8743
      %v8914 = vadd.f32 %v7796, %v8748
      %v8915 = vadd.f32 %v7797, %v8751
      %v8916 = vadd.f32 %v7798, %v8756
      %v8917 = vadd.f32 %v7799, %v8759
      %v8918 = vadd.f32 %v7800, %v8764
      %v8919 = vadd.f32 %v7801, %v8767
      %v8920 = vadd.f32 %v7802, %v8772
      %v8921 = vadd.f32 %v7803, %v8775
      %v8922 = vadd.f32 %v7804, %v8780
      %v8923 = vadd.f32 %v7805, %v8783
      %v8924 = vadd.f32 %v7806, %v8788
      %v8925 = vadd.f32 %v7807, %v8791
      %v8926 = vadd.f32 %v7808, %v8796
      %v8927 = vadd.f32 %v7809, %v8799
      %v8928 = vadd.f32 %v7810, %v8804
      %v8929 = vadd.f32 %v7811, %v8807
      %v8930 = vadd.f32 %v7812, %v8812
      %v8931 = vadd.f32 %v7813, %v8815
      %v8932 = vadd.f32 %v7814, %v8820
      %v8933 = vadd.f32 %v7815, %v8823
      %v8934 = vadd.f32 %v7816, %v8828
      %v8935 = vadd.f32 %v7817, %v8831
      %v8936 = vadd.f32 %v7818, %v8836
      %v8937 = vadd.f32 %v7819, %v8839
      %s8938 = smul.u32 %s20, 768
      %v8939 = vld [vmem:[%s291] sm:$0xff]
      %v8940 = vld [vmem:[%s291 + $0x8] sm:$0xff]
      %v8941 = vld [vmem:[%s291 + $0x10] sm:$0xff]
      %v8942 = vld [vmem:[%s291 + $0x18] sm:$0xff]
      %v8943 = vld [vmem:[%s291 + $0x20] sm:$0xff]
      %v8944 = vld [vmem:[%s291 + $0x28] sm:$0xff]
      %v8945 = vld [vmem:[%s291 + $0x30] sm:$0xff]
      %v8946 = vld [vmem:[%s291 + $0x38] sm:$0xff]
      %v8947 = vld [vmem:[%s291 + $0x40] sm:$0xff]
      %v8948 = vld [vmem:[%s291 + $0x48] sm:$0xff]
      %v8949 = vld [vmem:[%s291 + $0x50] sm:$0xff]
      %v8950 = vld [vmem:[%s291 + $0x58] sm:$0xff]
      %v8951 = vld [vmem:[%s291 + $0x60] sm:$0xff]
      %v8952 = vld [vmem:[%s291 + $0x68] sm:$0xff]
      %v8953 = vld [vmem:[%s291 + $0x70] sm:$0xff]
      %v8954 = vld [vmem:[%s291 + $0x78] sm:$0xff]
      %v8955 = vld [vmem:[%s291 + $0x80] sm:$0xff]
      %v8956 = vld [vmem:[%s291 + $0x88] sm:$0xff]
      %v8957 = vld [vmem:[%s291 + $0x90] sm:$0xff]
      %v8958 = vld [vmem:[%s291 + $0x98] sm:$0xff]
      %v8959 = vld [vmem:[%s291 + $0xa0] sm:$0xff]
      %v8960 = vld [vmem:[%s291 + $0xa8] sm:$0xff]
      %v8961 = vld [vmem:[%s291 + $0xb0] sm:$0xff]
      %v8962 = vld [vmem:[%s291 + $0xb8] sm:$0xff]
      %v8963 = vld [vmem:[%s291 + $0xc0] sm:$0xff]
      %v8964 = vld [vmem:[%s291 + $0xc8] sm:$0xff]
      %v8965 = vld [vmem:[%s291 + $0xd0] sm:$0xff]
      %v8966 = vld [vmem:[%s291 + $0xd8] sm:$0xff]
      %v8967 = vld [vmem:[%s291 + $0xe0] sm:$0xff]
      %v8968 = vld [vmem:[%s291 + $0xe8] sm:$0xff]
      %v8969 = vld [vmem:[%s291 + $0xf0] sm:$0xff]
      %v8970 = vld [vmem:[%s291 + $0xf8] sm:$0xff]
      %v8971 = vld [vmem:[%s291 + $0x100] sm:$0xff]
      %v8972 = vld [vmem:[%s291 + $0x108] sm:$0xff]
      %v8973 = vld [vmem:[%s291 + $0x110] sm:$0xff]
      %v8974 = vld [vmem:[%s291 + $0x118] sm:$0xff]
      %v8975 = vld [vmem:[%s291 + $0x120] sm:$0xff]
      %v8976 = vld [vmem:[%s291 + $0x128] sm:$0xff]
      %v8977 = vld [vmem:[%s291 + $0x130] sm:$0xff]
      %v8978 = vld [vmem:[%s291 + $0x138] sm:$0xff]
      %v8979 = vld [vmem:[%s291 + $0x140] sm:$0xff]
      %v8980 = vld [vmem:[%s291 + $0x148] sm:$0xff]
      %v8981 = vld [vmem:[%s291 + $0x150] sm:$0xff]
      %v8982 = vld [vmem:[%s291 + $0x158] sm:$0xff]
      %v8983 = vld [vmem:[%s291 + $0x160] sm:$0xff]
      %v8984 = vld [vmem:[%s291 + $0x168] sm:$0xff]
      %v8985 = vld [vmem:[%s291 + $0x170] sm:$0xff]
      %v8986 = vld [vmem:[%s291 + $0x178] sm:$0xff]
      %v8987 = vld [vmem:[%s291 + $0x180] sm:$0xff]
      %v8988 = vld [vmem:[%s291 + $0x188] sm:$0xff]
      %v8989 = vld [vmem:[%s291 + $0x190] sm:$0xff]
      %v8990 = vld [vmem:[%s291 + $0x198] sm:$0xff]
      %v8991 = vld [vmem:[%s291 + $0x1a0] sm:$0xff]
      %v8992 = vld [vmem:[%s291 + $0x1a8] sm:$0xff]
      %v8993 = vld [vmem:[%s291 + $0x1b0] sm:$0xff]
      %v8994 = vld [vmem:[%s291 + $0x1b8] sm:$0xff]
      %v8995 = vld [vmem:[%s291 + $0x1c0] sm:$0xff]
      %v8996 = vld [vmem:[%s291 + $0x1c8] sm:$0xff]
      %v8997 = vld [vmem:[%s291 + $0x1d0] sm:$0xff]
      %v8998 = vld [vmem:[%s291 + $0x1d8] sm:$0xff]
      %v8999 = vld [vmem:[%s291 + $0x1e0] sm:$0xff]
      %v9000 = vld [vmem:[%s291 + $0x1e8] sm:$0xff]
      %v9001 = vld [vmem:[%s291 + $0x1f0] sm:$0xff]
      %v9002 = vld [vmem:[%s291 + $0x1f8] sm:$0xff]
      %v9003 = vld [vmem:[%s291 + $0x200] sm:$0xff]
      %v9004 = vld [vmem:[%s291 + $0x208] sm:$0xff]
      %v9005 = vld [vmem:[%s291 + $0x210] sm:$0xff]
      %v9006 = vld [vmem:[%s291 + $0x218] sm:$0xff]
      %v9007 = vld [vmem:[%s291 + $0x220] sm:$0xff]
      %v9008 = vld [vmem:[%s291 + $0x228] sm:$0xff]
      %v9009 = vld [vmem:[%s291 + $0x230] sm:$0xff]
      %v9010 = vld [vmem:[%s291 + $0x238] sm:$0xff]
      %v9011 = vld [vmem:[%s291 + $0x240] sm:$0xff]
      %v9012 = vld [vmem:[%s291 + $0x248] sm:$0xff]
      %v9013 = vld [vmem:[%s291 + $0x250] sm:$0xff]
      %v9014 = vld [vmem:[%s291 + $0x258] sm:$0xff]
      %v9015 = vld [vmem:[%s291 + $0x260] sm:$0xff]
      %v9016 = vld [vmem:[%s291 + $0x268] sm:$0xff]
      %v9017 = vld [vmem:[%s291 + $0x270] sm:$0xff]
      %v9018 = vld [vmem:[%s291 + $0x278] sm:$0xff]
      %v9019 = vld [vmem:[%s291 + $0x280] sm:$0xff]
      %v9020 = vld [vmem:[%s291 + $0x288] sm:$0xff]
      %v9021 = vld [vmem:[%s291 + $0x290] sm:$0xff]
      %v9022 = vld [vmem:[%s291 + $0x298] sm:$0xff]
      %v9023 = vld [vmem:[%s291 + $0x2a0] sm:$0xff]
      %v9024 = vld [vmem:[%s291 + $0x2a8] sm:$0xff]
      %v9025 = vld [vmem:[%s291 + $0x2b0] sm:$0xff]
      %v9026 = vld [vmem:[%s291 + $0x2b8] sm:$0xff]
      %v9027 = vld [vmem:[%s291 + $0x2c0] sm:$0xff]
      %v9028 = vld [vmem:[%s291 + $0x2c8] sm:$0xff]
      %v9029 = vld [vmem:[%s291 + $0x2d0] sm:$0xff]
      %v9030 = vld [vmem:[%s291 + $0x2d8] sm:$0xff]
      %v9031 = vld [vmem:[%s291 + $0x2e0] sm:$0xff]
      %v9032 = vld [vmem:[%s291 + $0x2e8] sm:$0xff]
      %v9033 = vld [vmem:[%s291 + $0x2f0] sm:$0xff]
      %v9034 = vld [vmem:[%s291 + $0x2f8] sm:$0xff]
      %9036 = vset.pattern.permute.xlu0 0
      %9037 = vperm.xlu0 %9036, %v8939
      %v9038 = vpop.permute.xlu0 %9037
      %9041 = vset.pattern.permute.xlu0 0
      %9042 = vperm.xlu0 %9041, %v8940
      %v9043 = vpop.permute.xlu0 %9042
      %9046 = vset.pattern.permute.xlu0 0
      %9047 = vperm.xlu0 %9046, %v8941
      %v9048 = vpop.permute.xlu0 %9047
      %9051 = vset.pattern.permute.xlu0 0
      %9052 = vperm.xlu0 %9051, %v8942
      %v9053 = vpop.permute.xlu0 %9052
      %9056 = vset.pattern.permute.xlu0 0
      %9057 = vperm.xlu0 %9056, %v8943
      %v9058 = vpop.permute.xlu0 %9057
      %9061 = vset.pattern.permute.xlu0 0
      %9062 = vperm.xlu0 %9061, %v8944
      %v9063 = vpop.permute.xlu0 %9062
      %9066 = vset.pattern.permute.xlu0 0
      %9067 = vperm.xlu0 %9066, %v8945
      %v9068 = vpop.permute.xlu0 %9067
      %9071 = vset.pattern.permute.xlu0 0
      %9072 = vperm.xlu0 %9071, %v8946
      %v9073 = vpop.permute.xlu0 %9072
      %9076 = vset.pattern.permute.xlu0 0
      %9077 = vperm.xlu0 %9076, %v8947
      %v9078 = vpop.permute.xlu0 %9077
      %9081 = vset.pattern.permute.xlu0 0
      %9082 = vperm.xlu0 %9081, %v8948
      %v9083 = vpop.permute.xlu0 %9082
      %9086 = vset.pattern.permute.xlu0 0
      %9087 = vperm.xlu0 %9086, %v8949
      %v9088 = vpop.permute.xlu0 %9087
      %9091 = vset.pattern.permute.xlu0 0
      %9092 = vperm.xlu0 %9091, %v8950
      %v9093 = vpop.permute.xlu0 %9092
      %9096 = vset.pattern.permute.xlu0 0
      %9097 = vperm.xlu0 %9096, %v8951
      %v9098 = vpop.permute.xlu0 %9097
      %9101 = vset.pattern.permute.xlu0 0
      %9102 = vperm.xlu0 %9101, %v8952
      %v9103 = vpop.permute.xlu0 %9102
      %9106 = vset.pattern.permute.xlu0 0
      %9107 = vperm.xlu0 %9106, %v8953
      %v9108 = vpop.permute.xlu0 %9107
      %9111 = vset.pattern.permute.xlu0 0
      %9112 = vperm.xlu0 %9111, %v8954
      %v9113 = vpop.permute.xlu0 %9112
      %9116 = vset.pattern.permute.xlu0 0
      %9117 = vperm.xlu0 %9116, %v8955
      %v9118 = vpop.permute.xlu0 %9117
      %9121 = vset.pattern.permute.xlu0 0
      %9122 = vperm.xlu0 %9121, %v8956
      %v9123 = vpop.permute.xlu0 %9122
      %9126 = vset.pattern.permute.xlu0 0
      %9127 = vperm.xlu0 %9126, %v8957
      %v9128 = vpop.permute.xlu0 %9127
      %9131 = vset.pattern.permute.xlu0 0
      %9132 = vperm.xlu0 %9131, %v8958
      %v9133 = vpop.permute.xlu0 %9132
      %9136 = vset.pattern.permute.xlu0 0
      %9137 = vperm.xlu0 %9136, %v8959
      %v9138 = vpop.permute.xlu0 %9137
      %9141 = vset.pattern.permute.xlu0 0
      %9142 = vperm.xlu0 %9141, %v8960
      %v9143 = vpop.permute.xlu0 %9142
      %9146 = vset.pattern.permute.xlu0 0
      %9147 = vperm.xlu0 %9146, %v8961
      %v9148 = vpop.permute.xlu0 %9147
      %9151 = vset.pattern.permute.xlu0 0
      %9152 = vperm.xlu0 %9151, %v8962
      %v9153 = vpop.permute.xlu0 %9152
      %9156 = vset.pattern.permute.xlu0 0
      %9157 = vperm.xlu0 %9156, %v8963
      %v9158 = vpop.permute.xlu0 %9157
      %9161 = vset.pattern.permute.xlu0 0
      %9162 = vperm.xlu0 %9161, %v8964
      %v9163 = vpop.permute.xlu0 %9162
      %9166 = vset.pattern.permute.xlu0 0
      %9167 = vperm.xlu0 %9166, %v8965
      %v9168 = vpop.permute.xlu0 %9167
      %9171 = vset.pattern.permute.xlu0 0
      %9172 = vperm.xlu0 %9171, %v8966
      %v9173 = vpop.permute.xlu0 %9172
      %9176 = vset.pattern.permute.xlu0 0
      %9177 = vperm.xlu0 %9176, %v8967
      %v9178 = vpop.permute.xlu0 %9177
      %9181 = vset.pattern.permute.xlu0 0
      %9182 = vperm.xlu0 %9181, %v8968
      %v9183 = vpop.permute.xlu0 %9182
      %9186 = vset.pattern.permute.xlu0 0
      %9187 = vperm.xlu0 %9186, %v8969
      %v9188 = vpop.permute.xlu0 %9187
      %9191 = vset.pattern.permute.xlu0 0
      %9192 = vperm.xlu0 %9191, %v8970
      %v9193 = vpop.permute.xlu0 %9192
      %9196 = vset.pattern.permute.xlu0 0
      %9197 = vperm.xlu0 %9196, %v8971
      %v9198 = vpop.permute.xlu0 %9197
      %9201 = vset.pattern.permute.xlu0 0
      %9202 = vperm.xlu0 %9201, %v8972
      %v9203 = vpop.permute.xlu0 %9202
      %9206 = vset.pattern.permute.xlu0 0
      %9207 = vperm.xlu0 %9206, %v8973
      %v9208 = vpop.permute.xlu0 %9207
      %9211 = vset.pattern.permute.xlu0 0
      %9212 = vperm.xlu0 %9211, %v8974
      %v9213 = vpop.permute.xlu0 %9212
      %9216 = vset.pattern.permute.xlu0 0
      %9217 = vperm.xlu0 %9216, %v8975
      %v9218 = vpop.permute.xlu0 %9217
      %9221 = vset.pattern.permute.xlu0 0
      %9222 = vperm.xlu0 %9221, %v8976
      %v9223 = vpop.permute.xlu0 %9222
      %9226 = vset.pattern.permute.xlu0 0
      %9227 = vperm.xlu0 %9226, %v8977
      %v9228 = vpop.permute.xlu0 %9227
      %9231 = vset.pattern.permute.xlu0 0
      %9232 = vperm.xlu0 %9231, %v8978
      %v9233 = vpop.permute.xlu0 %9232
      %9236 = vset.pattern.permute.xlu0 0
      %9237 = vperm.xlu0 %9236, %v8979
      %v9238 = vpop.permute.xlu0 %9237
      %9241 = vset.pattern.permute.xlu0 0
      %9242 = vperm.xlu0 %9241, %v8980
      %v9243 = vpop.permute.xlu0 %9242
      %9246 = vset.pattern.permute.xlu0 0
      %9247 = vperm.xlu0 %9246, %v8981
      %v9248 = vpop.permute.xlu0 %9247
      %9251 = vset.pattern.permute.xlu0 0
      %9252 = vperm.xlu0 %9251, %v8982
      %v9253 = vpop.permute.xlu0 %9252
      %9256 = vset.pattern.permute.xlu0 0
      %9257 = vperm.xlu0 %9256, %v8983
      %v9258 = vpop.permute.xlu0 %9257
      %9261 = vset.pattern.permute.xlu0 0
      %9262 = vperm.xlu0 %9261, %v8984
      %v9263 = vpop.permute.xlu0 %9262
      %9266 = vset.pattern.permute.xlu0 0
      %9267 = vperm.xlu0 %9266, %v8985
      %v9268 = vpop.permute.xlu0 %9267
      %9271 = vset.pattern.permute.xlu0 0
      %9272 = vperm.xlu0 %9271, %v8986
      %v9273 = vpop.permute.xlu0 %9272
      %9276 = vset.pattern.permute.xlu0 0
      %9277 = vperm.xlu0 %9276, %v8987
      %v9278 = vpop.permute.xlu0 %9277
      %9281 = vset.pattern.permute.xlu0 0
      %9282 = vperm.xlu0 %9281, %v8988
      %v9283 = vpop.permute.xlu0 %9282
      %9286 = vset.pattern.permute.xlu0 0
      %9287 = vperm.xlu0 %9286, %v8989
      %v9288 = vpop.permute.xlu0 %9287
      %9291 = vset.pattern.permute.xlu0 0
      %9292 = vperm.xlu0 %9291, %v8990
      %v9293 = vpop.permute.xlu0 %9292
      %9296 = vset.pattern.permute.xlu0 0
      %9297 = vperm.xlu0 %9296, %v8991
      %v9298 = vpop.permute.xlu0 %9297
      %9301 = vset.pattern.permute.xlu0 0
      %9302 = vperm.xlu0 %9301, %v8992
      %v9303 = vpop.permute.xlu0 %9302
      %9306 = vset.pattern.permute.xlu0 0
      %9307 = vperm.xlu0 %9306, %v8993
      %v9308 = vpop.permute.xlu0 %9307
      %9311 = vset.pattern.permute.xlu0 0
      %9312 = vperm.xlu0 %9311, %v8994
      %v9313 = vpop.permute.xlu0 %9312
      %9316 = vset.pattern.permute.xlu0 0
      %9317 = vperm.xlu0 %9316, %v8995
      %v9318 = vpop.permute.xlu0 %9317
      %9321 = vset.pattern.permute.xlu0 0
      %9322 = vperm.xlu0 %9321, %v8996
      %v9323 = vpop.permute.xlu0 %9322
      %9326 = vset.pattern.permute.xlu0 0
      %9327 = vperm.xlu0 %9326, %v8997
      %v9328 = vpop.permute.xlu0 %9327
      %9331 = vset.pattern.permute.xlu0 0
      %9332 = vperm.xlu0 %9331, %v8998
      %v9333 = vpop.permute.xlu0 %9332
      %9336 = vset.pattern.permute.xlu0 0
      %9337 = vperm.xlu0 %9336, %v8999
      %v9338 = vpop.permute.xlu0 %9337
      %9341 = vset.pattern.permute.xlu0 0
      %9342 = vperm.xlu0 %9341, %v9000
      %v9343 = vpop.permute.xlu0 %9342
      %9346 = vset.pattern.permute.xlu0 0
      %9347 = vperm.xlu0 %9346, %v9001
      %v9348 = vpop.permute.xlu0 %9347
      %9351 = vset.pattern.permute.xlu0 0
      %9352 = vperm.xlu0 %9351, %v9002
      %v9353 = vpop.permute.xlu0 %9352
      %9356 = vset.pattern.permute.xlu0 0
      %9357 = vperm.xlu0 %9356, %v9003
      %v9358 = vpop.permute.xlu0 %9357
      %9361 = vset.pattern.permute.xlu0 0
      %9362 = vperm.xlu0 %9361, %v9004
      %v9363 = vpop.permute.xlu0 %9362
      %9366 = vset.pattern.permute.xlu0 0
      %9367 = vperm.xlu0 %9366, %v9005
      %v9368 = vpop.permute.xlu0 %9367
      %9371 = vset.pattern.permute.xlu0 0
      %9372 = vperm.xlu0 %9371, %v9006
      %v9373 = vpop.permute.xlu0 %9372
      %9376 = vset.pattern.permute.xlu0 0
      %9377 = vperm.xlu0 %9376, %v9007
      %v9378 = vpop.permute.xlu0 %9377
      %9381 = vset.pattern.permute.xlu0 0
      %9382 = vperm.xlu0 %9381, %v9008
      %v9383 = vpop.permute.xlu0 %9382
      %9386 = vset.pattern.permute.xlu0 0
      %9387 = vperm.xlu0 %9386, %v9009
      %v9388 = vpop.permute.xlu0 %9387
      %9391 = vset.pattern.permute.xlu0 0
      %9392 = vperm.xlu0 %9391, %v9010
      %v9393 = vpop.permute.xlu0 %9392
      %9396 = vset.pattern.permute.xlu0 0
      %9397 = vperm.xlu0 %9396, %v9011
      %v9398 = vpop.permute.xlu0 %9397
      %9401 = vset.pattern.permute.xlu0 0
      %9402 = vperm.xlu0 %9401, %v9012
      %v9403 = vpop.permute.xlu0 %9402
      %9406 = vset.pattern.permute.xlu0 0
      %9407 = vperm.xlu0 %9406, %v9013
      %v9408 = vpop.permute.xlu0 %9407
      %9411 = vset.pattern.permute.xlu0 0
      %9412 = vperm.xlu0 %9411, %v9014
      %v9413 = vpop.permute.xlu0 %9412
      %9416 = vset.pattern.permute.xlu0 0
      %9417 = vperm.xlu0 %9416, %v9015
      %v9418 = vpop.permute.xlu0 %9417
      %9421 = vset.pattern.permute.xlu0 0
      %9422 = vperm.xlu0 %9421, %v9016
      %v9423 = vpop.permute.xlu0 %9422
      %9426 = vset.pattern.permute.xlu0 0
      %9427 = vperm.xlu0 %9426, %v9017
      %v9428 = vpop.permute.xlu0 %9427
      %9431 = vset.pattern.permute.xlu0 0
      %9432 = vperm.xlu0 %9431, %v9018
      %v9433 = vpop.permute.xlu0 %9432
      %9436 = vset.pattern.permute.xlu0 0
      %9437 = vperm.xlu0 %9436, %v9019
      %v9438 = vpop.permute.xlu0 %9437
      %9441 = vset.pattern.permute.xlu0 0
      %9442 = vperm.xlu0 %9441, %v9020
      %v9443 = vpop.permute.xlu0 %9442
      %9446 = vset.pattern.permute.xlu0 0
      %9447 = vperm.xlu0 %9446, %v9021
      %v9448 = vpop.permute.xlu0 %9447
      %9451 = vset.pattern.permute.xlu0 0
      %9452 = vperm.xlu0 %9451, %v9022
      %v9453 = vpop.permute.xlu0 %9452
      %9456 = vset.pattern.permute.xlu0 0
      %9457 = vperm.xlu0 %9456, %v9023
      %v9458 = vpop.permute.xlu0 %9457
      %9461 = vset.pattern.permute.xlu0 0
      %9462 = vperm.xlu0 %9461, %v9024
      %v9463 = vpop.permute.xlu0 %9462
      %9466 = vset.pattern.permute.xlu0 0
      %9467 = vperm.xlu0 %9466, %v9025
      %v9468 = vpop.permute.xlu0 %9467
      %9471 = vset.pattern.permute.xlu0 0
      %9472 = vperm.xlu0 %9471, %v9026
      %v9473 = vpop.permute.xlu0 %9472
      %9476 = vset.pattern.permute.xlu0 0
      %9477 = vperm.xlu0 %9476, %v9027
      %v9478 = vpop.permute.xlu0 %9477
      %9481 = vset.pattern.permute.xlu0 0
      %9482 = vperm.xlu0 %9481, %v9028
      %v9483 = vpop.permute.xlu0 %9482
      %9486 = vset.pattern.permute.xlu0 0
      %9487 = vperm.xlu0 %9486, %v9029
      %v9488 = vpop.permute.xlu0 %9487
      %9491 = vset.pattern.permute.xlu0 0
      %9492 = vperm.xlu0 %9491, %v9030
      %v9493 = vpop.permute.xlu0 %9492
      %9496 = vset.pattern.permute.xlu0 0
      %9497 = vperm.xlu0 %9496, %v9031
      %v9498 = vpop.permute.xlu0 %9497
      %9501 = vset.pattern.permute.xlu0 0
      %9502 = vperm.xlu0 %9501, %v9032
      %v9503 = vpop.permute.xlu0 %9502
      %9506 = vset.pattern.permute.xlu0 0
      %9507 = vperm.xlu0 %9506, %v9033
      %v9508 = vpop.permute.xlu0 %9507
      %9511 = vset.pattern.permute.xlu0 0
      %9512 = vperm.xlu0 %9511, %v9034
      %v9513 = vpop.permute.xlu0 %9512
      %v9515 = vmul.f32 %v8842, %v9038
      %v9516 = vmul.f32 %v8843, %v9043
      %v9517 = vmul.f32 %v8844, %v9048
      %v9518 = vmul.f32 %v8845, %v9053
      %v9519 = vmul.f32 %v8846, %v9058
      %v9520 = vmul.f32 %v8847, %v9063
      %v9521 = vmul.f32 %v8848, %v9068
      %v9522 = vmul.f32 %v8849, %v9073
      %v9523 = vmul.f32 %v8850, %v9078
      %v9524 = vmul.f32 %v8851, %v9083
      %v9525 = vmul.f32 %v8852, %v9088
      %v9526 = vmul.f32 %v8853, %v9093
      %v9527 = vmul.f32 %v8854, %v9098
      %v9528 = vmul.f32 %v8855, %v9103
      %v9529 = vmul.f32 %v8856, %v9108
      %v9530 = vmul.f32 %v8857, %v9113
      %v9531 = vmul.f32 %v8858, %v9118
      %v9532 = vmul.f32 %v8859, %v9123
      %v9533 = vmul.f32 %v8860, %v9128
      %v9534 = vmul.f32 %v8861, %v9133
      %v9535 = vmul.f32 %v8862, %v9138
      %v9536 = vmul.f32 %v8863, %v9143
      %v9537 = vmul.f32 %v8864, %v9148
      %v9538 = vmul.f32 %v8865, %v9153
      %v9539 = vmul.f32 %v8866, %v9158
      %v9540 = vmul.f32 %v8867, %v9163
      %v9541 = vmul.f32 %v8868, %v9168
      %v9542 = vmul.f32 %v8869, %v9173
      %v9543 = vmul.f32 %v8870, %v9178
      %v9544 = vmul.f32 %v8871, %v9183
      %v9545 = vmul.f32 %v8872, %v9188
      %v9546 = vmul.f32 %v8873, %v9193
      %v9547 = vmul.f32 %v8874, %v9198
      %v9548 = vmul.f32 %v8875, %v9203
      %v9549 = vmul.f32 %v8876, %v9208
      %v9550 = vmul.f32 %v8877, %v9213
      %v9551 = vmul.f32 %v8878, %v9218
      %v9552 = vmul.f32 %v8879, %v9223
      %v9553 = vmul.f32 %v8880, %v9228
      %v9554 = vmul.f32 %v8881, %v9233
      %v9555 = vmul.f32 %v8882, %v9238
      %v9556 = vmul.f32 %v8883, %v9243
      %v9557 = vmul.f32 %v8884, %v9248
      %v9558 = vmul.f32 %v8885, %v9253
      %v9559 = vmul.f32 %v8886, %v9258
      %v9560 = vmul.f32 %v8887, %v9263
      %v9561 = vmul.f32 %v8888, %v9268
      %v9562 = vmul.f32 %v8889, %v9273
      %v9563 = vmul.f32 %v8890, %v9278
      %v9564 = vmul.f32 %v8891, %v9283
      %v9565 = vmul.f32 %v8892, %v9288
      %v9566 = vmul.f32 %v8893, %v9293
      %v9567 = vmul.f32 %v8894, %v9298
      %v9568 = vmul.f32 %v8895, %v9303
      %v9569 = vmul.f32 %v8896, %v9308
      %v9570 = vmul.f32 %v8897, %v9313
      %v9571 = vmul.f32 %v8898, %v9318
      %v9572 = vmul.f32 %v8899, %v9323
      %v9573 = vmul.f32 %v8900, %v9328
      %v9574 = vmul.f32 %v8901, %v9333
      %v9575 = vmul.f32 %v8902, %v9338
      %v9576 = vmul.f32 %v8903, %v9343
      %v9577 = vmul.f32 %v8904, %v9348
      %v9578 = vmul.f32 %v8905, %v9353
      %v9579 = vmul.f32 %v8906, %v9358
      %v9580 = vmul.f32 %v8907, %v9363
      %v9581 = vmul.f32 %v8908, %v9368
      %v9582 = vmul.f32 %v8909, %v9373
      %v9583 = vmul.f32 %v8910, %v9378
      %v9584 = vmul.f32 %v8911, %v9383
      %v9585 = vmul.f32 %v8912, %v9388
      %v9586 = vmul.f32 %v8913, %v9393
      %v9587 = vmul.f32 %v8914, %v9398
      %v9588 = vmul.f32 %v8915, %v9403
      %v9589 = vmul.f32 %v8916, %v9408
      %v9590 = vmul.f32 %v8917, %v9413
      %v9591 = vmul.f32 %v8918, %v9418
      %v9592 = vmul.f32 %v8919, %v9423
      %v9593 = vmul.f32 %v8920, %v9428
      %v9594 = vmul.f32 %v8921, %v9433
      %v9595 = vmul.f32 %v8922, %v9438
      %v9596 = vmul.f32 %v8923, %v9443
      %v9597 = vmul.f32 %v8924, %v9448
      %v9598 = vmul.f32 %v8925, %v9453
      %v9599 = vmul.f32 %v8926, %v9458
      %v9600 = vmul.f32 %v8927, %v9463
      %v9601 = vmul.f32 %v8928, %v9468
      %v9602 = vmul.f32 %v8929, %v9473
      %v9603 = vmul.f32 %v8930, %v9478
      %v9604 = vmul.f32 %v8931, %v9483
      %v9605 = vmul.f32 %v8932, %v9488
      %v9606 = vmul.f32 %v8933, %v9493
      %v9607 = vmul.f32 %v8934, %v9498
      %v9608 = vmul.f32 %v8935, %v9503
      %v9609 = vmul.f32 %v8936, %v9508
      %v9610 = vmul.f32 %v8937, %v9513
      %v9611 = vld [vmem:[#allocation3] sm:$0x1]
      %vm9612 = vcmask 130048
      %v9613 = vsel %vm9612, %v9515, 0.0
      %v9614 = vsel %vm9612, %v9516, 0.0
      %v9615 = vadd.f32 %v9613, %v9614
      %v9616 = vsel %vm9612, %v9517, 0.0
      %v9617 = vadd.f32 %v9615, %v9616
      %v9618 = vsel %vm9612, %v9518, 0.0
      %v9619 = vadd.f32 %v9617, %v9618
      %v9620 = vsel %vm9612, %v9519, 0.0
      %v9621 = vadd.f32 %v9619, %v9620
      %v9622 = vsel %vm9612, %v9520, 0.0
      %v9623 = vadd.f32 %v9621, %v9622
      %v9624 = vsel %vm9612, %v9521, 0.0
      %v9625 = vadd.f32 %v9623, %v9624
      %v9626 = vsel %vm9612, %v9522, 0.0
      %v9627 = vadd.f32 %v9625, %v9626
      %v9628 = vsel %vm9612, %v9523, 0.0
      %v9629 = vadd.f32 %v9627, %v9628
      %v9630 = vsel %vm9612, %v9524, 0.0
      %v9631 = vadd.f32 %v9629, %v9630
      %v9632 = vsel %vm9612, %v9525, 0.0
      %v9633 = vadd.f32 %v9631, %v9632
      %v9634 = vsel %vm9612, %v9526, 0.0
      %v9635 = vadd.f32 %v9633, %v9634
      %v9636 = vsel %vm9612, %v9527, 0.0
      %v9637 = vadd.f32 %v9635, %v9636
      %v9638 = vsel %vm9612, %v9528, 0.0
      %v9639 = vadd.f32 %v9637, %v9638
      %v9640 = vsel %vm9612, %v9529, 0.0
      %v9641 = vadd.f32 %v9639, %v9640
      %v9642 = vsel %vm9612, %v9530, 0.0
      %v9643 = vadd.f32 %v9641, %v9642
      %v9644 = vsel %vm9612, %v9531, 0.0
      %v9645 = vadd.f32 %v9643, %v9644
      %v9646 = vsel %vm9612, %v9532, 0.0
      %v9647 = vadd.f32 %v9645, %v9646
      %v9648 = vsel %vm9612, %v9533, 0.0
      %v9649 = vadd.f32 %v9647, %v9648
      %v9650 = vsel %vm9612, %v9534, 0.0
      %v9651 = vadd.f32 %v9649, %v9650
      %v9652 = vsel %vm9612, %v9535, 0.0
      %v9653 = vadd.f32 %v9651, %v9652
      %v9654 = vsel %vm9612, %v9536, 0.0
      %v9655 = vadd.f32 %v9653, %v9654
      %v9656 = vsel %vm9612, %v9537, 0.0
      %v9657 = vadd.f32 %v9655, %v9656
      %v9658 = vsel %vm9612, %v9538, 0.0
      %v9659 = vadd.f32 %v9657, %v9658
      %v9660 = vsel %vm9612, %v9539, 0.0
      %v9661 = vadd.f32 %v9659, %v9660
      %v9662 = vsel %vm9612, %v9540, 0.0
      %v9663 = vadd.f32 %v9661, %v9662
      %v9664 = vsel %vm9612, %v9541, 0.0
      %v9665 = vadd.f32 %v9663, %v9664
      %v9666 = vsel %vm9612, %v9542, 0.0
      %v9667 = vadd.f32 %v9665, %v9666
      %v9668 = vsel %vm9612, %v9543, 0.0
      %v9669 = vadd.f32 %v9667, %v9668
      %v9670 = vsel %vm9612, %v9544, 0.0
      %v9671 = vadd.f32 %v9669, %v9670
      %v9672 = vsel %vm9612, %v9545, 0.0
      %v9673 = vadd.f32 %v9671, %v9672
      %v9674 = vsel %vm9612, %v9546, 0.0
      %v9675 = vadd.f32 %v9673, %v9674
      %v9676 = vsel %vm9612, %v9547, 0.0
      %v9677 = vadd.f32 %v9675, %v9676
      %v9678 = vsel %vm9612, %v9548, 0.0
      %v9679 = vadd.f32 %v9677, %v9678
      %v9680 = vsel %vm9612, %v9549, 0.0
      %v9681 = vadd.f32 %v9679, %v9680
      %v9682 = vsel %vm9612, %v9550, 0.0
      %v9683 = vadd.f32 %v9681, %v9682
      %v9684 = vsel %vm9612, %v9551, 0.0
      %v9685 = vadd.f32 %v9683, %v9684
      %v9686 = vsel %vm9612, %v9552, 0.0
      %v9687 = vadd.f32 %v9685, %v9686
      %v9688 = vsel %vm9612, %v9553, 0.0
      %v9689 = vadd.f32 %v9687, %v9688
      %v9690 = vsel %vm9612, %v9554, 0.0
      %v9691 = vadd.f32 %v9689, %v9690
      %v9692 = vsel %vm9612, %v9555, 0.0
      %v9693 = vadd.f32 %v9691, %v9692
      %v9694 = vsel %vm9612, %v9556, 0.0
      %v9695 = vadd.f32 %v9693, %v9694
      %v9696 = vsel %vm9612, %v9557, 0.0
      %v9697 = vadd.f32 %v9695, %v9696
      %v9698 = vsel %vm9612, %v9558, 0.0
      %v9699 = vadd.f32 %v9697, %v9698
      %v9700 = vsel %vm9612, %v9559, 0.0
      %v9701 = vadd.f32 %v9699, %v9700
      %v9702 = vsel %vm9612, %v9560, 0.0
      %v9703 = vadd.f32 %v9701, %v9702
      %v9704 = vsel %vm9612, %v9561, 0.0
      %v9705 = vadd.f32 %v9703, %v9704
      %v9706 = vsel %vm9612, %v9562, 0.0
      %v9707 = vadd.f32 %v9705, %v9706
      %v9708 = vsel %vm9612, %v9563, 0.0
      %v9709 = vadd.f32 %v9707, %v9708
      %v9710 = vsel %vm9612, %v9564, 0.0
      %v9711 = vadd.f32 %v9709, %v9710
      %v9712 = vsel %vm9612, %v9565, 0.0
      %v9713 = vadd.f32 %v9711, %v9712
      %v9714 = vsel %vm9612, %v9566, 0.0
      %v9715 = vadd.f32 %v9713, %v9714
      %v9716 = vsel %vm9612, %v9567, 0.0
      %v9717 = vadd.f32 %v9715, %v9716
      %v9718 = vsel %vm9612, %v9568, 0.0
      %v9719 = vadd.f32 %v9717, %v9718
      %v9720 = vsel %vm9612, %v9569, 0.0
      %v9721 = vadd.f32 %v9719, %v9720
      %v9722 = vsel %vm9612, %v9570, 0.0
      %v9723 = vadd.f32 %v9721, %v9722
      %v9724 = vsel %vm9612, %v9571, 0.0
      %v9725 = vadd.f32 %v9723, %v9724
      %v9726 = vsel %vm9612, %v9572, 0.0
      %v9727 = vadd.f32 %v9725, %v9726
      %v9728 = vsel %vm9612, %v9573, 0.0
      %v9729 = vadd.f32 %v9727, %v9728
      %v9730 = vsel %vm9612, %v9574, 0.0
      %v9731 = vadd.f32 %v9729, %v9730
      %v9732 = vsel %vm9612, %v9575, 0.0
      %v9733 = vadd.f32 %v9731, %v9732
      %v9734 = vsel %vm9612, %v9576, 0.0
      %v9735 = vadd.f32 %v9733, %v9734
      %v9736 = vsel %vm9612, %v9577, 0.0
      %v9737 = vadd.f32 %v9735, %v9736
      %v9738 = vsel %vm9612, %v9578, 0.0
      %v9739 = vadd.f32 %v9737, %v9738
      %v9740 = vsel %vm9612, %v9579, 0.0
      %v9741 = vadd.f32 %v9739, %v9740
      %v9742 = vsel %vm9612, %v9580, 0.0
      %v9743 = vadd.f32 %v9741, %v9742
      %v9744 = vsel %vm9612, %v9581, 0.0
      %v9745 = vadd.f32 %v9743, %v9744
      %v9746 = vsel %vm9612, %v9582, 0.0
      %v9747 = vadd.f32 %v9745, %v9746
      %v9748 = vsel %vm9612, %v9583, 0.0
      %v9749 = vadd.f32 %v9747, %v9748
      %v9750 = vsel %vm9612, %v9584, 0.0
      %v9751 = vadd.f32 %v9749, %v9750
      %v9752 = vsel %vm9612, %v9585, 0.0
      %v9753 = vadd.f32 %v9751, %v9752
      %v9754 = vsel %vm9612, %v9586, 0.0
      %v9755 = vadd.f32 %v9753, %v9754
      %v9756 = vsel %vm9612, %v9587, 0.0
      %v9757 = vadd.f32 %v9755, %v9756
      %v9758 = vsel %vm9612, %v9588, 0.0
      %v9759 = vadd.f32 %v9757, %v9758
      %v9760 = vsel %vm9612, %v9589, 0.0
      %v9761 = vadd.f32 %v9759, %v9760
      %v9762 = vsel %vm9612, %v9590, 0.0
      %v9763 = vadd.f32 %v9761, %v9762
      %v9764 = vsel %vm9612, %v9591, 0.0
      %v9765 = vadd.f32 %v9763, %v9764
      %v9766 = vsel %vm9612, %v9592, 0.0
      %v9767 = vadd.f32 %v9765, %v9766
      %v9768 = vsel %vm9612, %v9593, 0.0
      %v9769 = vadd.f32 %v9767, %v9768
      %v9770 = vsel %vm9612, %v9594, 0.0
      %v9771 = vadd.f32 %v9769, %v9770
      %v9772 = vsel %vm9612, %v9595, 0.0
      %v9773 = vadd.f32 %v9771, %v9772
      %v9774 = vsel %vm9612, %v9596, 0.0
      %v9775 = vadd.f32 %v9773, %v9774
      %v9776 = vsel %vm9612, %v9597, 0.0
      %v9777 = vadd.f32 %v9775, %v9776
      %v9778 = vsel %vm9612, %v9598, 0.0
      %v9779 = vadd.f32 %v9777, %v9778
      %v9780 = vsel %vm9612, %v9599, 0.0
      %v9781 = vadd.f32 %v9779, %v9780
      %v9782 = vsel %vm9612, %v9600, 0.0
      %v9783 = vadd.f32 %v9781, %v9782
      %v9784 = vsel %vm9612, %v9601, 0.0
      %v9785 = vadd.f32 %v9783, %v9784
      %v9786 = vsel %vm9612, %v9602, 0.0
      %v9787 = vadd.f32 %v9785, %v9786
      %v9788 = vsel %vm9612, %v9603, 0.0
      %v9789 = vadd.f32 %v9787, %v9788
      %v9790 = vsel %vm9612, %v9604, 0.0
      %v9791 = vadd.f32 %v9789, %v9790
      %v9792 = vsel %vm9612, %v9605, 0.0
      %v9793 = vadd.f32 %v9791, %v9792
      %v9794 = vsel %vm9612, %v9606, 0.0
      %v9795 = vadd.f32 %v9793, %v9794
      %v9796 = vsel %vm9612, %v9607, 0.0
      %v9797 = vadd.f32 %v9795, %v9796
      %v9798 = vsel %vm9612, %v9608, 0.0
      %v9799 = vadd.f32 %v9797, %v9798
      %v9800 = vsel %vm9612, %v9609, 0.0
      %v9801 = vadd.f32 %v9799, %v9800
      %v9802 = vsel %vm9612, %v9610, 0.0
      %v9803 = vadd.f32 %v9801, %v9802
      %v9804 = vrot.slane %v9803, 4
      %v9805 = vadd.f32 %v9803, %v9804
      %v9806 = vrot.slane %v9805, 2
      %v9807 = vadd.f32 %v9805, %v9806
      %v9808 = vrot.slane %v9807, 1
      %v9809 = vadd.f32 %v9807, %v9808
      %v9810 = vadd.f32 %v9611, %v9809
      %vm9811 = vcmask 122880
      %9812 = vst.msk [vmem:[#allocation3] sm:$0x1] %vm9811, %v9810
      %v9813 = vld [vmem:[#allocation4] sm:$0x1]
      %v9814 = vmul.f32 %v8842, %v9515
      %v9815 = vmul.f32 %v8843, %v9516
      %v9816 = vmul.f32 %v8844, %v9517
      %v9817 = vmul.f32 %v8845, %v9518
      %v9818 = vmul.f32 %v8846, %v9519
      %v9819 = vmul.f32 %v8847, %v9520
      %v9820 = vmul.f32 %v8848, %v9521
      %v9821 = vmul.f32 %v8849, %v9522
      %v9822 = vmul.f32 %v8850, %v9523
      %v9823 = vmul.f32 %v8851, %v9524
      %v9824 = vmul.f32 %v8852, %v9525
      %v9825 = vmul.f32 %v8853, %v9526
      %v9826 = vmul.f32 %v8854, %v9527
      %v9827 = vmul.f32 %v8855, %v9528
      %v9828 = vmul.f32 %v8856, %v9529
      %v9829 = vmul.f32 %v8857, %v9530
      %v9830 = vmul.f32 %v8858, %v9531
      %v9831 = vmul.f32 %v8859, %v9532
      %v9832 = vmul.f32 %v8860, %v9533
      %v9833 = vmul.f32 %v8861, %v9534
      %v9834 = vmul.f32 %v8862, %v9535
      %v9835 = vmul.f32 %v8863, %v9536
      %v9836 = vmul.f32 %v8864, %v9537
      %v9837 = vmul.f32 %v8865, %v9538
      %v9838 = vmul.f32 %v8866, %v9539
      %v9839 = vmul.f32 %v8867, %v9540
      %v9840 = vmul.f32 %v8868, %v9541
      %v9841 = vmul.f32 %v8869, %v9542
      %v9842 = vmul.f32 %v8870, %v9543
      %v9843 = vmul.f32 %v8871, %v9544
      %v9844 = vmul.f32 %v8872, %v9545
      %v9845 = vmul.f32 %v8873, %v9546
      %v9846 = vmul.f32 %v8874, %v9547
      %v9847 = vmul.f32 %v8875, %v9548
      %v9848 = vmul.f32 %v8876, %v9549
      %v9849 = vmul.f32 %v8877, %v9550
      %v9850 = vmul.f32 %v8878, %v9551
      %v9851 = vmul.f32 %v8879, %v9552
      %v9852 = vmul.f32 %v8880, %v9553
      %v9853 = vmul.f32 %v8881, %v9554
      %v9854 = vmul.f32 %v8882, %v9555
      %v9855 = vmul.f32 %v8883, %v9556
      %v9856 = vmul.f32 %v8884, %v9557
      %v9857 = vmul.f32 %v8885, %v9558
      %v9858 = vmul.f32 %v8886, %v9559
      %v9859 = vmul.f32 %v8887, %v9560
      %v9860 = vmul.f32 %v8888, %v9561
      %v9861 = vmul.f32 %v8889, %v9562
      %v9862 = vmul.f32 %v8890, %v9563
      %v9863 = vmul.f32 %v8891, %v9564
      %v9864 = vmul.f32 %v8892, %v9565
      %v9865 = vmul.f32 %v8893, %v9566
      %v9866 = vmul.f32 %v8894, %v9567
      %v9867 = vmul.f32 %v8895, %v9568
      %v9868 = vmul.f32 %v8896, %v9569
      %v9869 = vmul.f32 %v8897, %v9570
      %v9870 = vmul.f32 %v8898, %v9571
      %v9871 = vmul.f32 %v8899, %v9572
      %v9872 = vmul.f32 %v8900, %v9573
      %v9873 = vmul.f32 %v8901, %v9574
      %v9874 = vmul.f32 %v8902, %v9575
      %v9875 = vmul.f32 %v8903, %v9576
      %v9876 = vmul.f32 %v8904, %v9577
      %v9877 = vmul.f32 %v8905, %v9578
      %v9878 = vmul.f32 %v8906, %v9579
      %v9879 = vmul.f32 %v8907, %v9580
      %v9880 = vmul.f32 %v8908, %v9581
      %v9881 = vmul.f32 %v8909, %v9582
      %v9882 = vmul.f32 %v8910, %v9583
      %v9883 = vmul.f32 %v8911, %v9584
      %v9884 = vmul.f32 %v8912, %v9585
      %v9885 = vmul.f32 %v8913, %v9586
      %v9886 = vmul.f32 %v8914, %v9587
      %v9887 = vmul.f32 %v8915, %v9588
      %v9888 = vmul.f32 %v8916, %v9589
      %v9889 = vmul.f32 %v8917, %v9590
      %v9890 = vmul.f32 %v8918, %v9591
      %v9891 = vmul.f32 %v8919, %v9592
      %v9892 = vmul.f32 %v8920, %v9593
      %v9893 = vmul.f32 %v8921, %v9594
      %v9894 = vmul.f32 %v8922, %v9595
      %v9895 = vmul.f32 %v8923, %v9596
      %v9896 = vmul.f32 %v8924, %v9597
      %v9897 = vmul.f32 %v8925, %v9598
      %v9898 = vmul.f32 %v8926, %v9599
      %v9899 = vmul.f32 %v8927, %v9600
      %v9900 = vmul.f32 %v8928, %v9601
      %v9901 = vmul.f32 %v8929, %v9602
      %v9902 = vmul.f32 %v8930, %v9603
      %v9903 = vmul.f32 %v8931, %v9604
      %v9904 = vmul.f32 %v8932, %v9605
      %v9905 = vmul.f32 %v8933, %v9606
      %v9906 = vmul.f32 %v8934, %v9607
      %v9907 = vmul.f32 %v8935, %v9608
      %v9908 = vmul.f32 %v8936, %v9609
      %v9909 = vmul.f32 %v8937, %v9610
      %v9910 = vsel %vm9612, %v9814, 0.0
      %v9911 = vsel %vm9612, %v9815, 0.0
      %v9912 = vadd.f32 %v9910, %v9911
      %v9913 = vsel %vm9612, %v9816, 0.0
      %v9914 = vadd.f32 %v9912, %v9913
      %v9915 = vsel %vm9612, %v9817, 0.0
      %v9916 = vadd.f32 %v9914, %v9915
      %v9917 = vsel %vm9612, %v9818, 0.0
      %v9918 = vadd.f32 %v9916, %v9917
      %v9919 = vsel %vm9612, %v9819, 0.0
      %v9920 = vadd.f32 %v9918, %v9919
      %v9921 = vsel %vm9612, %v9820, 0.0
      %v9922 = vadd.f32 %v9920, %v9921
      %v9923 = vsel %vm9612, %v9821, 0.0
      %v9924 = vadd.f32 %v9922, %v9923
      %v9925 = vsel %vm9612, %v9822, 0.0
      %v9926 = vadd.f32 %v9924, %v9925
      %v9927 = vsel %vm9612, %v9823, 0.0
      %v9928 = vadd.f32 %v9926, %v9927
      %v9929 = vsel %vm9612, %v9824, 0.0
      %v9930 = vadd.f32 %v9928, %v9929
      %v9931 = vsel %vm9612, %v9825, 0.0
      %v9932 = vadd.f32 %v9930, %v9931
      %v9933 = vsel %vm9612, %v9826, 0.0
      %v9934 = vadd.f32 %v9932, %v9933
      %v9935 = vsel %vm9612, %v9827, 0.0
      %v9936 = vadd.f32 %v9934, %v9935
      %v9937 = vsel %vm9612, %v9828, 0.0
      %v9938 = vadd.f32 %v9936, %v9937
      %v9939 = vsel %vm9612, %v9829, 0.0
      %v9940 = vadd.f32 %v9938, %v9939
      %v9941 = vsel %vm9612, %v9830, 0.0
      %v9942 = vadd.f32 %v9940, %v9941
      %v9943 = vsel %vm9612, %v9831, 0.0
      %v9944 = vadd.f32 %v9942, %v9943
      %v9945 = vsel %vm9612, %v9832, 0.0
      %v9946 = vadd.f32 %v9944, %v9945
      %v9947 = vsel %vm9612, %v9833, 0.0
      %v9948 = vadd.f32 %v9946, %v9947
      %v9949 = vsel %vm9612, %v9834, 0.0
      %v9950 = vadd.f32 %v9948, %v9949
      %v9951 = vsel %vm9612, %v9835, 0.0
      %v9952 = vadd.f32 %v9950, %v9951
      %v9953 = vsel %vm9612, %v9836, 0.0
      %v9954 = vadd.f32 %v9952, %v9953
      %v9955 = vsel %vm9612, %v9837, 0.0
      %v9956 = vadd.f32 %v9954, %v9955
      %v9957 = vsel %vm9612, %v9838, 0.0
      %v9958 = vadd.f32 %v9956, %v9957
      %v9959 = vsel %vm9612, %v9839, 0.0
      %v9960 = vadd.f32 %v9958, %v9959
      %v9961 = vsel %vm9612, %v9840, 0.0
      %v9962 = vadd.f32 %v9960, %v9961
      %v9963 = vsel %vm9612, %v9841, 0.0
      %v9964 = vadd.f32 %v9962, %v9963
      %v9965 = vsel %vm9612, %v9842, 0.0
      %v9966 = vadd.f32 %v9964, %v9965
      %v9967 = vsel %vm9612, %v9843, 0.0
      %v9968 = vadd.f32 %v9966, %v9967
      %v9969 = vsel %vm9612, %v9844, 0.0
      %v9970 = vadd.f32 %v9968, %v9969
      %v9971 = vsel %vm9612, %v9845, 0.0
      %v9972 = vadd.f32 %v9970, %v9971
      %v9973 = vsel %vm9612, %v9846, 0.0
      %v9974 = vadd.f32 %v9972, %v9973
      %v9975 = vsel %vm9612, %v9847, 0.0
      %v9976 = vadd.f32 %v9974, %v9975
      %v9977 = vsel %vm9612, %v9848, 0.0
      %v9978 = vadd.f32 %v9976, %v9977
      %v9979 = vsel %vm9612, %v9849, 0.0
      %v9980 = vadd.f32 %v9978, %v9979
      %v9981 = vsel %vm9612, %v9850, 0.0
      %v9982 = vadd.f32 %v9980, %v9981
      %v9983 = vsel %vm9612, %v9851, 0.0
      %v9984 = vadd.f32 %v9982, %v9983
      %v9985 = vsel %vm9612, %v9852, 0.0
      %v9986 = vadd.f32 %v9984, %v9985
      %v9987 = vsel %vm9612, %v9853, 0.0
      %v9988 = vadd.f32 %v9986, %v9987
      %v9989 = vsel %vm9612, %v9854, 0.0
      %v9990 = vadd.f32 %v9988, %v9989
      %v9991 = vsel %vm9612, %v9855, 0.0
      %v9992 = vadd.f32 %v9990, %v9991
      %v9993 = vsel %vm9612, %v9856, 0.0
      %v9994 = vadd.f32 %v9992, %v9993
      %v9995 = vsel %vm9612, %v9857, 0.0
      %v9996 = vadd.f32 %v9994, %v9995
      %v9997 = vsel %vm9612, %v9858, 0.0
      %v9998 = vadd.f32 %v9996, %v9997
      %v9999 = vsel %vm9612, %v9859, 0.0
      %v10000 = vadd.f32 %v9998, %v9999
      %v10001 = vsel %vm9612, %v9860, 0.0
      %v10002 = vadd.f32 %v10000, %v10001
      %v10003 = vsel %vm9612, %v9861, 0.0
      %v10004 = vadd.f32 %v10002, %v10003
      %v10005 = vsel %vm9612, %v9862, 0.0
      %v10006 = vadd.f32 %v10004, %v10005
      %v10007 = vsel %vm9612, %v9863, 0.0
      %v10008 = vadd.f32 %v10006, %v10007
      %v10009 = vsel %vm9612, %v9864, 0.0
      %v10010 = vadd.f32 %v10008, %v10009
      %v10011 = vsel %vm9612, %v9865, 0.0
      %v10012 = vadd.f32 %v10010, %v10011
      %v10013 = vsel %vm9612, %v9866, 0.0
      %v10014 = vadd.f32 %v10012, %v10013
      %v10015 = vsel %vm9612, %v9867, 0.0
      %v10016 = vadd.f32 %v10014, %v10015
      %v10017 = vsel %vm9612, %v9868, 0.0
      %v10018 = vadd.f32 %v10016, %v10017
      %v10019 = vsel %vm9612, %v9869, 0.0
      %v10020 = vadd.f32 %v10018, %v10019
      %v10021 = vsel %vm9612, %v9870, 0.0
      %v10022 = vadd.f32 %v10020, %v10021
      %v10023 = vsel %vm9612, %v9871, 0.0
      %v10024 = vadd.f32 %v10022, %v10023
      %v10025 = vsel %vm9612, %v9872, 0.0
      %v10026 = vadd.f32 %v10024, %v10025
      %v10027 = vsel %vm9612, %v9873, 0.0
      %v10028 = vadd.f32 %v10026, %v10027
      %v10029 = vsel %vm9612, %v9874, 0.0
      %v10030 = vadd.f32 %v10028, %v10029
      %v10031 = vsel %vm9612, %v9875, 0.0
      %v10032 = vadd.f32 %v10030, %v10031
      %v10033 = vsel %vm9612, %v9876, 0.0
      %v10034 = vadd.f32 %v10032, %v10033
      %v10035 = vsel %vm9612, %v9877, 0.0
      %v10036 = vadd.f32 %v10034, %v10035
      %v10037 = vsel %vm9612, %v9878, 0.0
      %v10038 = vadd.f32 %v10036, %v10037
      %v10039 = vsel %vm9612, %v9879, 0.0
      %v10040 = vadd.f32 %v10038, %v10039
      %v10041 = vsel %vm9612, %v9880, 0.0
      %v10042 = vadd.f32 %v10040, %v10041
      %v10043 = vsel %vm9612, %v9881, 0.0
      %v10044 = vadd.f32 %v10042, %v10043
      %v10045 = vsel %vm9612, %v9882, 0.0
      %v10046 = vadd.f32 %v10044, %v10045
      %v10047 = vsel %vm9612, %v9883, 0.0
      %v10048 = vadd.f32 %v10046, %v10047
      %v10049 = vsel %vm9612, %v9884, 0.0
      %v10050 = vadd.f32 %v10048, %v10049
      %v10051 = vsel %vm9612, %v9885, 0.0
      %v10052 = vadd.f32 %v10050, %v10051
      %v10053 = vsel %vm9612, %v9886, 0.0
      %v10054 = vadd.f32 %v10052, %v10053
      %v10055 = vsel %vm9612, %v9887, 0.0
      %v10056 = vadd.f32 %v10054, %v10055
      %v10057 = vsel %vm9612, %v9888, 0.0
      %v10058 = vadd.f32 %v10056, %v10057
      %v10059 = vsel %vm9612, %v9889, 0.0
      %v10060 = vadd.f32 %v10058, %v10059
      %v10061 = vsel %vm9612, %v9890, 0.0
      %v10062 = vadd.f32 %v10060, %v10061
      %v10063 = vsel %vm9612, %v9891, 0.0
      %v10064 = vadd.f32 %v10062, %v10063
      %v10065 = vsel %vm9612, %v9892, 0.0
      %v10066 = vadd.f32 %v10064, %v10065
      %v10067 = vsel %vm9612, %v9893, 0.0
      %v10068 = vadd.f32 %v10066, %v10067
      %v10069 = vsel %vm9612, %v9894, 0.0
      %v10070 = vadd.f32 %v10068, %v10069
      %v10071 = vsel %vm9612, %v9895, 0.0
      %v10072 = vadd.f32 %v10070, %v10071
      %v10073 = vsel %vm9612, %v9896, 0.0
      %v10074 = vadd.f32 %v10072, %v10073
      %v10075 = vsel %vm9612, %v9897, 0.0
      %v10076 = vadd.f32 %v10074, %v10075
      %v10077 = vsel %vm9612, %v9898, 0.0
      %v10078 = vadd.f32 %v10076, %v10077
      %v10079 = vsel %vm9612, %v9899, 0.0
      %v10080 = vadd.f32 %v10078, %v10079
      %v10081 = vsel %vm9612, %v9900, 0.0
      %v10082 = vadd.f32 %v10080, %v10081
      %v10083 = vsel %vm9612, %v9901, 0.0
      %v10084 = vadd.f32 %v10082, %v10083
      %v10085 = vsel %vm9612, %v9902, 0.0
      %v10086 = vadd.f32 %v10084, %v10085
      %v10087 = vsel %vm9612, %v9903, 0.0
      %v10088 = vadd.f32 %v10086, %v10087
      %v10089 = vsel %vm9612, %v9904, 0.0
      %v10090 = vadd.f32 %v10088, %v10089
      %v10091 = vsel %vm9612, %v9905, 0.0
      %v10092 = vadd.f32 %v10090, %v10091
      %v10093 = vsel %vm9612, %v9906, 0.0
      %v10094 = vadd.f32 %v10092, %v10093
      %v10095 = vsel %vm9612, %v9907, 0.0
      %v10096 = vadd.f32 %v10094, %v10095
      %v10097 = vsel %vm9612, %v9908, 0.0
      %v10098 = vadd.f32 %v10096, %v10097
      %v10099 = vsel %vm9612, %v9909, 0.0
      %v10100 = vadd.f32 %v10098, %v10099
      %v10101 = vrot.slane %v10100, 4
      %v10102 = vadd.f32 %v10100, %v10101
      %v10103 = vrot.slane %v10102, 2
      %v10104 = vadd.f32 %v10102, %v10103
      %v10105 = vrot.slane %v10104, 1
      %v10106 = vadd.f32 %v10104, %v10105
      %v10107 = vadd.f32 %v9813, %v10106
      %10108 = vst.msk [vmem:[#allocation4] sm:$0x1] %vm9811, %v10107
      %s10109 = scalar_lea.vmem %s297, %s8938
      %10110 = vst.msk [vmem:[%s10109] sm:$0xff] %vm9612, %v8842
      %10111 = vst.msk [vmem:[%s10109 + $0x8] sm:$0xff] %vm9612, %v8843
      %10112 = vst.msk [vmem:[%s10109 + $0x10] sm:$0xff] %vm9612, %v8844
      %10113 = vst.msk [vmem:[%s10109 + $0x18] sm:$0xff] %vm9612, %v8845
      %10114 = vst.msk [vmem:[%s10109 + $0x20] sm:$0xff] %vm9612, %v8846
      %10115 = vst.msk [vmem:[%s10109 + $0x28] sm:$0xff] %vm9612, %v8847
      %10116 = vst.msk [vmem:[%s10109 + $0x30] sm:$0xff] %vm9612, %v8848
      %10117 = vst.msk [vmem:[%s10109 + $0x38] sm:$0xff] %vm9612, %v8849
      %10118 = vst.msk [vmem:[%s10109 + $0x40] sm:$0xff] %vm9612, %v8850
      %10119 = vst.msk [vmem:[%s10109 + $0x48] sm:$0xff] %vm9612, %v8851
      %10120 = vst.msk [vmem:[%s10109 + $0x50] sm:$0xff] %vm9612, %v8852
      %10121 = vst.msk [vmem:[%s10109 + $0x58] sm:$0xff] %vm9612, %v8853
      %10122 = vst.msk [vmem:[%s10109 + $0x60] sm:$0xff] %vm9612, %v8854
      %10123 = vst.msk [vmem:[%s10109 + $0x68] sm:$0xff] %vm9612, %v8855
      %10124 = vst.msk [vmem:[%s10109 + $0x70] sm:$0xff] %vm9612, %v8856
      %10125 = vst.msk [vmem:[%s10109 + $0x78] sm:$0xff] %vm9612, %v8857
      %10126 = vst.msk [vmem:[%s10109 + $0x80] sm:$0xff] %vm9612, %v8858
      %10127 = vst.msk [vmem:[%s10109 + $0x88] sm:$0xff] %vm9612, %v8859
      %10128 = vst.msk [vmem:[%s10109 + $0x90] sm:$0xff] %vm9612, %v8860
      %10129 = vst.msk [vmem:[%s10109 + $0x98] sm:$0xff] %vm9612, %v8861
      %10130 = vst.msk [vmem:[%s10109 + $0xa0] sm:$0xff] %vm9612, %v8862
      %10131 = vst.msk [vmem:[%s10109 + $0xa8] sm:$0xff] %vm9612, %v8863
      %10132 = vst.msk [vmem:[%s10109 + $0xb0] sm:$0xff] %vm9612, %v8864
      %10133 = vst.msk [vmem:[%s10109 + $0xb8] sm:$0xff] %vm9612, %v8865
      %10134 = vst.msk [vmem:[%s10109 + $0xc0] sm:$0xff] %vm9612, %v8866
      %10135 = vst.msk [vmem:[%s10109 + $0xc8] sm:$0xff] %vm9612, %v8867
      %10136 = vst.msk [vmem:[%s10109 + $0xd0] sm:$0xff] %vm9612, %v8868
      %10137 = vst.msk [vmem:[%s10109 + $0xd8] sm:$0xff] %vm9612, %v8869
      %10138 = vst.msk [vmem:[%s10109 + $0xe0] sm:$0xff] %vm9612, %v8870
      %10139 = vst.msk [vmem:[%s10109 + $0xe8] sm:$0xff] %vm9612, %v8871
      %10140 = vst.msk [vmem:[%s10109 + $0xf0] sm:$0xff] %vm9612, %v8872
      %10141 = vst.msk [vmem:[%s10109 + $0xf8] sm:$0xff] %vm9612, %v8873
      %10142 = vst.msk [vmem:[%s10109 + $0x100] sm:$0xff] %vm9612, %v8874
      %10143 = vst.msk [vmem:[%s10109 + $0x108] sm:$0xff] %vm9612, %v8875
      %10144 = vst.msk [vmem:[%s10109 + $0x110] sm:$0xff] %vm9612, %v8876
      %10145 = vst.msk [vmem:[%s10109 + $0x118] sm:$0xff] %vm9612, %v8877
      %10146 = vst.msk [vmem:[%s10109 + $0x120] sm:$0xff] %vm9612, %v8878
      %10147 = vst.msk [vmem:[%s10109 + $0x128] sm:$0xff] %vm9612, %v8879
      %10148 = vst.msk [vmem:[%s10109 + $0x130] sm:$0xff] %vm9612, %v8880
      %10149 = vst.msk [vmem:[%s10109 + $0x138] sm:$0xff] %vm9612, %v8881
      %10150 = vst.msk [vmem:[%s10109 + $0x140] sm:$0xff] %vm9612, %v8882
      %10151 = vst.msk [vmem:[%s10109 + $0x148] sm:$0xff] %vm9612, %v8883
      %10152 = vst.msk [vmem:[%s10109 + $0x150] sm:$0xff] %vm9612, %v8884
      %10153 = vst.msk [vmem:[%s10109 + $0x158] sm:$0xff] %vm9612, %v8885
      %10154 = vst.msk [vmem:[%s10109 + $0x160] sm:$0xff] %vm9612, %v8886
      %10155 = vst.msk [vmem:[%s10109 + $0x168] sm:$0xff] %vm9612, %v8887
      %10156 = vst.msk [vmem:[%s10109 + $0x170] sm:$0xff] %vm9612, %v8888
      %10157 = vst.msk [vmem:[%s10109 + $0x178] sm:$0xff] %vm9612, %v8889
      %10158 = vst.msk [vmem:[%s10109 + $0x180] sm:$0xff] %vm9612, %v8890
      %10159 = vst.msk [vmem:[%s10109 + $0x188] sm:$0xff] %vm9612, %v8891
      %10160 = vst.msk [vmem:[%s10109 + $0x190] sm:$0xff] %vm9612, %v8892
      %10161 = vst.msk [vmem:[%s10109 + $0x198] sm:$0xff] %vm9612, %v8893
      %10162 = vst.msk [vmem:[%s10109 + $0x1a0] sm:$0xff] %vm9612, %v8894
      %10163 = vst.msk [vmem:[%s10109 + $0x1a8] sm:$0xff] %vm9612, %v8895
      %10164 = vst.msk [vmem:[%s10109 + $0x1b0] sm:$0xff] %vm9612, %v8896
      %10165 = vst.msk [vmem:[%s10109 + $0x1b8] sm:$0xff] %vm9612, %v8897
      %10166 = vst.msk [vmem:[%s10109 + $0x1c0] sm:$0xff] %vm9612, %v8898
      %10167 = vst.msk [vmem:[%s10109 + $0x1c8] sm:$0xff] %vm9612, %v8899
      %10168 = vst.msk [vmem:[%s10109 + $0x1d0] sm:$0xff] %vm9612, %v8900
      %10169 = vst.msk [vmem:[%s10109 + $0x1d8] sm:$0xff] %vm9612, %v8901
      %10170 = vst.msk [vmem:[%s10109 + $0x1e0] sm:$0xff] %vm9612, %v8902
      %10171 = vst.msk [vmem:[%s10109 + $0x1e8] sm:$0xff] %vm9612, %v8903
      %10172 = vst.msk [vmem:[%s10109 + $0x1f0] sm:$0xff] %vm9612, %v8904
      %10173 = vst.msk [vmem:[%s10109 + $0x1f8] sm:$0xff] %vm9612, %v8905
      %10174 = vst.msk [vmem:[%s10109 + $0x200] sm:$0xff] %vm9612, %v8906
      %10175 = vst.msk [vmem:[%s10109 + $0x208] sm:$0xff] %vm9612, %v8907
      %10176 = vst.msk [vmem:[%s10109 + $0x210] sm:$0xff] %vm9612, %v8908
      %10177 = vst.msk [vmem:[%s10109 + $0x218] sm:$0xff] %vm9612, %v8909
      %10178 = vst.msk [vmem:[%s10109 + $0x220] sm:$0xff] %vm9612, %v8910
      %10179 = vst.msk [vmem:[%s10109 + $0x228] sm:$0xff] %vm9612, %v8911
      %10180 = vst.msk [vmem:[%s10109 + $0x230] sm:$0xff] %vm9612, %v8912
      %10181 = vst.msk [vmem:[%s10109 + $0x238] sm:$0xff] %vm9612, %v8913
      %10182 = vst.msk [vmem:[%s10109 + $0x240] sm:$0xff] %vm9612, %v8914
      %10183 = vst.msk [vmem:[%s10109 + $0x248] sm:$0xff] %vm9612, %v8915
      %10184 = vst.msk [vmem:[%s10109 + $0x250] sm:$0xff] %vm9612, %v8916
      %10185 = vst.msk [vmem:[%s10109 + $0x258] sm:$0xff] %vm9612, %v8917
      %10186 = vst.msk [vmem:[%s10109 + $0x260] sm:$0xff] %vm9612, %v8918
      %10187 = vst.msk [vmem:[%s10109 + $0x268] sm:$0xff] %vm9612, %v8919
      %10188 = vst.msk [vmem:[%s10109 + $0x270] sm:$0xff] %vm9612, %v8920
      %10189 = vst.msk [vmem:[%s10109 + $0x278] sm:$0xff] %vm9612, %v8921
      %10190 = vst.msk [vmem:[%s10109 + $0x280] sm:$0xff] %vm9612, %v8922
      %10191 = vst.msk [vmem:[%s10109 + $0x288] sm:$0xff] %vm9612, %v8923
      %10192 = vst.msk [vmem:[%s10109 + $0x290] sm:$0xff] %vm9612, %v8924
      %10193 = vst.msk [vmem:[%s10109 + $0x298] sm:$0xff] %vm9612, %v8925
      %10194 = vst.msk [vmem:[%s10109 + $0x2a0] sm:$0xff] %vm9612, %v8926
      %10195 = vst.msk [vmem:[%s10109 + $0x2a8] sm:$0xff] %vm9612, %v8927
      %10196 = vst.msk [vmem:[%s10109 + $0x2b0] sm:$0xff] %vm9612, %v8928
      %10197 = vst.msk [vmem:[%s10109 + $0x2b8] sm:$0xff] %vm9612, %v8929
      %10198 = vst.msk [vmem:[%s10109 + $0x2c0] sm:$0xff] %vm9612, %v8930
      %10199 = vst.msk [vmem:[%s10109 + $0x2c8] sm:$0xff] %vm9612, %v8931
      %10200 = vst.msk [vmem:[%s10109 + $0x2d0] sm:$0xff] %vm9612, %v8932
      %10201 = vst.msk [vmem:[%s10109 + $0x2d8] sm:$0xff] %vm9612, %v8933
      %10202 = vst.msk [vmem:[%s10109 + $0x2e0] sm:$0xff] %vm9612, %v8934
      %10203 = vst.msk [vmem:[%s10109 + $0x2e8] sm:$0xff] %vm9612, %v8935
      %10204 = vst.msk [vmem:[%s10109 + $0x2f0] sm:$0xff] %vm9612, %v8936
      %10205 = vst.msk [vmem:[%s10109 + $0x2f8] sm:$0xff] %vm9612, %v8937
      // Predicated region
      $region41: #{unet_down.1} parent=35 // pred_check
        %p10206 = pneg %p299
      $region42: #{unet_down.1} parent=35 // pred_check_branch
        %10208 = sbr.rel (%p10206) target = $region44
      $region43: #{unet_down.1} parent=35 // pred_region
        %v10209 = vld [vmem:[#allocation3] sm:$0x1]
        %v10210 = vmul.f32 %v10209, 0.001953125
        %v10211 = vld [vmem:[#allocation4] sm:$0x1]
        %v10212 = vmul.f32 %v10211, 0.001953125
        %v10213 = vmul.f32 %v10210, %v10210
        %v10214 = vsub.f32 %v10212, %v10213
        %v10215 = vmax.f32 %v10214, 0.0
        %v10216 = vadd.f32 %v10215, 1e-05
        %v10217 = vrsqrt.pop %v10216
        %v10218 = vld [vmem:[%s297] sm:$0xff]
        %v10219 = vld [vmem:[%s297 + $0x8] sm:$0xff]
        %v10220 = vld [vmem:[%s297 + $0x10] sm:$0xff]
        %v10221 = vld [vmem:[%s297 + $0x18] sm:$0xff]
        %v10222 = vld [vmem:[%s297 + $0x20] sm:$0xff]
        %v10223 = vld [vmem:[%s297 + $0x28] sm:$0xff]
        %v10224 = vld [vmem:[%s297 + $0x30] sm:$0xff]
        %v10225 = vld [vmem:[%s297 + $0x38] sm:$0xff]
        %v10226 = vld [vmem:[%s297 + $0x40] sm:$0xff]
        %v10227 = vld [vmem:[%s297 + $0x48] sm:$0xff]
        %v10228 = vld [vmem:[%s297 + $0x50] sm:$0xff]
        %v10229 = vld [vmem:[%s297 + $0x58] sm:$0xff]
        %v10230 = vld [vmem:[%s297 + $0x60] sm:$0xff]
        %v10231 = vld [vmem:[%s297 + $0x68] sm:$0xff]
        %v10232 = vld [vmem:[%s297 + $0x70] sm:$0xff]
        %v10233 = vld [vmem:[%s297 + $0x78] sm:$0xff]
        %v10234 = vld [vmem:[%s297 + $0x80] sm:$0xff]
        %v10235 = vld [vmem:[%s297 + $0x88] sm:$0xff]
        %v10236 = vld [vmem:[%s297 + $0x90] sm:$0xff]
        %v10237 = vld [vmem:[%s297 + $0x98] sm:$0xff]
        %v10238 = vld [vmem:[%s297 + $0xa0] sm:$0xff]
        %v10239 = vld [vmem:[%s297 + $0xa8] sm:$0xff]
        %v10240 = vld [vmem:[%s297 + $0xb0] sm:$0xff]
        %v10241 = vld [vmem:[%s297 + $0xb8] sm:$0xff]
        %v10242 = vld [vmem:[%s297 + $0xc0] sm:$0xff]
        %v10243 = vld [vmem:[%s297 + $0xc8] sm:$0xff]
        %v10244 = vld [vmem:[%s297 + $0xd0] sm:$0xff]
        %v10245 = vld [vmem:[%s297 + $0xd8] sm:$0xff]
        %v10246 = vld [vmem:[%s297 + $0xe0] sm:$0xff]
        %v10247 = vld [vmem:[%s297 + $0xe8] sm:$0xff]
        %v10248 = vld [vmem:[%s297 + $0xf0] sm:$0xff]
        %v10249 = vld [vmem:[%s297 + $0xf8] sm:$0xff]
        %v10250 = vld [vmem:[%s297 + $0x100] sm:$0xff]
        %v10251 = vld [vmem:[%s297 + $0x108] sm:$0xff]
        %v10252 = vld [vmem:[%s297 + $0x110] sm:$0xff]
        %v10253 = vld [vmem:[%s297 + $0x118] sm:$0xff]
        %v10254 = vld [vmem:[%s297 + $0x120] sm:$0xff]
        %v10255 = vld [vmem:[%s297 + $0x128] sm:$0xff]
        %v10256 = vld [vmem:[%s297 + $0x130] sm:$0xff]
        %v10257 = vld [vmem:[%s297 + $0x138] sm:$0xff]
        %v10258 = vld [vmem:[%s297 + $0x140] sm:$0xff]
        %v10259 = vld [vmem:[%s297 + $0x148] sm:$0xff]
        %v10260 = vld [vmem:[%s297 + $0x150] sm:$0xff]
        %v10261 = vld [vmem:[%s297 + $0x158] sm:$0xff]
        %v10262 = vld [vmem:[%s297 + $0x160] sm:$0xff]
        %v10263 = vld [vmem:[%s297 + $0x168] sm:$0xff]
        %v10264 = vld [vmem:[%s297 + $0x170] sm:$0xff]
        %v10265 = vld [vmem:[%s297 + $0x178] sm:$0xff]
        %v10266 = vld [vmem:[%s297 + $0x180] sm:$0xff]
        %v10267 = vld [vmem:[%s297 + $0x188] sm:$0xff]
        %v10268 = vld [vmem:[%s297 + $0x190] sm:$0xff]
        %v10269 = vld [vmem:[%s297 + $0x198] sm:$0xff]
        %v10270 = vld [vmem:[%s297 + $0x1a0] sm:$0xff]
        %v10271 = vld [vmem:[%s297 + $0x1a8] sm:$0xff]
        %v10272 = vld [vmem:[%s297 + $0x1b0] sm:$0xff]
        %v10273 = vld [vmem:[%s297 + $0x1b8] sm:$0xff]
        %v10274 = vld [vmem:[%s297 + $0x1c0] sm:$0xff]
        %v10275 = vld [vmem:[%s297 + $0x1c8] sm:$0xff]
        %v10276 = vld [vmem:[%s297 + $0x1d0] sm:$0xff]
        %v10277 = vld [vmem:[%s297 + $0x1d8] sm:$0xff]
        %v10278 = vld [vmem:[%s297 + $0x1e0] sm:$0xff]
        %v10279 = vld [vmem:[%s297 + $0x1e8] sm:$0xff]
        %v10280 = vld [vmem:[%s297 + $0x1f0] sm:$0xff]
        %v10281 = vld [vmem:[%s297 + $0x1f8] sm:$0xff]
        %v10282 = vld [vmem:[%s297 + $0x200] sm:$0xff]
        %v10283 = vld [vmem:[%s297 + $0x208] sm:$0xff]
        %v10284 = vld [vmem:[%s297 + $0x210] sm:$0xff]
        %v10285 = vld [vmem:[%s297 + $0x218] sm:$0xff]
        %v10286 = vld [vmem:[%s297 + $0x220] sm:$0xff]
        %v10287 = vld [vmem:[%s297 + $0x228] sm:$0xff]
        %v10288 = vld [vmem:[%s297 + $0x230] sm:$0xff]
        %v10289 = vld [vmem:[%s297 + $0x238] sm:$0xff]
        %v10290 = vld [vmem:[%s297 + $0x240] sm:$0xff]
        %v10291 = vld [vmem:[%s297 + $0x248] sm:$0xff]
        %v10292 = vld [vmem:[%s297 + $0x250] sm:$0xff]
        %v10293 = vld [vmem:[%s297 + $0x258] sm:$0xff]
        %v10294 = vld [vmem:[%s297 + $0x260] sm:$0xff]
        %v10295 = vld [vmem:[%s297 + $0x268] sm:$0xff]
        %v10296 = vld [vmem:[%s297 + $0x270] sm:$0xff]
        %v10297 = vld [vmem:[%s297 + $0x278] sm:$0xff]
        %v10298 = vld [vmem:[%s297 + $0x280] sm:$0xff]
        %v10299 = vld [vmem:[%s297 + $0x288] sm:$0xff]
        %v10300 = vld [vmem:[%s297 + $0x290] sm:$0xff]
        %v10301 = vld [vmem:[%s297 + $0x298] sm:$0xff]
        %v10302 = vld [vmem:[%s297 + $0x2a0] sm:$0xff]
        %v10303 = vld [vmem:[%s297 + $0x2a8] sm:$0xff]
        %v10304 = vld [vmem:[%s297 + $0x2b0] sm:$0xff]
        %v10305 = vld [vmem:[%s297 + $0x2b8] sm:$0xff]
        %v10306 = vld [vmem:[%s297 + $0x2c0] sm:$0xff]
        %v10307 = vld [vmem:[%s297 + $0x2c8] sm:$0xff]
        %v10308 = vld [vmem:[%s297 + $0x2d0] sm:$0xff]
        %v10309 = vld [vmem:[%s297 + $0x2d8] sm:$0xff]
        %v10310 = vld [vmem:[%s297 + $0x2e0] sm:$0xff]
        %v10311 = vld [vmem:[%s297 + $0x2e8] sm:$0xff]
        %v10312 = vld [vmem:[%s297 + $0x2f0] sm:$0xff]
        %v10313 = vld [vmem:[%s297 + $0x2f8] sm:$0xff]
        %v10315 = vlaneseq
        %v10316 = vshrl.u32 %v10315, 7
        %v10317 = vsub.s32 0, %v10316
        %v10318 = vrot.slane %v10210, %v10317
        %v10320 = vsub.f32 %v10218, %v10318
        %v10321 = vsub.f32 %v10219, %v10318
        %v10322 = vsub.f32 %v10220, %v10318
        %v10323 = vsub.f32 %v10221, %v10318
        %v10324 = vsub.f32 %v10222, %v10318
        %v10325 = vsub.f32 %v10223, %v10318
        %v10326 = vsub.f32 %v10224, %v10318
        %v10327 = vsub.f32 %v10225, %v10318
        %v10328 = vsub.f32 %v10226, %v10318
        %v10329 = vsub.f32 %v10227, %v10318
        %v10330 = vsub.f32 %v10228, %v10318
        %v10331 = vsub.f32 %v10229, %v10318
        %v10332 = vsub.f32 %v10230, %v10318
        %v10333 = vsub.f32 %v10231, %v10318
        %v10334 = vsub.f32 %v10232, %v10318
        %v10335 = vsub.f32 %v10233, %v10318
        %v10336 = vsub.f32 %v10234, %v10318
        %v10337 = vsub.f32 %v10235, %v10318
        %v10338 = vsub.f32 %v10236, %v10318
        %v10339 = vsub.f32 %v10237, %v10318
        %v10340 = vsub.f32 %v10238, %v10318
        %v10341 = vsub.f32 %v10239, %v10318
        %v10342 = vsub.f32 %v10240, %v10318
        %v10343 = vsub.f32 %v10241, %v10318
        %v10344 = vsub.f32 %v10242, %v10318
        %v10345 = vsub.f32 %v10243, %v10318
        %v10346 = vsub.f32 %v10244, %v10318
        %v10347 = vsub.f32 %v10245, %v10318
        %v10348 = vsub.f32 %v10246, %v10318
        %v10349 = vsub.f32 %v10247, %v10318
        %v10350 = vsub.f32 %v10248, %v10318
        %v10351 = vsub.f32 %v10249, %v10318
        %v10352 = vsub.f32 %v10250, %v10318
        %v10353 = vsub.f32 %v10251, %v10318
        %v10354 = vsub.f32 %v10252, %v10318
        %v10355 = vsub.f32 %v10253, %v10318
        %v10356 = vsub.f32 %v10254, %v10318
        %v10357 = vsub.f32 %v10255, %v10318
        %v10358 = vsub.f32 %v10256, %v10318
        %v10359 = vsub.f32 %v10257, %v10318
        %v10360 = vsub.f32 %v10258, %v10318
        %v10361 = vsub.f32 %v10259, %v10318
        %v10362 = vsub.f32 %v10260, %v10318
        %v10363 = vsub.f32 %v10261, %v10318
        %v10364 = vsub.f32 %v10262, %v10318
        %v10365 = vsub.f32 %v10263, %v10318
        %v10366 = vsub.f32 %v10264, %v10318
        %v10367 = vsub.f32 %v10265, %v10318
        %v10368 = vsub.f32 %v10266, %v10318
        %v10369 = vsub.f32 %v10267, %v10318
        %v10370 = vsub.f32 %v10268, %v10318
        %v10371 = vsub.f32 %v10269, %v10318
        %v10372 = vsub.f32 %v10270, %v10318
        %v10373 = vsub.f32 %v10271, %v10318
        %v10374 = vsub.f32 %v10272, %v10318
        %v10375 = vsub.f32 %v10273, %v10318
        %v10376 = vsub.f32 %v10274, %v10318
        %v10377 = vsub.f32 %v10275, %v10318
        %v10378 = vsub.f32 %v10276, %v10318
        %v10379 = vsub.f32 %v10277, %v10318
        %v10380 = vsub.f32 %v10278, %v10318
        %v10381 = vsub.f32 %v10279, %v10318
        %v10382 = vsub.f32 %v10280, %v10318
        %v10383 = vsub.f32 %v10281, %v10318
        %v10384 = vsub.f32 %v10282, %v10318
        %v10385 = vsub.f32 %v10283, %v10318
        %v10386 = vsub.f32 %v10284, %v10318
        %v10387 = vsub.f32 %v10285, %v10318
        %v10388 = vsub.f32 %v10286, %v10318
        %v10389 = vsub.f32 %v10287, %v10318
        %v10390 = vsub.f32 %v10288, %v10318
        %v10391 = vsub.f32 %v10289, %v10318
        %v10392 = vsub.f32 %v10290, %v10318
        %v10393 = vsub.f32 %v10291, %v10318
        %v10394 = vsub.f32 %v10292, %v10318
        %v10395 = vsub.f32 %v10293, %v10318
        %v10396 = vsub.f32 %v10294, %v10318
        %v10397 = vsub.f32 %v10295, %v10318
        %v10398 = vsub.f32 %v10296, %v10318
        %v10399 = vsub.f32 %v10297, %v10318
        %v10400 = vsub.f32 %v10298, %v10318
        %v10401 = vsub.f32 %v10299, %v10318
        %v10402 = vsub.f32 %v10300, %v10318
        %v10403 = vsub.f32 %v10301, %v10318
        %v10404 = vsub.f32 %v10302, %v10318
        %v10405 = vsub.f32 %v10303, %v10318
        %v10406 = vsub.f32 %v10304, %v10318
        %v10407 = vsub.f32 %v10305, %v10318
        %v10408 = vsub.f32 %v10306, %v10318
        %v10409 = vsub.f32 %v10307, %v10318
        %v10410 = vsub.f32 %v10308, %v10318
        %v10411 = vsub.f32 %v10309, %v10318
        %v10412 = vsub.f32 %v10310, %v10318
        %v10413 = vsub.f32 %v10311, %v10318
        %v10414 = vsub.f32 %v10312, %v10318
        %v10415 = vsub.f32 %v10313, %v10318
        %v10417 = vlaneseq
        %v10418 = vshrl.u32 %v10417, 7
        %v10419 = vsub.s32 0, %v10418
        %v10420 = vrot.slane %v10217, %v10419
        %v10422 = vmul.f32 %v10320, %v10420
        %v10423 = vmul.f32 %v10321, %v10420
        %v10424 = vmul.f32 %v10322, %v10420
        %v10425 = vmul.f32 %v10323, %v10420
        %v10426 = vmul.f32 %v10324, %v10420
        %v10427 = vmul.f32 %v10325, %v10420
        %v10428 = vmul.f32 %v10326, %v10420
        %v10429 = vmul.f32 %v10327, %v10420
        %v10430 = vmul.f32 %v10328, %v10420
        %v10431 = vmul.f32 %v10329, %v10420
        %v10432 = vmul.f32 %v10330, %v10420
        %v10433 = vmul.f32 %v10331, %v10420
        %v10434 = vmul.f32 %v10332, %v10420
        %v10435 = vmul.f32 %v10333, %v10420
        %v10436 = vmul.f32 %v10334, %v10420
        %v10437 = vmul.f32 %v10335, %v10420
        %v10438 = vmul.f32 %v10336, %v10420
        %v10439 = vmul.f32 %v10337, %v10420
        %v10440 = vmul.f32 %v10338, %v10420
        %v10441 = vmul.f32 %v10339, %v10420
        %v10442 = vmul.f32 %v10340, %v10420
        %v10443 = vmul.f32 %v10341, %v10420
        %v10444 = vmul.f32 %v10342, %v10420
        %v10445 = vmul.f32 %v10343, %v10420
        %v10446 = vmul.f32 %v10344, %v10420
        %v10447 = vmul.f32 %v10345, %v10420
        %v10448 = vmul.f32 %v10346, %v10420
        %v10449 = vmul.f32 %v10347, %v10420
        %v10450 = vmul.f32 %v10348, %v10420
        %v10451 = vmul.f32 %v10349, %v10420
        %v10452 = vmul.f32 %v10350, %v10420
        %v10453 = vmul.f32 %v10351, %v10420
        %v10454 = vmul.f32 %v10352, %v10420
        %v10455 = vmul.f32 %v10353, %v10420
        %v10456 = vmul.f32 %v10354, %v10420
        %v10457 = vmul.f32 %v10355, %v10420
        %v10458 = vmul.f32 %v10356, %v10420
        %v10459 = vmul.f32 %v10357, %v10420
        %v10460 = vmul.f32 %v10358, %v10420
        %v10461 = vmul.f32 %v10359, %v10420
        %v10462 = vmul.f32 %v10360, %v10420
        %v10463 = vmul.f32 %v10361, %v10420
        %v10464 = vmul.f32 %v10362, %v10420
        %v10465 = vmul.f32 %v10363, %v10420
        %v10466 = vmul.f32 %v10364, %v10420
        %v10467 = vmul.f32 %v10365, %v10420
        %v10468 = vmul.f32 %v10366, %v10420
        %v10469 = vmul.f32 %v10367, %v10420
        %v10470 = vmul.f32 %v10368, %v10420
        %v10471 = vmul.f32 %v10369, %v10420
        %v10472 = vmul.f32 %v10370, %v10420
        %v10473 = vmul.f32 %v10371, %v10420
        %v10474 = vmul.f32 %v10372, %v10420
        %v10475 = vmul.f32 %v10373, %v10420
        %v10476 = vmul.f32 %v10374, %v10420
        %v10477 = vmul.f32 %v10375, %v10420
        %v10478 = vmul.f32 %v10376, %v10420
        %v10479 = vmul.f32 %v10377, %v10420
        %v10480 = vmul.f32 %v10378, %v10420
        %v10481 = vmul.f32 %v10379, %v10420
        %v10482 = vmul.f32 %v10380, %v10420
        %v10483 = vmul.f32 %v10381, %v10420
        %v10484 = vmul.f32 %v10382, %v10420
        %v10485 = vmul.f32 %v10383, %v10420
        %v10486 = vmul.f32 %v10384, %v10420
        %v10487 = vmul.f32 %v10385, %v10420
        %v10488 = vmul.f32 %v10386, %v10420
        %v10489 = vmul.f32 %v10387, %v10420
        %v10490 = vmul.f32 %v10388, %v10420
        %v10491 = vmul.f32 %v10389, %v10420
        %v10492 = vmul.f32 %v10390, %v10420
        %v10493 = vmul.f32 %v10391, %v10420
        %v10494 = vmul.f32 %v10392, %v10420
        %v10495 = vmul.f32 %v10393, %v10420
        %v10496 = vmul.f32 %v10394, %v10420
        %v10497 = vmul.f32 %v10395, %v10420
        %v10498 = vmul.f32 %v10396, %v10420
        %v10499 = vmul.f32 %v10397, %v10420
        %v10500 = vmul.f32 %v10398, %v10420
        %v10501 = vmul.f32 %v10399, %v10420
        %v10502 = vmul.f32 %v10400, %v10420
        %v10503 = vmul.f32 %v10401, %v10420
        %v10504 = vmul.f32 %v10402, %v10420
        %v10505 = vmul.f32 %v10403, %v10420
        %v10506 = vmul.f32 %v10404, %v10420
        %v10507 = vmul.f32 %v10405, %v10420
        %v10508 = vmul.f32 %v10406, %v10420
        %v10509 = vmul.f32 %v10407, %v10420
        %v10510 = vmul.f32 %v10408, %v10420
        %v10511 = vmul.f32 %v10409, %v10420
        %v10512 = vmul.f32 %v10410, %v10420
        %v10513 = vmul.f32 %v10411, %v10420
        %v10514 = vmul.f32 %v10412, %v10420
        %v10515 = vmul.f32 %v10413, %v10420
        %v10516 = vmul.f32 %v10414, %v10420
        %v10517 = vmul.f32 %v10415, %v10420
        %vm10518 = vcmp.gt.f32.partialorder %v10422, 0.0
        %vm10519 = vcmp.gt.f32.partialorder %v10423, 0.0
        %vm10520 = vcmp.gt.f32.partialorder %v10424, 0.0
        %vm10521 = vcmp.gt.f32.partialorder %v10425, 0.0
        %vm10522 = vcmp.gt.f32.partialorder %v10426, 0.0
        %vm10523 = vcmp.gt.f32.partialorder %v10427, 0.0
        %vm10524 = vcmp.gt.f32.partialorder %v10428, 0.0
        %vm10525 = vcmp.gt.f32.partialorder %v10429, 0.0
        %vm10526 = vcmp.gt.f32.partialorder %v10430, 0.0
        %vm10527 = vcmp.gt.f32.partialorder %v10431, 0.0
        %vm10528 = vcmp.gt.f32.partialorder %v10432, 0.0
        %vm10529 = vcmp.gt.f32.partialorder %v10433, 0.0
        %vm10530 = vcmp.gt.f32.partialorder %v10434, 0.0
        %vm10531 = vcmp.gt.f32.partialorder %v10435, 0.0
        %vm10532 = vcmp.gt.f32.partialorder %v10436, 0.0
        %vm10533 = vcmp.gt.f32.partialorder %v10437, 0.0
        %vm10534 = vcmp.gt.f32.partialorder %v10438, 0.0
        %vm10535 = vcmp.gt.f32.partialorder %v10439, 0.0
        %vm10536 = vcmp.gt.f32.partialorder %v10440, 0.0
        %vm10537 = vcmp.gt.f32.partialorder %v10441, 0.0
        %vm10538 = vcmp.gt.f32.partialorder %v10442, 0.0
        %vm10539 = vcmp.gt.f32.partialorder %v10443, 0.0
        %vm10540 = vcmp.gt.f32.partialorder %v10444, 0.0
        %vm10541 = vcmp.gt.f32.partialorder %v10445, 0.0
        %vm10542 = vcmp.gt.f32.partialorder %v10446, 0.0
        %vm10543 = vcmp.gt.f32.partialorder %v10447, 0.0
        %vm10544 = vcmp.gt.f32.partialorder %v10448, 0.0
        %vm10545 = vcmp.gt.f32.partialorder %v10449, 0.0
        %vm10546 = vcmp.gt.f32.partialorder %v10450, 0.0
        %vm10547 = vcmp.gt.f32.partialorder %v10451, 0.0
        %vm10548 = vcmp.gt.f32.partialorder %v10452, 0.0
        %vm10549 = vcmp.gt.f32.partialorder %v10453, 0.0
        %vm10550 = vcmp.gt.f32.partialorder %v10454, 0.0
        %vm10551 = vcmp.gt.f32.partialorder %v10455, 0.0
        %vm10552 = vcmp.gt.f32.partialorder %v10456, 0.0
        %vm10553 = vcmp.gt.f32.partialorder %v10457, 0.0
        %vm10554 = vcmp.gt.f32.partialorder %v10458, 0.0
        %vm10555 = vcmp.gt.f32.partialorder %v10459, 0.0
        %vm10556 = vcmp.gt.f32.partialorder %v10460, 0.0
        %vm10557 = vcmp.gt.f32.partialorder %v10461, 0.0
        %vm10558 = vcmp.gt.f32.partialorder %v10462, 0.0
        %vm10559 = vcmp.gt.f32.partialorder %v10463, 0.0
        %vm10560 = vcmp.gt.f32.partialorder %v10464, 0.0
        %vm10561 = vcmp.gt.f32.partialorder %v10465, 0.0
        %vm10562 = vcmp.gt.f32.partialorder %v10466, 0.0
        %vm10563 = vcmp.gt.f32.partialorder %v10467, 0.0
        %vm10564 = vcmp.gt.f32.partialorder %v10468, 0.0
        %vm10565 = vcmp.gt.f32.partialorder %v10469, 0.0
        %vm10566 = vcmp.gt.f32.partialorder %v10470, 0.0
        %vm10567 = vcmp.gt.f32.partialorder %v10471, 0.0
        %vm10568 = vcmp.gt.f32.partialorder %v10472, 0.0
        %vm10569 = vcmp.gt.f32.partialorder %v10473, 0.0
        %vm10570 = vcmp.gt.f32.partialorder %v10474, 0.0
        %vm10571 = vcmp.gt.f32.partialorder %v10475, 0.0
        %vm10572 = vcmp.gt.f32.partialorder %v10476, 0.0
        %vm10573 = vcmp.gt.f32.partialorder %v10477, 0.0
        %vm10574 = vcmp.gt.f32.partialorder %v10478, 0.0
        %vm10575 = vcmp.gt.f32.partialorder %v10479, 0.0
        %vm10576 = vcmp.gt.f32.partialorder %v10480, 0.0
        %vm10577 = vcmp.gt.f32.partialorder %v10481, 0.0
        %vm10578 = vcmp.gt.f32.partialorder %v10482, 0.0
        %vm10579 = vcmp.gt.f32.partialorder %v10483, 0.0
        %vm10580 = vcmp.gt.f32.partialorder %v10484, 0.0
        %vm10581 = vcmp.gt.f32.partialorder %v10485, 0.0
        %vm10582 = vcmp.gt.f32.partialorder %v10486, 0.0
        %vm10583 = vcmp.gt.f32.partialorder %v10487, 0.0
        %vm10584 = vcmp.gt.f32.partialorder %v10488, 0.0
        %vm10585 = vcmp.gt.f32.partialorder %v10489, 0.0
        %vm10586 = vcmp.gt.f32.partialorder %v10490, 0.0
        %vm10587 = vcmp.gt.f32.partialorder %v10491, 0.0
        %vm10588 = vcmp.gt.f32.partialorder %v10492, 0.0
        %vm10589 = vcmp.gt.f32.partialorder %v10493, 0.0
        %vm10590 = vcmp.gt.f32.partialorder %v10494, 0.0
        %vm10591 = vcmp.gt.f32.partialorder %v10495, 0.0
        %vm10592 = vcmp.gt.f32.partialorder %v10496, 0.0
        %vm10593 = vcmp.gt.f32.partialorder %v10497, 0.0
        %vm10594 = vcmp.gt.f32.partialorder %v10498, 0.0
        %vm10595 = vcmp.gt.f32.partialorder %v10499, 0.0
        %vm10596 = vcmp.gt.f32.partialorder %v10500, 0.0
        %vm10597 = vcmp.gt.f32.partialorder %v10501, 0.0
        %vm10598 = vcmp.gt.f32.partialorder %v10502, 0.0
        %vm10599 = vcmp.gt.f32.partialorder %v10503, 0.0
        %vm10600 = vcmp.gt.f32.partialorder %v10504, 0.0
        %vm10601 = vcmp.gt.f32.partialorder %v10505, 0.0
        %vm10602 = vcmp.gt.f32.partialorder %v10506, 0.0
        %vm10603 = vcmp.gt.f32.partialorder %v10507, 0.0
        %vm10604 = vcmp.gt.f32.partialorder %v10508, 0.0
        %vm10605 = vcmp.gt.f32.partialorder %v10509, 0.0
        %vm10606 = vcmp.gt.f32.partialorder %v10510, 0.0
        %vm10607 = vcmp.gt.f32.partialorder %v10511, 0.0
        %vm10608 = vcmp.gt.f32.partialorder %v10512, 0.0
        %vm10609 = vcmp.gt.f32.partialorder %v10513, 0.0
        %vm10610 = vcmp.gt.f32.partialorder %v10514, 0.0
        %vm10611 = vcmp.gt.f32.partialorder %v10515, 0.0
        %vm10612 = vcmp.gt.f32.partialorder %v10516, 0.0
        %vm10613 = vcmp.gt.f32.partialorder %v10517, 0.0
        %v10614 = vmul.f32 %v10422, 0.2
        %v10615 = vmul.f32 %v10423, 0.2
        %v10616 = vmul.f32 %v10424, 0.2
        %v10617 = vmul.f32 %v10425, 0.2
        %v10618 = vmul.f32 %v10426, 0.2
        %v10619 = vmul.f32 %v10427, 0.2
        %v10620 = vmul.f32 %v10428, 0.2
        %v10621 = vmul.f32 %v10429, 0.2
        %v10622 = vmul.f32 %v10430, 0.2
        %v10623 = vmul.f32 %v10431, 0.2
        %v10624 = vmul.f32 %v10432, 0.2
        %v10625 = vmul.f32 %v10433, 0.2
        %v10626 = vmul.f32 %v10434, 0.2
        %v10627 = vmul.f32 %v10435, 0.2
        %v10628 = vmul.f32 %v10436, 0.2
        %v10629 = vmul.f32 %v10437, 0.2
        %v10630 = vmul.f32 %v10438, 0.2
        %v10631 = vmul.f32 %v10439, 0.2
        %v10632 = vmul.f32 %v10440, 0.2
        %v10633 = vmul.f32 %v10441, 0.2
        %v10634 = vmul.f32 %v10442, 0.2
        %v10635 = vmul.f32 %v10443, 0.2
        %v10636 = vmul.f32 %v10444, 0.2
        %v10637 = vmul.f32 %v10445, 0.2
        %v10638 = vmul.f32 %v10446, 0.2
        %v10639 = vmul.f32 %v10447, 0.2
        %v10640 = vmul.f32 %v10448, 0.2
        %v10641 = vmul.f32 %v10449, 0.2
        %v10642 = vmul.f32 %v10450, 0.2
        %v10643 = vmul.f32 %v10451, 0.2
        %v10644 = vmul.f32 %v10452, 0.2
        %v10645 = vmul.f32 %v10453, 0.2
        %v10646 = vmul.f32 %v10454, 0.2
        %v10647 = vmul.f32 %v10455, 0.2
        %v10648 = vmul.f32 %v10456, 0.2
        %v10649 = vmul.f32 %v10457, 0.2
        %v10650 = vmul.f32 %v10458, 0.2
        %v10651 = vmul.f32 %v10459, 0.2
        %v10652 = vmul.f32 %v10460, 0.2
        %v10653 = vmul.f32 %v10461, 0.2
        %v10654 = vmul.f32 %v10462, 0.2
        %v10655 = vmul.f32 %v10463, 0.2
        %v10656 = vmul.f32 %v10464, 0.2
        %v10657 = vmul.f32 %v10465, 0.2
        %v10658 = vmul.f32 %v10466, 0.2
        %v10659 = vmul.f32 %v10467, 0.2
        %v10660 = vmul.f32 %v10468, 0.2
        %v10661 = vmul.f32 %v10469, 0.2
        %v10662 = vmul.f32 %v10470, 0.2
        %v10663 = vmul.f32 %v10471, 0.2
        %v10664 = vmul.f32 %v10472, 0.2
        %v10665 = vmul.f32 %v10473, 0.2
        %v10666 = vmul.f32 %v10474, 0.2
        %v10667 = vmul.f32 %v10475, 0.2
        %v10668 = vmul.f32 %v10476, 0.2
        %v10669 = vmul.f32 %v10477, 0.2
        %v10670 = vmul.f32 %v10478, 0.2
        %v10671 = vmul.f32 %v10479, 0.2
        %v10672 = vmul.f32 %v10480, 0.2
        %v10673 = vmul.f32 %v10481, 0.2
        %v10674 = vmul.f32 %v10482, 0.2
        %v10675 = vmul.f32 %v10483, 0.2
        %v10676 = vmul.f32 %v10484, 0.2
        %v10677 = vmul.f32 %v10485, 0.2
        %v10678 = vmul.f32 %v10486, 0.2
        %v10679 = vmul.f32 %v10487, 0.2
        %v10680 = vmul.f32 %v10488, 0.2
        %v10681 = vmul.f32 %v10489, 0.2
        %v10682 = vmul.f32 %v10490, 0.2
        %v10683 = vmul.f32 %v10491, 0.2
        %v10684 = vmul.f32 %v10492, 0.2
        %v10685 = vmul.f32 %v10493, 0.2
        %v10686 = vmul.f32 %v10494, 0.2
        %v10687 = vmul.f32 %v10495, 0.2
        %v10688 = vmul.f32 %v10496, 0.2
        %v10689 = vmul.f32 %v10497, 0.2
        %v10690 = vmul.f32 %v10498, 0.2
        %v10691 = vmul.f32 %v10499, 0.2
        %v10692 = vmul.f32 %v10500, 0.2
        %v10693 = vmul.f32 %v10501, 0.2
        %v10694 = vmul.f32 %v10502, 0.2
        %v10695 = vmul.f32 %v10503, 0.2
        %v10696 = vmul.f32 %v10504, 0.2
        %v10697 = vmul.f32 %v10505, 0.2
        %v10698 = vmul.f32 %v10506, 0.2
        %v10699 = vmul.f32 %v10507, 0.2
        %v10700 = vmul.f32 %v10508, 0.2
        %v10701 = vmul.f32 %v10509, 0.2
        %v10702 = vmul.f32 %v10510, 0.2
        %v10703 = vmul.f32 %v10511, 0.2
        %v10704 = vmul.f32 %v10512, 0.2
        %v10705 = vmul.f32 %v10513, 0.2
        %v10706 = vmul.f32 %v10514, 0.2
        %v10707 = vmul.f32 %v10515, 0.2
        %v10708 = vmul.f32 %v10516, 0.2
        %v10709 = vmul.f32 %v10517, 0.2
        %v10710 = vsel %vm10518, %v10422, %v10614
        %v10711 = vsel %vm10519, %v10423, %v10615
        %v10712 = vsel %vm10520, %v10424, %v10616
        %v10713 = vsel %vm10521, %v10425, %v10617
        %v10714 = vsel %vm10522, %v10426, %v10618
        %v10715 = vsel %vm10523, %v10427, %v10619
        %v10716 = vsel %vm10524, %v10428, %v10620
        %v10717 = vsel %vm10525, %v10429, %v10621
        %v10718 = vsel %vm10526, %v10430, %v10622
        %v10719 = vsel %vm10527, %v10431, %v10623
        %v10720 = vsel %vm10528, %v10432, %v10624
        %v10721 = vsel %vm10529, %v10433, %v10625
        %v10722 = vsel %vm10530, %v10434, %v10626
        %v10723 = vsel %vm10531, %v10435, %v10627
        %v10724 = vsel %vm10532, %v10436, %v10628
        %v10725 = vsel %vm10533, %v10437, %v10629
        %v10726 = vsel %vm10534, %v10438, %v10630
        %v10727 = vsel %vm10535, %v10439, %v10631
        %v10728 = vsel %vm10536, %v10440, %v10632
        %v10729 = vsel %vm10537, %v10441, %v10633
        %v10730 = vsel %vm10538, %v10442, %v10634
        %v10731 = vsel %vm10539, %v10443, %v10635
        %v10732 = vsel %vm10540, %v10444, %v10636
        %v10733 = vsel %vm10541, %v10445, %v10637
        %v10734 = vsel %vm10542, %v10446, %v10638
        %v10735 = vsel %vm10543, %v10447, %v10639
        %v10736 = vsel %vm10544, %v10448, %v10640
        %v10737 = vsel %vm10545, %v10449, %v10641
        %v10738 = vsel %vm10546, %v10450, %v10642
        %v10739 = vsel %vm10547, %v10451, %v10643
        %v10740 = vsel %vm10548, %v10452, %v10644
        %v10741 = vsel %vm10549, %v10453, %v10645
        %v10742 = vsel %vm10550, %v10454, %v10646
        %v10743 = vsel %vm10551, %v10455, %v10647
        %v10744 = vsel %vm10552, %v10456, %v10648
        %v10745 = vsel %vm10553, %v10457, %v10649
        %v10746 = vsel %vm10554, %v10458, %v10650
        %v10747 = vsel %vm10555, %v10459, %v10651
        %v10748 = vsel %vm10556, %v10460, %v10652
        %v10749 = vsel %vm10557, %v10461, %v10653
        %v10750 = vsel %vm10558, %v10462, %v10654
        %v10751 = vsel %vm10559, %v10463, %v10655
        %v10752 = vsel %vm10560, %v10464, %v10656
        %v10753 = vsel %vm10561, %v10465, %v10657
        %v10754 = vsel %vm10562, %v10466, %v10658
        %v10755 = vsel %vm10563, %v10467, %v10659
        %v10756 = vsel %vm10564, %v10468, %v10660
        %v10757 = vsel %vm10565, %v10469, %v10661
        %v10758 = vsel %vm10566, %v10470, %v10662
        %v10759 = vsel %vm10567, %v10471, %v10663
        %v10760 = vsel %vm10568, %v10472, %v10664
        %v10761 = vsel %vm10569, %v10473, %v10665
        %v10762 = vsel %vm10570, %v10474, %v10666
        %v10763 = vsel %vm10571, %v10475, %v10667
        %v10764 = vsel %vm10572, %v10476, %v10668
        %v10765 = vsel %vm10573, %v10477, %v10669
        %v10766 = vsel %vm10574, %v10478, %v10670
        %v10767 = vsel %vm10575, %v10479, %v10671
        %v10768 = vsel %vm10576, %v10480, %v10672
        %v10769 = vsel %vm10577, %v10481, %v10673
        %v10770 = vsel %vm10578, %v10482, %v10674
        %v10771 = vsel %vm10579, %v10483, %v10675
        %v10772 = vsel %vm10580, %v10484, %v10676
        %v10773 = vsel %vm10581, %v10485, %v10677
        %v10774 = vsel %vm10582, %v10486, %v10678
        %v10775 = vsel %vm10583, %v10487, %v10679
        %v10776 = vsel %vm10584, %v10488, %v10680
        %v10777 = vsel %vm10585, %v10489, %v10681
        %v10778 = vsel %vm10586, %v10490, %v10682
        %v10779 = vsel %vm10587, %v10491, %v10683
        %v10780 = vsel %vm10588, %v10492, %v10684
        %v10781 = vsel %vm10589, %v10493, %v10685
        %v10782 = vsel %vm10590, %v10494, %v10686
        %v10783 = vsel %vm10591, %v10495, %v10687
        %v10784 = vsel %vm10592, %v10496, %v10688
        %v10785 = vsel %vm10593, %v10497, %v10689
        %v10786 = vsel %vm10594, %v10498, %v10690
        %v10787 = vsel %vm10595, %v10499, %v10691
        %v10788 = vsel %vm10596, %v10500, %v10692
        %v10789 = vsel %vm10597, %v10501, %v10693
        %v10790 = vsel %vm10598, %v10502, %v10694
        %v10791 = vsel %vm10599, %v10503, %v10695
        %v10792 = vsel %vm10600, %v10504, %v10696
        %v10793 = vsel %vm10601, %v10505, %v10697
        %v10794 = vsel %vm10602, %v10506, %v10698
        %v10795 = vsel %vm10603, %v10507, %v10699
        %v10796 = vsel %vm10604, %v10508, %v10700
        %v10797 = vsel %vm10605, %v10509, %v10701
        %v10798 = vsel %vm10606, %v10510, %v10702
        %v10799 = vsel %vm10607, %v10511, %v10703
        %v10800 = vsel %vm10608, %v10512, %v10704
        %v10801 = vsel %vm10609, %v10513, %v10705
        %v10802 = vsel %vm10610, %v10514, %v10706
        %v10803 = vsel %vm10611, %v10515, %v10707
        %v10804 = vsel %vm10612, %v10516, %v10708
        %v10805 = vsel %vm10613, %v10517, %v10709
        %10806 = vst.msk [vmem:[%s297] sm:$0xff] %vm9612, %v10710
        %10807 = vst.msk [vmem:[%s297 + $0x8] sm:$0xff] %vm9612, %v10711
        %10808 = vst.msk [vmem:[%s297 + $0x10] sm:$0xff] %vm9612, %v10712
        %10809 = vst.msk [vmem:[%s297 + $0x18] sm:$0xff] %vm9612, %v10713
        %10810 = vst.msk [vmem:[%s297 + $0x20] sm:$0xff] %vm9612, %v10714
        %10811 = vst.msk [vmem:[%s297 + $0x28] sm:$0xff] %vm9612, %v10715
        %10812 = vst.msk [vmem:[%s297 + $0x30] sm:$0xff] %vm9612, %v10716
        %10813 = vst.msk [vmem:[%s297 + $0x38] sm:$0xff] %vm9612, %v10717
        %10814 = vst.msk [vmem:[%s297 + $0x40] sm:$0xff] %vm9612, %v10718
        %10815 = vst.msk [vmem:[%s297 + $0x48] sm:$0xff] %vm9612, %v10719
        %10816 = vst.msk [vmem:[%s297 + $0x50] sm:$0xff] %vm9612, %v10720
        %10817 = vst.msk [vmem:[%s297 + $0x58] sm:$0xff] %vm9612, %v10721
        %10818 = vst.msk [vmem:[%s297 + $0x60] sm:$0xff] %vm9612, %v10722
        %10819 = vst.msk [vmem:[%s297 + $0x68] sm:$0xff] %vm9612, %v10723
        %10820 = vst.msk [vmem:[%s297 + $0x70] sm:$0xff] %vm9612, %v10724
        %10821 = vst.msk [vmem:[%s297 + $0x78] sm:$0xff] %vm9612, %v10725
        %10822 = vst.msk [vmem:[%s297 + $0x80] sm:$0xff] %vm9612, %v10726
        %10823 = vst.msk [vmem:[%s297 + $0x88] sm:$0xff] %vm9612, %v10727
        %10824 = vst.msk [vmem:[%s297 + $0x90] sm:$0xff] %vm9612, %v10728
        %10825 = vst.msk [vmem:[%s297 + $0x98] sm:$0xff] %vm9612, %v10729
        %10826 = vst.msk [vmem:[%s297 + $0xa0] sm:$0xff] %vm9612, %v10730
        %10827 = vst.msk [vmem:[%s297 + $0xa8] sm:$0xff] %vm9612, %v10731
        %10828 = vst.msk [vmem:[%s297 + $0xb0] sm:$0xff] %vm9612, %v10732
        %10829 = vst.msk [vmem:[%s297 + $0xb8] sm:$0xff] %vm9612, %v10733
        %10830 = vst.msk [vmem:[%s297 + $0xc0] sm:$0xff] %vm9612, %v10734
        %10831 = vst.msk [vmem:[%s297 + $0xc8] sm:$0xff] %vm9612, %v10735
        %10832 = vst.msk [vmem:[%s297 + $0xd0] sm:$0xff] %vm9612, %v10736
        %10833 = vst.msk [vmem:[%s297 + $0xd8] sm:$0xff] %vm9612, %v10737
        %10834 = vst.msk [vmem:[%s297 + $0xe0] sm:$0xff] %vm9612, %v10738
        %10835 = vst.msk [vmem:[%s297 + $0xe8] sm:$0xff] %vm9612, %v10739
        %10836 = vst.msk [vmem:[%s297 + $0xf0] sm:$0xff] %vm9612, %v10740
        %10837 = vst.msk [vmem:[%s297 + $0xf8] sm:$0xff] %vm9612, %v10741
        %10838 = vst.msk [vmem:[%s297 + $0x100] sm:$0xff] %vm9612, %v10742
        %10839 = vst.msk [vmem:[%s297 + $0x108] sm:$0xff] %vm9612, %v10743
        %10840 = vst.msk [vmem:[%s297 + $0x110] sm:$0xff] %vm9612, %v10744
        %10841 = vst.msk [vmem:[%s297 + $0x118] sm:$0xff] %vm9612, %v10745
        %10842 = vst.msk [vmem:[%s297 + $0x120] sm:$0xff] %vm9612, %v10746
        %10843 = vst.msk [vmem:[%s297 + $0x128] sm:$0xff] %vm9612, %v10747
        %10844 = vst.msk [vmem:[%s297 + $0x130] sm:$0xff] %vm9612, %v10748
        %10845 = vst.msk [vmem:[%s297 + $0x138] sm:$0xff] %vm9612, %v10749
        %10846 = vst.msk [vmem:[%s297 + $0x140] sm:$0xff] %vm9612, %v10750
        %10847 = vst.msk [vmem:[%s297 + $0x148] sm:$0xff] %vm9612, %v10751
        %10848 = vst.msk [vmem:[%s297 + $0x150] sm:$0xff] %vm9612, %v10752
        %10849 = vst.msk [vmem:[%s297 + $0x158] sm:$0xff] %vm9612, %v10753
        %10850 = vst.msk [vmem:[%s297 + $0x160] sm:$0xff] %vm9612, %v10754
        %10851 = vst.msk [vmem:[%s297 + $0x168] sm:$0xff] %vm9612, %v10755
        %10852 = vst.msk [vmem:[%s297 + $0x170] sm:$0xff] %vm9612, %v10756
        %10853 = vst.msk [vmem:[%s297 + $0x178] sm:$0xff] %vm9612, %v10757
        %10854 = vst.msk [vmem:[%s297 + $0x180] sm:$0xff] %vm9612, %v10758
        %10855 = vst.msk [vmem:[%s297 + $0x188] sm:$0xff] %vm9612, %v10759
        %10856 = vst.msk [vmem:[%s297 + $0x190] sm:$0xff] %vm9612, %v10760
        %10857 = vst.msk [vmem:[%s297 + $0x198] sm:$0xff] %vm9612, %v10761
        %10858 = vst.msk [vmem:[%s297 + $0x1a0] sm:$0xff] %vm9612, %v10762
        %10859 = vst.msk [vmem:[%s297 + $0x1a8] sm:$0xff] %vm9612, %v10763
        %10860 = vst.msk [vmem:[%s297 + $0x1b0] sm:$0xff] %vm9612, %v10764
        %10861 = vst.msk [vmem:[%s297 + $0x1b8] sm:$0xff] %vm9612, %v10765
        %10862 = vst.msk [vmem:[%s297 + $0x1c0] sm:$0xff] %vm9612, %v10766
        %10863 = vst.msk [vmem:[%s297 + $0x1c8] sm:$0xff] %vm9612, %v10767
        %10864 = vst.msk [vmem:[%s297 + $0x1d0] sm:$0xff] %vm9612, %v10768
        %10865 = vst.msk [vmem:[%s297 + $0x1d8] sm:$0xff] %vm9612, %v10769
        %10866 = vst.msk [vmem:[%s297 + $0x1e0] sm:$0xff] %vm9612, %v10770
        %10867 = vst.msk [vmem:[%s297 + $0x1e8] sm:$0xff] %vm9612, %v10771
        %10868 = vst.msk [vmem:[%s297 + $0x1f0] sm:$0xff] %vm9612, %v10772
        %10869 = vst.msk [vmem:[%s297 + $0x1f8] sm:$0xff] %vm9612, %v10773
        %10870 = vst.msk [vmem:[%s297 + $0x200] sm:$0xff] %vm9612, %v10774
        %10871 = vst.msk [vmem:[%s297 + $0x208] sm:$0xff] %vm9612, %v10775
        %10872 = vst.msk [vmem:[%s297 + $0x210] sm:$0xff] %vm9612, %v10776
        %10873 = vst.msk [vmem:[%s297 + $0x218] sm:$0xff] %vm9612, %v10777
        %10874 = vst.msk [vmem:[%s297 + $0x220] sm:$0xff] %vm9612, %v10778
        %10875 = vst.msk [vmem:[%s297 + $0x228] sm:$0xff] %vm9612, %v10779
        %10876 = vst.msk [vmem:[%s297 + $0x230] sm:$0xff] %vm9612, %v10780
        %10877 = vst.msk [vmem:[%s297 + $0x238] sm:$0xff] %vm9612, %v10781
        %10878 = vst.msk [vmem:[%s297 + $0x240] sm:$0xff] %vm9612, %v10782
        %10879 = vst.msk [vmem:[%s297 + $0x248] sm:$0xff] %vm9612, %v10783
        %10880 = vst.msk [vmem:[%s297 + $0x250] sm:$0xff] %vm9612, %v10784
        %10881 = vst.msk [vmem:[%s297 + $0x258] sm:$0xff] %vm9612, %v10785
        %10882 = vst.msk [vmem:[%s297 + $0x260] sm:$0xff] %vm9612, %v10786
        %10883 = vst.msk [vmem:[%s297 + $0x268] sm:$0xff] %vm9612, %v10787
        %10884 = vst.msk [vmem:[%s297 + $0x270] sm:$0xff] %vm9612, %v10788
        %10885 = vst.msk [vmem:[%s297 + $0x278] sm:$0xff] %vm9612, %v10789
        %10886 = vst.msk [vmem:[%s297 + $0x280] sm:$0xff] %vm9612, %v10790
        %10887 = vst.msk [vmem:[%s297 + $0x288] sm:$0xff] %vm9612, %v10791
        %10888 = vst.msk [vmem:[%s297 + $0x290] sm:$0xff] %vm9612, %v10792
        %10889 = vst.msk [vmem:[%s297 + $0x298] sm:$0xff] %vm9612, %v10793
        %10890 = vst.msk [vmem:[%s297 + $0x2a0] sm:$0xff] %vm9612, %v10794
        %10891 = vst.msk [vmem:[%s297 + $0x2a8] sm:$0xff] %vm9612, %v10795
        %10892 = vst.msk [vmem:[%s297 + $0x2b0] sm:$0xff] %vm9612, %v10796
        %10893 = vst.msk [vmem:[%s297 + $0x2b8] sm:$0xff] %vm9612, %v10797
        %10894 = vst.msk [vmem:[%s297 + $0x2c0] sm:$0xff] %vm9612, %v10798
        %10895 = vst.msk [vmem:[%s297 + $0x2c8] sm:$0xff] %vm9612, %v10799
        %10896 = vst.msk [vmem:[%s297 + $0x2d0] sm:$0xff] %vm9612, %v10800
        %10897 = vst.msk [vmem:[%s297 + $0x2d8] sm:$0xff] %vm9612, %v10801
        %10898 = vst.msk [vmem:[%s297 + $0x2e0] sm:$0xff] %vm9612, %v10802
        %10899 = vst.msk [vmem:[%s297 + $0x2e8] sm:$0xff] %vm9612, %v10803
        %10900 = vst.msk [vmem:[%s297 + $0x2f0] sm:$0xff] %vm9612, %v10804
        %10901 = vst.msk [vmem:[%s297 + $0x2f8] sm:$0xff] %vm9612, %v10805
      $region44: #{unet_down.1} parent=35 // pred_fallthru
        _
      %p10902 = scmp.lt.s32.totalorder %s19, 1
      %s10903 = scalar_select %p10902, %s19, 1
      %s10904 = smul.addr %s10903, 96
      %s10905 = smul.addr %s10904, 8
      %s10906 = scalar_lea.vmem %s4, %s10905
      // Predicated region
      $region45: #{unet_down.1} parent=35 // pred_check
        %p10907 = pneg %p152
      $region46: #{unet_down.1} parent=35 // pred_check_branch
        %10909 = sbr.rel (%p10907) target = $region48
      $region47: #{unet_down.1} parent=35 // pred_region
        _
      $region48: #{unet_down.1} parent=35 // pred_fallthru
        _
    $region36: #{unet_down.1} parent=5 // pred_fallthru
      _
    %p10910 = scmp.le.s32.totalorder 2, %s10
    // Predicated region
    $region49: #{unet_down.1} parent=5 // pred_check
      %p10911 = pneg %p10910
    $region50: #{unet_down.1} parent=5 // pred_check_branch
      %10913 = sbr.rel (%p10911) target = $region52
    $region51: #{unet_down.1} parent=5 // pred_region
      %s10914 = ssub.s32 %s10, 2
      // Predicated region
      $region53: #{unet_down.1} parent=51 // pred_check
        %p10915 = pneg %p158
      $region54: #{unet_down.1} parent=51 // pred_check_branch
        %10917 = sbr.rel (%p10915) target = $region56
      $region55: #{unet_down.1} parent=51 // pred_region
        %p10918 = scmp.lt.s32.totalorder %s21, 1
        %s10919 = scalar_select %p10918, %s21, 1
        %s10920 = smul.addr %s10919, 96
        %s10921 = smul.addr %s10920, 8
        %s10922 = scalar_lea.vmem %s4, %s10921
      $region56: #{unet_down.1} parent=51 // pred_fallthru
        _
    $region52: #{unet_down.1} parent=5 // pred_fallthru
      _
  $region6: #{unet_down.1} parent=0 // loop_footer
    %s14 = sadd.s32 1, %s10
  $region7: #{unet_down.1} parent=0 // loop_footer_branch
    %9 = sbr.rel target = $region3
  $region8: #{unet_down.1} parent=0 // loop_exit
    _

</llo_original>
